<compile_context>
chip_gen: v6e
topology: v6e:2x2x1
jax: 0.10.0
libtpu: 0.0.40
codegen_flags: <defaults>
</compile_context>

<pallas_src>
import math

import jax
import jax.numpy as jnp
from jax import lax
from jax.experimental import pallas as pl
from jax.experimental.pallas import tpu as pltpu

LN_EPS = 1e-5
NEG_INF = -1e9


# ----------------------------------------------------------------------------
# Single fused transformer kernel (encoder + decoder + fc_out, batch folded
# into the sublane axis, grid=(1,))
# ----------------------------------------------------------------------------

def _make_transformer_kernel(cfg, B, Ss, St):
    D = cfg["d_model"]
    V = cfg["vocab"]
    H = cfg["num_head"]
    Le = cfg["num_encoder_layers"]
    Ld = cfg["num_decoder_layers"]
    Dh = D // H
    emb_scale = float(math.sqrt(D))
    attn_scale = float(1.0 / math.sqrt(Dh))

    def kernel(src_ref, tgt_ref, emb_ref, pe_ref,
               qkv_w_ref, qkv_b_ref, out_w_ref, out_b_ref,
               w1_ref, b1_ref, w2_ref, b2_ref,
               ln_g_ref, ln_b_ref, fc_w_ref, fc_b_ref,
               logits_ref):
        emb = emb_ref[...]                                      # (V, D)

        def embed(tok_ref, S):
            # batch-major flatten of the (S, B) token ids -> (B*S, 1)
            tok = tok_ref[...]
            ids = jnp.concatenate([tok[:, b:b + 1] for b in range(B)], axis=0)
            onehot = (ids == lax.broadcasted_iota(jnp.int32, (B * S, V), 1)
                      ).astype(jnp.float32)
            x = jnp.dot(onehot, emb, preferred_element_type=jnp.float32) * emb_scale
            # reference quirk: pe is indexed by the BATCH index and broadcast over the sequence
            pe = jnp.concatenate(
                [jnp.broadcast_to(pe_ref[b:b + 1, :], (S, D)) for b in range(B)], axis=0)
            return x + pe

        def bd_mask(Sq, Sk):
            # block-diagonal additive mask (batch folded into sublanes), already stacked
            # along heads: shape (H*B*Sq, B*Sk)
            rb = jnp.concatenate(
                [jnp.full((Sq, 1), float(b), jnp.float32) for b in range(B)], axis=0)
            rb = jnp.concatenate([rb] * H, axis=0)
            cb = jnp.concatenate(
                [jnp.full((1, Sk), float(b), jnp.float32) for b in range(B)], axis=1)
            return jnp.where(rb == cb, 0.0, NEG_INF)

        def layernorm(y, idx):
            mean = jnp.mean(y, axis=-1, keepdims=True)
            var = jnp.mean((y - mean) ** 2, axis=-1, keepdims=True)
            return (y - mean) * lax.rsqrt(var + LN_EPS) * ln_g_ref[idx] + ln_b_ref[idx]

        def mha(x_q, x_kv, idx, mask_h, cross):
            rq = x_q.shape[0]
            if not cross:
                # fused QKV projection: one matmul for all heads
                qkv = (jnp.dot(x_q, qkv_w_ref[idx], preferred_element_type=jnp.float32)
                       + qkv_b_ref[idx])                         # (Rq, 3D)
                q_f, k_f, v_f = qkv[:, :D], qkv[:, D:2 * D], qkv[:, 2 * D:]
            else:
                w = qkv_w_ref[idx]                               # (D, 3D)
                bqkv = qkv_b_ref[idx]                            # (1, 3D)
                q_f = (jnp.dot(x_q, w[:, :D], preferred_element_type=jnp.float32)
                       + bqkv[:, :D])
                kv = (jnp.dot(x_kv, w[:, D:], preferred_element_type=jnp.float32)
                      + bqkv[:, D:])                             # (Rk, 2D)
                k_f, v_f = kv[:, :D], kv[:, D:]
            # per-head q·kᵀ (contract last dims, no transposes), heads stacked along the
            # sublane axis so the softmax (max/exp/sum/div) runs ONCE for all heads
            s = jnp.concatenate(
                [lax.dot_general(q_f[:, h * Dh:(h + 1) * Dh],
                                 k_f[:, h * Dh:(h + 1) * Dh],
                                 (((1,), (1,)), ((), ())),
                                 preferred_element_type=jnp.float32)
                 for h in range(H)], axis=0)                     # (H*Rq, Rk)
            s = s * attn_scale + mask_h
            m = jnp.max(s, axis=-1, keepdims=True)
            p = jnp.exp(s - m)
            p = p / jnp.sum(p, axis=-1, keepdims=True)           # exact divide (parity)
            # per-head context, lane-concatenated -> single (D, D) out-projection
            ctx = jnp.concatenate(
                [jnp.dot(p[h * rq:(h + 1) * rq], v_f[:, h * Dh:(h + 1) * Dh],
                         preferred_element_type=jnp.float32)
                 for h in range(H)], axis=-1)                    # (Rq, D)
            return (jnp.dot(ctx, out_w_ref[idx], preferred_element_type=jnp.float32)
                    + out_b_ref[idx])

        def ffn(x, idx):
            hcur = jnp.maximum(
                jnp.dot(x, w1_ref[idx], preferred_element_type=jnp.float32) + b1_ref[idx],
                0.0)
            return (jnp.dot(hcur, w2_ref[idx], preferred_element_type=jnp.float32)
                    + b2_ref[idx])

        mask_ss = bd_mask(Ss, Ss)
        mask_tt = bd_mask(St, St)
        mask_ts = bd_mask(St, Ss)

        # ---------------- encoder (post-norm, ReLU FFN) ----------------
        x = embed(src_ref, Ss)                                   # (B*Ss, D)
        ln = 0
        for l in range(Le):
            x = layernorm(x + mha(x, x, l, mask_ss, cross=False), ln); ln += 1
            x = layernorm(x + ffn(x, l), ln); ln += 1
        mem = layernorm(x, ln); ln += 1                          # final encoder LayerNorm

        # ---------------- decoder (self-attn, cross-attn, FFN) ----------------
        y = embed(tgt_ref, St)                                   # (B*St, D)
        for l in range(Ld):
            a_idx = Le + 2 * l
            y = layernorm(y + mha(y, y, a_idx, mask_tt, cross=False), ln); ln += 1
            y = layernorm(y + mha(y, mem, a_idx + 1, mask_ts, cross=True), ln); ln += 1
            y = layernorm(y + ffn(y, Le + l), ln); ln += 1
        y = layernorm(y, ln)                                     # final decoder LayerNorm

        # fc_out padded to a lane-dense Vp (sliced back to vocab on the host)
        logits_ref[...] = (jnp.dot(y, fc_w_ref[...], preferred_element_type=jnp.float32)
                           + fc_b_ref[...])

    return kernel


# ----------------------------------------------------------------------------
# pallas_call wrapper
# ----------------------------------------------------------------------------

_WEIGHT_ORDER = ("emb", "pe", "qkv_w", "qkv_b", "out_w", "out_b",
                 "w1", "b1", "w2", "b2", "ln_g", "ln_b", "fc_w", "fc_b")


def _full_spec(arr):
    nd = arr.ndim
    return pl.BlockSpec(arr.shape, lambda i, _nd=nd: (0,) * _nd)


def student_transformer_forward(packed, src, tgt, cfg):
    Ss, B = src.shape
    St = tgt.shape[0]
    V = cfg["vocab"]
    Vp = packed["fc_w"].shape[1]
    Rt = B * St

    kernel = _make_transformer_kernel(cfg, B, Ss, St)
    inputs = [src.astype(jnp.int32), tgt.astype(jnp.int32)] + [packed[n] for n in _WEIGHT_ORDER]

    out = pl.pallas_call(
        kernel,
        out_shape=jax.ShapeDtypeStruct((Rt, Vp), jnp.float32),
        grid=(1,),
        in_specs=[_full_spec(a) for a in inputs],
        out_specs=pl.BlockSpec((Rt, Vp), lambda i: (0, 0)),
        compiler_params=pltpu.CompilerParams(dimension_semantics=("arbitrary",)),
    )(*inputs)

    # (B*St, Vp) -> (St, B, V): seq-first layout like the PyTorch reference
    return out.reshape(B, St, Vp)[:, :, :V].transpose(1, 0, 2)


# ----------------------------------------------------------------------------
# Host-side weight packing (pre-transpose / stack into a few slabs — done once)
# ----------------------------------------------------------------------------

def pack_weights(params, cfg):
    D, F, V = cfg["d_model"], cfg["dim_feedforward"], cfg["vocab"]
    Vp = ((V + 127) // 128) * 128                 # lane-dense padded vocab

    qkv_w, qkv_b, out_w, out_b = [], [], [], []
    w1, b1, w2, b2 = [], [], [], []
    ln_g, ln_b = [], []

    def add_attn(p):
        qkv_w.append(p["in_w"].T[None])                       # (1, D, 3D) columns [Q|K|V]
        qkv_b.append(p["in_b"].reshape(1, 1, 3 * D))
        out_w.append(p["out_w"].T[None])                      # (1, D, D)
        out_b.append(p["out_b"].reshape(1, 1, D))

    def add_ffn(lp):
        w1.append(lp["w1"].T[None]); b1.append(lp["b1"].reshape(1, 1, F))
        w2.append(lp["w2"].T[None]); b2.append(lp["b2"].reshape(1, 1, D))

    def add_ln(g, b):
        ln_g.append(g.reshape(1, 1, D)); ln_b.append(b.reshape(1, 1, D))

    for lp in params["encoder_layers"]:
        add_attn(lp["self_attn"])
        add_ffn(lp)
        add_ln(lp["ln1_g"], lp["ln1_b"])
        add_ln(lp["ln2_g"], lp["ln2_b"])
    add_ln(params["enc_norm_g"], params["enc_norm_b"])        # final encoder norm
    for lp in params["decoder_layers"]:
        add_attn(lp["self_attn"])
        add_attn(lp["cross_attn"])
        add_ffn(lp)
        add_ln(lp["ln1_g"], lp["ln1_b"])
        add_ln(lp["ln2_g"], lp["ln2_b"])
        add_ln(lp["ln3_g"], lp["ln3_b"])
    add_ln(params["dec_norm_g"], params["dec_norm_b"])        # final decoder norm

    cat = lambda xs: jnp.concatenate(xs, axis=0)
    fc_w = jnp.zeros((D, Vp), jnp.float32).at[:, :V].set(params["fc_w"].T)
    fc_b = jnp.zeros((1, Vp), jnp.float32).at[:, :V].set(params["fc_b"].reshape(1, V))
    return dict(
        emb=params["embedding"].astype(jnp.float32),
        pe=params["pe"].astype(jnp.float32),
        qkv_w=cat(qkv_w), qkv_b=cat(qkv_b), out_w=cat(out_w), out_b=cat(out_b),
        w1=cat(w1), b1=cat(b1), w2=cat(w2), b2=cat(b2),
        ln_g=cat(ln_g), ln_b=cat(ln_b), fc_w=fc_w, fc_b=fc_b)


# ----------------------------------------------------------------------------
# Deterministic parameter initialization (PyTorch-layout params)
# ----------------------------------------------------------------------------

def make_pe(max_len, d_model):
    pos = jnp.arange(max_len, dtype=jnp.float32)[:, None]
    div = jnp.exp(jnp.arange(0, d_model, 2, dtype=jnp.float32)
                  * (-math.log(10000.0) / d_model))
    pe = jnp.zeros((max_len, d_model), jnp.float32)
    pe = pe.at[:, 0::2].set(jnp.sin(pos * div))
    pe = pe.at[:, 1::2].set(jnp.cos(pos * div))
    return pe


def _mha_params(key, d_model):
    k1, k2 = jax.random.split(key)
    return {
        "in_w": 0.05 * jax.random.normal(k1, (3 * d_model, d_model), jnp.float32),
        "in_b": jnp.zeros((3 * d_model,), jnp.float32),
        "out_w": 0.05 * jax.random.normal(k2, (d_model, d_model), jnp.float32),
        "out_b": jnp.zeros((d_model,), jnp.float32),
    }


def _enc_layer_params(key, d_model, dff):
    k1, k2, k3 = jax.random.split(key, 3)
    return {
        "self_attn": _mha_params(k1, d_model),
        "w1": 0.05 * jax.random.normal(k2, (dff, d_model), jnp.float32),
        "b1": jnp.zeros((dff,), jnp.float32),
        "w2": 0.05 * jax.random.normal(k3, (d_model, dff), jnp.float32),
        "b2": jnp.zeros((d_model,), jnp.float32),
        "ln1_g": jnp.ones((d_model,), jnp.float32),
        "ln1_b": jnp.zeros((d_model,), jnp.float32),
        "ln2_g": jnp.ones((d_model,), jnp.float32),
        "ln2_b": jnp.zeros((d_model,), jnp.float32),
    }


def _dec_layer_params(key, d_model, dff):
    k1, k2, k3, k4 = jax.random.split(key, 4)
    return {
        "self_attn": _mha_params(k1, d_model),
        "cross_attn": _mha_params(k2, d_model),
        "w1": 0.05 * jax.random.normal(k3, (dff, d_model), jnp.float32),
        "b1": jnp.zeros((dff,), jnp.float32),
        "w2": 0.05 * jax.random.normal(k4, (d_model, dff), jnp.float32),
        "b2": jnp.zeros((d_model,), jnp.float32),
        "ln1_g": jnp.ones((d_model,), jnp.float32),
        "ln1_b": jnp.zeros((d_model,), jnp.float32),
        "ln2_g": jnp.ones((d_model,), jnp.float32),
        "ln2_b": jnp.zeros((d_model,), jnp.float32),
        "ln3_g": jnp.ones((d_model,), jnp.float32),
        "ln3_b": jnp.zeros((d_model,), jnp.float32),
    }


def init_params(key, cfg):
    V, D, F = cfg["vocab"], cfg["d_model"], cfg["dim_feedforward"]
    keys = jax.random.split(key, 4 + cfg["num_encoder_layers"] + cfg["num_decoder_layers"])
    ki = iter(keys)
    return {
        "embedding": 0.05 * jax.random.normal(next(ki), (V, D), jnp.float32),
        "pe": make_pe(cfg["max_len"], D),
        "encoder_layers": [_enc_layer_params(next(ki), D, F)
                           for _ in range(cfg["num_encoder_layers"])],
        "decoder_layers": [_dec_layer_params(next(ki), D, F)
                           for _ in range(cfg["num_decoder_layers"])],
        "enc_norm_g": jnp.ones((D,), jnp.float32),
        "enc_norm_b": jnp.zeros((D,), jnp.float32),
        "dec_norm_g": jnp.ones((D,), jnp.float32),
        "dec_norm_b": jnp.zeros((D,), jnp.float32),
        "fc_w": 0.05 * jax.random.normal(next(ki), (V, D), jnp.float32),
        "fc_b": jnp.zeros((V,), jnp.float32),
    }


# ----------------------------------------------------------------------------
# main
# ----------------------------------------------------------------------------

if __name__ == "__main__":
    cfg = dict(vocab=50, d_model=32, num_head=4,
               num_encoder_layers=2, num_decoder_layers=2,
               dim_feedforward=64, max_len=64)

    key = jax.random.PRNGKey(0)
    kp, ks, kt = jax.random.split(key, 3)
    params = init_params(kp, cfg)

    # one-time host-side weight packing (pre-transpose + slab stacking)
    packed = pack_weights(params, cfg)

    src_len, tgt_len, batch = 8, 8, 2
    src = jax.random.randint(ks, (src_len, batch), 0, cfg["vocab"], dtype=jnp.int32)
    tgt = jax.random.randint(kt, (tgt_len, batch), 0, cfg["vocab"], dtype=jnp.int32)

    logits = student_transformer_forward(packed, src, tgt, cfg)
    logits = jax.block_until_ready(logits)

    assert logits.shape == (tgt_len, batch, cfg["vocab"]), logits.shape
    assert bool(jnp.all(jnp.isfinite(logits))), "non-finite logits"
    print("KERNEL_OK")
</pallas_src>

<mosaic_0001>
module attributes {stable_mosaic.version = 11 : i64} {
  func.func @kernel(%arg0: i32, %arg1: memref<8x2xi32, #tpu.memory_space<vmem>>, %arg2: memref<8x2xi32, #tpu.memory_space<vmem>>, %arg3: memref<50x32xf32, #tpu.memory_space<vmem>>, %arg4: memref<64x32xf32, #tpu.memory_space<vmem>>, %arg5: memref<6x32x96xf32, #tpu.memory_space<vmem>>, %arg6: memref<6x1x96xf32, #tpu.memory_space<vmem>>, %arg7: memref<6x32x32xf32, #tpu.memory_space<vmem>>, %arg8: memref<6x1x32xf32, #tpu.memory_space<vmem>>, %arg9: memref<4x32x64xf32, #tpu.memory_space<vmem>>, %arg10: memref<4x1x64xf32, #tpu.memory_space<vmem>>, %arg11: memref<4x64x32xf32, #tpu.memory_space<vmem>>, %arg12: memref<4x1x32xf32, #tpu.memory_space<vmem>>, %arg13: memref<12x1x32xf32, #tpu.memory_space<vmem>>, %arg14: memref<12x1x32xf32, #tpu.memory_space<vmem>>, %arg15: memref<32x128xf32, #tpu.memory_space<vmem>>, %arg16: memref<1x128xf32, #tpu.memory_space<vmem>>, %arg17: memref<16x128xf32, #tpu.memory_space<vmem>>) attributes {dimension_semantics = [#tpu.dimension_semantics<arbitrary>], iteration_bounds = array<i64: 1>, scalar_prefetch = 0 : i64, scratch_operands = 0 : i64, tpu.core_type = #tpu.core_type<tc>, window_params = [{pipeline_mode = #tpu.pipeline_mode<synchronous>, transform_indices = @transform_0, window_bounds = array<i64: 8, 2>}, {pipeline_mode = #tpu.pipeline_mode<synchronous>, transform_indices = @transform_1, window_bounds = array<i64: 8, 2>}, {pipeline_mode = #tpu.pipeline_mode<synchronous>, transform_indices = @transform_2, window_bounds = array<i64: 50, 32>}, {pipeline_mode = #tpu.pipeline_mode<synchronous>, transform_indices = @transform_3, window_bounds = array<i64: 64, 32>}, {pipeline_mode = #tpu.pipeline_mode<synchronous>, transform_indices = @transform_4, window_bounds = array<i64: 6, 32, 96>}, {pipeline_mode = #tpu.pipeline_mode<synchronous>, transform_indices = @transform_5, window_bounds = array<i64: 6, 1, 96>}, {pipeline_mode = #tpu.pipeline_mode<synchronous>, transform_indices = @transform_6, window_bounds = array<i64: 6, 32, 32>}, {pipeline_mode = #tpu.pipeline_mode<synchronous>, transform_indices = @transform_7, window_bounds = array<i64: 6, 1, 32>}, {pipeline_mode = #tpu.pipeline_mode<synchronous>, transform_indices = @transform_8, window_bounds = array<i64: 4, 32, 64>}, {pipeline_mode = #tpu.pipeline_mode<synchronous>, transform_indices = @transform_9, window_bounds = array<i64: 4, 1, 64>}, {pipeline_mode = #tpu.pipeline_mode<synchronous>, transform_indices = @transform_10, window_bounds = array<i64: 4, 64, 32>}, {pipeline_mode = #tpu.pipeline_mode<synchronous>, transform_indices = @transform_11, window_bounds = array<i64: 4, 1, 32>}, {pipeline_mode = #tpu.pipeline_mode<synchronous>, transform_indices = @transform_12, window_bounds = array<i64: 12, 1, 32>}, {pipeline_mode = #tpu.pipeline_mode<synchronous>, transform_indices = @transform_13, window_bounds = array<i64: 12, 1, 32>}, {pipeline_mode = #tpu.pipeline_mode<synchronous>, transform_indices = @transform_14, window_bounds = array<i64: 32, 128>}, {pipeline_mode = #tpu.pipeline_mode<synchronous>, transform_indices = @transform_15, window_bounds = array<i64: 1, 128>}, {pipeline_mode = #tpu.pipeline_mode<synchronous>, transform_indices = @transform_16, window_bounds = array<i64: 16, 128>}]} {
    %c0 = arith.constant 0 : index
    %c0_0 = arith.constant 0 : index
    %0 = vector.load %arg3[%c0, %c0_0] : memref<50x32xf32, #tpu.memory_space<vmem>>, vector<50x32xf32>
    %cst = arith.constant 0.000000e+00 : f32
    %1 = vector.broadcast %cst : f32 to vector<8x1xf32>
    %cst_1 = arith.constant 1.000000e+00 : f32
    %2 = vector.broadcast %cst_1 : f32 to vector<8x1xf32>
    %3 = tpu.concatenate %1, %2 in 0 : vector<8x1xf32>, vector<8x1xf32> -> vector<16x1xf32>
    %4 = tpu.concatenate %3, %3, %3, %3 in 0 : vector<16x1xf32>, vector<16x1xf32>, vector<16x1xf32>, vector<16x1xf32> -> vector<64x1xf32>
    %cst_2 = arith.constant 0.000000e+00 : f32
    %5 = vector.broadcast %cst_2 : f32 to vector<1x8xf32>
    %cst_3 = arith.constant 1.000000e+00 : f32
    %6 = vector.broadcast %cst_3 : f32 to vector<1x8xf32>
    %7 = tpu.concatenate %5, %6 in 1 : vector<1x8xf32>, vector<1x8xf32> -> vector<1x16xf32>
    %8 = vector.broadcast %4 : vector<64x1xf32> to vector<64x16xf32>
    %9 = vector.broadcast %7 : vector<1x16xf32> to vector<64x16xf32>
    %10 = arith.cmpf oeq, %8, %9 : vector<64x16xf32>
    %cst_4 = arith.constant 0.000000e+00 : f32
    %cst_5 = arith.constant -1.000000e+09 : f32
    %11 = vector.broadcast %cst_4 : f32 to vector<64x16xf32>
    %12 = vector.broadcast %cst_5 : f32 to vector<64x16xf32>
    %13 = arith.select %10, %11, %12 : vector<64x16xi1>, vector<64x16xf32>
    %cst_6 = arith.constant 0.000000e+00 : f32
    %14 = vector.broadcast %cst_6 : f32 to vector<8x1xf32>
    %cst_7 = arith.constant 1.000000e+00 : f32
    %15 = vector.broadcast %cst_7 : f32 to vector<8x1xf32>
    %16 = tpu.concatenate %14, %15 in 0 : vector<8x1xf32>, vector<8x1xf32> -> vector<16x1xf32>
    %17 = tpu.concatenate %16, %16, %16, %16 in 0 : vector<16x1xf32>, vector<16x1xf32>, vector<16x1xf32>, vector<16x1xf32> -> vector<64x1xf32>
    %cst_8 = arith.constant 0.000000e+00 : f32
    %18 = vector.broadcast %cst_8 : f32 to vector<1x8xf32>
    %cst_9 = arith.constant 1.000000e+00 : f32
    %19 = vector.broadcast %cst_9 : f32 to vector<1x8xf32>
    %20 = tpu.concatenate %18, %19 in 1 : vector<1x8xf32>, vector<1x8xf32> -> vector<1x16xf32>
    %21 = vector.broadcast %17 : vector<64x1xf32> to vector<64x16xf32>
    %22 = vector.broadcast %20 : vector<1x16xf32> to vector<64x16xf32>
    %23 = arith.cmpf oeq, %21, %22 : vector<64x16xf32>
    %cst_10 = arith.constant 0.000000e+00 : f32
    %cst_11 = arith.constant -1.000000e+09 : f32
    %24 = vector.broadcast %cst_10 : f32 to vector<64x16xf32>
    %25 = vector.broadcast %cst_11 : f32 to vector<64x16xf32>
    %26 = arith.select %23, %24, %25 : vector<64x16xi1>, vector<64x16xf32>
    %cst_12 = arith.constant 0.000000e+00 : f32
    %27 = vector.broadcast %cst_12 : f32 to vector<8x1xf32>
    %cst_13 = arith.constant 1.000000e+00 : f32
    %28 = vector.broadcast %cst_13 : f32 to vector<8x1xf32>
    %29 = tpu.concatenate %27, %28 in 0 : vector<8x1xf32>, vector<8x1xf32> -> vector<16x1xf32>
    %30 = tpu.concatenate %29, %29, %29, %29 in 0 : vector<16x1xf32>, vector<16x1xf32>, vector<16x1xf32>, vector<16x1xf32> -> vector<64x1xf32>
    %cst_14 = arith.constant 0.000000e+00 : f32
    %31 = vector.broadcast %cst_14 : f32 to vector<1x8xf32>
    %cst_15 = arith.constant 1.000000e+00 : f32
    %32 = vector.broadcast %cst_15 : f32 to vector<1x8xf32>
    %33 = tpu.concatenate %31, %32 in 1 : vector<1x8xf32>, vector<1x8xf32> -> vector<1x16xf32>
    %34 = vector.broadcast %30 : vector<64x1xf32> to vector<64x16xf32>
    %35 = vector.broadcast %33 : vector<1x16xf32> to vector<64x16xf32>
    %36 = arith.cmpf oeq, %34, %35 : vector<64x16xf32>
    %cst_16 = arith.constant 0.000000e+00 : f32
    %cst_17 = arith.constant -1.000000e+09 : f32
    %37 = vector.broadcast %cst_16 : f32 to vector<64x16xf32>
    %38 = vector.broadcast %cst_17 : f32 to vector<64x16xf32>
    %39 = arith.select %36, %37, %38 : vector<64x16xi1>, vector<64x16xf32>
    %c0_18 = arith.constant 0 : index
    %c0_19 = arith.constant 0 : index
    %40 = vector.load %arg1[%c0_18, %c0_19] : memref<8x2xi32, #tpu.memory_space<vmem>>, vector<8x2xi32>
    %41 = vector.extract_strided_slice %40 {offsets = [0, 0], sizes = [8, 1], strides = [1, 1]} : vector<8x2xi32> to vector<8x1xi32>
    %42 = vector.extract_strided_slice %40 {offsets = [0, 1], sizes = [8, 1], strides = [1, 1]} : vector<8x2xi32> to vector<8x1xi32>
    %43 = tpu.concatenate %41, %42 in 0 : vector<8x1xi32>, vector<8x1xi32> -> vector<16x1xi32>
    %44 = tpu.iota {dimensions = array<i32: 1>} : vector<16x50xi32>
    %45 = vector.broadcast %43 : vector<16x1xi32> to vector<16x50xi32>
    %46 = arith.cmpi eq, %45, %44 : vector<16x50xi32>
    %47 = arith.extui %46 : vector<16x50xi1> to vector<16x50xi32>
    %48 = arith.sitofp %47 : vector<16x50xi32> to vector<16x50xf32>
    %cst_20 = arith.constant dense<0.000000e+00> : vector<16x32xf32>
    %49 = tpu.matmul %48, %0, %cst_20 {dimension_numbers = #tpu.dot_dimension_numbers<[1], [0], [0], [1], [0, 0, 1, 1], [], []>} : vector<16x50xf32>, vector<50x32xf32>, vector<16x32xf32> -> vector<16x32xf32>
    %cst_21 = arith.constant 5.65685415 : f32
    %50 = vector.broadcast %cst_21 : f32 to vector<16x32xf32>
    %51 = arith.mulf %49, %50 : vector<16x32xf32>
    %c0_22 = arith.constant 0 : index
    %c0_23 = arith.constant 0 : index
    %52 = vector.load %arg4[%c0_22, %c0_23] : memref<64x32xf32, #tpu.memory_space<vmem>>, vector<1x32xf32>
    %53 = vector.shape_cast %52 : vector<1x32xf32> to vector<1x32xf32>
    %54 = vector.broadcast %53 : vector<1x32xf32> to vector<8x32xf32>
    %c1 = arith.constant 1 : index
    %c0_24 = arith.constant 0 : index
    %55 = vector.load %arg4[%c1, %c0_24] : memref<64x32xf32, #tpu.memory_space<vmem>>, vector<1x32xf32>
    %56 = vector.shape_cast %55 : vector<1x32xf32> to vector<1x32xf32>
    %57 = vector.broadcast %56 : vector<1x32xf32> to vector<8x32xf32>
    %58 = tpu.concatenate %54, %57 in 0 : vector<8x32xf32>, vector<8x32xf32> -> vector<16x32xf32>
    %59 = arith.addf %51, %58 : vector<16x32xf32>
    %c0_25 = arith.constant 0 : index
    %c0_26 = arith.constant 0 : index
    %c0_27 = arith.constant 0 : index
    %60 = vector.load %arg5[%c0_25, %c0_26, %c0_27] : memref<6x32x96xf32, #tpu.memory_space<vmem>>, vector<1x32x96xf32>
    %61 = vector.shape_cast %60 : vector<1x32x96xf32> to vector<32x96xf32>
    %cst_28 = arith.constant dense<0.000000e+00> : vector<16x96xf32>
    %62 = tpu.matmul %59, %61, %cst_28 {dimension_numbers = #tpu.dot_dimension_numbers<[1], [0], [0], [1], [0, 0, 1, 1], [], []>} : vector<16x32xf32>, vector<32x96xf32>, vector<16x96xf32> -> vector<16x96xf32>
    %c0_29 = arith.constant 0 : index
    %c0_30 = arith.constant 0 : index
    %c0_31 = arith.constant 0 : index
    %63 = vector.load %arg6[%c0_29, %c0_30, %c0_31] : memref<6x1x96xf32, #tpu.memory_space<vmem>>, vector<1x1x96xf32>
    %64 = vector.shape_cast %63 : vector<1x1x96xf32> to vector<1x96xf32>
    %65 = vector.broadcast %64 : vector<1x96xf32> to vector<16x96xf32>
    %66 = arith.addf %62, %65 : vector<16x96xf32>
    %67 = vector.extract_strided_slice %66 {offsets = [0, 0], sizes = [16, 32], strides = [1, 1]} : vector<16x96xf32> to vector<16x32xf32>
    %68 = vector.extract_strided_slice %66 {offsets = [0, 32], sizes = [16, 32], strides = [1, 1]} : vector<16x96xf32> to vector<16x32xf32>
    %69 = vector.extract_strided_slice %66 {offsets = [0, 64], sizes = [16, 32], strides = [1, 1]} : vector<16x96xf32> to vector<16x32xf32>
    %70 = vector.extract_strided_slice %67 {offsets = [0, 0], sizes = [16, 8], strides = [1, 1]} : vector<16x32xf32> to vector<16x8xf32>
    %71 = vector.extract_strided_slice %68 {offsets = [0, 0], sizes = [16, 8], strides = [1, 1]} : vector<16x32xf32> to vector<16x8xf32>
    %cst_32 = arith.constant dense<0.000000e+00> : vector<16x16xf32>
    %72 = tpu.matmul %70, %71, %cst_32 {dimension_numbers = #tpu.dot_dimension_numbers<[1], [1], [0], [0], [0, 0, 1, 0], [], []>} : vector<16x8xf32>, vector<16x8xf32>, vector<16x16xf32> -> vector<16x16xf32>
    %73 = vector.extract_strided_slice %67 {offsets = [0, 8], sizes = [16, 8], strides = [1, 1]} : vector<16x32xf32> to vector<16x8xf32>
    %74 = vector.extract_strided_slice %68 {offsets = [0, 8], sizes = [16, 8], strides = [1, 1]} : vector<16x32xf32> to vector<16x8xf32>
    %cst_33 = arith.constant dense<0.000000e+00> : vector<16x16xf32>
    %75 = tpu.matmul %73, %74, %cst_33 {dimension_numbers = #tpu.dot_dimension_numbers<[1], [1], [0], [0], [0, 0, 1, 0], [], []>} : vector<16x8xf32>, vector<16x8xf32>, vector<16x16xf32> -> vector<16x16xf32>
    %76 = vector.extract_strided_slice %67 {offsets = [0, 16], sizes = [16, 8], strides = [1, 1]} : vector<16x32xf32> to vector<16x8xf32>
    %77 = vector.extract_strided_slice %68 {offsets = [0, 16], sizes = [16, 8], strides = [1, 1]} : vector<16x32xf32> to vector<16x8xf32>
    %cst_34 = arith.constant dense<0.000000e+00> : vector<16x16xf32>
    %78 = tpu.matmul %76, %77, %cst_34 {dimension_numbers = #tpu.dot_dimension_numbers<[1], [1], [0], [0], [0, 0, 1, 0], [], []>} : vector<16x8xf32>, vector<16x8xf32>, vector<16x16xf32> -> vector<16x16xf32>
    %79 = vector.extract_strided_slice %67 {offsets = [0, 24], sizes = [16, 8], strides = [1, 1]} : vector<16x32xf32> to vector<16x8xf32>
    %80 = vector.extract_strided_slice %68 {offsets = [0, 24], sizes = [16, 8], strides = [1, 1]} : vector<16x32xf32> to vector<16x8xf32>
    %cst_35 = arith.constant dense<0.000000e+00> : vector<16x16xf32>
    %81 = tpu.matmul %79, %80, %cst_35 {dimension_numbers = #tpu.dot_dimension_numbers<[1], [1], [0], [0], [0, 0, 1, 0], [], []>} : vector<16x8xf32>, vector<16x8xf32>, vector<16x16xf32> -> vector<16x16xf32>
    %82 = tpu.concatenate %72, %75, %78, %81 in 0 : vector<16x16xf32>, vector<16x16xf32>, vector<16x16xf32>, vector<16x16xf32> -> vector<64x16xf32>
    %cst_36 = arith.constant 0.353553385 : f32
    %83 = vector.broadcast %cst_36 : f32 to vector<64x16xf32>
    %84 = arith.mulf %82, %83 : vector<64x16xf32>
    %85 = arith.addf %84, %13 : vector<64x16xf32>
    %cst_37 = arith.constant dense<0xFF800000> : vector<64xf32>
    %86 = vector.multi_reduction <maximumf>, %85, %cst_37 [1] : vector<64x16xf32> to vector<64xf32>
    %87 = vector.shape_cast %86 : vector<64xf32> to vector<64x1xf32>
    %88 = vector.broadcast %87 : vector<64x1xf32> to vector<64x16xf32>
    %89 = arith.subf %85, %88 : vector<64x16xf32>
    %90 = math.exp %89 : vector<64x16xf32>
    %cst_38 = arith.constant dense<0.000000e+00> : vector<64xf32>
    %91 = vector.multi_reduction <add>, %90, %cst_38 [1] : vector<64x16xf32> to vector<64xf32>
    %92 = vector.shape_cast %91 : vector<64xf32> to vector<64x1xf32>
    %93 = vector.broadcast %92 : vector<64x1xf32> to vector<64x16xf32>
    %94 = arith.divf %90, %93 : vector<64x16xf32>
    %95 = vector.extract_strided_slice %94 {offsets = [0, 0], sizes = [16, 16], strides = [1, 1]} : vector<64x16xf32> to vector<16x16xf32>
    %96 = vector.extract_strided_slice %69 {offsets = [0, 0], sizes = [16, 8], strides = [1, 1]} : vector<16x32xf32> to vector<16x8xf32>
    %cst_39 = arith.constant dense<0.000000e+00> : vector<16x8xf32>
    %97 = tpu.matmul %95, %96, %cst_39 {dimension_numbers = #tpu.dot_dimension_numbers<[1], [0], [0], [1], [0, 0, 1, 1], [], []>} : vector<16x16xf32>, vector<16x8xf32>, vector<16x8xf32> -> vector<16x8xf32>
    %98 = vector.extract_strided_slice %94 {offsets = [16, 0], sizes = [16, 16], strides = [1, 1]} : vector<64x16xf32> to vector<16x16xf32>
    %99 = vector.extract_strided_slice %69 {offsets = [0, 8], sizes = [16, 8], strides = [1, 1]} : vector<16x32xf32> to vector<16x8xf32>
    %cst_40 = arith.constant dense<0.000000e+00> : vector<16x8xf32>
    %100 = tpu.matmul %98, %99, %cst_40 {dimension_numbers = #tpu.dot_dimension_numbers<[1], [0], [0], [1], [0, 0, 1, 1], [], []>} : vector<16x16xf32>, vector<16x8xf32>, vector<16x8xf32> -> vector<16x8xf32>
    %101 = vector.extract_strided_slice %94 {offsets = [32, 0], sizes = [16, 16], strides = [1, 1]} : vector<64x16xf32> to vector<16x16xf32>
    %102 = vector.extract_strided_slice %69 {offsets = [0, 16], sizes = [16, 8], strides = [1, 1]} : vector<16x32xf32> to vector<16x8xf32>
    %cst_41 = arith.constant dense<0.000000e+00> : vector<16x8xf32>
    %103 = tpu.matmul %101, %102, %cst_41 {dimension_numbers = #tpu.dot_dimension_numbers<[1], [0], [0], [1], [0, 0, 1, 1], [], []>} : vector<16x16xf32>, vector<16x8xf32>, vector<16x8xf32> -> vector<16x8xf32>
    %104 = vector.extract_strided_slice %94 {offsets = [48, 0], sizes = [16, 16], strides = [1, 1]} : vector<64x16xf32> to vector<16x16xf32>
    %105 = vector.extract_strided_slice %69 {offsets = [0, 24], sizes = [16, 8], strides = [1, 1]} : vector<16x32xf32> to vector<16x8xf32>
    %cst_42 = arith.constant dense<0.000000e+00> : vector<16x8xf32>
    %106 = tpu.matmul %104, %105, %cst_42 {dimension_numbers = #tpu.dot_dimension_numbers<[1], [0], [0], [1], [0, 0, 1, 1], [], []>} : vector<16x16xf32>, vector<16x8xf32>, vector<16x8xf32> -> vector<16x8xf32>
    %107 = tpu.concatenate %97, %100, %103, %106 in 1 : vector<16x8xf32>, vector<16x8xf32>, vector<16x8xf32>, vector<16x8xf32> -> vector<16x32xf32>
    %c0_43 = arith.constant 0 : index
    %c0_44 = arith.constant 0 : index
    %c0_45 = arith.constant 0 : index
    %108 = vector.load %arg7[%c0_43, %c0_44, %c0_45] : memref<6x32x32xf32, #tpu.memory_space<vmem>>, vector<1x32x32xf32>
    %109 = vector.shape_cast %108 : vector<1x32x32xf32> to vector<32x32xf32>
    %cst_46 = arith.constant dense<0.000000e+00> : vector<16x32xf32>
    %110 = tpu.matmul %107, %109, %cst_46 {dimension_numbers = #tpu.dot_dimension_numbers<[1], [0], [0], [1], [0, 0, 1, 1], [], []>} : vector<16x32xf32>, vector<32x32xf32>, vector<16x32xf32> -> vector<16x32xf32>
    %c0_47 = arith.constant 0 : index
    %c0_48 = arith.constant 0 : index
    %c0_49 = arith.constant 0 : index
    %111 = vector.load %arg8[%c0_47, %c0_48, %c0_49] : memref<6x1x32xf32, #tpu.memory_space<vmem>>, vector<1x1x32xf32>
    %112 = vector.shape_cast %111 : vector<1x1x32xf32> to vector<1x32xf32>
    %113 = vector.broadcast %112 : vector<1x32xf32> to vector<16x32xf32>
    %114 = arith.addf %110, %113 : vector<16x32xf32>
    %115 = arith.addf %59, %114 : vector<16x32xf32>
    %cst_50 = arith.constant dense<0.000000e+00> : vector<16xf32>
    %116 = vector.multi_reduction <add>, %115, %cst_50 [1] : vector<16x32xf32> to vector<16xf32>
    %117 = vector.shape_cast %116 : vector<16xf32> to vector<16x1xf32>
    %cst_51 = arith.constant 3.200000e+01 : f32
    %118 = vector.broadcast %cst_51 : f32 to vector<16x1xf32>
    %119 = arith.divf %117, %118 : vector<16x1xf32>
    %120 = vector.broadcast %119 : vector<16x1xf32> to vector<16x32xf32>
    %121 = arith.subf %115, %120 : vector<16x32xf32>
    %122 = arith.mulf %121, %121 : vector<16x32xf32>
    %cst_52 = arith.constant dense<0.000000e+00> : vector<16xf32>
    %123 = vector.multi_reduction <add>, %122, %cst_52 [1] : vector<16x32xf32> to vector<16xf32>
    %124 = vector.shape_cast %123 : vector<16xf32> to vector<16x1xf32>
    %cst_53 = arith.constant 3.200000e+01 : f32
    %125 = vector.broadcast %cst_53 : f32 to vector<16x1xf32>
    %126 = arith.divf %124, %125 : vector<16x1xf32>
    %127 = vector.broadcast %119 : vector<16x1xf32> to vector<16x32xf32>
    %128 = arith.subf %115, %127 : vector<16x32xf32>
    %cst_54 = arith.constant 9.99999974E-6 : f32
    %129 = vector.broadcast %cst_54 : f32 to vector<16x1xf32>
    %130 = arith.addf %126, %129 : vector<16x1xf32>
    %131 = math.rsqrt %130 : vector<16x1xf32>
    %132 = vector.broadcast %131 : vector<16x1xf32> to vector<16x32xf32>
    %133 = arith.mulf %128, %132 : vector<16x32xf32>
    %c0_55 = arith.constant 0 : index
    %c0_56 = arith.constant 0 : index
    %c0_57 = arith.constant 0 : index
    %134 = vector.load %arg13[%c0_55, %c0_56, %c0_57] : memref<12x1x32xf32, #tpu.memory_space<vmem>>, vector<1x1x32xf32>
    %135 = vector.shape_cast %134 : vector<1x1x32xf32> to vector<1x32xf32>
    %136 = vector.broadcast %135 : vector<1x32xf32> to vector<16x32xf32>
    %137 = arith.mulf %133, %136 : vector<16x32xf32>
    %c0_58 = arith.constant 0 : index
    %c0_59 = arith.constant 0 : index
    %c0_60 = arith.constant 0 : index
    %138 = vector.load %arg14[%c0_58, %c0_59, %c0_60] : memref<12x1x32xf32, #tpu.memory_space<vmem>>, vector<1x1x32xf32>
    %139 = vector.shape_cast %138 : vector<1x1x32xf32> to vector<1x32xf32>
    %140 = vector.broadcast %139 : vector<1x32xf32> to vector<16x32xf32>
    %141 = arith.addf %137, %140 : vector<16x32xf32>
    %c0_61 = arith.constant 0 : index
    %c0_62 = arith.constant 0 : index
    %c0_63 = arith.constant 0 : index
    %142 = vector.load %arg9[%c0_61, %c0_62, %c0_63] : memref<4x32x64xf32, #tpu.memory_space<vmem>>, vector<1x32x64xf32>
    %143 = vector.shape_cast %142 : vector<1x32x64xf32> to vector<32x64xf32>
    %cst_64 = arith.constant dense<0.000000e+00> : vector<16x64xf32>
    %144 = tpu.matmul %141, %143, %cst_64 {dimension_numbers = #tpu.dot_dimension_numbers<[1], [0], [0], [1], [0, 0, 1, 1], [], []>} : vector<16x32xf32>, vector<32x64xf32>, vector<16x64xf32> -> vector<16x64xf32>
    %c0_65 = arith.constant 0 : index
    %c0_66 = arith.constant 0 : index
    %c0_67 = arith.constant 0 : index
    %145 = vector.load %arg10[%c0_65, %c0_66, %c0_67] : memref<4x1x64xf32, #tpu.memory_space<vmem>>, vector<1x1x64xf32>
    %146 = vector.shape_cast %145 : vector<1x1x64xf32> to vector<1x64xf32>
    %147 = vector.broadcast %146 : vector<1x64xf32> to vector<16x64xf32>
    %148 = arith.addf %144, %147 : vector<16x64xf32>
    %cst_68 = arith.constant 0.000000e+00 : f32
    %149 = vector.broadcast %cst_68 : f32 to vector<16x64xf32>
    %150 = arith.maximumf %148, %149 : vector<16x64xf32>
    %c0_69 = arith.constant 0 : index
    %c0_70 = arith.constant 0 : index
    %c0_71 = arith.constant 0 : index
    %151 = vector.load %arg11[%c0_69, %c0_70, %c0_71] : memref<4x64x32xf32, #tpu.memory_space<vmem>>, vector<1x64x32xf32>
    %152 = vector.shape_cast %151 : vector<1x64x32xf32> to vector<64x32xf32>
    %cst_72 = arith.constant dense<0.000000e+00> : vector<16x32xf32>
    %153 = tpu.matmul %150, %152, %cst_72 {dimension_numbers = #tpu.dot_dimension_numbers<[1], [0], [0], [1], [0, 0, 1, 1], [], []>} : vector<16x64xf32>, vector<64x32xf32>, vector<16x32xf32> -> vector<16x32xf32>
    %c0_73 = arith.constant 0 : index
    %c0_74 = arith.constant 0 : index
    %c0_75 = arith.constant 0 : index
    %154 = vector.load %arg12[%c0_73, %c0_74, %c0_75] : memref<4x1x32xf32, #tpu.memory_space<vmem>>, vector<1x1x32xf32>
    %155 = vector.shape_cast %154 : vector<1x1x32xf32> to vector<1x32xf32>
    %156 = vector.broadcast %155 : vector<1x32xf32> to vector<16x32xf32>
    %157 = arith.addf %153, %156 : vector<16x32xf32>
    %158 = arith.addf %141, %157 : vector<16x32xf32>
    %cst_76 = arith.constant dense<0.000000e+00> : vector<16xf32>
    %159 = vector.multi_reduction <add>, %158, %cst_76 [1] : vector<16x32xf32> to vector<16xf32>
    %160 = vector.shape_cast %159 : vector<16xf32> to vector<16x1xf32>
    %cst_77 = arith.constant 3.200000e+01 : f32
    %161 = vector.broadcast %cst_77 : f32 to vector<16x1xf32>
    %162 = arith.divf %160, %161 : vector<16x1xf32>
    %163 = vector.broadcast %162 : vector<16x1xf32> to vector<16x32xf32>
    %164 = arith.subf %158, %163 : vector<16x32xf32>
    %165 = arith.mulf %164, %164 : vector<16x32xf32>
    %cst_78 = arith.constant dense<0.000000e+00> : vector<16xf32>
    %166 = vector.multi_reduction <add>, %165, %cst_78 [1] : vector<16x32xf32> to vector<16xf32>
    %167 = vector.shape_cast %166 : vector<16xf32> to vector<16x1xf32>
    %cst_79 = arith.constant 3.200000e+01 : f32
    %168 = vector.broadcast %cst_79 : f32 to vector<16x1xf32>
    %169 = arith.divf %167, %168 : vector<16x1xf32>
    %170 = vector.broadcast %162 : vector<16x1xf32> to vector<16x32xf32>
    %171 = arith.subf %158, %170 : vector<16x32xf32>
    %cst_80 = arith.constant 9.99999974E-6 : f32
    %172 = vector.broadcast %cst_80 : f32 to vector<16x1xf32>
    %173 = arith.addf %169, %172 : vector<16x1xf32>
    %174 = math.rsqrt %173 : vector<16x1xf32>
    %175 = vector.broadcast %174 : vector<16x1xf32> to vector<16x32xf32>
    %176 = arith.mulf %171, %175 : vector<16x32xf32>
    %c1_81 = arith.constant 1 : index
    %c0_82 = arith.constant 0 : index
    %c0_83 = arith.constant 0 : index
    %177 = vector.load %arg13[%c1_81, %c0_82, %c0_83] : memref<12x1x32xf32, #tpu.memory_space<vmem>>, vector<1x1x32xf32>
    %178 = vector.shape_cast %177 : vector<1x1x32xf32> to vector<1x32xf32>
    %179 = vector.broadcast %178 : vector<1x32xf32> to vector<16x32xf32>
    %180 = arith.mulf %176, %179 : vector<16x32xf32>
    %c1_84 = arith.constant 1 : index
    %c0_85 = arith.constant 0 : index
    %c0_86 = arith.constant 0 : index
    %181 = vector.load %arg14[%c1_84, %c0_85, %c0_86] : memref<12x1x32xf32, #tpu.memory_space<vmem>>, vector<1x1x32xf32>
    %182 = vector.shape_cast %181 : vector<1x1x32xf32> to vector<1x32xf32>
    %183 = vector.broadcast %182 : vector<1x32xf32> to vector<16x32xf32>
    %184 = arith.addf %180, %183 : vector<16x32xf32>
    %c1_87 = arith.constant 1 : index
    %c0_88 = arith.constant 0 : index
    %c0_89 = arith.constant 0 : index
    %185 = vector.load %arg5[%c1_87, %c0_88, %c0_89] : memref<6x32x96xf32, #tpu.memory_space<vmem>>, vector<1x32x96xf32>
    %186 = vector.shape_cast %185 : vector<1x32x96xf32> to vector<32x96xf32>
    %cst_90 = arith.constant dense<0.000000e+00> : vector<16x96xf32>
    %187 = tpu.matmul %184, %186, %cst_90 {dimension_numbers = #tpu.dot_dimension_numbers<[1], [0], [0], [1], [0, 0, 1, 1], [], []>} : vector<16x32xf32>, vector<32x96xf32>, vector<16x96xf32> -> vector<16x96xf32>
    %c1_91 = arith.constant 1 : index
    %c0_92 = arith.constant 0 : index
    %c0_93 = arith.constant 0 : index
    %188 = vector.load %arg6[%c1_91, %c0_92, %c0_93] : memref<6x1x96xf32, #tpu.memory_space<vmem>>, vector<1x1x96xf32>
    %189 = vector.shape_cast %188 : vector<1x1x96xf32> to vector<1x96xf32>
    %190 = vector.broadcast %189 : vector<1x96xf32> to vector<16x96xf32>
    %191 = arith.addf %187, %190 : vector<16x96xf32>
    %192 = vector.extract_strided_slice %191 {offsets = [0, 0], sizes = [16, 32], strides = [1, 1]} : vector<16x96xf32> to vector<16x32xf32>
    %193 = vector.extract_strided_slice %191 {offsets = [0, 32], sizes = [16, 32], strides = [1, 1]} : vector<16x96xf32> to vector<16x32xf32>
    %194 = vector.extract_strided_slice %191 {offsets = [0, 64], sizes = [16, 32], strides = [1, 1]} : vector<16x96xf32> to vector<16x32xf32>
    %195 = vector.extract_strided_slice %192 {offsets = [0, 0], sizes = [16, 8], strides = [1, 1]} : vector<16x32xf32> to vector<16x8xf32>
    %196 = vector.extract_strided_slice %193 {offsets = [0, 0], sizes = [16, 8], strides = [1, 1]} : vector<16x32xf32> to vector<16x8xf32>
    %cst_94 = arith.constant dense<0.000000e+00> : vector<16x16xf32>
    %197 = tpu.matmul %195, %196, %cst_94 {dimension_numbers = #tpu.dot_dimension_numbers<[1], [1], [0], [0], [0, 0, 1, 0], [], []>} : vector<16x8xf32>, vector<16x8xf32>, vector<16x16xf32> -> vector<16x16xf32>
    %198 = vector.extract_strided_slice %192 {offsets = [0, 8], sizes = [16, 8], strides = [1, 1]} : vector<16x32xf32> to vector<16x8xf32>
    %199 = vector.extract_strided_slice %193 {offsets = [0, 8], sizes = [16, 8], strides = [1, 1]} : vector<16x32xf32> to vector<16x8xf32>
    %cst_95 = arith.constant dense<0.000000e+00> : vector<16x16xf32>
    %200 = tpu.matmul %198, %199, %cst_95 {dimension_numbers = #tpu.dot_dimension_numbers<[1], [1], [0], [0], [0, 0, 1, 0], [], []>} : vector<16x8xf32>, vector<16x8xf32>, vector<16x16xf32> -> vector<16x16xf32>
    %201 = vector.extract_strided_slice %192 {offsets = [0, 16], sizes = [16, 8], strides = [1, 1]} : vector<16x32xf32> to vector<16x8xf32>
    %202 = vector.extract_strided_slice %193 {offsets = [0, 16], sizes = [16, 8], strides = [1, 1]} : vector<16x32xf32> to vector<16x8xf32>
    %cst_96 = arith.constant dense<0.000000e+00> : vector<16x16xf32>
    %203 = tpu.matmul %201, %202, %cst_96 {dimension_numbers = #tpu.dot_dimension_numbers<[1], [1], [0], [0], [0, 0, 1, 0], [], []>} : vector<16x8xf32>, vector<16x8xf32>, vector<16x16xf32> -> vector<16x16xf32>
    %204 = vector.extract_strided_slice %192 {offsets = [0, 24], sizes = [16, 8], strides = [1, 1]} : vector<16x32xf32> to vector<16x8xf32>
    %205 = vector.extract_strided_slice %193 {offsets = [0, 24], sizes = [16, 8], strides = [1, 1]} : vector<16x32xf32> to vector<16x8xf32>
    %cst_97 = arith.constant dense<0.000000e+00> : vector<16x16xf32>
    %206 = tpu.matmul %204, %205, %cst_97 {dimension_numbers = #tpu.dot_dimension_numbers<[1], [1], [0], [0], [0, 0, 1, 0], [], []>} : vector<16x8xf32>, vector<16x8xf32>, vector<16x16xf32> -> vector<16x16xf32>
    %207 = tpu.concatenate %197, %200, %203, %206 in 0 : vector<16x16xf32>, vector<16x16xf32>, vector<16x16xf32>, vector<16x16xf32> -> vector<64x16xf32>
    %cst_98 = arith.constant 0.353553385 : f32
    %208 = vector.broadcast %cst_98 : f32 to vector<64x16xf32>
    %209 = arith.mulf %207, %208 : vector<64x16xf32>
    %210 = arith.addf %209, %13 : vector<64x16xf32>
    %cst_99 = arith.constant dense<0xFF800000> : vector<64xf32>
    %211 = vector.multi_reduction <maximumf>, %210, %cst_99 [1] : vector<64x16xf32> to vector<64xf32>
    %212 = vector.shape_cast %211 : vector<64xf32> to vector<64x1xf32>
    %213 = vector.broadcast %212 : vector<64x1xf32> to vector<64x16xf32>
    %214 = arith.subf %210, %213 : vector<64x16xf32>
    %215 = math.exp %214 : vector<64x16xf32>
    %cst_100 = arith.constant dense<0.000000e+00> : vector<64xf32>
    %216 = vector.multi_reduction <add>, %215, %cst_100 [1] : vector<64x16xf32> to vector<64xf32>
    %217 = vector.shape_cast %216 : vector<64xf32> to vector<64x1xf32>
    %218 = vector.broadcast %217 : vector<64x1xf32> to vector<64x16xf32>
    %219 = arith.divf %215, %218 : vector<64x16xf32>
    %220 = vector.extract_strided_slice %219 {offsets = [0, 0], sizes = [16, 16], strides = [1, 1]} : vector<64x16xf32> to vector<16x16xf32>
    %221 = vector.extract_strided_slice %194 {offsets = [0, 0], sizes = [16, 8], strides = [1, 1]} : vector<16x32xf32> to vector<16x8xf32>
    %cst_101 = arith.constant dense<0.000000e+00> : vector<16x8xf32>
    %222 = tpu.matmul %220, %221, %cst_101 {dimension_numbers = #tpu.dot_dimension_numbers<[1], [0], [0], [1], [0, 0, 1, 1], [], []>} : vector<16x16xf32>, vector<16x8xf32>, vector<16x8xf32> -> vector<16x8xf32>
    %223 = vector.extract_strided_slice %219 {offsets = [16, 0], sizes = [16, 16], strides = [1, 1]} : vector<64x16xf32> to vector<16x16xf32>
    %224 = vector.extract_strided_slice %194 {offsets = [0, 8], sizes = [16, 8], strides = [1, 1]} : vector<16x32xf32> to vector<16x8xf32>
    %cst_102 = arith.constant dense<0.000000e+00> : vector<16x8xf32>
    %225 = tpu.matmul %223, %224, %cst_102 {dimension_numbers = #tpu.dot_dimension_numbers<[1], [0], [0], [1], [0, 0, 1, 1], [], []>} : vector<16x16xf32>, vector<16x8xf32>, vector<16x8xf32> -> vector<16x8xf32>
    %226 = vector.extract_strided_slice %219 {offsets = [32, 0], sizes = [16, 16], strides = [1, 1]} : vector<64x16xf32> to vector<16x16xf32>
    %227 = vector.extract_strided_slice %194 {offsets = [0, 16], sizes = [16, 8], strides = [1, 1]} : vector<16x32xf32> to vector<16x8xf32>
    %cst_103 = arith.constant dense<0.000000e+00> : vector<16x8xf32>
    %228 = tpu.matmul %226, %227, %cst_103 {dimension_numbers = #tpu.dot_dimension_numbers<[1], [0], [0], [1], [0, 0, 1, 1], [], []>} : vector<16x16xf32>, vector<16x8xf32>, vector<16x8xf32> -> vector<16x8xf32>
    %229 = vector.extract_strided_slice %219 {offsets = [48, 0], sizes = [16, 16], strides = [1, 1]} : vector<64x16xf32> to vector<16x16xf32>
    %230 = vector.extract_strided_slice %194 {offsets = [0, 24], sizes = [16, 8], strides = [1, 1]} : vector<16x32xf32> to vector<16x8xf32>
    %cst_104 = arith.constant dense<0.000000e+00> : vector<16x8xf32>
    %231 = tpu.matmul %229, %230, %cst_104 {dimension_numbers = #tpu.dot_dimension_numbers<[1], [0], [0], [1], [0, 0, 1, 1], [], []>} : vector<16x16xf32>, vector<16x8xf32>, vector<16x8xf32> -> vector<16x8xf32>
    %232 = tpu.concatenate %222, %225, %228, %231 in 1 : vector<16x8xf32>, vector<16x8xf32>, vector<16x8xf32>, vector<16x8xf32> -> vector<16x32xf32>
    %c1_105 = arith.constant 1 : index
    %c0_106 = arith.constant 0 : index
    %c0_107 = arith.constant 0 : index
    %233 = vector.load %arg7[%c1_105, %c0_106, %c0_107] : memref<6x32x32xf32, #tpu.memory_space<vmem>>, vector<1x32x32xf32>
    %234 = vector.shape_cast %233 : vector<1x32x32xf32> to vector<32x32xf32>
    %cst_108 = arith.constant dense<0.000000e+00> : vector<16x32xf32>
    %235 = tpu.matmul %232, %234, %cst_108 {dimension_numbers = #tpu.dot_dimension_numbers<[1], [0], [0], [1], [0, 0, 1, 1], [], []>} : vector<16x32xf32>, vector<32x32xf32>, vector<16x32xf32> -> vector<16x32xf32>
    %c1_109 = arith.constant 1 : index
    %c0_110 = arith.constant 0 : index
    %c0_111 = arith.constant 0 : index
    %236 = vector.load %arg8[%c1_109, %c0_110, %c0_111] : memref<6x1x32xf32, #tpu.memory_space<vmem>>, vector<1x1x32xf32>
    %237 = vector.shape_cast %236 : vector<1x1x32xf32> to vector<1x32xf32>
    %238 = vector.broadcast %237 : vector<1x32xf32> to vector<16x32xf32>
    %239 = arith.addf %235, %238 : vector<16x32xf32>
    %240 = arith.addf %184, %239 : vector<16x32xf32>
    %cst_112 = arith.constant dense<0.000000e+00> : vector<16xf32>
    %241 = vector.multi_reduction <add>, %240, %cst_112 [1] : vector<16x32xf32> to vector<16xf32>
    %242 = vector.shape_cast %241 : vector<16xf32> to vector<16x1xf32>
    %cst_113 = arith.constant 3.200000e+01 : f32
    %243 = vector.broadcast %cst_113 : f32 to vector<16x1xf32>
    %244 = arith.divf %242, %243 : vector<16x1xf32>
    %245 = vector.broadcast %244 : vector<16x1xf32> to vector<16x32xf32>
    %246 = arith.subf %240, %245 : vector<16x32xf32>
    %247 = arith.mulf %246, %246 : vector<16x32xf32>
    %cst_114 = arith.constant dense<0.000000e+00> : vector<16xf32>
    %248 = vector.multi_reduction <add>, %247, %cst_114 [1] : vector<16x32xf32> to vector<16xf32>
    %249 = vector.shape_cast %248 : vector<16xf32> to vector<16x1xf32>
    %cst_115 = arith.constant 3.200000e+01 : f32
    %250 = vector.broadcast %cst_115 : f32 to vector<16x1xf32>
    %251 = arith.divf %249, %250 : vector<16x1xf32>
    %252 = vector.broadcast %244 : vector<16x1xf32> to vector<16x32xf32>
    %253 = arith.subf %240, %252 : vector<16x32xf32>
    %cst_116 = arith.constant 9.99999974E-6 : f32
    %254 = vector.broadcast %cst_116 : f32 to vector<16x1xf32>
    %255 = arith.addf %251, %254 : vector<16x1xf32>
    %256 = math.rsqrt %255 : vector<16x1xf32>
    %257 = vector.broadcast %256 : vector<16x1xf32> to vector<16x32xf32>
    %258 = arith.mulf %253, %257 : vector<16x32xf32>
    %c2 = arith.constant 2 : index
    %c0_117 = arith.constant 0 : index
    %c0_118 = arith.constant 0 : index
    %259 = vector.load %arg13[%c2, %c0_117, %c0_118] : memref<12x1x32xf32, #tpu.memory_space<vmem>>, vector<1x1x32xf32>
    %260 = vector.shape_cast %259 : vector<1x1x32xf32> to vector<1x32xf32>
    %261 = vector.broadcast %260 : vector<1x32xf32> to vector<16x32xf32>
    %262 = arith.mulf %258, %261 : vector<16x32xf32>
    %c2_119 = arith.constant 2 : index
    %c0_120 = arith.constant 0 : index
    %c0_121 = arith.constant 0 : index
    %263 = vector.load %arg14[%c2_119, %c0_120, %c0_121] : memref<12x1x32xf32, #tpu.memory_space<vmem>>, vector<1x1x32xf32>
    %264 = vector.shape_cast %263 : vector<1x1x32xf32> to vector<1x32xf32>
    %265 = vector.broadcast %264 : vector<1x32xf32> to vector<16x32xf32>
    %266 = arith.addf %262, %265 : vector<16x32xf32>
    %c1_122 = arith.constant 1 : index
    %c0_123 = arith.constant 0 : index
    %c0_124 = arith.constant 0 : index
    %267 = vector.load %arg9[%c1_122, %c0_123, %c0_124] : memref<4x32x64xf32, #tpu.memory_space<vmem>>, vector<1x32x64xf32>
    %268 = vector.shape_cast %267 : vector<1x32x64xf32> to vector<32x64xf32>
    %cst_125 = arith.constant dense<0.000000e+00> : vector<16x64xf32>
    %269 = tpu.matmul %266, %268, %cst_125 {dimension_numbers = #tpu.dot_dimension_numbers<[1], [0], [0], [1], [0, 0, 1, 1], [], []>} : vector<16x32xf32>, vector<32x64xf32>, vector<16x64xf32> -> vector<16x64xf32>
    %c1_126 = arith.constant 1 : index
    %c0_127 = arith.constant 0 : index
    %c0_128 = arith.constant 0 : index
    %270 = vector.load %arg10[%c1_126, %c0_127, %c0_128] : memref<4x1x64xf32, #tpu.memory_space<vmem>>, vector<1x1x64xf32>
    %271 = vector.shape_cast %270 : vector<1x1x64xf32> to vector<1x64xf32>
    %272 = vector.broadcast %271 : vector<1x64xf32> to vector<16x64xf32>
    %273 = arith.addf %269, %272 : vector<16x64xf32>
    %cst_129 = arith.constant 0.000000e+00 : f32
    %274 = vector.broadcast %cst_129 : f32 to vector<16x64xf32>
    %275 = arith.maximumf %273, %274 : vector<16x64xf32>
    %c1_130 = arith.constant 1 : index
    %c0_131 = arith.constant 0 : index
    %c0_132 = arith.constant 0 : index
    %276 = vector.load %arg11[%c1_130, %c0_131, %c0_132] : memref<4x64x32xf32, #tpu.memory_space<vmem>>, vector<1x64x32xf32>
    %277 = vector.shape_cast %276 : vector<1x64x32xf32> to vector<64x32xf32>
    %cst_133 = arith.constant dense<0.000000e+00> : vector<16x32xf32>
    %278 = tpu.matmul %275, %277, %cst_133 {dimension_numbers = #tpu.dot_dimension_numbers<[1], [0], [0], [1], [0, 0, 1, 1], [], []>} : vector<16x64xf32>, vector<64x32xf32>, vector<16x32xf32> -> vector<16x32xf32>
    %c1_134 = arith.constant 1 : index
    %c0_135 = arith.constant 0 : index
    %c0_136 = arith.constant 0 : index
    %279 = vector.load %arg12[%c1_134, %c0_135, %c0_136] : memref<4x1x32xf32, #tpu.memory_space<vmem>>, vector<1x1x32xf32>
    %280 = vector.shape_cast %279 : vector<1x1x32xf32> to vector<1x32xf32>
    %281 = vector.broadcast %280 : vector<1x32xf32> to vector<16x32xf32>
    %282 = arith.addf %278, %281 : vector<16x32xf32>
    %283 = arith.addf %266, %282 : vector<16x32xf32>
    %cst_137 = arith.constant dense<0.000000e+00> : vector<16xf32>
    %284 = vector.multi_reduction <add>, %283, %cst_137 [1] : vector<16x32xf32> to vector<16xf32>
    %285 = vector.shape_cast %284 : vector<16xf32> to vector<16x1xf32>
    %cst_138 = arith.constant 3.200000e+01 : f32
    %286 = vector.broadcast %cst_138 : f32 to vector<16x1xf32>
    %287 = arith.divf %285, %286 : vector<16x1xf32>
    %288 = vector.broadcast %287 : vector<16x1xf32> to vector<16x32xf32>
    %289 = arith.subf %283, %288 : vector<16x32xf32>
    %290 = arith.mulf %289, %289 : vector<16x32xf32>
    %cst_139 = arith.constant dense<0.000000e+00> : vector<16xf32>
    %291 = vector.multi_reduction <add>, %290, %cst_139 [1] : vector<16x32xf32> to vector<16xf32>
    %292 = vector.shape_cast %291 : vector<16xf32> to vector<16x1xf32>
    %cst_140 = arith.constant 3.200000e+01 : f32
    %293 = vector.broadcast %cst_140 : f32 to vector<16x1xf32>
    %294 = arith.divf %292, %293 : vector<16x1xf32>
    %295 = vector.broadcast %287 : vector<16x1xf32> to vector<16x32xf32>
    %296 = arith.subf %283, %295 : vector<16x32xf32>
    %cst_141 = arith.constant 9.99999974E-6 : f32
    %297 = vector.broadcast %cst_141 : f32 to vector<16x1xf32>
    %298 = arith.addf %294, %297 : vector<16x1xf32>
    %299 = math.rsqrt %298 : vector<16x1xf32>
    %300 = vector.broadcast %299 : vector<16x1xf32> to vector<16x32xf32>
    %301 = arith.mulf %296, %300 : vector<16x32xf32>
    %c3 = arith.constant 3 : index
    %c0_142 = arith.constant 0 : index
    %c0_143 = arith.constant 0 : index
    %302 = vector.load %arg13[%c3, %c0_142, %c0_143] : memref<12x1x32xf32, #tpu.memory_space<vmem>>, vector<1x1x32xf32>
    %303 = vector.shape_cast %302 : vector<1x1x32xf32> to vector<1x32xf32>
    %304 = vector.broadcast %303 : vector<1x32xf32> to vector<16x32xf32>
    %305 = arith.mulf %301, %304 : vector<16x32xf32>
    %c3_144 = arith.constant 3 : index
    %c0_145 = arith.constant 0 : index
    %c0_146 = arith.constant 0 : index
    %306 = vector.load %arg14[%c3_144, %c0_145, %c0_146] : memref<12x1x32xf32, #tpu.memory_space<vmem>>, vector<1x1x32xf32>
    %307 = vector.shape_cast %306 : vector<1x1x32xf32> to vector<1x32xf32>
    %308 = vector.broadcast %307 : vector<1x32xf32> to vector<16x32xf32>
    %309 = arith.addf %305, %308 : vector<16x32xf32>
    %cst_147 = arith.constant dense<0.000000e+00> : vector<16xf32>
    %310 = vector.multi_reduction <add>, %309, %cst_147 [1] : vector<16x32xf32> to vector<16xf32>
    %311 = vector.shape_cast %310 : vector<16xf32> to vector<16x1xf32>
    %cst_148 = arith.constant 3.200000e+01 : f32
    %312 = vector.broadcast %cst_148 : f32 to vector<16x1xf32>
    %313 = arith.divf %311, %312 : vector<16x1xf32>
    %314 = vector.broadcast %313 : vector<16x1xf32> to vector<16x32xf32>
    %315 = arith.subf %309, %314 : vector<16x32xf32>
    %316 = arith.mulf %315, %315 : vector<16x32xf32>
    %cst_149 = arith.constant dense<0.000000e+00> : vector<16xf32>
    %317 = vector.multi_reduction <add>, %316, %cst_149 [1] : vector<16x32xf32> to vector<16xf32>
    %318 = vector.shape_cast %317 : vector<16xf32> to vector<16x1xf32>
    %cst_150 = arith.constant 3.200000e+01 : f32
    %319 = vector.broadcast %cst_150 : f32 to vector<16x1xf32>
    %320 = arith.divf %318, %319 : vector<16x1xf32>
    %321 = vector.broadcast %313 : vector<16x1xf32> to vector<16x32xf32>
    %322 = arith.subf %309, %321 : vector<16x32xf32>
    %cst_151 = arith.constant 9.99999974E-6 : f32
    %323 = vector.broadcast %cst_151 : f32 to vector<16x1xf32>
    %324 = arith.addf %320, %323 : vector<16x1xf32>
    %325 = math.rsqrt %324 : vector<16x1xf32>
    %326 = vector.broadcast %325 : vector<16x1xf32> to vector<16x32xf32>
    %327 = arith.mulf %322, %326 : vector<16x32xf32>
    %c4 = arith.constant 4 : index
    %c0_152 = arith.constant 0 : index
    %c0_153 = arith.constant 0 : index
    %328 = vector.load %arg13[%c4, %c0_152, %c0_153] : memref<12x1x32xf32, #tpu.memory_space<vmem>>, vector<1x1x32xf32>
    %329 = vector.shape_cast %328 : vector<1x1x32xf32> to vector<1x32xf32>
    %330 = vector.broadcast %329 : vector<1x32xf32> to vector<16x32xf32>
    %331 = arith.mulf %327, %330 : vector<16x32xf32>
    %c4_154 = arith.constant 4 : index
    %c0_155 = arith.constant 0 : index
    %c0_156 = arith.constant 0 : index
    %332 = vector.load %arg14[%c4_154, %c0_155, %c0_156] : memref<12x1x32xf32, #tpu.memory_space<vmem>>, vector<1x1x32xf32>
    %333 = vector.shape_cast %332 : vector<1x1x32xf32> to vector<1x32xf32>
    %334 = vector.broadcast %333 : vector<1x32xf32> to vector<16x32xf32>
    %335 = arith.addf %331, %334 : vector<16x32xf32>
    %c0_157 = arith.constant 0 : index
    %c0_158 = arith.constant 0 : index
    %336 = vector.load %arg2[%c0_157, %c0_158] : memref<8x2xi32, #tpu.memory_space<vmem>>, vector<8x2xi32>
    %337 = vector.extract_strided_slice %336 {offsets = [0, 0], sizes = [8, 1], strides = [1, 1]} : vector<8x2xi32> to vector<8x1xi32>
    %338 = vector.extract_strided_slice %336 {offsets = [0, 1], sizes = [8, 1], strides = [1, 1]} : vector<8x2xi32> to vector<8x1xi32>
    %339 = tpu.concatenate %337, %338 in 0 : vector<8x1xi32>, vector<8x1xi32> -> vector<16x1xi32>
    %340 = tpu.iota {dimensions = array<i32: 1>} : vector<16x50xi32>
    %341 = vector.broadcast %339 : vector<16x1xi32> to vector<16x50xi32>
    %342 = arith.cmpi eq, %341, %340 : vector<16x50xi32>
    %343 = arith.extui %342 : vector<16x50xi1> to vector<16x50xi32>
    %344 = arith.sitofp %343 : vector<16x50xi32> to vector<16x50xf32>
    %cst_159 = arith.constant dense<0.000000e+00> : vector<16x32xf32>
    %345 = tpu.matmul %344, %0, %cst_159 {dimension_numbers = #tpu.dot_dimension_numbers<[1], [0], [0], [1], [0, 0, 1, 1], [], []>} : vector<16x50xf32>, vector<50x32xf32>, vector<16x32xf32> -> vector<16x32xf32>
    %cst_160 = arith.constant 5.65685415 : f32
    %346 = vector.broadcast %cst_160 : f32 to vector<16x32xf32>
    %347 = arith.mulf %345, %346 : vector<16x32xf32>
    %c0_161 = arith.constant 0 : index
    %c0_162 = arith.constant 0 : index
    %348 = vector.load %arg4[%c0_161, %c0_162] : memref<64x32xf32, #tpu.memory_space<vmem>>, vector<1x32xf32>
    %349 = vector.shape_cast %348 : vector<1x32xf32> to vector<1x32xf32>
    %350 = vector.broadcast %349 : vector<1x32xf32> to vector<8x32xf32>
    %c1_163 = arith.constant 1 : index
    %c0_164 = arith.constant 0 : index
    %351 = vector.load %arg4[%c1_163, %c0_164] : memref<64x32xf32, #tpu.memory_space<vmem>>, vector<1x32xf32>
    %352 = vector.shape_cast %351 : vector<1x32xf32> to vector<1x32xf32>
    %353 = vector.broadcast %352 : vector<1x32xf32> to vector<8x32xf32>
    %354 = tpu.concatenate %350, %353 in 0 : vector<8x32xf32>, vector<8x32xf32> -> vector<16x32xf32>
    %355 = arith.addf %347, %354 : vector<16x32xf32>
    %c2_165 = arith.constant 2 : index
    %c0_166 = arith.constant 0 : index
    %c0_167 = arith.constant 0 : index
    %356 = vector.load %arg5[%c2_165, %c0_166, %c0_167] : memref<6x32x96xf32, #tpu.memory_space<vmem>>, vector<1x32x96xf32>
    %357 = vector.shape_cast %356 : vector<1x32x96xf32> to vector<32x96xf32>
    %cst_168 = arith.constant dense<0.000000e+00> : vector<16x96xf32>
    %358 = tpu.matmul %355, %357, %cst_168 {dimension_numbers = #tpu.dot_dimension_numbers<[1], [0], [0], [1], [0, 0, 1, 1], [], []>} : vector<16x32xf32>, vector<32x96xf32>, vector<16x96xf32> -> vector<16x96xf32>
    %c2_169 = arith.constant 2 : index
    %c0_170 = arith.constant 0 : index
    %c0_171 = arith.constant 0 : index
    %359 = vector.load %arg6[%c2_169, %c0_170, %c0_171] : memref<6x1x96xf32, #tpu.memory_space<vmem>>, vector<1x1x96xf32>
    %360 = vector.shape_cast %359 : vector<1x1x96xf32> to vector<1x96xf32>
    %361 = vector.broadcast %360 : vector<1x96xf32> to vector<16x96xf32>
    %362 = arith.addf %358, %361 : vector<16x96xf32>
    %363 = vector.extract_strided_slice %362 {offsets = [0, 0], sizes = [16, 32], strides = [1, 1]} : vector<16x96xf32> to vector<16x32xf32>
    %364 = vector.extract_strided_slice %362 {offsets = [0, 32], sizes = [16, 32], strides = [1, 1]} : vector<16x96xf32> to vector<16x32xf32>
    %365 = vector.extract_strided_slice %362 {offsets = [0, 64], sizes = [16, 32], strides = [1, 1]} : vector<16x96xf32> to vector<16x32xf32>
    %366 = vector.extract_strided_slice %363 {offsets = [0, 0], sizes = [16, 8], strides = [1, 1]} : vector<16x32xf32> to vector<16x8xf32>
    %367 = vector.extract_strided_slice %364 {offsets = [0, 0], sizes = [16, 8], strides = [1, 1]} : vector<16x32xf32> to vector<16x8xf32>
    %cst_172 = arith.constant dense<0.000000e+00> : vector<16x16xf32>
    %368 = tpu.matmul %366, %367, %cst_172 {dimension_numbers = #tpu.dot_dimension_numbers<[1], [1], [0], [0], [0, 0, 1, 0], [], []>} : vector<16x8xf32>, vector<16x8xf32>, vector<16x16xf32> -> vector<16x16xf32>
    %369 = vector.extract_strided_slice %363 {offsets = [0, 8], sizes = [16, 8], strides = [1, 1]} : vector<16x32xf32> to vector<16x8xf32>
    %370 = vector.extract_strided_slice %364 {offsets = [0, 8], sizes = [16, 8], strides = [1, 1]} : vector<16x32xf32> to vector<16x8xf32>
    %cst_173 = arith.constant dense<0.000000e+00> : vector<16x16xf32>
    %371 = tpu.matmul %369, %370, %cst_173 {dimension_numbers = #tpu.dot_dimension_numbers<[1], [1], [0], [0], [0, 0, 1, 0], [], []>} : vector<16x8xf32>, vector<16x8xf32>, vector<16x16xf32> -> vector<16x16xf32>
    %372 = vector.extract_strided_slice %363 {offsets = [0, 16], sizes = [16, 8], strides = [1, 1]} : vector<16x32xf32> to vector<16x8xf32>
    %373 = vector.extract_strided_slice %364 {offsets = [0, 16], sizes = [16, 8], strides = [1, 1]} : vector<16x32xf32> to vector<16x8xf32>
    %cst_174 = arith.constant dense<0.000000e+00> : vector<16x16xf32>
    %374 = tpu.matmul %372, %373, %cst_174 {dimension_numbers = #tpu.dot_dimension_numbers<[1], [1], [0], [0], [0, 0, 1, 0], [], []>} : vector<16x8xf32>, vector<16x8xf32>, vector<16x16xf32> -> vector<16x16xf32>
    %375 = vector.extract_strided_slice %363 {offsets = [0, 24], sizes = [16, 8], strides = [1, 1]} : vector<16x32xf32> to vector<16x8xf32>
    %376 = vector.extract_strided_slice %364 {offsets = [0, 24], sizes = [16, 8], strides = [1, 1]} : vector<16x32xf32> to vector<16x8xf32>
    %cst_175 = arith.constant dense<0.000000e+00> : vector<16x16xf32>
    %377 = tpu.matmul %375, %376, %cst_175 {dimension_numbers = #tpu.dot_dimension_numbers<[1], [1], [0], [0], [0, 0, 1, 0], [], []>} : vector<16x8xf32>, vector<16x8xf32>, vector<16x16xf32> -> vector<16x16xf32>
    %378 = tpu.concatenate %368, %371, %374, %377 in 0 : vector<16x16xf32>, vector<16x16xf32>, vector<16x16xf32>, vector<16x16xf32> -> vector<64x16xf32>
    %cst_176 = arith.constant 0.353553385 : f32
    %379 = vector.broadcast %cst_176 : f32 to vector<64x16xf32>
    %380 = arith.mulf %378, %379 : vector<64x16xf32>
    %381 = arith.addf %380, %26 : vector<64x16xf32>
    %cst_177 = arith.constant dense<0xFF800000> : vector<64xf32>
    %382 = vector.multi_reduction <maximumf>, %381, %cst_177 [1] : vector<64x16xf32> to vector<64xf32>
    %383 = vector.shape_cast %382 : vector<64xf32> to vector<64x1xf32>
    %384 = vector.broadcast %383 : vector<64x1xf32> to vector<64x16xf32>
    %385 = arith.subf %381, %384 : vector<64x16xf32>
    %386 = math.exp %385 : vector<64x16xf32>
    %cst_178 = arith.constant dense<0.000000e+00> : vector<64xf32>
    %387 = vector.multi_reduction <add>, %386, %cst_178 [1] : vector<64x16xf32> to vector<64xf32>
    %388 = vector.shape_cast %387 : vector<64xf32> to vector<64x1xf32>
    %389 = vector.broadcast %388 : vector<64x1xf32> to vector<64x16xf32>
    %390 = arith.divf %386, %389 : vector<64x16xf32>
    %391 = vector.extract_strided_slice %390 {offsets = [0, 0], sizes = [16, 16], strides = [1, 1]} : vector<64x16xf32> to vector<16x16xf32>
    %392 = vector.extract_strided_slice %365 {offsets = [0, 0], sizes = [16, 8], strides = [1, 1]} : vector<16x32xf32> to vector<16x8xf32>
    %cst_179 = arith.constant dense<0.000000e+00> : vector<16x8xf32>
    %393 = tpu.matmul %391, %392, %cst_179 {dimension_numbers = #tpu.dot_dimension_numbers<[1], [0], [0], [1], [0, 0, 1, 1], [], []>} : vector<16x16xf32>, vector<16x8xf32>, vector<16x8xf32> -> vector<16x8xf32>
    %394 = vector.extract_strided_slice %390 {offsets = [16, 0], sizes = [16, 16], strides = [1, 1]} : vector<64x16xf32> to vector<16x16xf32>
    %395 = vector.extract_strided_slice %365 {offsets = [0, 8], sizes = [16, 8], strides = [1, 1]} : vector<16x32xf32> to vector<16x8xf32>
    %cst_180 = arith.constant dense<0.000000e+00> : vector<16x8xf32>
    %396 = tpu.matmul %394, %395, %cst_180 {dimension_numbers = #tpu.dot_dimension_numbers<[1], [0], [0], [1], [0, 0, 1, 1], [], []>} : vector<16x16xf32>, vector<16x8xf32>, vector<16x8xf32> -> vector<16x8xf32>
    %397 = vector.extract_strided_slice %390 {offsets = [32, 0], sizes = [16, 16], strides = [1, 1]} : vector<64x16xf32> to vector<16x16xf32>
    %398 = vector.extract_strided_slice %365 {offsets = [0, 16], sizes = [16, 8], strides = [1, 1]} : vector<16x32xf32> to vector<16x8xf32>
    %cst_181 = arith.constant dense<0.000000e+00> : vector<16x8xf32>
    %399 = tpu.matmul %397, %398, %cst_181 {dimension_numbers = #tpu.dot_dimension_numbers<[1], [0], [0], [1], [0, 0, 1, 1], [], []>} : vector<16x16xf32>, vector<16x8xf32>, vector<16x8xf32> -> vector<16x8xf32>
    %400 = vector.extract_strided_slice %390 {offsets = [48, 0], sizes = [16, 16], strides = [1, 1]} : vector<64x16xf32> to vector<16x16xf32>
    %401 = vector.extract_strided_slice %365 {offsets = [0, 24], sizes = [16, 8], strides = [1, 1]} : vector<16x32xf32> to vector<16x8xf32>
    %cst_182 = arith.constant dense<0.000000e+00> : vector<16x8xf32>
    %402 = tpu.matmul %400, %401, %cst_182 {dimension_numbers = #tpu.dot_dimension_numbers<[1], [0], [0], [1], [0, 0, 1, 1], [], []>} : vector<16x16xf32>, vector<16x8xf32>, vector<16x8xf32> -> vector<16x8xf32>
    %403 = tpu.concatenate %393, %396, %399, %402 in 1 : vector<16x8xf32>, vector<16x8xf32>, vector<16x8xf32>, vector<16x8xf32> -> vector<16x32xf32>
    %c2_183 = arith.constant 2 : index
    %c0_184 = arith.constant 0 : index
    %c0_185 = arith.constant 0 : index
    %404 = vector.load %arg7[%c2_183, %c0_184, %c0_185] : memref<6x32x32xf32, #tpu.memory_space<vmem>>, vector<1x32x32xf32>
    %405 = vector.shape_cast %404 : vector<1x32x32xf32> to vector<32x32xf32>
    %cst_186 = arith.constant dense<0.000000e+00> : vector<16x32xf32>
    %406 = tpu.matmul %403, %405, %cst_186 {dimension_numbers = #tpu.dot_dimension_numbers<[1], [0], [0], [1], [0, 0, 1, 1], [], []>} : vector<16x32xf32>, vector<32x32xf32>, vector<16x32xf32> -> vector<16x32xf32>
    %c2_187 = arith.constant 2 : index
    %c0_188 = arith.constant 0 : index
    %c0_189 = arith.constant 0 : index
    %407 = vector.load %arg8[%c2_187, %c0_188, %c0_189] : memref<6x1x32xf32, #tpu.memory_space<vmem>>, vector<1x1x32xf32>
    %408 = vector.shape_cast %407 : vector<1x1x32xf32> to vector<1x32xf32>
    %409 = vector.broadcast %408 : vector<1x32xf32> to vector<16x32xf32>
    %410 = arith.addf %406, %409 : vector<16x32xf32>
    %411 = arith.addf %355, %410 : vector<16x32xf32>
    %cst_190 = arith.constant dense<0.000000e+00> : vector<16xf32>
    %412 = vector.multi_reduction <add>, %411, %cst_190 [1] : vector<16x32xf32> to vector<16xf32>
    %413 = vector.shape_cast %412 : vector<16xf32> to vector<16x1xf32>
    %cst_191 = arith.constant 3.200000e+01 : f32
    %414 = vector.broadcast %cst_191 : f32 to vector<16x1xf32>
    %415 = arith.divf %413, %414 : vector<16x1xf32>
    %416 = vector.broadcast %415 : vector<16x1xf32> to vector<16x32xf32>
    %417 = arith.subf %411, %416 : vector<16x32xf32>
    %418 = arith.mulf %417, %417 : vector<16x32xf32>
    %cst_192 = arith.constant dense<0.000000e+00> : vector<16xf32>
    %419 = vector.multi_reduction <add>, %418, %cst_192 [1] : vector<16x32xf32> to vector<16xf32>
    %420 = vector.shape_cast %419 : vector<16xf32> to vector<16x1xf32>
    %cst_193 = arith.constant 3.200000e+01 : f32
    %421 = vector.broadcast %cst_193 : f32 to vector<16x1xf32>
    %422 = arith.divf %420, %421 : vector<16x1xf32>
    %423 = vector.broadcast %415 : vector<16x1xf32> to vector<16x32xf32>
    %424 = arith.subf %411, %423 : vector<16x32xf32>
    %cst_194 = arith.constant 9.99999974E-6 : f32
    %425 = vector.broadcast %cst_194 : f32 to vector<16x1xf32>
    %426 = arith.addf %422, %425 : vector<16x1xf32>
    %427 = math.rsqrt %426 : vector<16x1xf32>
    %428 = vector.broadcast %427 : vector<16x1xf32> to vector<16x32xf32>
    %429 = arith.mulf %424, %428 : vector<16x32xf32>
    %c5 = arith.constant 5 : index
    %c0_195 = arith.constant 0 : index
    %c0_196 = arith.constant 0 : index
    %430 = vector.load %arg13[%c5, %c0_195, %c0_196] : memref<12x1x32xf32, #tpu.memory_space<vmem>>, vector<1x1x32xf32>
    %431 = vector.shape_cast %430 : vector<1x1x32xf32> to vector<1x32xf32>
    %432 = vector.broadcast %431 : vector<1x32xf32> to vector<16x32xf32>
    %433 = arith.mulf %429, %432 : vector<16x32xf32>
    %c5_197 = arith.constant 5 : index
    %c0_198 = arith.constant 0 : index
    %c0_199 = arith.constant 0 : index
    %434 = vector.load %arg14[%c5_197, %c0_198, %c0_199] : memref<12x1x32xf32, #tpu.memory_space<vmem>>, vector<1x1x32xf32>
    %435 = vector.shape_cast %434 : vector<1x1x32xf32> to vector<1x32xf32>
    %436 = vector.broadcast %435 : vector<1x32xf32> to vector<16x32xf32>
    %437 = arith.addf %433, %436 : vector<16x32xf32>
    %c3_200 = arith.constant 3 : index
    %c0_201 = arith.constant 0 : index
    %c0_202 = arith.constant 0 : index
    %438 = vector.load %arg5[%c3_200, %c0_201, %c0_202] : memref<6x32x96xf32, #tpu.memory_space<vmem>>, vector<1x32x96xf32>
    %439 = vector.shape_cast %438 : vector<1x32x96xf32> to vector<32x96xf32>
    %c3_203 = arith.constant 3 : index
    %c0_204 = arith.constant 0 : index
    %c0_205 = arith.constant 0 : index
    %440 = vector.load %arg6[%c3_203, %c0_204, %c0_205] : memref<6x1x96xf32, #tpu.memory_space<vmem>>, vector<1x1x96xf32>
    %441 = vector.shape_cast %440 : vector<1x1x96xf32> to vector<1x96xf32>
    %442 = vector.extract_strided_slice %439 {offsets = [0, 0], sizes = [32, 32], strides = [1, 1]} : vector<32x96xf32> to vector<32x32xf32>
    %cst_206 = arith.constant dense<0.000000e+00> : vector<16x32xf32>
    %443 = tpu.matmul %437, %442, %cst_206 {dimension_numbers = #tpu.dot_dimension_numbers<[1], [0], [0], [1], [0, 0, 1, 1], [], []>} : vector<16x32xf32>, vector<32x32xf32>, vector<16x32xf32> -> vector<16x32xf32>
    %444 = vector.extract_strided_slice %441 {offsets = [0, 0], sizes = [1, 32], strides = [1, 1]} : vector<1x96xf32> to vector<1x32xf32>
    %445 = vector.broadcast %444 : vector<1x32xf32> to vector<16x32xf32>
    %446 = arith.addf %443, %445 : vector<16x32xf32>
    %447 = vector.extract_strided_slice %439 {offsets = [0, 32], sizes = [32, 64], strides = [1, 1]} : vector<32x96xf32> to vector<32x64xf32>
    %cst_207 = arith.constant dense<0.000000e+00> : vector<16x64xf32>
    %448 = tpu.matmul %335, %447, %cst_207 {dimension_numbers = #tpu.dot_dimension_numbers<[1], [0], [0], [1], [0, 0, 1, 1], [], []>} : vector<16x32xf32>, vector<32x64xf32>, vector<16x64xf32> -> vector<16x64xf32>
    %449 = vector.extract_strided_slice %441 {offsets = [0, 32], sizes = [1, 64], strides = [1, 1]} : vector<1x96xf32> to vector<1x64xf32>
    %450 = vector.broadcast %449 : vector<1x64xf32> to vector<16x64xf32>
    %451 = arith.addf %448, %450 : vector<16x64xf32>
    %452 = vector.extract_strided_slice %451 {offsets = [0, 0], sizes = [16, 32], strides = [1, 1]} : vector<16x64xf32> to vector<16x32xf32>
    %453 = vector.extract_strided_slice %451 {offsets = [0, 32], sizes = [16, 32], strides = [1, 1]} : vector<16x64xf32> to vector<16x32xf32>
    %454 = vector.extract_strided_slice %446 {offsets = [0, 0], sizes = [16, 8], strides = [1, 1]} : vector<16x32xf32> to vector<16x8xf32>
    %455 = vector.extract_strided_slice %452 {offsets = [0, 0], sizes = [16, 8], strides = [1, 1]} : vector<16x32xf32> to vector<16x8xf32>
    %cst_208 = arith.constant dense<0.000000e+00> : vector<16x16xf32>
    %456 = tpu.matmul %454, %455, %cst_208 {dimension_numbers = #tpu.dot_dimension_numbers<[1], [1], [0], [0], [0, 0, 1, 0], [], []>} : vector<16x8xf32>, vector<16x8xf32>, vector<16x16xf32> -> vector<16x16xf32>
    %457 = vector.extract_strided_slice %446 {offsets = [0, 8], sizes = [16, 8], strides = [1, 1]} : vector<16x32xf32> to vector<16x8xf32>
    %458 = vector.extract_strided_slice %452 {offsets = [0, 8], sizes = [16, 8], strides = [1, 1]} : vector<16x32xf32> to vector<16x8xf32>
    %cst_209 = arith.constant dense<0.000000e+00> : vector<16x16xf32>
    %459 = tpu.matmul %457, %458, %cst_209 {dimension_numbers = #tpu.dot_dimension_numbers<[1], [1], [0], [0], [0, 0, 1, 0], [], []>} : vector<16x8xf32>, vector<16x8xf32>, vector<16x16xf32> -> vector<16x16xf32>
    %460 = vector.extract_strided_slice %446 {offsets = [0, 16], sizes = [16, 8], strides = [1, 1]} : vector<16x32xf32> to vector<16x8xf32>
    %461 = vector.extract_strided_slice %452 {offsets = [0, 16], sizes = [16, 8], strides = [1, 1]} : vector<16x32xf32> to vector<16x8xf32>
    %cst_210 = arith.constant dense<0.000000e+00> : vector<16x16xf32>
    %462 = tpu.matmul %460, %461, %cst_210 {dimension_numbers = #tpu.dot_dimension_numbers<[1], [1], [0], [0], [0, 0, 1, 0], [], []>} : vector<16x8xf32>, vector<16x8xf32>, vector<16x16xf32> -> vector<16x16xf32>
    %463 = vector.extract_strided_slice %446 {offsets = [0, 24], sizes = [16, 8], strides = [1, 1]} : vector<16x32xf32> to vector<16x8xf32>
    %464 = vector.extract_strided_slice %452 {offsets = [0, 24], sizes = [16, 8], strides = [1, 1]} : vector<16x32xf32> to vector<16x8xf32>
    %cst_211 = arith.constant dense<0.000000e+00> : vector<16x16xf32>
    %465 = tpu.matmul %463, %464, %cst_211 {dimension_numbers = #tpu.dot_dimension_numbers<[1], [1], [0], [0], [0, 0, 1, 0], [], []>} : vector<16x8xf32>, vector<16x8xf32>, vector<16x16xf32> -> vector<16x16xf32>
    %466 = tpu.concatenate %456, %459, %462, %465 in 0 : vector<16x16xf32>, vector<16x16xf32>, vector<16x16xf32>, vector<16x16xf32> -> vector<64x16xf32>
    %cst_212 = arith.constant 0.353553385 : f32
    %467 = vector.broadcast %cst_212 : f32 to vector<64x16xf32>
    %468 = arith.mulf %466, %467 : vector<64x16xf32>
    %469 = arith.addf %468, %39 : vector<64x16xf32>
    %cst_213 = arith.constant dense<0xFF800000> : vector<64xf32>
    %470 = vector.multi_reduction <maximumf>, %469, %cst_213 [1] : vector<64x16xf32> to vector<64xf32>
    %471 = vector.shape_cast %470 : vector<64xf32> to vector<64x1xf32>
    %472 = vector.broadcast %471 : vector<64x1xf32> to vector<64x16xf32>
    %473 = arith.subf %469, %472 : vector<64x16xf32>
    %474 = math.exp %473 : vector<64x16xf32>
    %cst_214 = arith.constant dense<0.000000e+00> : vector<64xf32>
    %475 = vector.multi_reduction <add>, %474, %cst_214 [1] : vector<64x16xf32> to vector<64xf32>
    %476 = vector.shape_cast %475 : vector<64xf32> to vector<64x1xf32>
    %477 = vector.broadcast %476 : vector<64x1xf32> to vector<64x16xf32>
    %478 = arith.divf %474, %477 : vector<64x16xf32>
    %479 = vector.extract_strided_slice %478 {offsets = [0, 0], sizes = [16, 16], strides = [1, 1]} : vector<64x16xf32> to vector<16x16xf32>
    %480 = vector.extract_strided_slice %453 {offsets = [0, 0], sizes = [16, 8], strides = [1, 1]} : vector<16x32xf32> to vector<16x8xf32>
    %cst_215 = arith.constant dense<0.000000e+00> : vector<16x8xf32>
    %481 = tpu.matmul %479, %480, %cst_215 {dimension_numbers = #tpu.dot_dimension_numbers<[1], [0], [0], [1], [0, 0, 1, 1], [], []>} : vector<16x16xf32>, vector<16x8xf32>, vector<16x8xf32> -> vector<16x8xf32>
    %482 = vector.extract_strided_slice %478 {offsets = [16, 0], sizes = [16, 16], strides = [1, 1]} : vector<64x16xf32> to vector<16x16xf32>
    %483 = vector.extract_strided_slice %453 {offsets = [0, 8], sizes = [16, 8], strides = [1, 1]} : vector<16x32xf32> to vector<16x8xf32>
    %cst_216 = arith.constant dense<0.000000e+00> : vector<16x8xf32>
    %484 = tpu.matmul %482, %483, %cst_216 {dimension_numbers = #tpu.dot_dimension_numbers<[1], [0], [0], [1], [0, 0, 1, 1], [], []>} : vector<16x16xf32>, vector<16x8xf32>, vector<16x8xf32> -> vector<16x8xf32>
    %485 = vector.extract_strided_slice %478 {offsets = [32, 0], sizes = [16, 16], strides = [1, 1]} : vector<64x16xf32> to vector<16x16xf32>
    %486 = vector.extract_strided_slice %453 {offsets = [0, 16], sizes = [16, 8], strides = [1, 1]} : vector<16x32xf32> to vector<16x8xf32>
    %cst_217 = arith.constant dense<0.000000e+00> : vector<16x8xf32>
    %487 = tpu.matmul %485, %486, %cst_217 {dimension_numbers = #tpu.dot_dimension_numbers<[1], [0], [0], [1], [0, 0, 1, 1], [], []>} : vector<16x16xf32>, vector<16x8xf32>, vector<16x8xf32> -> vector<16x8xf32>
    %488 = vector.extract_strided_slice %478 {offsets = [48, 0], sizes = [16, 16], strides = [1, 1]} : vector<64x16xf32> to vector<16x16xf32>
    %489 = vector.extract_strided_slice %453 {offsets = [0, 24], sizes = [16, 8], strides = [1, 1]} : vector<16x32xf32> to vector<16x8xf32>
    %cst_218 = arith.constant dense<0.000000e+00> : vector<16x8xf32>
    %490 = tpu.matmul %488, %489, %cst_218 {dimension_numbers = #tpu.dot_dimension_numbers<[1], [0], [0], [1], [0, 0, 1, 1], [], []>} : vector<16x16xf32>, vector<16x8xf32>, vector<16x8xf32> -> vector<16x8xf32>
    %491 = tpu.concatenate %481, %484, %487, %490 in 1 : vector<16x8xf32>, vector<16x8xf32>, vector<16x8xf32>, vector<16x8xf32> -> vector<16x32xf32>
    %c3_219 = arith.constant 3 : index
    %c0_220 = arith.constant 0 : index
    %c0_221 = arith.constant 0 : index
    %492 = vector.load %arg7[%c3_219, %c0_220, %c0_221] : memref<6x32x32xf32, #tpu.memory_space<vmem>>, vector<1x32x32xf32>
    %493 = vector.shape_cast %492 : vector<1x32x32xf32> to vector<32x32xf32>
    %cst_222 = arith.constant dense<0.000000e+00> : vector<16x32xf32>
    %494 = tpu.matmul %491, %493, %cst_222 {dimension_numbers = #tpu.dot_dimension_numbers<[1], [0], [0], [1], [0, 0, 1, 1], [], []>} : vector<16x32xf32>, vector<32x32xf32>, vector<16x32xf32> -> vector<16x32xf32>
    %c3_223 = arith.constant 3 : index
    %c0_224 = arith.constant 0 : index
    %c0_225 = arith.constant 0 : index
    %495 = vector.load %arg8[%c3_223, %c0_224, %c0_225] : memref<6x1x32xf32, #tpu.memory_space<vmem>>, vector<1x1x32xf32>
    %496 = vector.shape_cast %495 : vector<1x1x32xf32> to vector<1x32xf32>
    %497 = vector.broadcast %496 : vector<1x32xf32> to vector<16x32xf32>
    %498 = arith.addf %494, %497 : vector<16x32xf32>
    %499 = arith.addf %437, %498 : vector<16x32xf32>
    %cst_226 = arith.constant dense<0.000000e+00> : vector<16xf32>
    %500 = vector.multi_reduction <add>, %499, %cst_226 [1] : vector<16x32xf32> to vector<16xf32>
    %501 = vector.shape_cast %500 : vector<16xf32> to vector<16x1xf32>
    %cst_227 = arith.constant 3.200000e+01 : f32
    %502 = vector.broadcast %cst_227 : f32 to vector<16x1xf32>
    %503 = arith.divf %501, %502 : vector<16x1xf32>
    %504 = vector.broadcast %503 : vector<16x1xf32> to vector<16x32xf32>
    %505 = arith.subf %499, %504 : vector<16x32xf32>
    %506 = arith.mulf %505, %505 : vector<16x32xf32>
    %cst_228 = arith.constant dense<0.000000e+00> : vector<16xf32>
    %507 = vector.multi_reduction <add>, %506, %cst_228 [1] : vector<16x32xf32> to vector<16xf32>
    %508 = vector.shape_cast %507 : vector<16xf32> to vector<16x1xf32>
    %cst_229 = arith.constant 3.200000e+01 : f32
    %509 = vector.broadcast %cst_229 : f32 to vector<16x1xf32>
    %510 = arith.divf %508, %509 : vector<16x1xf32>
    %511 = vector.broadcast %503 : vector<16x1xf32> to vector<16x32xf32>
    %512 = arith.subf %499, %511 : vector<16x32xf32>
    %cst_230 = arith.constant 9.99999974E-6 : f32
    %513 = vector.broadcast %cst_230 : f32 to vector<16x1xf32>
    %514 = arith.addf %510, %513 : vector<16x1xf32>
    %515 = math.rsqrt %514 : vector<16x1xf32>
    %516 = vector.broadcast %515 : vector<16x1xf32> to vector<16x32xf32>
    %517 = arith.mulf %512, %516 : vector<16x32xf32>
    %c6 = arith.constant 6 : index
    %c0_231 = arith.constant 0 : index
    %c0_232 = arith.constant 0 : index
    %518 = vector.load %arg13[%c6, %c0_231, %c0_232] : memref<12x1x32xf32, #tpu.memory_space<vmem>>, vector<1x1x32xf32>
    %519 = vector.shape_cast %518 : vector<1x1x32xf32> to vector<1x32xf32>
    %520 = vector.broadcast %519 : vector<1x32xf32> to vector<16x32xf32>
    %521 = arith.mulf %517, %520 : vector<16x32xf32>
    %c6_233 = arith.constant 6 : index
    %c0_234 = arith.constant 0 : index
    %c0_235 = arith.constant 0 : index
    %522 = vector.load %arg14[%c6_233, %c0_234, %c0_235] : memref<12x1x32xf32, #tpu.memory_space<vmem>>, vector<1x1x32xf32>
    %523 = vector.shape_cast %522 : vector<1x1x32xf32> to vector<1x32xf32>
    %524 = vector.broadcast %523 : vector<1x32xf32> to vector<16x32xf32>
    %525 = arith.addf %521, %524 : vector<16x32xf32>
    %c2_236 = arith.constant 2 : index
    %c0_237 = arith.constant 0 : index
    %c0_238 = arith.constant 0 : index
    %526 = vector.load %arg9[%c2_236, %c0_237, %c0_238] : memref<4x32x64xf32, #tpu.memory_space<vmem>>, vector<1x32x64xf32>
    %527 = vector.shape_cast %526 : vector<1x32x64xf32> to vector<32x64xf32>
    %cst_239 = arith.constant dense<0.000000e+00> : vector<16x64xf32>
    %528 = tpu.matmul %525, %527, %cst_239 {dimension_numbers = #tpu.dot_dimension_numbers<[1], [0], [0], [1], [0, 0, 1, 1], [], []>} : vector<16x32xf32>, vector<32x64xf32>, vector<16x64xf32> -> vector<16x64xf32>
    %c2_240 = arith.constant 2 : index
    %c0_241 = arith.constant 0 : index
    %c0_242 = arith.constant 0 : index
    %529 = vector.load %arg10[%c2_240, %c0_241, %c0_242] : memref<4x1x64xf32, #tpu.memory_space<vmem>>, vector<1x1x64xf32>
    %530 = vector.shape_cast %529 : vector<1x1x64xf32> to vector<1x64xf32>
    %531 = vector.broadcast %530 : vector<1x64xf32> to vector<16x64xf32>
    %532 = arith.addf %528, %531 : vector<16x64xf32>
    %cst_243 = arith.constant 0.000000e+00 : f32
    %533 = vector.broadcast %cst_243 : f32 to vector<16x64xf32>
    %534 = arith.maximumf %532, %533 : vector<16x64xf32>
    %c2_244 = arith.constant 2 : index
    %c0_245 = arith.constant 0 : index
    %c0_246 = arith.constant 0 : index
    %535 = vector.load %arg11[%c2_244, %c0_245, %c0_246] : memref<4x64x32xf32, #tpu.memory_space<vmem>>, vector<1x64x32xf32>
    %536 = vector.shape_cast %535 : vector<1x64x32xf32> to vector<64x32xf32>
    %cst_247 = arith.constant dense<0.000000e+00> : vector<16x32xf32>
    %537 = tpu.matmul %534, %536, %cst_247 {dimension_numbers = #tpu.dot_dimension_numbers<[1], [0], [0], [1], [0, 0, 1, 1], [], []>} : vector<16x64xf32>, vector<64x32xf32>, vector<16x32xf32> -> vector<16x32xf32>
    %c2_248 = arith.constant 2 : index
    %c0_249 = arith.constant 0 : index
    %c0_250 = arith.constant 0 : index
    %538 = vector.load %arg12[%c2_248, %c0_249, %c0_250] : memref<4x1x32xf32, #tpu.memory_space<vmem>>, vector<1x1x32xf32>
    %539 = vector.shape_cast %538 : vector<1x1x32xf32> to vector<1x32xf32>
    %540 = vector.broadcast %539 : vector<1x32xf32> to vector<16x32xf32>
    %541 = arith.addf %537, %540 : vector<16x32xf32>
    %542 = arith.addf %525, %541 : vector<16x32xf32>
    %cst_251 = arith.constant dense<0.000000e+00> : vector<16xf32>
    %543 = vector.multi_reduction <add>, %542, %cst_251 [1] : vector<16x32xf32> to vector<16xf32>
    %544 = vector.shape_cast %543 : vector<16xf32> to vector<16x1xf32>
    %cst_252 = arith.constant 3.200000e+01 : f32
    %545 = vector.broadcast %cst_252 : f32 to vector<16x1xf32>
    %546 = arith.divf %544, %545 : vector<16x1xf32>
    %547 = vector.broadcast %546 : vector<16x1xf32> to vector<16x32xf32>
    %548 = arith.subf %542, %547 : vector<16x32xf32>
    %549 = arith.mulf %548, %548 : vector<16x32xf32>
    %cst_253 = arith.constant dense<0.000000e+00> : vector<16xf32>
    %550 = vector.multi_reduction <add>, %549, %cst_253 [1] : vector<16x32xf32> to vector<16xf32>
    %551 = vector.shape_cast %550 : vector<16xf32> to vector<16x1xf32>
    %cst_254 = arith.constant 3.200000e+01 : f32
    %552 = vector.broadcast %cst_254 : f32 to vector<16x1xf32>
    %553 = arith.divf %551, %552 : vector<16x1xf32>
    %554 = vector.broadcast %546 : vector<16x1xf32> to vector<16x32xf32>
    %555 = arith.subf %542, %554 : vector<16x32xf32>
    %cst_255 = arith.constant 9.99999974E-6 : f32
    %556 = vector.broadcast %cst_255 : f32 to vector<16x1xf32>
    %557 = arith.addf %553, %556 : vector<16x1xf32>
    %558 = math.rsqrt %557 : vector<16x1xf32>
    %559 = vector.broadcast %558 : vector<16x1xf32> to vector<16x32xf32>
    %560 = arith.mulf %555, %559 : vector<16x32xf32>
    %c7 = arith.constant 7 : index
    %c0_256 = arith.constant 0 : index
    %c0_257 = arith.constant 0 : index
    %561 = vector.load %arg13[%c7, %c0_256, %c0_257] : memref<12x1x32xf32, #tpu.memory_space<vmem>>, vector<1x1x32xf32>
    %562 = vector.shape_cast %561 : vector<1x1x32xf32> to vector<1x32xf32>
    %563 = vector.broadcast %562 : vector<1x32xf32> to vector<16x32xf32>
    %564 = arith.mulf %560, %563 : vector<16x32xf32>
    %c7_258 = arith.constant 7 : index
    %c0_259 = arith.constant 0 : index
    %c0_260 = arith.constant 0 : index
    %565 = vector.load %arg14[%c7_258, %c0_259, %c0_260] : memref<12x1x32xf32, #tpu.memory_space<vmem>>, vector<1x1x32xf32>
    %566 = vector.shape_cast %565 : vector<1x1x32xf32> to vector<1x32xf32>
    %567 = vector.broadcast %566 : vector<1x32xf32> to vector<16x32xf32>
    %568 = arith.addf %564, %567 : vector<16x32xf32>
    %c4_261 = arith.constant 4 : index
    %c0_262 = arith.constant 0 : index
    %c0_263 = arith.constant 0 : index
    %569 = vector.load %arg5[%c4_261, %c0_262, %c0_263] : memref<6x32x96xf32, #tpu.memory_space<vmem>>, vector<1x32x96xf32>
    %570 = vector.shape_cast %569 : vector<1x32x96xf32> to vector<32x96xf32>
    %cst_264 = arith.constant dense<0.000000e+00> : vector<16x96xf32>
    %571 = tpu.matmul %568, %570, %cst_264 {dimension_numbers = #tpu.dot_dimension_numbers<[1], [0], [0], [1], [0, 0, 1, 1], [], []>} : vector<16x32xf32>, vector<32x96xf32>, vector<16x96xf32> -> vector<16x96xf32>
    %c4_265 = arith.constant 4 : index
    %c0_266 = arith.constant 0 : index
    %c0_267 = arith.constant 0 : index
    %572 = vector.load %arg6[%c4_265, %c0_266, %c0_267] : memref<6x1x96xf32, #tpu.memory_space<vmem>>, vector<1x1x96xf32>
    %573 = vector.shape_cast %572 : vector<1x1x96xf32> to vector<1x96xf32>
    %574 = vector.broadcast %573 : vector<1x96xf32> to vector<16x96xf32>
    %575 = arith.addf %571, %574 : vector<16x96xf32>
    %576 = vector.extract_strided_slice %575 {offsets = [0, 0], sizes = [16, 32], strides = [1, 1]} : vector<16x96xf32> to vector<16x32xf32>
    %577 = vector.extract_strided_slice %575 {offsets = [0, 32], sizes = [16, 32], strides = [1, 1]} : vector<16x96xf32> to vector<16x32xf32>
    %578 = vector.extract_strided_slice %575 {offsets = [0, 64], sizes = [16, 32], strides = [1, 1]} : vector<16x96xf32> to vector<16x32xf32>
    %579 = vector.extract_strided_slice %576 {offsets = [0, 0], sizes = [16, 8], strides = [1, 1]} : vector<16x32xf32> to vector<16x8xf32>
    %580 = vector.extract_strided_slice %577 {offsets = [0, 0], sizes = [16, 8], strides = [1, 1]} : vector<16x32xf32> to vector<16x8xf32>
    %cst_268 = arith.constant dense<0.000000e+00> : vector<16x16xf32>
    %581 = tpu.matmul %579, %580, %cst_268 {dimension_numbers = #tpu.dot_dimension_numbers<[1], [1], [0], [0], [0, 0, 1, 0], [], []>} : vector<16x8xf32>, vector<16x8xf32>, vector<16x16xf32> -> vector<16x16xf32>
    %582 = vector.extract_strided_slice %576 {offsets = [0, 8], sizes = [16, 8], strides = [1, 1]} : vector<16x32xf32> to vector<16x8xf32>
    %583 = vector.extract_strided_slice %577 {offsets = [0, 8], sizes = [16, 8], strides = [1, 1]} : vector<16x32xf32> to vector<16x8xf32>
    %cst_269 = arith.constant dense<0.000000e+00> : vector<16x16xf32>
    %584 = tpu.matmul %582, %583, %cst_269 {dimension_numbers = #tpu.dot_dimension_numbers<[1], [1], [0], [0], [0, 0, 1, 0], [], []>} : vector<16x8xf32>, vector<16x8xf32>, vector<16x16xf32> -> vector<16x16xf32>
    %585 = vector.extract_strided_slice %576 {offsets = [0, 16], sizes = [16, 8], strides = [1, 1]} : vector<16x32xf32> to vector<16x8xf32>
    %586 = vector.extract_strided_slice %577 {offsets = [0, 16], sizes = [16, 8], strides = [1, 1]} : vector<16x32xf32> to vector<16x8xf32>
    %cst_270 = arith.constant dense<0.000000e+00> : vector<16x16xf32>
    %587 = tpu.matmul %585, %586, %cst_270 {dimension_numbers = #tpu.dot_dimension_numbers<[1], [1], [0], [0], [0, 0, 1, 0], [], []>} : vector<16x8xf32>, vector<16x8xf32>, vector<16x16xf32> -> vector<16x16xf32>
    %588 = vector.extract_strided_slice %576 {offsets = [0, 24], sizes = [16, 8], strides = [1, 1]} : vector<16x32xf32> to vector<16x8xf32>
    %589 = vector.extract_strided_slice %577 {offsets = [0, 24], sizes = [16, 8], strides = [1, 1]} : vector<16x32xf32> to vector<16x8xf32>
    %cst_271 = arith.constant dense<0.000000e+00> : vector<16x16xf32>
    %590 = tpu.matmul %588, %589, %cst_271 {dimension_numbers = #tpu.dot_dimension_numbers<[1], [1], [0], [0], [0, 0, 1, 0], [], []>} : vector<16x8xf32>, vector<16x8xf32>, vector<16x16xf32> -> vector<16x16xf32>
    %591 = tpu.concatenate %581, %584, %587, %590 in 0 : vector<16x16xf32>, vector<16x16xf32>, vector<16x16xf32>, vector<16x16xf32> -> vector<64x16xf32>
    %cst_272 = arith.constant 0.353553385 : f32
    %592 = vector.broadcast %cst_272 : f32 to vector<64x16xf32>
    %593 = arith.mulf %591, %592 : vector<64x16xf32>
    %594 = arith.addf %593, %26 : vector<64x16xf32>
    %cst_273 = arith.constant dense<0xFF800000> : vector<64xf32>
    %595 = vector.multi_reduction <maximumf>, %594, %cst_273 [1] : vector<64x16xf32> to vector<64xf32>
    %596 = vector.shape_cast %595 : vector<64xf32> to vector<64x1xf32>
    %597 = vector.broadcast %596 : vector<64x1xf32> to vector<64x16xf32>
    %598 = arith.subf %594, %597 : vector<64x16xf32>
    %599 = math.exp %598 : vector<64x16xf32>
    %cst_274 = arith.constant dense<0.000000e+00> : vector<64xf32>
    %600 = vector.multi_reduction <add>, %599, %cst_274 [1] : vector<64x16xf32> to vector<64xf32>
    %601 = vector.shape_cast %600 : vector<64xf32> to vector<64x1xf32>
    %602 = vector.broadcast %601 : vector<64x1xf32> to vector<64x16xf32>
    %603 = arith.divf %599, %602 : vector<64x16xf32>
    %604 = vector.extract_strided_slice %603 {offsets = [0, 0], sizes = [16, 16], strides = [1, 1]} : vector<64x16xf32> to vector<16x16xf32>
    %605 = vector.extract_strided_slice %578 {offsets = [0, 0], sizes = [16, 8], strides = [1, 1]} : vector<16x32xf32> to vector<16x8xf32>
    %cst_275 = arith.constant dense<0.000000e+00> : vector<16x8xf32>
    %606 = tpu.matmul %604, %605, %cst_275 {dimension_numbers = #tpu.dot_dimension_numbers<[1], [0], [0], [1], [0, 0, 1, 1], [], []>} : vector<16x16xf32>, vector<16x8xf32>, vector<16x8xf32> -> vector<16x8xf32>
    %607 = vector.extract_strided_slice %603 {offsets = [16, 0], sizes = [16, 16], strides = [1, 1]} : vector<64x16xf32> to vector<16x16xf32>
    %608 = vector.extract_strided_slice %578 {offsets = [0, 8], sizes = [16, 8], strides = [1, 1]} : vector<16x32xf32> to vector<16x8xf32>
    %cst_276 = arith.constant dense<0.000000e+00> : vector<16x8xf32>
    %609 = tpu.matmul %607, %608, %cst_276 {dimension_numbers = #tpu.dot_dimension_numbers<[1], [0], [0], [1], [0, 0, 1, 1], [], []>} : vector<16x16xf32>, vector<16x8xf32>, vector<16x8xf32> -> vector<16x8xf32>
    %610 = vector.extract_strided_slice %603 {offsets = [32, 0], sizes = [16, 16], strides = [1, 1]} : vector<64x16xf32> to vector<16x16xf32>
    %611 = vector.extract_strided_slice %578 {offsets = [0, 16], sizes = [16, 8], strides = [1, 1]} : vector<16x32xf32> to vector<16x8xf32>
    %cst_277 = arith.constant dense<0.000000e+00> : vector<16x8xf32>
    %612 = tpu.matmul %610, %611, %cst_277 {dimension_numbers = #tpu.dot_dimension_numbers<[1], [0], [0], [1], [0, 0, 1, 1], [], []>} : vector<16x16xf32>, vector<16x8xf32>, vector<16x8xf32> -> vector<16x8xf32>
    %613 = vector.extract_strided_slice %603 {offsets = [48, 0], sizes = [16, 16], strides = [1, 1]} : vector<64x16xf32> to vector<16x16xf32>
    %614 = vector.extract_strided_slice %578 {offsets = [0, 24], sizes = [16, 8], strides = [1, 1]} : vector<16x32xf32> to vector<16x8xf32>
    %cst_278 = arith.constant dense<0.000000e+00> : vector<16x8xf32>
    %615 = tpu.matmul %613, %614, %cst_278 {dimension_numbers = #tpu.dot_dimension_numbers<[1], [0], [0], [1], [0, 0, 1, 1], [], []>} : vector<16x16xf32>, vector<16x8xf32>, vector<16x8xf32> -> vector<16x8xf32>
    %616 = tpu.concatenate %606, %609, %612, %615 in 1 : vector<16x8xf32>, vector<16x8xf32>, vector<16x8xf32>, vector<16x8xf32> -> vector<16x32xf32>
    %c4_279 = arith.constant 4 : index
    %c0_280 = arith.constant 0 : index
    %c0_281 = arith.constant 0 : index
    %617 = vector.load %arg7[%c4_279, %c0_280, %c0_281] : memref<6x32x32xf32, #tpu.memory_space<vmem>>, vector<1x32x32xf32>
    %618 = vector.shape_cast %617 : vector<1x32x32xf32> to vector<32x32xf32>
    %cst_282 = arith.constant dense<0.000000e+00> : vector<16x32xf32>
    %619 = tpu.matmul %616, %618, %cst_282 {dimension_numbers = #tpu.dot_dimension_numbers<[1], [0], [0], [1], [0, 0, 1, 1], [], []>} : vector<16x32xf32>, vector<32x32xf32>, vector<16x32xf32> -> vector<16x32xf32>
    %c4_283 = arith.constant 4 : index
    %c0_284 = arith.constant 0 : index
    %c0_285 = arith.constant 0 : index
    %620 = vector.load %arg8[%c4_283, %c0_284, %c0_285] : memref<6x1x32xf32, #tpu.memory_space<vmem>>, vector<1x1x32xf32>
    %621 = vector.shape_cast %620 : vector<1x1x32xf32> to vector<1x32xf32>
    %622 = vector.broadcast %621 : vector<1x32xf32> to vector<16x32xf32>
    %623 = arith.addf %619, %622 : vector<16x32xf32>
    %624 = arith.addf %568, %623 : vector<16x32xf32>
    %cst_286 = arith.constant dense<0.000000e+00> : vector<16xf32>
    %625 = vector.multi_reduction <add>, %624, %cst_286 [1] : vector<16x32xf32> to vector<16xf32>
    %626 = vector.shape_cast %625 : vector<16xf32> to vector<16x1xf32>
    %cst_287 = arith.constant 3.200000e+01 : f32
    %627 = vector.broadcast %cst_287 : f32 to vector<16x1xf32>
    %628 = arith.divf %626, %627 : vector<16x1xf32>
    %629 = vector.broadcast %628 : vector<16x1xf32> to vector<16x32xf32>
    %630 = arith.subf %624, %629 : vector<16x32xf32>
    %631 = arith.mulf %630, %630 : vector<16x32xf32>
    %cst_288 = arith.constant dense<0.000000e+00> : vector<16xf32>
    %632 = vector.multi_reduction <add>, %631, %cst_288 [1] : vector<16x32xf32> to vector<16xf32>
    %633 = vector.shape_cast %632 : vector<16xf32> to vector<16x1xf32>
    %cst_289 = arith.constant 3.200000e+01 : f32
    %634 = vector.broadcast %cst_289 : f32 to vector<16x1xf32>
    %635 = arith.divf %633, %634 : vector<16x1xf32>
    %636 = vector.broadcast %628 : vector<16x1xf32> to vector<16x32xf32>
    %637 = arith.subf %624, %636 : vector<16x32xf32>
    %cst_290 = arith.constant 9.99999974E-6 : f32
    %638 = vector.broadcast %cst_290 : f32 to vector<16x1xf32>
    %639 = arith.addf %635, %638 : vector<16x1xf32>
    %640 = math.rsqrt %639 : vector<16x1xf32>
    %641 = vector.broadcast %640 : vector<16x1xf32> to vector<16x32xf32>
    %642 = arith.mulf %637, %641 : vector<16x32xf32>
    %c8 = arith.constant 8 : index
    %c0_291 = arith.constant 0 : index
    %c0_292 = arith.constant 0 : index
    %643 = vector.load %arg13[%c8, %c0_291, %c0_292] : memref<12x1x32xf32, #tpu.memory_space<vmem>>, vector<1x1x32xf32>
    %644 = vector.shape_cast %643 : vector<1x1x32xf32> to vector<1x32xf32>
    %645 = vector.broadcast %644 : vector<1x32xf32> to vector<16x32xf32>
    %646 = arith.mulf %642, %645 : vector<16x32xf32>
    %c8_293 = arith.constant 8 : index
    %c0_294 = arith.constant 0 : index
    %c0_295 = arith.constant 0 : index
    %647 = vector.load %arg14[%c8_293, %c0_294, %c0_295] : memref<12x1x32xf32, #tpu.memory_space<vmem>>, vector<1x1x32xf32>
    %648 = vector.shape_cast %647 : vector<1x1x32xf32> to vector<1x32xf32>
    %649 = vector.broadcast %648 : vector<1x32xf32> to vector<16x32xf32>
    %650 = arith.addf %646, %649 : vector<16x32xf32>
    %c5_296 = arith.constant 5 : index
    %c0_297 = arith.constant 0 : index
    %c0_298 = arith.constant 0 : index
    %651 = vector.load %arg5[%c5_296, %c0_297, %c0_298] : memref<6x32x96xf32, #tpu.memory_space<vmem>>, vector<1x32x96xf32>
    %652 = vector.shape_cast %651 : vector<1x32x96xf32> to vector<32x96xf32>
    %c5_299 = arith.constant 5 : index
    %c0_300 = arith.constant 0 : index
    %c0_301 = arith.constant 0 : index
    %653 = vector.load %arg6[%c5_299, %c0_300, %c0_301] : memref<6x1x96xf32, #tpu.memory_space<vmem>>, vector<1x1x96xf32>
    %654 = vector.shape_cast %653 : vector<1x1x96xf32> to vector<1x96xf32>
    %655 = vector.extract_strided_slice %652 {offsets = [0, 0], sizes = [32, 32], strides = [1, 1]} : vector<32x96xf32> to vector<32x32xf32>
    %cst_302 = arith.constant dense<0.000000e+00> : vector<16x32xf32>
    %656 = tpu.matmul %650, %655, %cst_302 {dimension_numbers = #tpu.dot_dimension_numbers<[1], [0], [0], [1], [0, 0, 1, 1], [], []>} : vector<16x32xf32>, vector<32x32xf32>, vector<16x32xf32> -> vector<16x32xf32>
    %657 = vector.extract_strided_slice %654 {offsets = [0, 0], sizes = [1, 32], strides = [1, 1]} : vector<1x96xf32> to vector<1x32xf32>
    %658 = vector.broadcast %657 : vector<1x32xf32> to vector<16x32xf32>
    %659 = arith.addf %656, %658 : vector<16x32xf32>
    %660 = vector.extract_strided_slice %652 {offsets = [0, 32], sizes = [32, 64], strides = [1, 1]} : vector<32x96xf32> to vector<32x64xf32>
    %cst_303 = arith.constant dense<0.000000e+00> : vector<16x64xf32>
    %661 = tpu.matmul %335, %660, %cst_303 {dimension_numbers = #tpu.dot_dimension_numbers<[1], [0], [0], [1], [0, 0, 1, 1], [], []>} : vector<16x32xf32>, vector<32x64xf32>, vector<16x64xf32> -> vector<16x64xf32>
    %662 = vector.extract_strided_slice %654 {offsets = [0, 32], sizes = [1, 64], strides = [1, 1]} : vector<1x96xf32> to vector<1x64xf32>
    %663 = vector.broadcast %662 : vector<1x64xf32> to vector<16x64xf32>
    %664 = arith.addf %661, %663 : vector<16x64xf32>
    %665 = vector.extract_strided_slice %664 {offsets = [0, 0], sizes = [16, 32], strides = [1, 1]} : vector<16x64xf32> to vector<16x32xf32>
    %666 = vector.extract_strided_slice %664 {offsets = [0, 32], sizes = [16, 32], strides = [1, 1]} : vector<16x64xf32> to vector<16x32xf32>
    %667 = vector.extract_strided_slice %659 {offsets = [0, 0], sizes = [16, 8], strides = [1, 1]} : vector<16x32xf32> to vector<16x8xf32>
    %668 = vector.extract_strided_slice %665 {offsets = [0, 0], sizes = [16, 8], strides = [1, 1]} : vector<16x32xf32> to vector<16x8xf32>
    %cst_304 = arith.constant dense<0.000000e+00> : vector<16x16xf32>
    %669 = tpu.matmul %667, %668, %cst_304 {dimension_numbers = #tpu.dot_dimension_numbers<[1], [1], [0], [0], [0, 0, 1, 0], [], []>} : vector<16x8xf32>, vector<16x8xf32>, vector<16x16xf32> -> vector<16x16xf32>
    %670 = vector.extract_strided_slice %659 {offsets = [0, 8], sizes = [16, 8], strides = [1, 1]} : vector<16x32xf32> to vector<16x8xf32>
    %671 = vector.extract_strided_slice %665 {offsets = [0, 8], sizes = [16, 8], strides = [1, 1]} : vector<16x32xf32> to vector<16x8xf32>
    %cst_305 = arith.constant dense<0.000000e+00> : vector<16x16xf32>
    %672 = tpu.matmul %670, %671, %cst_305 {dimension_numbers = #tpu.dot_dimension_numbers<[1], [1], [0], [0], [0, 0, 1, 0], [], []>} : vector<16x8xf32>, vector<16x8xf32>, vector<16x16xf32> -> vector<16x16xf32>
    %673 = vector.extract_strided_slice %659 {offsets = [0, 16], sizes = [16, 8], strides = [1, 1]} : vector<16x32xf32> to vector<16x8xf32>
    %674 = vector.extract_strided_slice %665 {offsets = [0, 16], sizes = [16, 8], strides = [1, 1]} : vector<16x32xf32> to vector<16x8xf32>
    %cst_306 = arith.constant dense<0.000000e+00> : vector<16x16xf32>
    %675 = tpu.matmul %673, %674, %cst_306 {dimension_numbers = #tpu.dot_dimension_numbers<[1], [1], [0], [0], [0, 0, 1, 0], [], []>} : vector<16x8xf32>, vector<16x8xf32>, vector<16x16xf32> -> vector<16x16xf32>
    %676 = vector.extract_strided_slice %659 {offsets = [0, 24], sizes = [16, 8], strides = [1, 1]} : vector<16x32xf32> to vector<16x8xf32>
    %677 = vector.extract_strided_slice %665 {offsets = [0, 24], sizes = [16, 8], strides = [1, 1]} : vector<16x32xf32> to vector<16x8xf32>
    %cst_307 = arith.constant dense<0.000000e+00> : vector<16x16xf32>
    %678 = tpu.matmul %676, %677, %cst_307 {dimension_numbers = #tpu.dot_dimension_numbers<[1], [1], [0], [0], [0, 0, 1, 0], [], []>} : vector<16x8xf32>, vector<16x8xf32>, vector<16x16xf32> -> vector<16x16xf32>
    %679 = tpu.concatenate %669, %672, %675, %678 in 0 : vector<16x16xf32>, vector<16x16xf32>, vector<16x16xf32>, vector<16x16xf32> -> vector<64x16xf32>
    %cst_308 = arith.constant 0.353553385 : f32
    %680 = vector.broadcast %cst_308 : f32 to vector<64x16xf32>
    %681 = arith.mulf %679, %680 : vector<64x16xf32>
    %682 = arith.addf %681, %39 : vector<64x16xf32>
    %cst_309 = arith.constant dense<0xFF800000> : vector<64xf32>
    %683 = vector.multi_reduction <maximumf>, %682, %cst_309 [1] : vector<64x16xf32> to vector<64xf32>
    %684 = vector.shape_cast %683 : vector<64xf32> to vector<64x1xf32>
    %685 = vector.broadcast %684 : vector<64x1xf32> to vector<64x16xf32>
    %686 = arith.subf %682, %685 : vector<64x16xf32>
    %687 = math.exp %686 : vector<64x16xf32>
    %cst_310 = arith.constant dense<0.000000e+00> : vector<64xf32>
    %688 = vector.multi_reduction <add>, %687, %cst_310 [1] : vector<64x16xf32> to vector<64xf32>
    %689 = vector.shape_cast %688 : vector<64xf32> to vector<64x1xf32>
    %690 = vector.broadcast %689 : vector<64x1xf32> to vector<64x16xf32>
    %691 = arith.divf %687, %690 : vector<64x16xf32>
    %692 = vector.extract_strided_slice %691 {offsets = [0, 0], sizes = [16, 16], strides = [1, 1]} : vector<64x16xf32> to vector<16x16xf32>
    %693 = vector.extract_strided_slice %666 {offsets = [0, 0], sizes = [16, 8], strides = [1, 1]} : vector<16x32xf32> to vector<16x8xf32>
    %cst_311 = arith.constant dense<0.000000e+00> : vector<16x8xf32>
    %694 = tpu.matmul %692, %693, %cst_311 {dimension_numbers = #tpu.dot_dimension_numbers<[1], [0], [0], [1], [0, 0, 1, 1], [], []>} : vector<16x16xf32>, vector<16x8xf32>, vector<16x8xf32> -> vector<16x8xf32>
    %695 = vector.extract_strided_slice %691 {offsets = [16, 0], sizes = [16, 16], strides = [1, 1]} : vector<64x16xf32> to vector<16x16xf32>
    %696 = vector.extract_strided_slice %666 {offsets = [0, 8], sizes = [16, 8], strides = [1, 1]} : vector<16x32xf32> to vector<16x8xf32>
    %cst_312 = arith.constant dense<0.000000e+00> : vector<16x8xf32>
    %697 = tpu.matmul %695, %696, %cst_312 {dimension_numbers = #tpu.dot_dimension_numbers<[1], [0], [0], [1], [0, 0, 1, 1], [], []>} : vector<16x16xf32>, vector<16x8xf32>, vector<16x8xf32> -> vector<16x8xf32>
    %698 = vector.extract_strided_slice %691 {offsets = [32, 0], sizes = [16, 16], strides = [1, 1]} : vector<64x16xf32> to vector<16x16xf32>
    %699 = vector.extract_strided_slice %666 {offsets = [0, 16], sizes = [16, 8], strides = [1, 1]} : vector<16x32xf32> to vector<16x8xf32>
    %cst_313 = arith.constant dense<0.000000e+00> : vector<16x8xf32>
    %700 = tpu.matmul %698, %699, %cst_313 {dimension_numbers = #tpu.dot_dimension_numbers<[1], [0], [0], [1], [0, 0, 1, 1], [], []>} : vector<16x16xf32>, vector<16x8xf32>, vector<16x8xf32> -> vector<16x8xf32>
    %701 = vector.extract_strided_slice %691 {offsets = [48, 0], sizes = [16, 16], strides = [1, 1]} : vector<64x16xf32> to vector<16x16xf32>
    %702 = vector.extract_strided_slice %666 {offsets = [0, 24], sizes = [16, 8], strides = [1, 1]} : vector<16x32xf32> to vector<16x8xf32>
    %cst_314 = arith.constant dense<0.000000e+00> : vector<16x8xf32>
    %703 = tpu.matmul %701, %702, %cst_314 {dimension_numbers = #tpu.dot_dimension_numbers<[1], [0], [0], [1], [0, 0, 1, 1], [], []>} : vector<16x16xf32>, vector<16x8xf32>, vector<16x8xf32> -> vector<16x8xf32>
    %704 = tpu.concatenate %694, %697, %700, %703 in 1 : vector<16x8xf32>, vector<16x8xf32>, vector<16x8xf32>, vector<16x8xf32> -> vector<16x32xf32>
    %c5_315 = arith.constant 5 : index
    %c0_316 = arith.constant 0 : index
    %c0_317 = arith.constant 0 : index
    %705 = vector.load %arg7[%c5_315, %c0_316, %c0_317] : memref<6x32x32xf32, #tpu.memory_space<vmem>>, vector<1x32x32xf32>
    %706 = vector.shape_cast %705 : vector<1x32x32xf32> to vector<32x32xf32>
    %cst_318 = arith.constant dense<0.000000e+00> : vector<16x32xf32>
    %707 = tpu.matmul %704, %706, %cst_318 {dimension_numbers = #tpu.dot_dimension_numbers<[1], [0], [0], [1], [0, 0, 1, 1], [], []>} : vector<16x32xf32>, vector<32x32xf32>, vector<16x32xf32> -> vector<16x32xf32>
    %c5_319 = arith.constant 5 : index
    %c0_320 = arith.constant 0 : index
    %c0_321 = arith.constant 0 : index
    %708 = vector.load %arg8[%c5_319, %c0_320, %c0_321] : memref<6x1x32xf32, #tpu.memory_space<vmem>>, vector<1x1x32xf32>
    %709 = vector.shape_cast %708 : vector<1x1x32xf32> to vector<1x32xf32>
    %710 = vector.broadcast %709 : vector<1x32xf32> to vector<16x32xf32>
    %711 = arith.addf %707, %710 : vector<16x32xf32>
    %712 = arith.addf %650, %711 : vector<16x32xf32>
    %cst_322 = arith.constant dense<0.000000e+00> : vector<16xf32>
    %713 = vector.multi_reduction <add>, %712, %cst_322 [1] : vector<16x32xf32> to vector<16xf32>
    %714 = vector.shape_cast %713 : vector<16xf32> to vector<16x1xf32>
    %cst_323 = arith.constant 3.200000e+01 : f32
    %715 = vector.broadcast %cst_323 : f32 to vector<16x1xf32>
    %716 = arith.divf %714, %715 : vector<16x1xf32>
    %717 = vector.broadcast %716 : vector<16x1xf32> to vector<16x32xf32>
    %718 = arith.subf %712, %717 : vector<16x32xf32>
    %719 = arith.mulf %718, %718 : vector<16x32xf32>
    %cst_324 = arith.constant dense<0.000000e+00> : vector<16xf32>
    %720 = vector.multi_reduction <add>, %719, %cst_324 [1] : vector<16x32xf32> to vector<16xf32>
    %721 = vector.shape_cast %720 : vector<16xf32> to vector<16x1xf32>
    %cst_325 = arith.constant 3.200000e+01 : f32
    %722 = vector.broadcast %cst_325 : f32 to vector<16x1xf32>
    %723 = arith.divf %721, %722 : vector<16x1xf32>
    %724 = vector.broadcast %716 : vector<16x1xf32> to vector<16x32xf32>
    %725 = arith.subf %712, %724 : vector<16x32xf32>
    %cst_326 = arith.constant 9.99999974E-6 : f32
    %726 = vector.broadcast %cst_326 : f32 to vector<16x1xf32>
    %727 = arith.addf %723, %726 : vector<16x1xf32>
    %728 = math.rsqrt %727 : vector<16x1xf32>
    %729 = vector.broadcast %728 : vector<16x1xf32> to vector<16x32xf32>
    %730 = arith.mulf %725, %729 : vector<16x32xf32>
    %c9 = arith.constant 9 : index
    %c0_327 = arith.constant 0 : index
    %c0_328 = arith.constant 0 : index
    %731 = vector.load %arg13[%c9, %c0_327, %c0_328] : memref<12x1x32xf32, #tpu.memory_space<vmem>>, vector<1x1x32xf32>
    %732 = vector.shape_cast %731 : vector<1x1x32xf32> to vector<1x32xf32>
    %733 = vector.broadcast %732 : vector<1x32xf32> to vector<16x32xf32>
    %734 = arith.mulf %730, %733 : vector<16x32xf32>
    %c9_329 = arith.constant 9 : index
    %c0_330 = arith.constant 0 : index
    %c0_331 = arith.constant 0 : index
    %735 = vector.load %arg14[%c9_329, %c0_330, %c0_331] : memref<12x1x32xf32, #tpu.memory_space<vmem>>, vector<1x1x32xf32>
    %736 = vector.shape_cast %735 : vector<1x1x32xf32> to vector<1x32xf32>
    %737 = vector.broadcast %736 : vector<1x32xf32> to vector<16x32xf32>
    %738 = arith.addf %734, %737 : vector<16x32xf32>
    %c3_332 = arith.constant 3 : index
    %c0_333 = arith.constant 0 : index
    %c0_334 = arith.constant 0 : index
    %739 = vector.load %arg9[%c3_332, %c0_333, %c0_334] : memref<4x32x64xf32, #tpu.memory_space<vmem>>, vector<1x32x64xf32>
    %740 = vector.shape_cast %739 : vector<1x32x64xf32> to vector<32x64xf32>
    %cst_335 = arith.constant dense<0.000000e+00> : vector<16x64xf32>
    %741 = tpu.matmul %738, %740, %cst_335 {dimension_numbers = #tpu.dot_dimension_numbers<[1], [0], [0], [1], [0, 0, 1, 1], [], []>} : vector<16x32xf32>, vector<32x64xf32>, vector<16x64xf32> -> vector<16x64xf32>
    %c3_336 = arith.constant 3 : index
    %c0_337 = arith.constant 0 : index
    %c0_338 = arith.constant 0 : index
    %742 = vector.load %arg10[%c3_336, %c0_337, %c0_338] : memref<4x1x64xf32, #tpu.memory_space<vmem>>, vector<1x1x64xf32>
    %743 = vector.shape_cast %742 : vector<1x1x64xf32> to vector<1x64xf32>
    %744 = vector.broadcast %743 : vector<1x64xf32> to vector<16x64xf32>
    %745 = arith.addf %741, %744 : vector<16x64xf32>
    %cst_339 = arith.constant 0.000000e+00 : f32
    %746 = vector.broadcast %cst_339 : f32 to vector<16x64xf32>
    %747 = arith.maximumf %745, %746 : vector<16x64xf32>
    %c3_340 = arith.constant 3 : index
    %c0_341 = arith.constant 0 : index
    %c0_342 = arith.constant 0 : index
    %748 = vector.load %arg11[%c3_340, %c0_341, %c0_342] : memref<4x64x32xf32, #tpu.memory_space<vmem>>, vector<1x64x32xf32>
    %749 = vector.shape_cast %748 : vector<1x64x32xf32> to vector<64x32xf32>
    %cst_343 = arith.constant dense<0.000000e+00> : vector<16x32xf32>
    %750 = tpu.matmul %747, %749, %cst_343 {dimension_numbers = #tpu.dot_dimension_numbers<[1], [0], [0], [1], [0, 0, 1, 1], [], []>} : vector<16x64xf32>, vector<64x32xf32>, vector<16x32xf32> -> vector<16x32xf32>
    %c3_344 = arith.constant 3 : index
    %c0_345 = arith.constant 0 : index
    %c0_346 = arith.constant 0 : index
    %751 = vector.load %arg12[%c3_344, %c0_345, %c0_346] : memref<4x1x32xf32, #tpu.memory_space<vmem>>, vector<1x1x32xf32>
    %752 = vector.shape_cast %751 : vector<1x1x32xf32> to vector<1x32xf32>
    %753 = vector.broadcast %752 : vector<1x32xf32> to vector<16x32xf32>
    %754 = arith.addf %750, %753 : vector<16x32xf32>
    %755 = arith.addf %738, %754 : vector<16x32xf32>
    %cst_347 = arith.constant dense<0.000000e+00> : vector<16xf32>
    %756 = vector.multi_reduction <add>, %755, %cst_347 [1] : vector<16x32xf32> to vector<16xf32>
    %757 = vector.shape_cast %756 : vector<16xf32> to vector<16x1xf32>
    %cst_348 = arith.constant 3.200000e+01 : f32
    %758 = vector.broadcast %cst_348 : f32 to vector<16x1xf32>
    %759 = arith.divf %757, %758 : vector<16x1xf32>
    %760 = vector.broadcast %759 : vector<16x1xf32> to vector<16x32xf32>
    %761 = arith.subf %755, %760 : vector<16x32xf32>
    %762 = arith.mulf %761, %761 : vector<16x32xf32>
    %cst_349 = arith.constant dense<0.000000e+00> : vector<16xf32>
    %763 = vector.multi_reduction <add>, %762, %cst_349 [1] : vector<16x32xf32> to vector<16xf32>
    %764 = vector.shape_cast %763 : vector<16xf32> to vector<16x1xf32>
    %cst_350 = arith.constant 3.200000e+01 : f32
    %765 = vector.broadcast %cst_350 : f32 to vector<16x1xf32>
    %766 = arith.divf %764, %765 : vector<16x1xf32>
    %767 = vector.broadcast %759 : vector<16x1xf32> to vector<16x32xf32>
    %768 = arith.subf %755, %767 : vector<16x32xf32>
    %cst_351 = arith.constant 9.99999974E-6 : f32
    %769 = vector.broadcast %cst_351 : f32 to vector<16x1xf32>
    %770 = arith.addf %766, %769 : vector<16x1xf32>
    %771 = math.rsqrt %770 : vector<16x1xf32>
    %772 = vector.broadcast %771 : vector<16x1xf32> to vector<16x32xf32>
    %773 = arith.mulf %768, %772 : vector<16x32xf32>
    %c10 = arith.constant 10 : index
    %c0_352 = arith.constant 0 : index
    %c0_353 = arith.constant 0 : index
    %774 = vector.load %arg13[%c10, %c0_352, %c0_353] : memref<12x1x32xf32, #tpu.memory_space<vmem>>, vector<1x1x32xf32>
    %775 = vector.shape_cast %774 : vector<1x1x32xf32> to vector<1x32xf32>
    %776 = vector.broadcast %775 : vector<1x32xf32> to vector<16x32xf32>
    %777 = arith.mulf %773, %776 : vector<16x32xf32>
    %c10_354 = arith.constant 10 : index
    %c0_355 = arith.constant 0 : index
    %c0_356 = arith.constant 0 : index
    %778 = vector.load %arg14[%c10_354, %c0_355, %c0_356] : memref<12x1x32xf32, #tpu.memory_space<vmem>>, vector<1x1x32xf32>
    %779 = vector.shape_cast %778 : vector<1x1x32xf32> to vector<1x32xf32>
    %780 = vector.broadcast %779 : vector<1x32xf32> to vector<16x32xf32>
    %781 = arith.addf %777, %780 : vector<16x32xf32>
    %cst_357 = arith.constant dense<0.000000e+00> : vector<16xf32>
    %782 = vector.multi_reduction <add>, %781, %cst_357 [1] : vector<16x32xf32> to vector<16xf32>
    %783 = vector.shape_cast %782 : vector<16xf32> to vector<16x1xf32>
    %cst_358 = arith.constant 3.200000e+01 : f32
    %784 = vector.broadcast %cst_358 : f32 to vector<16x1xf32>
    %785 = arith.divf %783, %784 : vector<16x1xf32>
    %786 = vector.broadcast %785 : vector<16x1xf32> to vector<16x32xf32>
    %787 = arith.subf %781, %786 : vector<16x32xf32>
    %788 = arith.mulf %787, %787 : vector<16x32xf32>
    %cst_359 = arith.constant dense<0.000000e+00> : vector<16xf32>
    %789 = vector.multi_reduction <add>, %788, %cst_359 [1] : vector<16x32xf32> to vector<16xf32>
    %790 = vector.shape_cast %789 : vector<16xf32> to vector<16x1xf32>
    %cst_360 = arith.constant 3.200000e+01 : f32
    %791 = vector.broadcast %cst_360 : f32 to vector<16x1xf32>
    %792 = arith.divf %790, %791 : vector<16x1xf32>
    %793 = vector.broadcast %785 : vector<16x1xf32> to vector<16x32xf32>
    %794 = arith.subf %781, %793 : vector<16x32xf32>
    %cst_361 = arith.constant 9.99999974E-6 : f32
    %795 = vector.broadcast %cst_361 : f32 to vector<16x1xf32>
    %796 = arith.addf %792, %795 : vector<16x1xf32>
    %797 = math.rsqrt %796 : vector<16x1xf32>
    %798 = vector.broadcast %797 : vector<16x1xf32> to vector<16x32xf32>
    %799 = arith.mulf %794, %798 : vector<16x32xf32>
    %c11 = arith.constant 11 : index
    %c0_362 = arith.constant 0 : index
    %c0_363 = arith.constant 0 : index
    %800 = vector.load %arg13[%c11, %c0_362, %c0_363] : memref<12x1x32xf32, #tpu.memory_space<vmem>>, vector<1x1x32xf32>
    %801 = vector.shape_cast %800 : vector<1x1x32xf32> to vector<1x32xf32>
    %802 = vector.broadcast %801 : vector<1x32xf32> to vector<16x32xf32>
    %803 = arith.mulf %799, %802 : vector<16x32xf32>
    %c11_364 = arith.constant 11 : index
    %c0_365 = arith.constant 0 : index
    %c0_366 = arith.constant 0 : index
    %804 = vector.load %arg14[%c11_364, %c0_365, %c0_366] : memref<12x1x32xf32, #tpu.memory_space<vmem>>, vector<1x1x32xf32>
    %805 = vector.shape_cast %804 : vector<1x1x32xf32> to vector<1x32xf32>
    %806 = vector.broadcast %805 : vector<1x32xf32> to vector<16x32xf32>
    %807 = arith.addf %803, %806 : vector<16x32xf32>
    %c0_367 = arith.constant 0 : index
    %c0_368 = arith.constant 0 : index
    %808 = vector.load %arg15[%c0_367, %c0_368] : memref<32x128xf32, #tpu.memory_space<vmem>>, vector<32x128xf32>
    %cst_369 = arith.constant dense<0.000000e+00> : vector<16x128xf32>
    %809 = tpu.matmul %807, %808, %cst_369 {dimension_numbers = #tpu.dot_dimension_numbers<[1], [0], [0], [1], [0, 0, 1, 1], [], []>} : vector<16x32xf32>, vector<32x128xf32>, vector<16x128xf32> -> vector<16x128xf32>
    %c0_370 = arith.constant 0 : index
    %c0_371 = arith.constant 0 : index
    %810 = vector.load %arg16[%c0_370, %c0_371] : memref<1x128xf32, #tpu.memory_space<vmem>>, vector<1x128xf32>
    %811 = vector.broadcast %810 : vector<1x128xf32> to vector<16x128xf32>
    %812 = arith.addf %809, %811 : vector<16x128xf32>
    %c0_372 = arith.constant 0 : index
    %c0_373 = arith.constant 0 : index
    %813 = vector.load %arg17[%c0_372, %c0_373] : memref<16x128xf32, #tpu.memory_space<vmem>>, vector<16x128xf32>
    tpu.vector_store %arg17[%c0_372, %c0_373], %812 {strides = array<i32>} : memref<16x128xf32, #tpu.memory_space<vmem>>, vector<16x128xf32>,
    return
  }
  func.func @transform_0(%arg0: i32) -> (i32, i32) {
    %c0_i32 = arith.constant 0 : i32
    %c0_i32_0 = arith.constant 0 : i32
    %c0_i32_1 = arith.constant 0 : i32
    return %c0_i32, %c0_i32_0 : i32, i32
  }
  func.func @transform_1(%arg0: i32) -> (i32, i32) {
    %c0_i32 = arith.constant 0 : i32
    %c0_i32_0 = arith.constant 0 : i32
    %c0_i32_1 = arith.constant 0 : i32
    return %c0_i32, %c0_i32_0 : i32, i32
  }
  func.func @transform_2(%arg0: i32) -> (i32, i32) {
    %c0_i32 = arith.constant 0 : i32
    %c0_i32_0 = arith.constant 0 : i32
    %c0_i32_1 = arith.constant 0 : i32
    return %c0_i32, %c0_i32_0 : i32, i32
  }
  func.func @transform_3(%arg0: i32) -> (i32, i32) {
    %c0_i32 = arith.constant 0 : i32
    %c0_i32_0 = arith.constant 0 : i32
    %c0_i32_1 = arith.constant 0 : i32
    return %c0_i32, %c0_i32_0 : i32, i32
  }
  func.func @transform_4(%arg0: i32) -> (i32, i32, i32) {
    %c0_i32 = arith.constant 0 : i32
    %c0_i32_0 = arith.constant 0 : i32
    %c0_i32_1 = arith.constant 0 : i32
    %c0_i32_2 = arith.constant 0 : i32
    return %c0_i32, %c0_i32_0, %c0_i32_1 : i32, i32, i32
  }
  func.func @transform_5(%arg0: i32) -> (i32, i32, i32) {
    %c0_i32 = arith.constant 0 : i32
    %c0_i32_0 = arith.constant 0 : i32
    %c0_i32_1 = arith.constant 0 : i32
    %c0_i32_2 = arith.constant 0 : i32
    return %c0_i32, %c0_i32_0, %c0_i32_1 : i32, i32, i32
  }
  func.func @transform_6(%arg0: i32) -> (i32, i32, i32) {
    %c0_i32 = arith.constant 0 : i32
    %c0_i32_0 = arith.constant 0 : i32
    %c0_i32_1 = arith.constant 0 : i32
    %c0_i32_2 = arith.constant 0 : i32
    return %c0_i32, %c0_i32_0, %c0_i32_1 : i32, i32, i32
  }
  func.func @transform_7(%arg0: i32) -> (i32, i32, i32) {
    %c0_i32 = arith.constant 0 : i32
    %c0_i32_0 = arith.constant 0 : i32
    %c0_i32_1 = arith.constant 0 : i32
    %c0_i32_2 = arith.constant 0 : i32
    return %c0_i32, %c0_i32_0, %c0_i32_1 : i32, i32, i32
  }
  func.func @transform_8(%arg0: i32) -> (i32, i32, i32) {
    %c0_i32 = arith.constant 0 : i32
    %c0_i32_0 = arith.constant 0 : i32
    %c0_i32_1 = arith.constant 0 : i32
    %c0_i32_2 = arith.constant 0 : i32
    return %c0_i32, %c0_i32_0, %c0_i32_1 : i32, i32, i32
  }
  func.func @transform_9(%arg0: i32) -> (i32, i32, i32) {
    %c0_i32 = arith.constant 0 : i32
    %c0_i32_0 = arith.constant 0 : i32
    %c0_i32_1 = arith.constant 0 : i32
    %c0_i32_2 = arith.constant 0 : i32
    return %c0_i32, %c0_i32_0, %c0_i32_1 : i32, i32, i32
  }
  func.func @transform_10(%arg0: i32) -> (i32, i32, i32) {
    %c0_i32 = arith.constant 0 : i32
    %c0_i32_0 = arith.constant 0 : i32
    %c0_i32_1 = arith.constant 0 : i32
    %c0_i32_2 = arith.constant 0 : i32
    return %c0_i32, %c0_i32_0, %c0_i32_1 : i32, i32, i32
  }
  func.func @transform_11(%arg0: i32) -> (i32, i32, i32) {
    %c0_i32 = arith.constant 0 : i32
    %c0_i32_0 = arith.constant 0 : i32
    %c0_i32_1 = arith.constant 0 : i32
    %c0_i32_2 = arith.constant 0 : i32
    return %c0_i32, %c0_i32_0, %c0_i32_1 : i32, i32, i32
  }
  func.func @transform_12(%arg0: i32) -> (i32, i32, i32) {
    %c0_i32 = arith.constant 0 : i32
    %c0_i32_0 = arith.constant 0 : i32
    %c0_i32_1 = arith.constant 0 : i32
    %c0_i32_2 = arith.constant 0 : i32
    return %c0_i32, %c0_i32_0, %c0_i32_1 : i32, i32, i32
  }
  func.func @transform_13(%arg0: i32) -> (i32, i32, i32) {
    %c0_i32 = arith.constant 0 : i32
    %c0_i32_0 = arith.constant 0 : i32
    %c0_i32_1 = arith.constant 0 : i32
    %c0_i32_2 = arith.constant 0 : i32
    return %c0_i32, %c0_i32_0, %c0_i32_1 : i32, i32, i32
  }
  func.func @transform_14(%arg0: i32) -> (i32, i32) {
    %c0_i32 = arith.constant 0 : i32
    %c0_i32_0 = arith.constant 0 : i32
    %c0_i32_1 = arith.constant 0 : i32
    return %c0_i32, %c0_i32_0 : i32, i32
  }
  func.func @transform_15(%arg0: i32) -> (i32, i32) {
    %c0_i32 = arith.constant 0 : i32
    %c0_i32_0 = arith.constant 0 : i32
    %c0_i32_1 = arith.constant 0 : i32
    return %c0_i32, %c0_i32_0 : i32, i32
  }
  func.func @transform_16(%arg0: i32) -> (i32, i32) {
    %c0_i32 = arith.constant 0 : i32
    %c0_i32_0 = arith.constant 0 : i32
    %c0_i32_1 = arith.constant 0 : i32
    return %c0_i32, %c0_i32_0 : i32, i32
  }
}

</mosaic_0001>

<llo_original>
// kernel: tpu_custom_call.1
$region0: #{tpu_custom_call.1}
  #allocation0 [shape = 'u32[]', space=smem, size = 0x4, offset = 0x4, fixed_abs, tag = 'smem constant byte address 0x4 - core index']
  #allocation1 [shape = 'u32[144,128]{1,0:T(1,128)}', space=vmem, size = 0x12000, scoped, tag = 'internal scratch']
  %s0 = inlined_call_operand.vmem [shape: s32[8,2], index: 0, kind: input, shape index: {}]
  %s1 = inlined_call_operand.vmem [shape: s32[8,2], index: 1, kind: input, shape index: {}]
  %s2 = inlined_call_operand.vmem [shape: f32[50,32], index: 2, kind: input, shape index: {}]
  %s3 = inlined_call_operand.vmem [shape: f32[64,32], index: 3, kind: input, shape index: {}]
  %s4 = inlined_call_operand.vmem [shape: f32[6,32,96], index: 4, kind: input, shape index: {}]
  %s5 = inlined_call_operand.hbm [shape: f32[6,1,96], index: 5, kind: input, shape index: {}]
  %s6 = inlined_call_operand.vmem [shape: f32[6,32,32], index: 6, kind: input, shape index: {}]
  %s7 = inlined_call_operand.hbm [shape: f32[6,1,32], index: 7, kind: input, shape index: {}]
  %s8 = inlined_call_operand.vmem [shape: f32[4,32,64], index: 8, kind: input, shape index: {}]
  %s9 = inlined_call_operand.hbm [shape: f32[4,1,64], index: 9, kind: input, shape index: {}]
  %s10 = inlined_call_operand.vmem [shape: f32[4,64,32], index: 10, kind: input, shape index: {}]
  %s11 = inlined_call_operand.hbm [shape: f32[4,1,32], index: 11, kind: input, shape index: {}]
  %s12 = inlined_call_operand.vmem [shape: f32[12,1,32], index: 12, kind: input, shape index: {}]
  %s13 = inlined_call_operand.vmem [shape: f32[12,1,32], index: 13, kind: input, shape index: {}]
  %s14 = inlined_call_operand.vmem [shape: f32[32,128], index: 14, kind: input, shape index: {}]
  %s15 = inlined_call_operand.vmem [shape: f32[1,128], index: 15, kind: input, shape index: {}]
  %s16 = inlined_call_operand.hbm [shape: f32[16,128], index: 16, kind: output, shape index: {}]
  %s17 = sld [smem:[#allocation0]]
  $region90: #{tpu_custom_call.1} parent=0
    _
  %s19 = ssub.s32 1, %s17
  %s20 = scalar_select 0, %s19, %s17
  $region1: #{tpu_custom_call.1} parent=0
    #allocation2 [shape = 'u8[3072]{0}', space=vmem, size = 0xc00, scoped, tag = 'input window, operand 5, single buffered']
    #allocation3 [shape = 's32[1]{0}', space=sflag, size = 0x4, scoped, tag = 'scoped memory for tpu_custom_call.1']
    #allocation4 [shape = 's32[1]{0}', space=sflag, size = 0x4, scoped, tag = 'scoped memory for tpu_custom_call.1']
    #allocation5 [shape = 'u8[3072]{0}', space=vmem, size = 0xc00, scoped, tag = 'input window, operand 7, single buffered']
    #allocation6 [shape = 's32[1]{0}', space=sflag, size = 0x4, scoped, tag = 'scoped memory for tpu_custom_call.1']
    #allocation7 [shape = 'u8[2048]{0}', space=vmem, size = 0x800, scoped, tag = 'input window, operand 9, single buffered']
    #allocation8 [shape = 'u8[2048]{0}', space=vmem, size = 0x800, scoped, tag = 'input window, operand 11, single buffered']
    #allocation9 [shape = 's32[1]{0}', space=sflag, size = 0x4, scoped, tag = 'scoped memory for tpu_custom_call.1']
    #allocation10 [shape = 'u8[8192]{0}', space=vmem, size = 0x2000, scoped, tag = 'output window, operand 0, single buffered']
    %21 = vsyncpa [#allocation3], 0
    %22 = vsyncpa [#allocation6], 0
    %23 = vsyncpa [#allocation9], 0
    %24 = vsyncpa [#allocation4], 0
    // Predicated region
    $region2: #{tpu_custom_call.1} parent=1 // pred_check
      _
    $region3: #{tpu_custom_call.1} parent=1 // pred_check_branch
      %26 = sbr.rel (0) target = $region5
    $region4: #{tpu_custom_call.1} parent=1 // pred_region
      _
    $region5: #{tpu_custom_call.1} parent=1 // pred_fallthru
      _
    // Predicated region
    $region6: #{tpu_custom_call.1} parent=1 // pred_check
      _
    $region7: #{tpu_custom_call.1} parent=1 // pred_check_branch
      %28 = sbr.rel (0) target = $region9
    $region8: #{tpu_custom_call.1} parent=1 // pred_region
      _
    $region9: #{tpu_custom_call.1} parent=1 // pred_fallthru
      _
    // Predicated region
    $region10: #{tpu_custom_call.1} parent=1 // pred_check
      _
    $region11: #{tpu_custom_call.1} parent=1 // pred_check_branch
      %30 = sbr.rel (0) target = $region13
    $region12: #{tpu_custom_call.1} parent=1 // pred_region
      _
    $region13: #{tpu_custom_call.1} parent=1 // pred_fallthru
      _
    // Predicated region
    $region14: #{tpu_custom_call.1} parent=1 // pred_check
      _
    $region15: #{tpu_custom_call.1} parent=1 // pred_check_branch
      %32 = sbr.rel (0) target = $region17
    $region16: #{tpu_custom_call.1} parent=1 // pred_region
      _
    $region17: #{tpu_custom_call.1} parent=1 // pred_fallthru
      _
    // Predicated region
    $region18: #{tpu_custom_call.1} parent=1 // pred_check
      _
    $region19: #{tpu_custom_call.1} parent=1 // pred_check_branch
      %34 = sbr.rel (0) target = $region21
    $region20: #{tpu_custom_call.1} parent=1 // pred_region
      _
    $region21: #{tpu_custom_call.1} parent=1 // pred_fallthru
      _
    // Predicated region
    $region22: #{tpu_custom_call.1} parent=1 // pred_check
      _
    $region23: #{tpu_custom_call.1} parent=1 // pred_check_branch
      %36 = sbr.rel (0) target = $region25
    $region24: #{tpu_custom_call.1} parent=1 // pred_region
      %s38 = ssub.s32 96, 96
      %39 = vsyncadd [#allocation3], %s38
      %s40 = sshll.u32 [#allocation2], 4
      %s41 = int_to_ptr.vmem [resolvable:$true] %s40
      %46 = dma.hbm_to_vmem [thread:$0]  %s5, 96, %s41, [#allocation3], 16, 16, 1
    $region25: #{tpu_custom_call.1} parent=1 // pred_fallthru
      _
    // Predicated region
    $region26: #{tpu_custom_call.1} parent=1 // pred_check
      _
    $region27: #{tpu_custom_call.1} parent=1 // pred_check_branch
      %48 = sbr.rel (0) target = $region29
    $region28: #{tpu_custom_call.1} parent=1 // pred_region
      _
    $region29: #{tpu_custom_call.1} parent=1 // pred_fallthru
      _
    // Predicated region
    $region30: #{tpu_custom_call.1} parent=1 // pred_check
      _
    $region31: #{tpu_custom_call.1} parent=1 // pred_check_branch
      %50 = sbr.rel (0) target = $region33
    $region32: #{tpu_custom_call.1} parent=1 // pred_region
      %s52 = ssub.s32 96, 96
      %53 = vsyncadd [#allocation6], %s52
      %s54 = sshll.u32 [#allocation5], 4
      %s55 = int_to_ptr.vmem [resolvable:$true] %s54
      %60 = dma.hbm_to_vmem [thread:$0]  %s7, 96, %s55, [#allocation6], 16, 16, 1
    $region33: #{tpu_custom_call.1} parent=1 // pred_fallthru
      _
    // Predicated region
    $region34: #{tpu_custom_call.1} parent=1 // pred_check
      _
    $region35: #{tpu_custom_call.1} parent=1 // pred_check_branch
      %62 = sbr.rel (0) target = $region37
    $region36: #{tpu_custom_call.1} parent=1 // pred_region
      _
    $region37: #{tpu_custom_call.1} parent=1 // pred_fallthru
      _
    // Predicated region
    $region38: #{tpu_custom_call.1} parent=1 // pred_check
      _
    $region39: #{tpu_custom_call.1} parent=1 // pred_check_branch
      %64 = sbr.rel (0) target = $region41
    $region40: #{tpu_custom_call.1} parent=1 // pred_region
      %s66 = ssub.s32 64, 64
      %67 = vsyncadd [#allocation6], %s66
      %s68 = sshll.u32 [#allocation7], 4
      %s69 = int_to_ptr.vmem [resolvable:$true] %s68
      %74 = dma.hbm_to_vmem [thread:$0]  %s9, 64, %s69, [#allocation6], 16, 16, 1
    $region41: #{tpu_custom_call.1} parent=1 // pred_fallthru
      _
    // Predicated region
    $region42: #{tpu_custom_call.1} parent=1 // pred_check
      _
    $region43: #{tpu_custom_call.1} parent=1 // pred_check_branch
      %76 = sbr.rel (0) target = $region45
    $region44: #{tpu_custom_call.1} parent=1 // pred_region
      _
    $region45: #{tpu_custom_call.1} parent=1 // pred_fallthru
      _
    // Predicated region
    $region46: #{tpu_custom_call.1} parent=1 // pred_check
      _
    $region47: #{tpu_custom_call.1} parent=1 // pred_check_branch
      %78 = sbr.rel (0) target = $region49
    $region48: #{tpu_custom_call.1} parent=1 // pred_region
      %s80 = ssub.s32 64, 64
      %81 = vsyncadd [#allocation9], %s80
      %s82 = sshll.u32 [#allocation8], 4
      %s83 = int_to_ptr.vmem [resolvable:$true] %s82
      %88 = dma.hbm_to_vmem [thread:$0]  %s11, 64, %s83, [#allocation9], 16, 16, 1
    $region49: #{tpu_custom_call.1} parent=1 // pred_fallthru
      _
    // Predicated region
    $region50: #{tpu_custom_call.1} parent=1 // pred_check
      _
    $region51: #{tpu_custom_call.1} parent=1 // pred_check_branch
      %90 = sbr.rel (0) target = $region53
    $region52: #{tpu_custom_call.1} parent=1 // pred_region
      _
    $region53: #{tpu_custom_call.1} parent=1 // pred_fallthru
      _
    // Predicated region
    $region54: #{tpu_custom_call.1} parent=1 // pred_check
      _
    $region55: #{tpu_custom_call.1} parent=1 // pred_check_branch
      %92 = sbr.rel (0) target = $region57
    $region56: #{tpu_custom_call.1} parent=1 // pred_region
      _
    $region57: #{tpu_custom_call.1} parent=1 // pred_fallthru
      _
    // Predicated region
    $region58: #{tpu_custom_call.1} parent=1 // pred_check
      _
    $region59: #{tpu_custom_call.1} parent=1 // pred_check_branch
      %94 = sbr.rel (0) target = $region61
    $region60: #{tpu_custom_call.1} parent=1 // pred_region
      _
    $region61: #{tpu_custom_call.1} parent=1 // pred_fallthru
      _
    // Predicated region
    $region62: #{tpu_custom_call.1} parent=1 // pred_check
      _
    $region63: #{tpu_custom_call.1} parent=1 // pred_check_branch
      %96 = sbr.rel (0) target = $region65
    $region64: #{tpu_custom_call.1} parent=1 // pred_region
      _
    $region65: #{tpu_custom_call.1} parent=1 // pred_fallthru
      _
    // Predicated region
    $region66: #{tpu_custom_call.1} parent=1 // pred_check
      _
    $region67: #{tpu_custom_call.1} parent=1 // pred_check_branch
      %98 = sbr.rel (0) target = $region69
    $region68: #{tpu_custom_call.1} parent=1 // pred_region
      %99 = dma.done [#allocation3], 96
    $region69: #{tpu_custom_call.1} parent=1 // pred_fallthru
      _
    // Predicated region
    $region70: #{tpu_custom_call.1} parent=1 // pred_check
      _
    $region71: #{tpu_custom_call.1} parent=1 // pred_check_branch
      %101 = sbr.rel (0) target = $region73
    $region72: #{tpu_custom_call.1} parent=1 // pred_region
      %102 = dma.done [#allocation6], 96
    $region73: #{tpu_custom_call.1} parent=1 // pred_fallthru
      _
    // Predicated region
    $region74: #{tpu_custom_call.1} parent=1 // pred_check
      _
    $region75: #{tpu_custom_call.1} parent=1 // pred_check_branch
      %104 = sbr.rel (0) target = $region77
    $region76: #{tpu_custom_call.1} parent=1 // pred_region
      %105 = dma.done [#allocation6], 64
    $region77: #{tpu_custom_call.1} parent=1 // pred_fallthru
      _
    // Predicated region
    $region78: #{tpu_custom_call.1} parent=1 // pred_check
      _
    $region79: #{tpu_custom_call.1} parent=1 // pred_check_branch
      %107 = sbr.rel (0) target = $region81
    $region80: #{tpu_custom_call.1} parent=1 // pred_region
      %108 = dma.done [#allocation9], 64
    $region81: #{tpu_custom_call.1} parent=1 // pred_fallthru
      _
    %v109 = vld [vmem:[%s2] sm:$0xff]
    %v110 = vld [vmem:[%s2 + $0x8] sm:$0xff]
    %v111 = vld [vmem:[%s2 + $0x10] sm:$0xff]
    %v112 = vld [vmem:[%s2 + $0x18] sm:$0xff]
    %v113 = vld [vmem:[%s2 + $0x20] sm:$0xff]
    %v114 = vld [vmem:[%s2 + $0x28] sm:$0xff]
    %v115 = vld [vmem:[%s2 + $0x30] sm:$0x3]
    %vm116 = vcmask 64512
    %v117 = vsel %vm116, 0.0, 1.0
    %119 = vset.pattern.permute.xlu0 0
    %120 = vperm.xlu0 %119, 0.0
    %v121 = vpop.permute.xlu0 %120
    %124 = vset.pattern.permute.xlu0 0
    %125 = vperm.xlu0 %124, 1.0
    %v126 = vpop.permute.xlu0 %125
    %v128 = vlaneseq
    %v129 = vshrl.u32 %v128, 7
    %v130 = vsub.s32 0, %v129
    %v131 = vrot.slane %v117, %v130
    %vm132 = vcmp.eq.f32.partialorder %v121, %v131
    %vm133 = vcmp.eq.f32.partialorder %v126, %v131
    %v134 = vsel %vm132, 0.0, -1e+09
    %v135 = vsel %vm133, 0.0, -1e+09
    %v136 = vld [vmem:[%s0] sm:$0xff]
    %137 = vrot.lane.b32.xlu0 %v136, 127
    %v138 = vpop.permute.xlu0 %137
    %v139 = vlaneseq
    %v140 = vand.u32 %v139, 127
    %141 = vset.pattern.permute.xlu0 0
    %142 = vperm.xlu0 %141, %v136
    %v143 = vpop.permute.xlu0 %142
    %144 = vset.pattern.permute.xlu0 0
    %145 = vperm.xlu0 %144, %v138
    %v146 = vpop.permute.xlu0 %145
    %vm147 = vcmp.eq.s32.totalorder %v143, %v140
    %vm148 = vcmp.eq.s32.totalorder %v146, %v140
    %v149 = vsel %vm147, 1, 0
    %v150 = vsel %vm148, 1, 0
    %v151 = vcvt.s32.f32 %v149
    %v152 = vcvt.s32.f32 %v150
    %vm153 = vcmask 408576
    %v155 = vsel %vm153, %v151, 0
    %v158 = vsel %vm153, %v152, 0
    %vm160 = vcmask 1041408
    %v162 = vsel %vm160, %v115, 0
    %164 = vmatprep.subr.mxu0 0.0
    %165 = vmatpush1.msra.mxu0 0.0
    %166 = vmatprep.subr.mxu0 0.0
    %167 = vmatpush1.msra.mxu0 0.0
    %168 = vmatprep.subr.mxu0 0.0
    %169 = vmatpush1.msra.mxu0 0.0
    %170 = vmatprep.subr.mxu0 0.0
    %171 = vmatpush1.msra.mxu0 0.0
    %172 = vmatprep.subr.mxu0 0.0
    %173 = vmatpush1.msra.mxu0 0.0
    %174 = vmatprep.subr.mxu0 0.0
    %175 = vmatpush1.msra.mxu0 0.0
    %176 = vmatprep.subr.mxu0 0.0
    %177 = vmatpush1.msra.mxu0 0.0
    %178 = vmatprep.subr.mxu0 0.0
    %179 = vmatpush1.msra.mxu0 0.0
    %180 = vmatprep.subr.mxu0 0.0
    %181 = vmatpush1.msra.mxu0 0.0
    %182 = vmatprep.subr.mxu0 0.0
    %183 = vmatpush1.msra.mxu0 %v162
    %184 = vmatprep.subr.mxu0 0.0
    %185 = vmatpush1.msra.mxu0 %v114
    %186 = vmatprep.subr.mxu0 0.0
    %187 = vmatpush1.msra.mxu0 %v113
    %188 = vmatprep.subr.mxu0 0.0
    %189 = vmatpush1.msra.mxu0 %v112
    %190 = vmatprep.subr.mxu0 0.0
    %191 = vmatpush1.msra.mxu0 %v111
    %192 = vmatprep.subr.mxu0 0.0
    %193 = vmatpush1.msra.mxu0 %v110
    %194 = vmatprep.subr.mxu0 0.0
    %195 = vmatpush1.msra.mxu0 %v109
    %196 = vmatprep.subr.mxu0 0.0
    %197 = vmatpush2.msra.mxu0 0.0
    %198 = vmatprep.subr.mxu0 0.0
    %199 = vmatpush2.msra.mxu0 0.0
    %200 = vmatprep.subr.mxu0 0.0
    %201 = vmatpush2.msra.mxu0 0.0
    %202 = vmatprep.subr.mxu0 0.0
    %203 = vmatpush2.msra.mxu0 0.0
    %204 = vmatprep.subr.mxu0 0.0
    %205 = vmatpush2.msra.mxu0 0.0
    %206 = vmatprep.subr.mxu0 0.0
    %207 = vmatpush2.msra.mxu0 0.0
    %208 = vmatprep.subr.mxu0 0.0
    %209 = vmatpush2.msra.mxu0 0.0
    %210 = vmatprep.subr.mxu0 0.0
    %211 = vmatpush2.msra.mxu0 0.0
    %212 = vmatprep.subr.mxu0 0.0
    %213 = vmatpush2.msra.mxu0 0.0
    %214 = vmatprep.subr.mxu0 0.0
    %215 = vmatpush2.msra.mxu0 0.0
    %216 = vmatprep.subr.mxu0 0.0
    %217 = vmatpush2.msra.mxu0 0.0
    %218 = vmatprep.subr.mxu0 0.0
    %219 = vmatpush2.msra.mxu0 0.0
    %220 = vmatprep.subr.mxu0 0.0
    %221 = vmatpush2.msra.mxu0 0.0
    %222 = vmatprep.subr.mxu0 0.0
    %223 = vmatpush2.msra.mxu0 0.0
    %224 = vmatprep.subr.mxu0 0.0
    %225 = vmatpush2.msra.mxu0 0.0
    %226 = vmatprep.subr.mxu0 0.0
    %227 = vmatpush2.msra.mxu0 0.0
    %228 = vmatprep.mubr.f32.mxu0 0.0
    %229 = vmatmul.mubr.f32.gmra.mxu0 %v155
    %v230 = vpop.f32.mrf.mxu0
    %v231 = vadd.f32 0.0, %v230
    %v232 = vpop.f32.mrf.mxu0
    %233 = vmatprep.mubr.f32.mxu0 0.0
    %234 = vmatmul.mubr.f32.gmra.mxu0 %v158
    %v235 = vpop.f32.mrf.mxu0
    %v236 = vadd.f32 0.0, %v235
    %v237 = vpop.f32.mrf.mxu0
    %238 = vdwg.mxu0
    %v239 = vmul.f32 %v231, 5.656854
    %v240 = vmul.f32 %v236, 5.656854
    %v241 = vld [vmem:[%s3] sm:$0x1]
    %v242 = vlaneseq
    %v243 = vshrl.u32 %v242, 7
    %v244 = vsub.s32 0, %v243
    %v245 = vrot.slane %v241, %v244
    %v246 = vld [vmem:[%s3 + $0x1] sm:$0x1]
    %v247 = vlaneseq
    %v248 = vshrl.u32 %v247, 7
    %v249 = vsub.s32 0, %v248
    %v250 = vrot.slane %v246, %v249
    %v251 = vadd.f32 %v239, %v245
    %v252 = vadd.f32 %v240, %v250
    %v253 = vld [vmem:[%s4] sm:$0xff]
    %v254 = vld [vmem:[%s4 + $0x8] sm:$0xff]
    %v255 = vld [vmem:[%s4 + $0x10] sm:$0xff]
    %v256 = vld [vmem:[%s4 + $0x18] sm:$0xff]
    %v257 = vld [vmem:[#allocation2] sm:$0x1]
    %v259 = vlaneseq
    %v260 = vshrl.u32 %v259, 7
    %v261 = vsub.s32 0, %v260
    %v262 = vrot.slane %v257, %v261
    %vm264 = vcmask 261120
    %v266 = vsel %vm264, %v251, 0
    %v269 = vsel %vm264, %v252, 0
    %271 = vmatprep.subr.mxu0 0.0
    %272 = vmatpush1.msra.mxu0 0.0
    %273 = vmatprep.subr.mxu0 0.0
    %274 = vmatpush1.msra.mxu0 0.0
    %275 = vmatprep.subr.mxu0 0.0
    %276 = vmatpush1.msra.mxu0 0.0
    %277 = vmatprep.subr.mxu0 0.0
    %278 = vmatpush1.msra.mxu0 0.0
    %279 = vmatprep.subr.mxu0 0.0
    %280 = vmatpush1.msra.mxu0 0.0
    %281 = vmatprep.subr.mxu0 0.0
    %282 = vmatpush1.msra.mxu0 0.0
    %283 = vmatprep.subr.mxu0 0.0
    %284 = vmatpush1.msra.mxu0 0.0
    %285 = vmatprep.subr.mxu0 0.0
    %286 = vmatpush1.msra.mxu0 0.0
    %287 = vmatprep.subr.mxu0 0.0
    %288 = vmatpush1.msra.mxu0 0.0
    %289 = vmatprep.subr.mxu0 0.0
    %290 = vmatpush1.msra.mxu0 0.0
    %291 = vmatprep.subr.mxu0 0.0
    %292 = vmatpush1.msra.mxu0 0.0
    %293 = vmatprep.subr.mxu0 0.0
    %294 = vmatpush1.msra.mxu0 0.0
    %295 = vmatprep.subr.mxu0 0.0
    %296 = vmatpush1.msra.mxu0 %v256
    %297 = vmatprep.subr.mxu0 0.0
    %298 = vmatpush1.msra.mxu0 %v255
    %299 = vmatprep.subr.mxu0 0.0
    %300 = vmatpush1.msra.mxu0 %v254
    %301 = vmatprep.subr.mxu0 0.0
    %302 = vmatpush1.msra.mxu0 %v253
    %303 = vmatprep.subr.mxu0 0.0
    %304 = vmatpush2.msra.mxu0 0.0
    %305 = vmatprep.subr.mxu0 0.0
    %306 = vmatpush2.msra.mxu0 0.0
    %307 = vmatprep.subr.mxu0 0.0
    %308 = vmatpush2.msra.mxu0 0.0
    %309 = vmatprep.subr.mxu0 0.0
    %310 = vmatpush2.msra.mxu0 0.0
    %311 = vmatprep.subr.mxu0 0.0
    %312 = vmatpush2.msra.mxu0 0.0
    %313 = vmatprep.subr.mxu0 0.0
    %314 = vmatpush2.msra.mxu0 0.0
    %315 = vmatprep.subr.mxu0 0.0
    %316 = vmatpush2.msra.mxu0 0.0
    %317 = vmatprep.subr.mxu0 0.0
    %318 = vmatpush2.msra.mxu0 0.0
    %319 = vmatprep.subr.mxu0 0.0
    %320 = vmatpush2.msra.mxu0 0.0
    %321 = vmatprep.subr.mxu0 0.0
    %322 = vmatpush2.msra.mxu0 0.0
    %323 = vmatprep.subr.mxu0 0.0
    %324 = vmatpush2.msra.mxu0 0.0
    %325 = vmatprep.subr.mxu0 0.0
    %326 = vmatpush2.msra.mxu0 0.0
    %327 = vmatprep.subr.mxu0 0.0
    %328 = vmatpush2.msra.mxu0 0.0
    %329 = vmatprep.subr.mxu0 0.0
    %330 = vmatpush2.msra.mxu0 0.0
    %331 = vmatprep.subr.mxu0 0.0
    %332 = vmatpush2.msra.mxu0 0.0
    %333 = vmatprep.subr.mxu0 0.0
    %334 = vmatpush2.msra.mxu0 0.0
    %335 = vmatprep.mubr.f32.mxu0 0.0
    %336 = vmatmul.mubr.f32.gmra.mxu0 %v266
    %v337 = vpop.f32.mrf.mxu0
    %v338 = vadd.f32 %v262, %v337
    %v339 = vpop.f32.mrf.mxu0
    %340 = vmatprep.mubr.f32.mxu0 0.0
    %341 = vmatmul.mubr.f32.gmra.mxu0 %v269
    %v342 = vpop.f32.mrf.mxu0
    %v343 = vadd.f32 %v262, %v342
    %v344 = vpop.f32.mrf.mxu0
    %345 = vdwg.mxu0
    %348 = vrot.lane.b32.xlu0 %v338, 96
    %v349 = vpop.permute.xlu0 %348
    %350 = vrot.lane.b32.xlu0 %v343, 96
    %v351 = vpop.permute.xlu0 %350
    %v352 = vsel %vm116, %v338, 0
    %v354 = vsel %vm116, %v343, 0
    %v356 = vsel %vm116, %v349, 0
    %v358 = vsel %vm116, %v351, 0
    %360 = vmatprep.subr.mxu0 0.0
    %361 = vmatpush1.xpose.msra.mxu0 0.0
    %362 = vmatprep.subr.mxu0 0.0
    %363 = vmatpush1.xpose.msra.mxu0 0.0
    %364 = vmatprep.subr.mxu0 0.0
    %365 = vmatpush1.xpose.msra.mxu0 0.0
    %366 = vmatprep.subr.mxu0 0.0
    %367 = vmatpush1.xpose.msra.mxu0 0.0
    %368 = vmatprep.subr.mxu0 0.0
    %369 = vmatpush1.xpose.msra.mxu0 0.0
    %370 = vmatprep.subr.mxu0 0.0
    %371 = vmatpush1.xpose.msra.mxu0 0.0
    %372 = vmatprep.subr.mxu0 0.0
    %373 = vmatpush1.xpose.msra.mxu0 0.0
    %374 = vmatprep.subr.mxu0 0.0
    %375 = vmatpush1.xpose.msra.mxu0 0.0
    %376 = vmatprep.subr.mxu0 0.0
    %377 = vmatpush1.xpose.msra.mxu0 0.0
    %378 = vmatprep.subr.mxu0 0.0
    %379 = vmatpush1.xpose.msra.mxu0 0.0
    %380 = vmatprep.subr.mxu0 0.0
    %381 = vmatpush1.xpose.msra.mxu0 0.0
    %382 = vmatprep.subr.mxu0 0.0
    %383 = vmatpush1.xpose.msra.mxu0 0.0
    %384 = vmatprep.subr.mxu0 0.0
    %385 = vmatpush1.xpose.msra.mxu0 0.0
    %386 = vmatprep.subr.mxu0 0.0
    %387 = vmatpush1.xpose.msra.mxu0 0.0
    %388 = vmatprep.subr.mxu0 0.0
    %389 = vmatpush1.xpose.msra.mxu0 %v358
    %390 = vmatprep.subr.mxu0 0.0
    %391 = vmatpush1.xpose.msra.mxu0 %v356
    %392 = vmatprep.subr.mxu0 0.0
    %393 = vmatpush2.xpose.msra.mxu0 0.0
    %394 = vmatprep.subr.mxu0 0.0
    %395 = vmatpush2.xpose.msra.mxu0 0.0
    %396 = vmatprep.subr.mxu0 0.0
    %397 = vmatpush2.xpose.msra.mxu0 0.0
    %398 = vmatprep.subr.mxu0 0.0
    %399 = vmatpush2.xpose.msra.mxu0 0.0
    %400 = vmatprep.subr.mxu0 0.0
    %401 = vmatpush2.xpose.msra.mxu0 0.0
    %402 = vmatprep.subr.mxu0 0.0
    %403 = vmatpush2.xpose.msra.mxu0 0.0
    %404 = vmatprep.subr.mxu0 0.0
    %405 = vmatpush2.xpose.msra.mxu0 0.0
    %406 = vmatprep.subr.mxu0 0.0
    %407 = vmatpush2.xpose.msra.mxu0 0.0
    %408 = vmatprep.subr.mxu0 0.0
    %409 = vmatpush2.xpose.msra.mxu0 0.0
    %410 = vmatprep.subr.mxu0 0.0
    %411 = vmatpush2.xpose.msra.mxu0 0.0
    %412 = vmatprep.subr.mxu0 0.0
    %413 = vmatpush2.xpose.msra.mxu0 0.0
    %414 = vmatprep.subr.mxu0 0.0
    %415 = vmatpush2.xpose.msra.mxu0 0.0
    %416 = vmatprep.subr.mxu0 0.0
    %417 = vmatpush2.xpose.msra.mxu0 0.0
    %418 = vmatprep.subr.mxu0 0.0
    %419 = vmatpush2.xpose.msra.mxu0 0.0
    %420 = vmatprep.subr.mxu0 0.0
    %421 = vmatpush2.xpose.msra.mxu0 0.0
    %422 = vmatprep.subr.mxu0 0.0
    %423 = vmatpush2.xpose.msra.mxu0 0.0
    %424 = vmatprep.mubr.f32.mxu0 0.0
    %425 = vmatmul.mubr.f32.gmra.mxu0 %v352
    %v426 = vpop.f32.mrf.mxu0
    %v427 = vadd.f32 0.0, %v426
    %v428 = vpop.f32.mrf.mxu0
    %429 = vmatprep.mubr.f32.mxu0 0.0
    %430 = vmatmul.mubr.f32.gmra.mxu0 %v354
    %v431 = vpop.f32.mrf.mxu0
    %v432 = vadd.f32 0.0, %v431
    %v433 = vpop.f32.mrf.mxu0
    %434 = vdwg.mxu0
    %435 = vrot.lane.b32.xlu0 %v338, 120
    %v436 = vpop.permute.xlu0 %435
    %437 = vrot.lane.b32.xlu0 %v343, 120
    %v438 = vpop.permute.xlu0 %437
    %439 = vrot.lane.b32.xlu0 %v338, 88
    %v440 = vpop.permute.xlu0 %439
    %441 = vrot.lane.b32.xlu0 %v343, 88
    %v442 = vpop.permute.xlu0 %441
    %v443 = vsel %vm116, %v436, 0
    %v445 = vsel %vm116, %v438, 0
    %v447 = vsel %vm116, %v440, 0
    %v449 = vsel %vm116, %v442, 0
    %451 = vmatprep.subr.mxu0 0.0
    %452 = vmatpush1.xpose.msra.mxu0 0.0
    %453 = vmatprep.subr.mxu0 0.0
    %454 = vmatpush1.xpose.msra.mxu0 0.0
    %455 = vmatprep.subr.mxu0 0.0
    %456 = vmatpush1.xpose.msra.mxu0 0.0
    %457 = vmatprep.subr.mxu0 0.0
    %458 = vmatpush1.xpose.msra.mxu0 0.0
    %459 = vmatprep.subr.mxu0 0.0
    %460 = vmatpush1.xpose.msra.mxu0 0.0
    %461 = vmatprep.subr.mxu0 0.0
    %462 = vmatpush1.xpose.msra.mxu0 0.0
    %463 = vmatprep.subr.mxu0 0.0
    %464 = vmatpush1.xpose.msra.mxu0 0.0
    %465 = vmatprep.subr.mxu0 0.0
    %466 = vmatpush1.xpose.msra.mxu0 0.0
    %467 = vmatprep.subr.mxu0 0.0
    %468 = vmatpush1.xpose.msra.mxu0 0.0
    %469 = vmatprep.subr.mxu0 0.0
    %470 = vmatpush1.xpose.msra.mxu0 0.0
    %471 = vmatprep.subr.mxu0 0.0
    %472 = vmatpush1.xpose.msra.mxu0 0.0
    %473 = vmatprep.subr.mxu0 0.0
    %474 = vmatpush1.xpose.msra.mxu0 0.0
    %475 = vmatprep.subr.mxu0 0.0
    %476 = vmatpush1.xpose.msra.mxu0 0.0
    %477 = vmatprep.subr.mxu0 0.0
    %478 = vmatpush1.xpose.msra.mxu0 0.0
    %479 = vmatprep.subr.mxu0 0.0
    %480 = vmatpush1.xpose.msra.mxu0 %v449
    %481 = vmatprep.subr.mxu0 0.0
    %482 = vmatpush1.xpose.msra.mxu0 %v447
    %483 = vmatprep.subr.mxu0 0.0
    %484 = vmatpush2.xpose.msra.mxu0 0.0
    %485 = vmatprep.subr.mxu0 0.0
    %486 = vmatpush2.xpose.msra.mxu0 0.0
    %487 = vmatprep.subr.mxu0 0.0
    %488 = vmatpush2.xpose.msra.mxu0 0.0
    %489 = vmatprep.subr.mxu0 0.0
    %490 = vmatpush2.xpose.msra.mxu0 0.0
    %491 = vmatprep.subr.mxu0 0.0
    %492 = vmatpush2.xpose.msra.mxu0 0.0
    %493 = vmatprep.subr.mxu0 0.0
    %494 = vmatpush2.xpose.msra.mxu0 0.0
    %495 = vmatprep.subr.mxu0 0.0
    %496 = vmatpush2.xpose.msra.mxu0 0.0
    %497 = vmatprep.subr.mxu0 0.0
    %498 = vmatpush2.xpose.msra.mxu0 0.0
    %499 = vmatprep.subr.mxu0 0.0
    %500 = vmatpush2.xpose.msra.mxu0 0.0
    %501 = vmatprep.subr.mxu0 0.0
    %502 = vmatpush2.xpose.msra.mxu0 0.0
    %503 = vmatprep.subr.mxu0 0.0
    %504 = vmatpush2.xpose.msra.mxu0 0.0
    %505 = vmatprep.subr.mxu0 0.0
    %506 = vmatpush2.xpose.msra.mxu0 0.0
    %507 = vmatprep.subr.mxu0 0.0
    %508 = vmatpush2.xpose.msra.mxu0 0.0
    %509 = vmatprep.subr.mxu0 0.0
    %510 = vmatpush2.xpose.msra.mxu0 0.0
    %511 = vmatprep.subr.mxu0 0.0
    %512 = vmatpush2.xpose.msra.mxu0 0.0
    %513 = vmatprep.subr.mxu0 0.0
    %514 = vmatpush2.xpose.msra.mxu0 0.0
    %515 = vmatprep.mubr.f32.mxu0 0.0
    %516 = vmatmul.mubr.f32.gmra.mxu0 %v443
    %v517 = vpop.f32.mrf.mxu0
    %v518 = vadd.f32 0.0, %v517
    %v519 = vpop.f32.mrf.mxu0
    %520 = vmatprep.mubr.f32.mxu0 0.0
    %521 = vmatmul.mubr.f32.gmra.mxu0 %v445
    %v522 = vpop.f32.mrf.mxu0
    %v523 = vadd.f32 0.0, %v522
    %v524 = vpop.f32.mrf.mxu0
    %525 = vdwg.mxu0
    %526 = vrot.lane.b32.xlu0 %v338, 112
    %v527 = vpop.permute.xlu0 %526
    %528 = vrot.lane.b32.xlu0 %v343, 112
    %v529 = vpop.permute.xlu0 %528
    %530 = vrot.lane.b32.xlu0 %v338, 80
    %v531 = vpop.permute.xlu0 %530
    %532 = vrot.lane.b32.xlu0 %v343, 80
    %v533 = vpop.permute.xlu0 %532
    %v534 = vsel %vm116, %v527, 0
    %v536 = vsel %vm116, %v529, 0
    %v538 = vsel %vm116, %v531, 0
    %v540 = vsel %vm116, %v533, 0
    %542 = vmatprep.subr.mxu0 0.0
    %543 = vmatpush1.xpose.msra.mxu0 0.0
    %544 = vmatprep.subr.mxu0 0.0
    %545 = vmatpush1.xpose.msra.mxu0 0.0
    %546 = vmatprep.subr.mxu0 0.0
    %547 = vmatpush1.xpose.msra.mxu0 0.0
    %548 = vmatprep.subr.mxu0 0.0
    %549 = vmatpush1.xpose.msra.mxu0 0.0
    %550 = vmatprep.subr.mxu0 0.0
    %551 = vmatpush1.xpose.msra.mxu0 0.0
    %552 = vmatprep.subr.mxu0 0.0
    %553 = vmatpush1.xpose.msra.mxu0 0.0
    %554 = vmatprep.subr.mxu0 0.0
    %555 = vmatpush1.xpose.msra.mxu0 0.0
    %556 = vmatprep.subr.mxu0 0.0
    %557 = vmatpush1.xpose.msra.mxu0 0.0
    %558 = vmatprep.subr.mxu0 0.0
    %559 = vmatpush1.xpose.msra.mxu0 0.0
    %560 = vmatprep.subr.mxu0 0.0
    %561 = vmatpush1.xpose.msra.mxu0 0.0
    %562 = vmatprep.subr.mxu0 0.0
    %563 = vmatpush1.xpose.msra.mxu0 0.0
    %564 = vmatprep.subr.mxu0 0.0
    %565 = vmatpush1.xpose.msra.mxu0 0.0
    %566 = vmatprep.subr.mxu0 0.0
    %567 = vmatpush1.xpose.msra.mxu0 0.0
    %568 = vmatprep.subr.mxu0 0.0
    %569 = vmatpush1.xpose.msra.mxu0 0.0
    %570 = vmatprep.subr.mxu0 0.0
    %571 = vmatpush1.xpose.msra.mxu0 %v540
    %572 = vmatprep.subr.mxu0 0.0
    %573 = vmatpush1.xpose.msra.mxu0 %v538
    %574 = vmatprep.subr.mxu0 0.0
    %575 = vmatpush2.xpose.msra.mxu0 0.0
    %576 = vmatprep.subr.mxu0 0.0
    %577 = vmatpush2.xpose.msra.mxu0 0.0
    %578 = vmatprep.subr.mxu0 0.0
    %579 = vmatpush2.xpose.msra.mxu0 0.0
    %580 = vmatprep.subr.mxu0 0.0
    %581 = vmatpush2.xpose.msra.mxu0 0.0
    %582 = vmatprep.subr.mxu0 0.0
    %583 = vmatpush2.xpose.msra.mxu0 0.0
    %584 = vmatprep.subr.mxu0 0.0
    %585 = vmatpush2.xpose.msra.mxu0 0.0
    %586 = vmatprep.subr.mxu0 0.0
    %587 = vmatpush2.xpose.msra.mxu0 0.0
    %588 = vmatprep.subr.mxu0 0.0
    %589 = vmatpush2.xpose.msra.mxu0 0.0
    %590 = vmatprep.subr.mxu0 0.0
    %591 = vmatpush2.xpose.msra.mxu0 0.0
    %592 = vmatprep.subr.mxu0 0.0
    %593 = vmatpush2.xpose.msra.mxu0 0.0
    %594 = vmatprep.subr.mxu0 0.0
    %595 = vmatpush2.xpose.msra.mxu0 0.0
    %596 = vmatprep.subr.mxu0 0.0
    %597 = vmatpush2.xpose.msra.mxu0 0.0
    %598 = vmatprep.subr.mxu0 0.0
    %599 = vmatpush2.xpose.msra.mxu0 0.0
    %600 = vmatprep.subr.mxu0 0.0
    %601 = vmatpush2.xpose.msra.mxu0 0.0
    %602 = vmatprep.subr.mxu0 0.0
    %603 = vmatpush2.xpose.msra.mxu0 0.0
    %604 = vmatprep.subr.mxu0 0.0
    %605 = vmatpush2.xpose.msra.mxu0 0.0
    %606 = vmatprep.mubr.f32.mxu0 0.0
    %607 = vmatmul.mubr.f32.gmra.mxu0 %v534
    %v608 = vpop.f32.mrf.mxu0
    %v609 = vadd.f32 0.0, %v608
    %v610 = vpop.f32.mrf.mxu0
    %611 = vmatprep.mubr.f32.mxu0 0.0
    %612 = vmatmul.mubr.f32.gmra.mxu0 %v536
    %v613 = vpop.f32.mrf.mxu0
    %v614 = vadd.f32 0.0, %v613
    %v615 = vpop.f32.mrf.mxu0
    %616 = vdwg.mxu0
    %617 = vrot.lane.b32.xlu0 %v338, 104
    %v618 = vpop.permute.xlu0 %617
    %619 = vrot.lane.b32.xlu0 %v343, 104
    %v620 = vpop.permute.xlu0 %619
    %621 = vrot.lane.b32.xlu0 %v338, 72
    %v622 = vpop.permute.xlu0 %621
    %623 = vrot.lane.b32.xlu0 %v343, 72
    %v624 = vpop.permute.xlu0 %623
    %v625 = vsel %vm116, %v618, 0
    %v627 = vsel %vm116, %v620, 0
    %v629 = vsel %vm116, %v622, 0
    %v631 = vsel %vm116, %v624, 0
    %633 = vmatprep.subr.mxu0 0.0
    %634 = vmatpush1.xpose.msra.mxu0 0.0
    %635 = vmatprep.subr.mxu0 0.0
    %636 = vmatpush1.xpose.msra.mxu0 0.0
    %637 = vmatprep.subr.mxu0 0.0
    %638 = vmatpush1.xpose.msra.mxu0 0.0
    %639 = vmatprep.subr.mxu0 0.0
    %640 = vmatpush1.xpose.msra.mxu0 0.0
    %641 = vmatprep.subr.mxu0 0.0
    %642 = vmatpush1.xpose.msra.mxu0 0.0
    %643 = vmatprep.subr.mxu0 0.0
    %644 = vmatpush1.xpose.msra.mxu0 0.0
    %645 = vmatprep.subr.mxu0 0.0
    %646 = vmatpush1.xpose.msra.mxu0 0.0
    %647 = vmatprep.subr.mxu0 0.0
    %648 = vmatpush1.xpose.msra.mxu0 0.0
    %649 = vmatprep.subr.mxu0 0.0
    %650 = vmatpush1.xpose.msra.mxu0 0.0
    %651 = vmatprep.subr.mxu0 0.0
    %652 = vmatpush1.xpose.msra.mxu0 0.0
    %653 = vmatprep.subr.mxu0 0.0
    %654 = vmatpush1.xpose.msra.mxu0 0.0
    %655 = vmatprep.subr.mxu0 0.0
    %656 = vmatpush1.xpose.msra.mxu0 0.0
    %657 = vmatprep.subr.mxu0 0.0
    %658 = vmatpush1.xpose.msra.mxu0 0.0
    %659 = vmatprep.subr.mxu0 0.0
    %660 = vmatpush1.xpose.msra.mxu0 0.0
    %661 = vmatprep.subr.mxu0 0.0
    %662 = vmatpush1.xpose.msra.mxu0 %v631
    %663 = vmatprep.subr.mxu0 0.0
    %664 = vmatpush1.xpose.msra.mxu0 %v629
    %665 = vmatprep.subr.mxu0 0.0
    %666 = vmatpush2.xpose.msra.mxu0 0.0
    %667 = vmatprep.subr.mxu0 0.0
    %668 = vmatpush2.xpose.msra.mxu0 0.0
    %669 = vmatprep.subr.mxu0 0.0
    %670 = vmatpush2.xpose.msra.mxu0 0.0
    %671 = vmatprep.subr.mxu0 0.0
    %672 = vmatpush2.xpose.msra.mxu0 0.0
    %673 = vmatprep.subr.mxu0 0.0
    %674 = vmatpush2.xpose.msra.mxu0 0.0
    %675 = vmatprep.subr.mxu0 0.0
    %676 = vmatpush2.xpose.msra.mxu0 0.0
    %677 = vmatprep.subr.mxu0 0.0
    %678 = vmatpush2.xpose.msra.mxu0 0.0
    %679 = vmatprep.subr.mxu0 0.0
    %680 = vmatpush2.xpose.msra.mxu0 0.0
    %681 = vmatprep.subr.mxu0 0.0
    %682 = vmatpush2.xpose.msra.mxu0 0.0
    %683 = vmatprep.subr.mxu0 0.0
    %684 = vmatpush2.xpose.msra.mxu0 0.0
    %685 = vmatprep.subr.mxu0 0.0
    %686 = vmatpush2.xpose.msra.mxu0 0.0
    %687 = vmatprep.subr.mxu0 0.0
    %688 = vmatpush2.xpose.msra.mxu0 0.0
    %689 = vmatprep.subr.mxu0 0.0
    %690 = vmatpush2.xpose.msra.mxu0 0.0
    %691 = vmatprep.subr.mxu0 0.0
    %692 = vmatpush2.xpose.msra.mxu0 0.0
    %693 = vmatprep.subr.mxu0 0.0
    %694 = vmatpush2.xpose.msra.mxu0 0.0
    %695 = vmatprep.subr.mxu0 0.0
    %696 = vmatpush2.xpose.msra.mxu0 0.0
    %697 = vmatprep.mubr.f32.mxu0 0.0
    %698 = vmatmul.mubr.f32.gmra.mxu0 %v625
    %v699 = vpop.f32.mrf.mxu0
    %v700 = vadd.f32 0.0, %v699
    %v701 = vpop.f32.mrf.mxu0
    %702 = vmatprep.mubr.f32.mxu0 0.0
    %703 = vmatmul.mubr.f32.gmra.mxu0 %v627
    %v704 = vpop.f32.mrf.mxu0
    %v705 = vadd.f32 0.0, %v704
    %v706 = vpop.f32.mrf.mxu0
    %707 = vdwg.mxu0
    %v708 = vmul.f32 %v427, 0.35355338
    %v709 = vmul.f32 %v432, 0.35355338
    %v710 = vmul.f32 %v518, 0.35355338
    %v711 = vmul.f32 %v523, 0.35355338
    %v712 = vmul.f32 %v609, 0.35355338
    %v713 = vmul.f32 %v614, 0.35355338
    %v714 = vmul.f32 %v700, 0.35355338
    %v715 = vmul.f32 %v705, 0.35355338
    %v716 = vadd.f32 %v708, %v134
    %v717 = vadd.f32 %v709, %v135
    %v718 = vadd.f32 %v710, %v134
    %v719 = vadd.f32 %v711, %v135
    %v720 = vadd.f32 %v712, %v134
    %v721 = vadd.f32 %v713, %v135
    %v722 = vadd.f32 %v714, %v134
    %v723 = vadd.f32 %v715, %v135
    %vm724 = vcmask 130048
    %v725 = vsel %vm724, %v716, -inf
    %726 = vmax.xlane.f32.xlu0 %v725
    %v727 = vpop.xlane.xlu0 %726
    %v728 = vsel %vm724, %v717, -inf
    %729 = vmax.xlane.f32.xlu0 %v728
    %v730 = vpop.xlane.xlu0 %729
    %v731 = vsel %vm724, %v718, -inf
    %732 = vmax.xlane.f32.xlu0 %v731
    %v733 = vpop.xlane.xlu0 %732
    %v734 = vsel %vm724, %v719, -inf
    %735 = vmax.xlane.f32.xlu0 %v734
    %v736 = vpop.xlane.xlu0 %735
    %v737 = vsel %vm724, %v720, -inf
    %738 = vmax.xlane.f32.xlu0 %v737
    %v739 = vpop.xlane.xlu0 %738
    %v740 = vsel %vm724, %v721, -inf
    %741 = vmax.xlane.f32.xlu0 %v740
    %v742 = vpop.xlane.xlu0 %741
    %v743 = vsel %vm724, %v722, -inf
    %744 = vmax.xlane.f32.xlu0 %v743
    %v745 = vpop.xlane.xlu0 %744
    %v746 = vsel %vm724, %v723, -inf
    %747 = vmax.xlane.f32.xlu0 %v746
    %v748 = vpop.xlane.xlu0 %747
    %v749 = vsub.f32 %v716, %v727
    %v750 = vsub.f32 %v717, %v730
    %v751 = vsub.f32 %v718, %v733
    %v752 = vsub.f32 %v719, %v736
    %v753 = vsub.f32 %v720, %v739
    %v754 = vsub.f32 %v721, %v742
    %v755 = vsub.f32 %v722, %v745
    %v756 = vsub.f32 %v723, %v748
    %v757 = vmul.f32 %v749, 1.442695
    %v758 = vpow.pop %v757
    %v759 = vmul.f32 %v750, 1.442695
    %v760 = vpow.pop %v759
    %v761 = vmul.f32 %v751, 1.442695
    %v762 = vpow.pop %v761
    %v763 = vmul.f32 %v752, 1.442695
    %v764 = vpow.pop %v763
    %v765 = vmul.f32 %v753, 1.442695
    %v766 = vpow.pop %v765
    %v767 = vmul.f32 %v754, 1.442695
    %v768 = vpow.pop %v767
    %v769 = vmul.f32 %v755, 1.442695
    %v770 = vpow.pop %v769
    %v771 = vmul.f32 %v756, 1.442695
    %v772 = vpow.pop %v771
    %v773 = vsel %vm724, %v758, 0.0
    %774 = vadd.xlane.f32.xlu0 %v773
    %v775 = vpop.xlane.xlu0 %774
    %v776 = vsel %vm724, %v760, 0.0
    %777 = vadd.xlane.f32.xlu0 %v776
    %v778 = vpop.xlane.xlu0 %777
    %v779 = vsel %vm724, %v762, 0.0
    %780 = vadd.xlane.f32.xlu0 %v779
    %v781 = vpop.xlane.xlu0 %780
    %v782 = vsel %vm724, %v764, 0.0
    %783 = vadd.xlane.f32.xlu0 %v782
    %v784 = vpop.xlane.xlu0 %783
    %v785 = vsel %vm724, %v766, 0.0
    %786 = vadd.xlane.f32.xlu0 %v785
    %v787 = vpop.xlane.xlu0 %786
    %v788 = vsel %vm724, %v768, 0.0
    %789 = vadd.xlane.f32.xlu0 %v788
    %v790 = vpop.xlane.xlu0 %789
    %v791 = vsel %vm724, %v770, 0.0
    %792 = vadd.xlane.f32.xlu0 %v791
    %v793 = vpop.xlane.xlu0 %792
    %v794 = vsel %vm724, %v772, 0.0
    %795 = vadd.xlane.f32.xlu0 %v794
    %v796 = vpop.xlane.xlu0 %795
    %v797 = vrcp.pop %v775
    %v798 = vmul.f32 %v758, %v797
    %v799 = vrcp.pop %v778
    %v800 = vmul.f32 %v760, %v799
    %v801 = vrcp.pop %v781
    %v802 = vmul.f32 %v762, %v801
    %v803 = vrcp.pop %v784
    %v804 = vmul.f32 %v764, %v803
    %v805 = vrcp.pop %v787
    %v806 = vmul.f32 %v766, %v805
    %v807 = vrcp.pop %v790
    %v808 = vmul.f32 %v768, %v807
    %v809 = vrcp.pop %v793
    %v810 = vmul.f32 %v770, %v809
    %v811 = vrcp.pop %v796
    %v812 = vmul.f32 %v772, %v811
    %813 = vrot.lane.b32.xlu0 %v338, 64
    %v814 = vpop.permute.xlu0 %813
    %815 = vrot.lane.b32.xlu0 %v343, 64
    %v816 = vpop.permute.xlu0 %815
    %v820 = vsel %vm724, %v798, 0
    %v823 = vsel %vm724, %v800, 0
    %825 = vmatprep.subr.mxu0 0.0
    %826 = vmatpush1.msra.mxu0 0.0
    %827 = vmatprep.subr.mxu0 0.0
    %828 = vmatpush1.msra.mxu0 0.0
    %829 = vmatprep.subr.mxu0 0.0
    %830 = vmatpush1.msra.mxu0 0.0
    %831 = vmatprep.subr.mxu0 0.0
    %832 = vmatpush1.msra.mxu0 0.0
    %833 = vmatprep.subr.mxu0 0.0
    %834 = vmatpush1.msra.mxu0 0.0
    %835 = vmatprep.subr.mxu0 0.0
    %836 = vmatpush1.msra.mxu0 0.0
    %837 = vmatprep.subr.mxu0 0.0
    %838 = vmatpush1.msra.mxu0 0.0
    %839 = vmatprep.subr.mxu0 0.0
    %840 = vmatpush1.msra.mxu0 0.0
    %841 = vmatprep.subr.mxu0 0.0
    %842 = vmatpush1.msra.mxu0 0.0
    %843 = vmatprep.subr.mxu0 0.0
    %844 = vmatpush1.msra.mxu0 0.0
    %845 = vmatprep.subr.mxu0 0.0
    %846 = vmatpush1.msra.mxu0 0.0
    %847 = vmatprep.subr.mxu0 0.0
    %848 = vmatpush1.msra.mxu0 0.0
    %849 = vmatprep.subr.mxu0 0.0
    %850 = vmatpush1.msra.mxu0 0.0
    %851 = vmatprep.subr.mxu0 0.0
    %852 = vmatpush1.msra.mxu0 0.0
    %853 = vmatprep.subr.mxu0 0.0
    %854 = vmatpush1.msra.mxu0 %v816
    %855 = vmatprep.subr.mxu0 0.0
    %856 = vmatpush1.msra.mxu0 %v814
    %857 = vmatprep.subr.mxu0 0.0
    %858 = vmatpush2.msra.mxu0 0.0
    %859 = vmatprep.subr.mxu0 0.0
    %860 = vmatpush2.msra.mxu0 0.0
    %861 = vmatprep.subr.mxu0 0.0
    %862 = vmatpush2.msra.mxu0 0.0
    %863 = vmatprep.subr.mxu0 0.0
    %864 = vmatpush2.msra.mxu0 0.0
    %865 = vmatprep.subr.mxu0 0.0
    %866 = vmatpush2.msra.mxu0 0.0
    %867 = vmatprep.subr.mxu0 0.0
    %868 = vmatpush2.msra.mxu0 0.0
    %869 = vmatprep.subr.mxu0 0.0
    %870 = vmatpush2.msra.mxu0 0.0
    %871 = vmatprep.subr.mxu0 0.0
    %872 = vmatpush2.msra.mxu0 0.0
    %873 = vmatprep.subr.mxu0 0.0
    %874 = vmatpush2.msra.mxu0 0.0
    %875 = vmatprep.subr.mxu0 0.0
    %876 = vmatpush2.msra.mxu0 0.0
    %877 = vmatprep.subr.mxu0 0.0
    %878 = vmatpush2.msra.mxu0 0.0
    %879 = vmatprep.subr.mxu0 0.0
    %880 = vmatpush2.msra.mxu0 0.0
    %881 = vmatprep.subr.mxu0 0.0
    %882 = vmatpush2.msra.mxu0 0.0
    %883 = vmatprep.subr.mxu0 0.0
    %884 = vmatpush2.msra.mxu0 0.0
    %885 = vmatprep.subr.mxu0 0.0
    %886 = vmatpush2.msra.mxu0 0.0
    %887 = vmatprep.subr.mxu0 0.0
    %888 = vmatpush2.msra.mxu0 0.0
    %889 = vmatprep.mubr.f32.mxu0 0.0
    %890 = vmatmul.mubr.f32.gmra.mxu0 %v820
    %v891 = vpop.f32.mrf.mxu0
    %v892 = vadd.f32 0.0, %v891
    %v893 = vpop.f32.mrf.mxu0
    %894 = vmatprep.mubr.f32.mxu0 0.0
    %895 = vmatmul.mubr.f32.gmra.mxu0 %v823
    %v896 = vpop.f32.mrf.mxu0
    %v897 = vadd.f32 0.0, %v896
    %v898 = vpop.f32.mrf.mxu0
    %899 = vdwg.mxu0
    %900 = vrot.lane.b32.xlu0 %v338, 56
    %v901 = vpop.permute.xlu0 %900
    %902 = vrot.lane.b32.xlu0 %v343, 56
    %v903 = vpop.permute.xlu0 %902
    %v907 = vsel %vm724, %v802, 0
    %v910 = vsel %vm724, %v804, 0
    %912 = vmatprep.subr.mxu0 0.0
    %913 = vmatpush1.msra.mxu0 0.0
    %914 = vmatprep.subr.mxu0 0.0
    %915 = vmatpush1.msra.mxu0 0.0
    %916 = vmatprep.subr.mxu0 0.0
    %917 = vmatpush1.msra.mxu0 0.0
    %918 = vmatprep.subr.mxu0 0.0
    %919 = vmatpush1.msra.mxu0 0.0
    %920 = vmatprep.subr.mxu0 0.0
    %921 = vmatpush1.msra.mxu0 0.0
    %922 = vmatprep.subr.mxu0 0.0
    %923 = vmatpush1.msra.mxu0 0.0
    %924 = vmatprep.subr.mxu0 0.0
    %925 = vmatpush1.msra.mxu0 0.0
    %926 = vmatprep.subr.mxu0 0.0
    %927 = vmatpush1.msra.mxu0 0.0
    %928 = vmatprep.subr.mxu0 0.0
    %929 = vmatpush1.msra.mxu0 0.0
    %930 = vmatprep.subr.mxu0 0.0
    %931 = vmatpush1.msra.mxu0 0.0
    %932 = vmatprep.subr.mxu0 0.0
    %933 = vmatpush1.msra.mxu0 0.0
    %934 = vmatprep.subr.mxu0 0.0
    %935 = vmatpush1.msra.mxu0 0.0
    %936 = vmatprep.subr.mxu0 0.0
    %937 = vmatpush1.msra.mxu0 0.0
    %938 = vmatprep.subr.mxu0 0.0
    %939 = vmatpush1.msra.mxu0 0.0
    %940 = vmatprep.subr.mxu0 0.0
    %941 = vmatpush1.msra.mxu0 %v903
    %942 = vmatprep.subr.mxu0 0.0
    %943 = vmatpush1.msra.mxu0 %v901
    %944 = vmatprep.subr.mxu0 0.0
    %945 = vmatpush2.msra.mxu0 0.0
    %946 = vmatprep.subr.mxu0 0.0
    %947 = vmatpush2.msra.mxu0 0.0
    %948 = vmatprep.subr.mxu0 0.0
    %949 = vmatpush2.msra.mxu0 0.0
    %950 = vmatprep.subr.mxu0 0.0
    %951 = vmatpush2.msra.mxu0 0.0
    %952 = vmatprep.subr.mxu0 0.0
    %953 = vmatpush2.msra.mxu0 0.0
    %954 = vmatprep.subr.mxu0 0.0
    %955 = vmatpush2.msra.mxu0 0.0
    %956 = vmatprep.subr.mxu0 0.0
    %957 = vmatpush2.msra.mxu0 0.0
    %958 = vmatprep.subr.mxu0 0.0
    %959 = vmatpush2.msra.mxu0 0.0
    %960 = vmatprep.subr.mxu0 0.0
    %961 = vmatpush2.msra.mxu0 0.0
    %962 = vmatprep.subr.mxu0 0.0
    %963 = vmatpush2.msra.mxu0 0.0
    %964 = vmatprep.subr.mxu0 0.0
    %965 = vmatpush2.msra.mxu0 0.0
    %966 = vmatprep.subr.mxu0 0.0
    %967 = vmatpush2.msra.mxu0 0.0
    %968 = vmatprep.subr.mxu0 0.0
    %969 = vmatpush2.msra.mxu0 0.0
    %970 = vmatprep.subr.mxu0 0.0
    %971 = vmatpush2.msra.mxu0 0.0
    %972 = vmatprep.subr.mxu0 0.0
    %973 = vmatpush2.msra.mxu0 0.0
    %974 = vmatprep.subr.mxu0 0.0
    %975 = vmatpush2.msra.mxu0 0.0
    %976 = vmatprep.mubr.f32.mxu0 0.0
    %977 = vmatmul.mubr.f32.gmra.mxu0 %v907
    %v978 = vpop.f32.mrf.mxu0
    %v979 = vadd.f32 0.0, %v978
    %v980 = vpop.f32.mrf.mxu0
    %981 = vmatprep.mubr.f32.mxu0 0.0
    %982 = vmatmul.mubr.f32.gmra.mxu0 %v910
    %v983 = vpop.f32.mrf.mxu0
    %v984 = vadd.f32 0.0, %v983
    %v985 = vpop.f32.mrf.mxu0
    %986 = vdwg.mxu0
    %987 = vrot.lane.b32.xlu0 %v338, 48
    %v988 = vpop.permute.xlu0 %987
    %989 = vrot.lane.b32.xlu0 %v343, 48
    %v990 = vpop.permute.xlu0 %989
    %v994 = vsel %vm724, %v806, 0
    %v997 = vsel %vm724, %v808, 0
    %999 = vmatprep.subr.mxu0 0.0
    %1000 = vmatpush1.msra.mxu0 0.0
    %1001 = vmatprep.subr.mxu0 0.0
    %1002 = vmatpush1.msra.mxu0 0.0
    %1003 = vmatprep.subr.mxu0 0.0
    %1004 = vmatpush1.msra.mxu0 0.0
    %1005 = vmatprep.subr.mxu0 0.0
    %1006 = vmatpush1.msra.mxu0 0.0
    %1007 = vmatprep.subr.mxu0 0.0
    %1008 = vmatpush1.msra.mxu0 0.0
    %1009 = vmatprep.subr.mxu0 0.0
    %1010 = vmatpush1.msra.mxu0 0.0
    %1011 = vmatprep.subr.mxu0 0.0
    %1012 = vmatpush1.msra.mxu0 0.0
    %1013 = vmatprep.subr.mxu0 0.0
    %1014 = vmatpush1.msra.mxu0 0.0
    %1015 = vmatprep.subr.mxu0 0.0
    %1016 = vmatpush1.msra.mxu0 0.0
    %1017 = vmatprep.subr.mxu0 0.0
    %1018 = vmatpush1.msra.mxu0 0.0
    %1019 = vmatprep.subr.mxu0 0.0
    %1020 = vmatpush1.msra.mxu0 0.0
    %1021 = vmatprep.subr.mxu0 0.0
    %1022 = vmatpush1.msra.mxu0 0.0
    %1023 = vmatprep.subr.mxu0 0.0
    %1024 = vmatpush1.msra.mxu0 0.0
    %1025 = vmatprep.subr.mxu0 0.0
    %1026 = vmatpush1.msra.mxu0 0.0
    %1027 = vmatprep.subr.mxu0 0.0
    %1028 = vmatpush1.msra.mxu0 %v990
    %1029 = vmatprep.subr.mxu0 0.0
    %1030 = vmatpush1.msra.mxu0 %v988
    %1031 = vmatprep.subr.mxu0 0.0
    %1032 = vmatpush2.msra.mxu0 0.0
    %1033 = vmatprep.subr.mxu0 0.0
    %1034 = vmatpush2.msra.mxu0 0.0
    %1035 = vmatprep.subr.mxu0 0.0
    %1036 = vmatpush2.msra.mxu0 0.0
    %1037 = vmatprep.subr.mxu0 0.0
    %1038 = vmatpush2.msra.mxu0 0.0
    %1039 = vmatprep.subr.mxu0 0.0
    %1040 = vmatpush2.msra.mxu0 0.0
    %1041 = vmatprep.subr.mxu0 0.0
    %1042 = vmatpush2.msra.mxu0 0.0
    %1043 = vmatprep.subr.mxu0 0.0
    %1044 = vmatpush2.msra.mxu0 0.0
    %1045 = vmatprep.subr.mxu0 0.0
    %1046 = vmatpush2.msra.mxu0 0.0
    %1047 = vmatprep.subr.mxu0 0.0
    %1048 = vmatpush2.msra.mxu0 0.0
    %1049 = vmatprep.subr.mxu0 0.0
    %1050 = vmatpush2.msra.mxu0 0.0
    %1051 = vmatprep.subr.mxu0 0.0
    %1052 = vmatpush2.msra.mxu0 0.0
    %1053 = vmatprep.subr.mxu0 0.0
    %1054 = vmatpush2.msra.mxu0 0.0
    %1055 = vmatprep.subr.mxu0 0.0
    %1056 = vmatpush2.msra.mxu0 0.0
    %1057 = vmatprep.subr.mxu0 0.0
    %1058 = vmatpush2.msra.mxu0 0.0
    %1059 = vmatprep.subr.mxu0 0.0
    %1060 = vmatpush2.msra.mxu0 0.0
    %1061 = vmatprep.subr.mxu0 0.0
    %1062 = vmatpush2.msra.mxu0 0.0
    %1063 = vmatprep.mubr.f32.mxu0 0.0
    %1064 = vmatmul.mubr.f32.gmra.mxu0 %v994
    %v1065 = vpop.f32.mrf.mxu0
    %v1066 = vadd.f32 0.0, %v1065
    %v1067 = vpop.f32.mrf.mxu0
    %1068 = vmatprep.mubr.f32.mxu0 0.0
    %1069 = vmatmul.mubr.f32.gmra.mxu0 %v997
    %v1070 = vpop.f32.mrf.mxu0
    %v1071 = vadd.f32 0.0, %v1070
    %v1072 = vpop.f32.mrf.mxu0
    %1073 = vdwg.mxu0
    %1074 = vrot.lane.b32.xlu0 %v338, 40
    %v1075 = vpop.permute.xlu0 %1074
    %1076 = vrot.lane.b32.xlu0 %v343, 40
    %v1077 = vpop.permute.xlu0 %1076
    %v1081 = vsel %vm724, %v810, 0
    %v1084 = vsel %vm724, %v812, 0
    %1086 = vmatprep.subr.mxu0 0.0
    %1087 = vmatpush1.msra.mxu0 0.0
    %1088 = vmatprep.subr.mxu0 0.0
    %1089 = vmatpush1.msra.mxu0 0.0
    %1090 = vmatprep.subr.mxu0 0.0
    %1091 = vmatpush1.msra.mxu0 0.0
    %1092 = vmatprep.subr.mxu0 0.0
    %1093 = vmatpush1.msra.mxu0 0.0
    %1094 = vmatprep.subr.mxu0 0.0
    %1095 = vmatpush1.msra.mxu0 0.0
    %1096 = vmatprep.subr.mxu0 0.0
    %1097 = vmatpush1.msra.mxu0 0.0
    %1098 = vmatprep.subr.mxu0 0.0
    %1099 = vmatpush1.msra.mxu0 0.0
    %1100 = vmatprep.subr.mxu0 0.0
    %1101 = vmatpush1.msra.mxu0 0.0
    %1102 = vmatprep.subr.mxu0 0.0
    %1103 = vmatpush1.msra.mxu0 0.0
    %1104 = vmatprep.subr.mxu0 0.0
    %1105 = vmatpush1.msra.mxu0 0.0
    %1106 = vmatprep.subr.mxu0 0.0
    %1107 = vmatpush1.msra.mxu0 0.0
    %1108 = vmatprep.subr.mxu0 0.0
    %1109 = vmatpush1.msra.mxu0 0.0
    %1110 = vmatprep.subr.mxu0 0.0
    %1111 = vmatpush1.msra.mxu0 0.0
    %1112 = vmatprep.subr.mxu0 0.0
    %1113 = vmatpush1.msra.mxu0 0.0
    %1114 = vmatprep.subr.mxu0 0.0
    %1115 = vmatpush1.msra.mxu0 %v1077
    %1116 = vmatprep.subr.mxu0 0.0
    %1117 = vmatpush1.msra.mxu0 %v1075
    %1118 = vmatprep.subr.mxu0 0.0
    %1119 = vmatpush2.msra.mxu0 0.0
    %1120 = vmatprep.subr.mxu0 0.0
    %1121 = vmatpush2.msra.mxu0 0.0
    %1122 = vmatprep.subr.mxu0 0.0
    %1123 = vmatpush2.msra.mxu0 0.0
    %1124 = vmatprep.subr.mxu0 0.0
    %1125 = vmatpush2.msra.mxu0 0.0
    %1126 = vmatprep.subr.mxu0 0.0
    %1127 = vmatpush2.msra.mxu0 0.0
    %1128 = vmatprep.subr.mxu0 0.0
    %1129 = vmatpush2.msra.mxu0 0.0
    %1130 = vmatprep.subr.mxu0 0.0
    %1131 = vmatpush2.msra.mxu0 0.0
    %1132 = vmatprep.subr.mxu0 0.0
    %1133 = vmatpush2.msra.mxu0 0.0
    %1134 = vmatprep.subr.mxu0 0.0
    %1135 = vmatpush2.msra.mxu0 0.0
    %1136 = vmatprep.subr.mxu0 0.0
    %1137 = vmatpush2.msra.mxu0 0.0
    %1138 = vmatprep.subr.mxu0 0.0
    %1139 = vmatpush2.msra.mxu0 0.0
    %1140 = vmatprep.subr.mxu0 0.0
    %1141 = vmatpush2.msra.mxu0 0.0
    %1142 = vmatprep.subr.mxu0 0.0
    %1143 = vmatpush2.msra.mxu0 0.0
    %1144 = vmatprep.subr.mxu0 0.0
    %1145 = vmatpush2.msra.mxu0 0.0
    %1146 = vmatprep.subr.mxu0 0.0
    %1147 = vmatpush2.msra.mxu0 0.0
    %1148 = vmatprep.subr.mxu0 0.0
    %1149 = vmatpush2.msra.mxu0 0.0
    %1150 = vmatprep.mubr.f32.mxu0 0.0
    %1151 = vmatmul.mubr.f32.gmra.mxu0 %v1081
    %v1152 = vpop.f32.mrf.mxu0
    %v1153 = vadd.f32 0.0, %v1152
    %v1154 = vpop.f32.mrf.mxu0
    %1155 = vmatprep.mubr.f32.mxu0 0.0
    %1156 = vmatmul.mubr.f32.gmra.mxu0 %v1084
    %v1157 = vpop.f32.mrf.mxu0
    %v1158 = vadd.f32 0.0, %v1157
    %v1159 = vpop.f32.mrf.mxu0
    %1160 = vdwg.mxu0
    %1163 = vrot.lane.b32.xlu0 %v979, 8
    %v1164 = vpop.permute.xlu0 %1163
    %1165 = vrot.lane.b32.xlu0 %v984, 8
    %v1166 = vpop.permute.xlu0 %1165
    %1171 = vrot.lane.b32.xlu0 %v1066, 16
    %v1172 = vpop.permute.xlu0 %1171
    %1173 = vrot.lane.b32.xlu0 %v1071, 16
    %v1174 = vpop.permute.xlu0 %1173
    %1179 = vrot.lane.b32.xlu0 %v1153, 24
    %v1180 = vpop.permute.xlu0 %1179
    %1181 = vrot.lane.b32.xlu0 %v1158, 24
    %v1182 = vpop.permute.xlu0 %1181
    %v1185 = vsel %vm116, %v892, %v1164
    %v1186 = vsel %vm116, %v897, %v1166
    %v1187 = vsel %vm724, %v1185, %v1172
    %v1188 = vsel %vm724, %v1186, %v1174
    %vm1189 = vcmask 195584
    %v1190 = vsel %vm1189, %v1187, %v1180
    %v1191 = vsel %vm1189, %v1188, %v1182
    %v1192 = vld [vmem:[%s6] sm:$0xff]
    %v1193 = vld [vmem:[%s6 + $0x8] sm:$0xff]
    %v1194 = vld [vmem:[%s6 + $0x10] sm:$0xff]
    %v1195 = vld [vmem:[%s6 + $0x18] sm:$0xff]
    %v1196 = vld [vmem:[#allocation5] sm:$0x1]
    %v1198 = vlaneseq
    %v1199 = vshrl.u32 %v1198, 7
    %v1200 = vsub.s32 0, %v1199
    %v1201 = vrot.slane %v1196, %v1200
    %v1204 = vsel %vm264, %v1190, 0
    %v1207 = vsel %vm264, %v1191, 0
    %1209 = vmatprep.subr.mxu0 0.0
    %1210 = vmatpush1.msra.mxu0 0.0
    %1211 = vmatprep.subr.mxu0 0.0
    %1212 = vmatpush1.msra.mxu0 0.0
    %1213 = vmatprep.subr.mxu0 0.0
    %1214 = vmatpush1.msra.mxu0 0.0
    %1215 = vmatprep.subr.mxu0 0.0
    %1216 = vmatpush1.msra.mxu0 0.0
    %1217 = vmatprep.subr.mxu0 0.0
    %1218 = vmatpush1.msra.mxu0 0.0
    %1219 = vmatprep.subr.mxu0 0.0
    %1220 = vmatpush1.msra.mxu0 0.0
    %1221 = vmatprep.subr.mxu0 0.0
    %1222 = vmatpush1.msra.mxu0 0.0
    %1223 = vmatprep.subr.mxu0 0.0
    %1224 = vmatpush1.msra.mxu0 0.0
    %1225 = vmatprep.subr.mxu0 0.0
    %1226 = vmatpush1.msra.mxu0 0.0
    %1227 = vmatprep.subr.mxu0 0.0
    %1228 = vmatpush1.msra.mxu0 0.0
    %1229 = vmatprep.subr.mxu0 0.0
    %1230 = vmatpush1.msra.mxu0 0.0
    %1231 = vmatprep.subr.mxu0 0.0
    %1232 = vmatpush1.msra.mxu0 0.0
    %1233 = vmatprep.subr.mxu0 0.0
    %1234 = vmatpush1.msra.mxu0 %v1195
    %1235 = vmatprep.subr.mxu0 0.0
    %1236 = vmatpush1.msra.mxu0 %v1194
    %1237 = vmatprep.subr.mxu0 0.0
    %1238 = vmatpush1.msra.mxu0 %v1193
    %1239 = vmatprep.subr.mxu0 0.0
    %1240 = vmatpush1.msra.mxu0 %v1192
    %1241 = vmatprep.subr.mxu0 0.0
    %1242 = vmatpush2.msra.mxu0 0.0
    %1243 = vmatprep.subr.mxu0 0.0
    %1244 = vmatpush2.msra.mxu0 0.0
    %1245 = vmatprep.subr.mxu0 0.0
    %1246 = vmatpush2.msra.mxu0 0.0
    %1247 = vmatprep.subr.mxu0 0.0
    %1248 = vmatpush2.msra.mxu0 0.0
    %1249 = vmatprep.subr.mxu0 0.0
    %1250 = vmatpush2.msra.mxu0 0.0
    %1251 = vmatprep.subr.mxu0 0.0
    %1252 = vmatpush2.msra.mxu0 0.0
    %1253 = vmatprep.subr.mxu0 0.0
    %1254 = vmatpush2.msra.mxu0 0.0
    %1255 = vmatprep.subr.mxu0 0.0
    %1256 = vmatpush2.msra.mxu0 0.0
    %1257 = vmatprep.subr.mxu0 0.0
    %1258 = vmatpush2.msra.mxu0 0.0
    %1259 = vmatprep.subr.mxu0 0.0
    %1260 = vmatpush2.msra.mxu0 0.0
    %1261 = vmatprep.subr.mxu0 0.0
    %1262 = vmatpush2.msra.mxu0 0.0
    %1263 = vmatprep.subr.mxu0 0.0
    %1264 = vmatpush2.msra.mxu0 0.0
    %1265 = vmatprep.subr.mxu0 0.0
    %1266 = vmatpush2.msra.mxu0 0.0
    %1267 = vmatprep.subr.mxu0 0.0
    %1268 = vmatpush2.msra.mxu0 0.0
    %1269 = vmatprep.subr.mxu0 0.0
    %1270 = vmatpush2.msra.mxu0 0.0
    %1271 = vmatprep.subr.mxu0 0.0
    %1272 = vmatpush2.msra.mxu0 0.0
    %1273 = vmatprep.mubr.f32.mxu0 0.0
    %1274 = vmatmul.mubr.f32.gmra.mxu0 %v1204
    %v1275 = vpop.f32.mrf.mxu0
    %v1276 = vadd.f32 %v1201, %v1275
    %v1277 = vpop.f32.mrf.mxu0
    %1278 = vmatprep.mubr.f32.mxu0 0.0
    %1279 = vmatmul.mubr.f32.gmra.mxu0 %v1207
    %v1280 = vpop.f32.mrf.mxu0
    %v1281 = vadd.f32 %v1201, %v1280
    %v1282 = vpop.f32.mrf.mxu0
    %1283 = vdwg.mxu0
    %v1284 = vadd.f32 %v251, %v1276
    %v1285 = vadd.f32 %v252, %v1281
    %v1286 = vsel %vm264, %v1284, 0.0
    %1287 = vadd.xlane.f32.xlu0 %v1286
    %v1288 = vpop.xlane.xlu0 %1287
    %v1289 = vsel %vm264, %v1285, 0.0
    %1290 = vadd.xlane.f32.xlu0 %v1289
    %v1291 = vpop.xlane.xlu0 %1290
    %v1292 = vrcp.pop 32.0
    %v1293 = vmul.f32 %v1288, %v1292
    %v1294 = vmul.f32 %v1291, %v1292
    %v1295 = vsub.f32 %v1284, %v1293
    %v1296 = vsub.f32 %v1285, %v1294
    %v1297 = vmul.f32 %v1295, %v1295
    %v1298 = vmul.f32 %v1296, %v1296
    %v1299 = vsel %vm264, %v1297, 0.0
    %1300 = vadd.xlane.f32.xlu0 %v1299
    %v1301 = vpop.xlane.xlu0 %1300
    %v1302 = vsel %vm264, %v1298, 0.0
    %1303 = vadd.xlane.f32.xlu0 %v1302
    %v1304 = vpop.xlane.xlu0 %1303
    %v1305 = vmul.f32 %v1301, %v1292
    %v1306 = vmul.f32 %v1304, %v1292
    %v1307 = vadd.f32 %v1305, 1e-05
    %v1308 = vadd.f32 %v1306, 1e-05
    %v1309 = vrsqrt.pop %v1307
    %v1310 = vrsqrt.pop %v1308
    %v1311 = vmul.f32 %v1295, %v1309
    %v1312 = vmul.f32 %v1296, %v1310
    %v1313 = vld [vmem:[%s12] sm:$0x1]
    %v1315 = vlaneseq
    %v1316 = vshrl.u32 %v1315, 7
    %v1317 = vsub.s32 0, %v1316
    %v1318 = vrot.slane %v1313, %v1317
    %v1320 = vmul.f32 %v1311, %v1318
    %v1321 = vmul.f32 %v1312, %v1318
    %v1322 = vld [vmem:[%s13] sm:$0x1]
    %v1324 = vlaneseq
    %v1325 = vshrl.u32 %v1324, 7
    %v1326 = vsub.s32 0, %v1325
    %v1327 = vrot.slane %v1322, %v1326
    %v1329 = vadd.f32 %v1320, %v1327
    %v1330 = vadd.f32 %v1321, %v1327
    %v1331 = vld [vmem:[%s8] sm:$0xff]
    %v1332 = vld [vmem:[%s8 + $0x8] sm:$0xff]
    %v1333 = vld [vmem:[%s8 + $0x10] sm:$0xff]
    %v1334 = vld [vmem:[%s8 + $0x18] sm:$0xff]
    %v1335 = vld [vmem:[#allocation7] sm:$0x1]
    %v1337 = vlaneseq
    %v1338 = vshrl.u32 %v1337, 7
    %v1339 = vsub.s32 0, %v1338
    %v1340 = vrot.slane %v1335, %v1339
    %v1343 = vsel %vm264, %v1329, 0
    %v1346 = vsel %vm264, %v1330, 0
    %1348 = vmatprep.subr.mxu0 0.0
    %1349 = vmatpush1.msra.mxu0 0.0
    %1350 = vmatprep.subr.mxu0 0.0
    %1351 = vmatpush1.msra.mxu0 0.0
    %1352 = vmatprep.subr.mxu0 0.0
    %1353 = vmatpush1.msra.mxu0 0.0
    %1354 = vmatprep.subr.mxu0 0.0
    %1355 = vmatpush1.msra.mxu0 0.0
    %1356 = vmatprep.subr.mxu0 0.0
    %1357 = vmatpush1.msra.mxu0 0.0
    %1358 = vmatprep.subr.mxu0 0.0
    %1359 = vmatpush1.msra.mxu0 0.0
    %1360 = vmatprep.subr.mxu0 0.0
    %1361 = vmatpush1.msra.mxu0 0.0
    %1362 = vmatprep.subr.mxu0 0.0
    %1363 = vmatpush1.msra.mxu0 0.0
    %1364 = vmatprep.subr.mxu0 0.0
    %1365 = vmatpush1.msra.mxu0 0.0
    %1366 = vmatprep.subr.mxu0 0.0
    %1367 = vmatpush1.msra.mxu0 0.0
    %1368 = vmatprep.subr.mxu0 0.0
    %1369 = vmatpush1.msra.mxu0 0.0
    %1370 = vmatprep.subr.mxu0 0.0
    %1371 = vmatpush1.msra.mxu0 0.0
    %1372 = vmatprep.subr.mxu0 0.0
    %1373 = vmatpush1.msra.mxu0 %v1334
    %1374 = vmatprep.subr.mxu0 0.0
    %1375 = vmatpush1.msra.mxu0 %v1333
    %1376 = vmatprep.subr.mxu0 0.0
    %1377 = vmatpush1.msra.mxu0 %v1332
    %1378 = vmatprep.subr.mxu0 0.0
    %1379 = vmatpush1.msra.mxu0 %v1331
    %1380 = vmatprep.subr.mxu0 0.0
    %1381 = vmatpush2.msra.mxu0 0.0
    %1382 = vmatprep.subr.mxu0 0.0
    %1383 = vmatpush2.msra.mxu0 0.0
    %1384 = vmatprep.subr.mxu0 0.0
    %1385 = vmatpush2.msra.mxu0 0.0
    %1386 = vmatprep.subr.mxu0 0.0
    %1387 = vmatpush2.msra.mxu0 0.0
    %1388 = vmatprep.subr.mxu0 0.0
    %1389 = vmatpush2.msra.mxu0 0.0
    %1390 = vmatprep.subr.mxu0 0.0
    %1391 = vmatpush2.msra.mxu0 0.0
    %1392 = vmatprep.subr.mxu0 0.0
    %1393 = vmatpush2.msra.mxu0 0.0
    %1394 = vmatprep.subr.mxu0 0.0
    %1395 = vmatpush2.msra.mxu0 0.0
    %1396 = vmatprep.subr.mxu0 0.0
    %1397 = vmatpush2.msra.mxu0 0.0
    %1398 = vmatprep.subr.mxu0 0.0
    %1399 = vmatpush2.msra.mxu0 0.0
    %1400 = vmatprep.subr.mxu0 0.0
    %1401 = vmatpush2.msra.mxu0 0.0
    %1402 = vmatprep.subr.mxu0 0.0
    %1403 = vmatpush2.msra.mxu0 0.0
    %1404 = vmatprep.subr.mxu0 0.0
    %1405 = vmatpush2.msra.mxu0 0.0
    %1406 = vmatprep.subr.mxu0 0.0
    %1407 = vmatpush2.msra.mxu0 0.0
    %1408 = vmatprep.subr.mxu0 0.0
    %1409 = vmatpush2.msra.mxu0 0.0
    %1410 = vmatprep.subr.mxu0 0.0
    %1411 = vmatpush2.msra.mxu0 0.0
    %1412 = vmatprep.mubr.f32.mxu0 0.0
    %1413 = vmatmul.mubr.f32.gmra.mxu0 %v1343
    %v1414 = vpop.f32.mrf.mxu0
    %v1415 = vadd.f32 %v1340, %v1414
    %v1416 = vpop.f32.mrf.mxu0
    %1417 = vmatprep.mubr.f32.mxu0 0.0
    %1418 = vmatmul.mubr.f32.gmra.mxu0 %v1346
    %v1419 = vpop.f32.mrf.mxu0
    %v1420 = vadd.f32 %v1340, %v1419
    %v1421 = vpop.f32.mrf.mxu0
    %1422 = vdwg.mxu0
    %v1423 = vmax.f32 %v1415, 0.0
    %v1424 = vmax.f32 %v1420, 0.0
    %v1425 = vld [vmem:[%s10] sm:$0xff]
    %v1426 = vld [vmem:[%s10 + $0x8] sm:$0xff]
    %v1427 = vld [vmem:[%s10 + $0x10] sm:$0xff]
    %v1428 = vld [vmem:[%s10 + $0x18] sm:$0xff]
    %v1429 = vld [vmem:[%s10 + $0x20] sm:$0xff]
    %v1430 = vld [vmem:[%s10 + $0x28] sm:$0xff]
    %v1431 = vld [vmem:[%s10 + $0x30] sm:$0xff]
    %v1432 = vld [vmem:[%s10 + $0x38] sm:$0xff]
    %v1433 = vld [vmem:[#allocation8] sm:$0x1]
    %v1435 = vlaneseq
    %v1436 = vshrl.u32 %v1435, 7
    %v1437 = vsub.s32 0, %v1436
    %v1438 = vrot.slane %v1433, %v1437
    %vm1440 = vcmask 523264
    %v1442 = vsel %vm1440, %v1423, 0
    %v1445 = vsel %vm1440, %v1424, 0
    %1447 = vmatprep.subr.mxu0 0.0
    %1448 = vmatpush1.msra.mxu0 0.0
    %1449 = vmatprep.subr.mxu0 0.0
    %1450 = vmatpush1.msra.mxu0 0.0
    %1451 = vmatprep.subr.mxu0 0.0
    %1452 = vmatpush1.msra.mxu0 0.0
    %1453 = vmatprep.subr.mxu0 0.0
    %1454 = vmatpush1.msra.mxu0 0.0
    %1455 = vmatprep.subr.mxu0 0.0
    %1456 = vmatpush1.msra.mxu0 0.0
    %1457 = vmatprep.subr.mxu0 0.0
    %1458 = vmatpush1.msra.mxu0 0.0
    %1459 = vmatprep.subr.mxu0 0.0
    %1460 = vmatpush1.msra.mxu0 0.0
    %1461 = vmatprep.subr.mxu0 0.0
    %1462 = vmatpush1.msra.mxu0 0.0
    %1463 = vmatprep.subr.mxu0 0.0
    %1464 = vmatpush1.msra.mxu0 %v1432
    %1465 = vmatprep.subr.mxu0 0.0
    %1466 = vmatpush1.msra.mxu0 %v1431
    %1467 = vmatprep.subr.mxu0 0.0
    %1468 = vmatpush1.msra.mxu0 %v1430
    %1469 = vmatprep.subr.mxu0 0.0
    %1470 = vmatpush1.msra.mxu0 %v1429
    %1471 = vmatprep.subr.mxu0 0.0
    %1472 = vmatpush1.msra.mxu0 %v1428
    %1473 = vmatprep.subr.mxu0 0.0
    %1474 = vmatpush1.msra.mxu0 %v1427
    %1475 = vmatprep.subr.mxu0 0.0
    %1476 = vmatpush1.msra.mxu0 %v1426
    %1477 = vmatprep.subr.mxu0 0.0
    %1478 = vmatpush1.msra.mxu0 %v1425
    %1479 = vmatprep.subr.mxu0 0.0
    %1480 = vmatpush2.msra.mxu0 0.0
    %1481 = vmatprep.subr.mxu0 0.0
    %1482 = vmatpush2.msra.mxu0 0.0
    %1483 = vmatprep.subr.mxu0 0.0
    %1484 = vmatpush2.msra.mxu0 0.0
    %1485 = vmatprep.subr.mxu0 0.0
    %1486 = vmatpush2.msra.mxu0 0.0
    %1487 = vmatprep.subr.mxu0 0.0
    %1488 = vmatpush2.msra.mxu0 0.0
    %1489 = vmatprep.subr.mxu0 0.0
    %1490 = vmatpush2.msra.mxu0 0.0
    %1491 = vmatprep.subr.mxu0 0.0
    %1492 = vmatpush2.msra.mxu0 0.0
    %1493 = vmatprep.subr.mxu0 0.0
    %1494 = vmatpush2.msra.mxu0 0.0
    %1495 = vmatprep.subr.mxu0 0.0
    %1496 = vmatpush2.msra.mxu0 0.0
    %1497 = vmatprep.subr.mxu0 0.0
    %1498 = vmatpush2.msra.mxu0 0.0
    %1499 = vmatprep.subr.mxu0 0.0
    %1500 = vmatpush2.msra.mxu0 0.0
    %1501 = vmatprep.subr.mxu0 0.0
    %1502 = vmatpush2.msra.mxu0 0.0
    %1503 = vmatprep.subr.mxu0 0.0
    %1504 = vmatpush2.msra.mxu0 0.0
    %1505 = vmatprep.subr.mxu0 0.0
    %1506 = vmatpush2.msra.mxu0 0.0
    %1507 = vmatprep.subr.mxu0 0.0
    %1508 = vmatpush2.msra.mxu0 0.0
    %1509 = vmatprep.subr.mxu0 0.0
    %1510 = vmatpush2.msra.mxu0 0.0
    %1511 = vmatprep.mubr.f32.mxu0 0.0
    %1512 = vmatmul.mubr.f32.gmra.mxu0 %v1442
    %v1513 = vpop.f32.mrf.mxu0
    %v1514 = vadd.f32 %v1438, %v1513
    %v1515 = vpop.f32.mrf.mxu0
    %1516 = vmatprep.mubr.f32.mxu0 0.0
    %1517 = vmatmul.mubr.f32.gmra.mxu0 %v1445
    %v1518 = vpop.f32.mrf.mxu0
    %v1519 = vadd.f32 %v1438, %v1518
    %v1520 = vpop.f32.mrf.mxu0
    %1521 = vdwg.mxu0
    %v1522 = vadd.f32 %v1329, %v1514
    %v1523 = vadd.f32 %v1330, %v1519
    %v1524 = vsel %vm264, %v1522, 0.0
    %1525 = vadd.xlane.f32.xlu0 %v1524
    %v1526 = vpop.xlane.xlu0 %1525
    %v1527 = vsel %vm264, %v1523, 0.0
    %1528 = vadd.xlane.f32.xlu0 %v1527
    %v1529 = vpop.xlane.xlu0 %1528
    %v1530 = vmul.f32 %v1526, %v1292
    %v1531 = vmul.f32 %v1529, %v1292
    %v1532 = vsub.f32 %v1522, %v1530
    %v1533 = vsub.f32 %v1523, %v1531
    %v1534 = vmul.f32 %v1532, %v1532
    %v1535 = vmul.f32 %v1533, %v1533
    %v1536 = vsel %vm264, %v1534, 0.0
    %1537 = vadd.xlane.f32.xlu0 %v1536
    %v1538 = vpop.xlane.xlu0 %1537
    %v1539 = vsel %vm264, %v1535, 0.0
    %1540 = vadd.xlane.f32.xlu0 %v1539
    %v1541 = vpop.xlane.xlu0 %1540
    %v1542 = vmul.f32 %v1538, %v1292
    %v1543 = vmul.f32 %v1541, %v1292
    %v1544 = vadd.f32 %v1542, 1e-05
    %v1545 = vadd.f32 %v1543, 1e-05
    %v1546 = vrsqrt.pop %v1544
    %v1547 = vrsqrt.pop %v1545
    %v1548 = vmul.f32 %v1532, %v1546
    %v1549 = vmul.f32 %v1533, %v1547
    %s1550 = scalar_lea.vmem %s12, 1
    %v1551 = vld [vmem:[%s1550] sm:$0x1]
    %v1553 = vlaneseq
    %v1554 = vshrl.u32 %v1553, 7
    %v1555 = vsub.s32 0, %v1554
    %v1556 = vrot.slane %v1551, %v1555
    %v1558 = vmul.f32 %v1548, %v1556
    %v1559 = vmul.f32 %v1549, %v1556
    %s1560 = scalar_lea.vmem %s13, 1
    %v1561 = vld [vmem:[%s1560] sm:$0x1]
    %v1563 = vlaneseq
    %v1564 = vshrl.u32 %v1563, 7
    %v1565 = vsub.s32 0, %v1564
    %v1566 = vrot.slane %v1561, %v1565
    %v1568 = vadd.f32 %v1558, %v1566
    %v1569 = vadd.f32 %v1559, %v1566
    %s1570 = scalar_lea.vmem %s4, 32
    %v1571 = vld [vmem:[%s1570] sm:$0xff]
    %v1572 = vld [vmem:[%s1570 + $0x8] sm:$0xff]
    %v1573 = vld [vmem:[%s1570 + $0x10] sm:$0xff]
    %v1574 = vld [vmem:[%s1570 + $0x18] sm:$0xff]
    %s1575 = scalar_lea.vmem [#allocation2], 1
    %v1576 = vld [vmem:[%s1575] sm:$0x1]
    %v1578 = vlaneseq
    %v1579 = vshrl.u32 %v1578, 7
    %v1580 = vsub.s32 0, %v1579
    %v1581 = vrot.slane %v1576, %v1580
    %v1584 = vsel %vm264, %v1568, 0
    %v1587 = vsel %vm264, %v1569, 0
    %1589 = vmatprep.subr.mxu0 0.0
    %1590 = vmatpush1.msra.mxu0 0.0
    %1591 = vmatprep.subr.mxu0 0.0
    %1592 = vmatpush1.msra.mxu0 0.0
    %1593 = vmatprep.subr.mxu0 0.0
    %1594 = vmatpush1.msra.mxu0 0.0
    %1595 = vmatprep.subr.mxu0 0.0
    %1596 = vmatpush1.msra.mxu0 0.0
    %1597 = vmatprep.subr.mxu0 0.0
    %1598 = vmatpush1.msra.mxu0 0.0
    %1599 = vmatprep.subr.mxu0 0.0
    %1600 = vmatpush1.msra.mxu0 0.0
    %1601 = vmatprep.subr.mxu0 0.0
    %1602 = vmatpush1.msra.mxu0 0.0
    %1603 = vmatprep.subr.mxu0 0.0
    %1604 = vmatpush1.msra.mxu0 0.0
    %1605 = vmatprep.subr.mxu0 0.0
    %1606 = vmatpush1.msra.mxu0 0.0
    %1607 = vmatprep.subr.mxu0 0.0
    %1608 = vmatpush1.msra.mxu0 0.0
    %1609 = vmatprep.subr.mxu0 0.0
    %1610 = vmatpush1.msra.mxu0 0.0
    %1611 = vmatprep.subr.mxu0 0.0
    %1612 = vmatpush1.msra.mxu0 0.0
    %1613 = vmatprep.subr.mxu0 0.0
    %1614 = vmatpush1.msra.mxu0 %v1574
    %1615 = vmatprep.subr.mxu0 0.0
    %1616 = vmatpush1.msra.mxu0 %v1573
    %1617 = vmatprep.subr.mxu0 0.0
    %1618 = vmatpush1.msra.mxu0 %v1572
    %1619 = vmatprep.subr.mxu0 0.0
    %1620 = vmatpush1.msra.mxu0 %v1571
    %1621 = vmatprep.subr.mxu0 0.0
    %1622 = vmatpush2.msra.mxu0 0.0
    %1623 = vmatprep.subr.mxu0 0.0
    %1624 = vmatpush2.msra.mxu0 0.0
    %1625 = vmatprep.subr.mxu0 0.0
    %1626 = vmatpush2.msra.mxu0 0.0
    %1627 = vmatprep.subr.mxu0 0.0
    %1628 = vmatpush2.msra.mxu0 0.0
    %1629 = vmatprep.subr.mxu0 0.0
    %1630 = vmatpush2.msra.mxu0 0.0
    %1631 = vmatprep.subr.mxu0 0.0
    %1632 = vmatpush2.msra.mxu0 0.0
    %1633 = vmatprep.subr.mxu0 0.0
    %1634 = vmatpush2.msra.mxu0 0.0
    %1635 = vmatprep.subr.mxu0 0.0
    %1636 = vmatpush2.msra.mxu0 0.0
    %1637 = vmatprep.subr.mxu0 0.0
    %1638 = vmatpush2.msra.mxu0 0.0
    %1639 = vmatprep.subr.mxu0 0.0
    %1640 = vmatpush2.msra.mxu0 0.0
    %1641 = vmatprep.subr.mxu0 0.0
    %1642 = vmatpush2.msra.mxu0 0.0
    %1643 = vmatprep.subr.mxu0 0.0
    %1644 = vmatpush2.msra.mxu0 0.0
    %1645 = vmatprep.subr.mxu0 0.0
    %1646 = vmatpush2.msra.mxu0 0.0
    %1647 = vmatprep.subr.mxu0 0.0
    %1648 = vmatpush2.msra.mxu0 0.0
    %1649 = vmatprep.subr.mxu0 0.0
    %1650 = vmatpush2.msra.mxu0 0.0
    %1651 = vmatprep.subr.mxu0 0.0
    %1652 = vmatpush2.msra.mxu0 0.0
    %1653 = vmatprep.mubr.f32.mxu0 0.0
    %1654 = vmatmul.mubr.f32.gmra.mxu0 %v1584
    %v1655 = vpop.f32.mrf.mxu0
    %v1656 = vadd.f32 %v1581, %v1655
    %v1657 = vpop.f32.mrf.mxu0
    %1658 = vmatprep.mubr.f32.mxu0 0.0
    %1659 = vmatmul.mubr.f32.gmra.mxu0 %v1587
    %v1660 = vpop.f32.mrf.mxu0
    %v1661 = vadd.f32 %v1581, %v1660
    %v1662 = vpop.f32.mrf.mxu0
    %1663 = vdwg.mxu0
    %1666 = vrot.lane.b32.xlu0 %v1656, 96
    %v1667 = vpop.permute.xlu0 %1666
    %1668 = vrot.lane.b32.xlu0 %v1661, 96
    %v1669 = vpop.permute.xlu0 %1668
    %v1670 = vsel %vm116, %v1656, 0
    %v1672 = vsel %vm116, %v1661, 0
    %v1674 = vsel %vm116, %v1667, 0
    %v1676 = vsel %vm116, %v1669, 0
    %1678 = vmatprep.subr.mxu0 0.0
    %1679 = vmatpush1.xpose.msra.mxu0 0.0
    %1680 = vmatprep.subr.mxu0 0.0
    %1681 = vmatpush1.xpose.msra.mxu0 0.0
    %1682 = vmatprep.subr.mxu0 0.0
    %1683 = vmatpush1.xpose.msra.mxu0 0.0
    %1684 = vmatprep.subr.mxu0 0.0
    %1685 = vmatpush1.xpose.msra.mxu0 0.0
    %1686 = vmatprep.subr.mxu0 0.0
    %1687 = vmatpush1.xpose.msra.mxu0 0.0
    %1688 = vmatprep.subr.mxu0 0.0
    %1689 = vmatpush1.xpose.msra.mxu0 0.0
    %1690 = vmatprep.subr.mxu0 0.0
    %1691 = vmatpush1.xpose.msra.mxu0 0.0
    %1692 = vmatprep.subr.mxu0 0.0
    %1693 = vmatpush1.xpose.msra.mxu0 0.0
    %1694 = vmatprep.subr.mxu0 0.0
    %1695 = vmatpush1.xpose.msra.mxu0 0.0
    %1696 = vmatprep.subr.mxu0 0.0
    %1697 = vmatpush1.xpose.msra.mxu0 0.0
    %1698 = vmatprep.subr.mxu0 0.0
    %1699 = vmatpush1.xpose.msra.mxu0 0.0
    %1700 = vmatprep.subr.mxu0 0.0
    %1701 = vmatpush1.xpose.msra.mxu0 0.0
    %1702 = vmatprep.subr.mxu0 0.0
    %1703 = vmatpush1.xpose.msra.mxu0 0.0
    %1704 = vmatprep.subr.mxu0 0.0
    %1705 = vmatpush1.xpose.msra.mxu0 0.0
    %1706 = vmatprep.subr.mxu0 0.0
    %1707 = vmatpush1.xpose.msra.mxu0 %v1676
    %1708 = vmatprep.subr.mxu0 0.0
    %1709 = vmatpush1.xpose.msra.mxu0 %v1674
    %1710 = vmatprep.subr.mxu0 0.0
    %1711 = vmatpush2.xpose.msra.mxu0 0.0
    %1712 = vmatprep.subr.mxu0 0.0
    %1713 = vmatpush2.xpose.msra.mxu0 0.0
    %1714 = vmatprep.subr.mxu0 0.0
    %1715 = vmatpush2.xpose.msra.mxu0 0.0
    %1716 = vmatprep.subr.mxu0 0.0
    %1717 = vmatpush2.xpose.msra.mxu0 0.0
    %1718 = vmatprep.subr.mxu0 0.0
    %1719 = vmatpush2.xpose.msra.mxu0 0.0
    %1720 = vmatprep.subr.mxu0 0.0
    %1721 = vmatpush2.xpose.msra.mxu0 0.0
    %1722 = vmatprep.subr.mxu0 0.0
    %1723 = vmatpush2.xpose.msra.mxu0 0.0
    %1724 = vmatprep.subr.mxu0 0.0
    %1725 = vmatpush2.xpose.msra.mxu0 0.0
    %1726 = vmatprep.subr.mxu0 0.0
    %1727 = vmatpush2.xpose.msra.mxu0 0.0
    %1728 = vmatprep.subr.mxu0 0.0
    %1729 = vmatpush2.xpose.msra.mxu0 0.0
    %1730 = vmatprep.subr.mxu0 0.0
    %1731 = vmatpush2.xpose.msra.mxu0 0.0
    %1732 = vmatprep.subr.mxu0 0.0
    %1733 = vmatpush2.xpose.msra.mxu0 0.0
    %1734 = vmatprep.subr.mxu0 0.0
    %1735 = vmatpush2.xpose.msra.mxu0 0.0
    %1736 = vmatprep.subr.mxu0 0.0
    %1737 = vmatpush2.xpose.msra.mxu0 0.0
    %1738 = vmatprep.subr.mxu0 0.0
    %1739 = vmatpush2.xpose.msra.mxu0 0.0
    %1740 = vmatprep.subr.mxu0 0.0
    %1741 = vmatpush2.xpose.msra.mxu0 0.0
    %1742 = vmatprep.mubr.f32.mxu0 0.0
    %1743 = vmatmul.mubr.f32.gmra.mxu0 %v1670
    %v1744 = vpop.f32.mrf.mxu0
    %v1745 = vadd.f32 0.0, %v1744
    %v1746 = vpop.f32.mrf.mxu0
    %1747 = vmatprep.mubr.f32.mxu0 0.0
    %1748 = vmatmul.mubr.f32.gmra.mxu0 %v1672
    %v1749 = vpop.f32.mrf.mxu0
    %v1750 = vadd.f32 0.0, %v1749
    %v1751 = vpop.f32.mrf.mxu0
    %1752 = vdwg.mxu0
    %1753 = vrot.lane.b32.xlu0 %v1656, 120
    %v1754 = vpop.permute.xlu0 %1753
    %1755 = vrot.lane.b32.xlu0 %v1661, 120
    %v1756 = vpop.permute.xlu0 %1755
    %1757 = vrot.lane.b32.xlu0 %v1656, 88
    %v1758 = vpop.permute.xlu0 %1757
    %1759 = vrot.lane.b32.xlu0 %v1661, 88
    %v1760 = vpop.permute.xlu0 %1759
    %v1761 = vsel %vm116, %v1754, 0
    %v1763 = vsel %vm116, %v1756, 0
    %v1765 = vsel %vm116, %v1758, 0
    %v1767 = vsel %vm116, %v1760, 0
    %1769 = vmatprep.subr.mxu0 0.0
    %1770 = vmatpush1.xpose.msra.mxu0 0.0
    %1771 = vmatprep.subr.mxu0 0.0
    %1772 = vmatpush1.xpose.msra.mxu0 0.0
    %1773 = vmatprep.subr.mxu0 0.0
    %1774 = vmatpush1.xpose.msra.mxu0 0.0
    %1775 = vmatprep.subr.mxu0 0.0
    %1776 = vmatpush1.xpose.msra.mxu0 0.0
    %1777 = vmatprep.subr.mxu0 0.0
    %1778 = vmatpush1.xpose.msra.mxu0 0.0
    %1779 = vmatprep.subr.mxu0 0.0
    %1780 = vmatpush1.xpose.msra.mxu0 0.0
    %1781 = vmatprep.subr.mxu0 0.0
    %1782 = vmatpush1.xpose.msra.mxu0 0.0
    %1783 = vmatprep.subr.mxu0 0.0
    %1784 = vmatpush1.xpose.msra.mxu0 0.0
    %1785 = vmatprep.subr.mxu0 0.0
    %1786 = vmatpush1.xpose.msra.mxu0 0.0
    %1787 = vmatprep.subr.mxu0 0.0
    %1788 = vmatpush1.xpose.msra.mxu0 0.0
    %1789 = vmatprep.subr.mxu0 0.0
    %1790 = vmatpush1.xpose.msra.mxu0 0.0
    %1791 = vmatprep.subr.mxu0 0.0
    %1792 = vmatpush1.xpose.msra.mxu0 0.0
    %1793 = vmatprep.subr.mxu0 0.0
    %1794 = vmatpush1.xpose.msra.mxu0 0.0
    %1795 = vmatprep.subr.mxu0 0.0
    %1796 = vmatpush1.xpose.msra.mxu0 0.0
    %1797 = vmatprep.subr.mxu0 0.0
    %1798 = vmatpush1.xpose.msra.mxu0 %v1767
    %1799 = vmatprep.subr.mxu0 0.0
    %1800 = vmatpush1.xpose.msra.mxu0 %v1765
    %1801 = vmatprep.subr.mxu0 0.0
    %1802 = vmatpush2.xpose.msra.mxu0 0.0
    %1803 = vmatprep.subr.mxu0 0.0
    %1804 = vmatpush2.xpose.msra.mxu0 0.0
    %1805 = vmatprep.subr.mxu0 0.0
    %1806 = vmatpush2.xpose.msra.mxu0 0.0
    %1807 = vmatprep.subr.mxu0 0.0
    %1808 = vmatpush2.xpose.msra.mxu0 0.0
    %1809 = vmatprep.subr.mxu0 0.0
    %1810 = vmatpush2.xpose.msra.mxu0 0.0
    %1811 = vmatprep.subr.mxu0 0.0
    %1812 = vmatpush2.xpose.msra.mxu0 0.0
    %1813 = vmatprep.subr.mxu0 0.0
    %1814 = vmatpush2.xpose.msra.mxu0 0.0
    %1815 = vmatprep.subr.mxu0 0.0
    %1816 = vmatpush2.xpose.msra.mxu0 0.0
    %1817 = vmatprep.subr.mxu0 0.0
    %1818 = vmatpush2.xpose.msra.mxu0 0.0
    %1819 = vmatprep.subr.mxu0 0.0
    %1820 = vmatpush2.xpose.msra.mxu0 0.0
    %1821 = vmatprep.subr.mxu0 0.0
    %1822 = vmatpush2.xpose.msra.mxu0 0.0
    %1823 = vmatprep.subr.mxu0 0.0
    %1824 = vmatpush2.xpose.msra.mxu0 0.0
    %1825 = vmatprep.subr.mxu0 0.0
    %1826 = vmatpush2.xpose.msra.mxu0 0.0
    %1827 = vmatprep.subr.mxu0 0.0
    %1828 = vmatpush2.xpose.msra.mxu0 0.0
    %1829 = vmatprep.subr.mxu0 0.0
    %1830 = vmatpush2.xpose.msra.mxu0 0.0
    %1831 = vmatprep.subr.mxu0 0.0
    %1832 = vmatpush2.xpose.msra.mxu0 0.0
    %1833 = vmatprep.mubr.f32.mxu0 0.0
    %1834 = vmatmul.mubr.f32.gmra.mxu0 %v1761
    %v1835 = vpop.f32.mrf.mxu0
    %v1836 = vadd.f32 0.0, %v1835
    %v1837 = vpop.f32.mrf.mxu0
    %1838 = vmatprep.mubr.f32.mxu0 0.0
    %1839 = vmatmul.mubr.f32.gmra.mxu0 %v1763
    %v1840 = vpop.f32.mrf.mxu0
    %v1841 = vadd.f32 0.0, %v1840
    %v1842 = vpop.f32.mrf.mxu0
    %1843 = vdwg.mxu0
    %1844 = vrot.lane.b32.xlu0 %v1656, 112
    %v1845 = vpop.permute.xlu0 %1844
    %1846 = vrot.lane.b32.xlu0 %v1661, 112
    %v1847 = vpop.permute.xlu0 %1846
    %1848 = vrot.lane.b32.xlu0 %v1656, 80
    %v1849 = vpop.permute.xlu0 %1848
    %1850 = vrot.lane.b32.xlu0 %v1661, 80
    %v1851 = vpop.permute.xlu0 %1850
    %v1852 = vsel %vm116, %v1845, 0
    %v1854 = vsel %vm116, %v1847, 0
    %v1856 = vsel %vm116, %v1849, 0
    %v1858 = vsel %vm116, %v1851, 0
    %1860 = vmatprep.subr.mxu0 0.0
    %1861 = vmatpush1.xpose.msra.mxu0 0.0
    %1862 = vmatprep.subr.mxu0 0.0
    %1863 = vmatpush1.xpose.msra.mxu0 0.0
    %1864 = vmatprep.subr.mxu0 0.0
    %1865 = vmatpush1.xpose.msra.mxu0 0.0
    %1866 = vmatprep.subr.mxu0 0.0
    %1867 = vmatpush1.xpose.msra.mxu0 0.0
    %1868 = vmatprep.subr.mxu0 0.0
    %1869 = vmatpush1.xpose.msra.mxu0 0.0
    %1870 = vmatprep.subr.mxu0 0.0
    %1871 = vmatpush1.xpose.msra.mxu0 0.0
    %1872 = vmatprep.subr.mxu0 0.0
    %1873 = vmatpush1.xpose.msra.mxu0 0.0
    %1874 = vmatprep.subr.mxu0 0.0
    %1875 = vmatpush1.xpose.msra.mxu0 0.0
    %1876 = vmatprep.subr.mxu0 0.0
    %1877 = vmatpush1.xpose.msra.mxu0 0.0
    %1878 = vmatprep.subr.mxu0 0.0
    %1879 = vmatpush1.xpose.msra.mxu0 0.0
    %1880 = vmatprep.subr.mxu0 0.0
    %1881 = vmatpush1.xpose.msra.mxu0 0.0
    %1882 = vmatprep.subr.mxu0 0.0
    %1883 = vmatpush1.xpose.msra.mxu0 0.0
    %1884 = vmatprep.subr.mxu0 0.0
    %1885 = vmatpush1.xpose.msra.mxu0 0.0
    %1886 = vmatprep.subr.mxu0 0.0
    %1887 = vmatpush1.xpose.msra.mxu0 0.0
    %1888 = vmatprep.subr.mxu0 0.0
    %1889 = vmatpush1.xpose.msra.mxu0 %v1858
    %1890 = vmatprep.subr.mxu0 0.0
    %1891 = vmatpush1.xpose.msra.mxu0 %v1856
    %1892 = vmatprep.subr.mxu0 0.0
    %1893 = vmatpush2.xpose.msra.mxu0 0.0
    %1894 = vmatprep.subr.mxu0 0.0
    %1895 = vmatpush2.xpose.msra.mxu0 0.0
    %1896 = vmatprep.subr.mxu0 0.0
    %1897 = vmatpush2.xpose.msra.mxu0 0.0
    %1898 = vmatprep.subr.mxu0 0.0
    %1899 = vmatpush2.xpose.msra.mxu0 0.0
    %1900 = vmatprep.subr.mxu0 0.0
    %1901 = vmatpush2.xpose.msra.mxu0 0.0
    %1902 = vmatprep.subr.mxu0 0.0
    %1903 = vmatpush2.xpose.msra.mxu0 0.0
    %1904 = vmatprep.subr.mxu0 0.0
    %1905 = vmatpush2.xpose.msra.mxu0 0.0
    %1906 = vmatprep.subr.mxu0 0.0
    %1907 = vmatpush2.xpose.msra.mxu0 0.0
    %1908 = vmatprep.subr.mxu0 0.0
    %1909 = vmatpush2.xpose.msra.mxu0 0.0
    %1910 = vmatprep.subr.mxu0 0.0
    %1911 = vmatpush2.xpose.msra.mxu0 0.0
    %1912 = vmatprep.subr.mxu0 0.0
    %1913 = vmatpush2.xpose.msra.mxu0 0.0
    %1914 = vmatprep.subr.mxu0 0.0
    %1915 = vmatpush2.xpose.msra.mxu0 0.0
    %1916 = vmatprep.subr.mxu0 0.0
    %1917 = vmatpush2.xpose.msra.mxu0 0.0
    %1918 = vmatprep.subr.mxu0 0.0
    %1919 = vmatpush2.xpose.msra.mxu0 0.0
    %1920 = vmatprep.subr.mxu0 0.0
    %1921 = vmatpush2.xpose.msra.mxu0 0.0
    %1922 = vmatprep.subr.mxu0 0.0
    %1923 = vmatpush2.xpose.msra.mxu0 0.0
    %1924 = vmatprep.mubr.f32.mxu0 0.0
    %1925 = vmatmul.mubr.f32.gmra.mxu0 %v1852
    %v1926 = vpop.f32.mrf.mxu0
    %v1927 = vadd.f32 0.0, %v1926
    %v1928 = vpop.f32.mrf.mxu0
    %1929 = vmatprep.mubr.f32.mxu0 0.0
    %1930 = vmatmul.mubr.f32.gmra.mxu0 %v1854
    %v1931 = vpop.f32.mrf.mxu0
    %v1932 = vadd.f32 0.0, %v1931
    %v1933 = vpop.f32.mrf.mxu0
    %1934 = vdwg.mxu0
    %1935 = vrot.lane.b32.xlu0 %v1656, 104
    %v1936 = vpop.permute.xlu0 %1935
    %1937 = vrot.lane.b32.xlu0 %v1661, 104
    %v1938 = vpop.permute.xlu0 %1937
    %1939 = vrot.lane.b32.xlu0 %v1656, 72
    %v1940 = vpop.permute.xlu0 %1939
    %1941 = vrot.lane.b32.xlu0 %v1661, 72
    %v1942 = vpop.permute.xlu0 %1941
    %v1943 = vsel %vm116, %v1936, 0
    %v1945 = vsel %vm116, %v1938, 0
    %v1947 = vsel %vm116, %v1940, 0
    %v1949 = vsel %vm116, %v1942, 0
    %1951 = vmatprep.subr.mxu0 0.0
    %1952 = vmatpush1.xpose.msra.mxu0 0.0
    %1953 = vmatprep.subr.mxu0 0.0
    %1954 = vmatpush1.xpose.msra.mxu0 0.0
    %1955 = vmatprep.subr.mxu0 0.0
    %1956 = vmatpush1.xpose.msra.mxu0 0.0
    %1957 = vmatprep.subr.mxu0 0.0
    %1958 = vmatpush1.xpose.msra.mxu0 0.0
    %1959 = vmatprep.subr.mxu0 0.0
    %1960 = vmatpush1.xpose.msra.mxu0 0.0
    %1961 = vmatprep.subr.mxu0 0.0
    %1962 = vmatpush1.xpose.msra.mxu0 0.0
    %1963 = vmatprep.subr.mxu0 0.0
    %1964 = vmatpush1.xpose.msra.mxu0 0.0
    %1965 = vmatprep.subr.mxu0 0.0
    %1966 = vmatpush1.xpose.msra.mxu0 0.0
    %1967 = vmatprep.subr.mxu0 0.0
    %1968 = vmatpush1.xpose.msra.mxu0 0.0
    %1969 = vmatprep.subr.mxu0 0.0
    %1970 = vmatpush1.xpose.msra.mxu0 0.0
    %1971 = vmatprep.subr.mxu0 0.0
    %1972 = vmatpush1.xpose.msra.mxu0 0.0
    %1973 = vmatprep.subr.mxu0 0.0
    %1974 = vmatpush1.xpose.msra.mxu0 0.0
    %1975 = vmatprep.subr.mxu0 0.0
    %1976 = vmatpush1.xpose.msra.mxu0 0.0
    %1977 = vmatprep.subr.mxu0 0.0
    %1978 = vmatpush1.xpose.msra.mxu0 0.0
    %1979 = vmatprep.subr.mxu0 0.0
    %1980 = vmatpush1.xpose.msra.mxu0 %v1949
    %1981 = vmatprep.subr.mxu0 0.0
    %1982 = vmatpush1.xpose.msra.mxu0 %v1947
    %1983 = vmatprep.subr.mxu0 0.0
    %1984 = vmatpush2.xpose.msra.mxu0 0.0
    %1985 = vmatprep.subr.mxu0 0.0
    %1986 = vmatpush2.xpose.msra.mxu0 0.0
    %1987 = vmatprep.subr.mxu0 0.0
    %1988 = vmatpush2.xpose.msra.mxu0 0.0
    %1989 = vmatprep.subr.mxu0 0.0
    %1990 = vmatpush2.xpose.msra.mxu0 0.0
    %1991 = vmatprep.subr.mxu0 0.0
    %1992 = vmatpush2.xpose.msra.mxu0 0.0
    %1993 = vmatprep.subr.mxu0 0.0
    %1994 = vmatpush2.xpose.msra.mxu0 0.0
    %1995 = vmatprep.subr.mxu0 0.0
    %1996 = vmatpush2.xpose.msra.mxu0 0.0
    %1997 = vmatprep.subr.mxu0 0.0
    %1998 = vmatpush2.xpose.msra.mxu0 0.0
    %1999 = vmatprep.subr.mxu0 0.0
    %2000 = vmatpush2.xpose.msra.mxu0 0.0
    %2001 = vmatprep.subr.mxu0 0.0
    %2002 = vmatpush2.xpose.msra.mxu0 0.0
    %2003 = vmatprep.subr.mxu0 0.0
    %2004 = vmatpush2.xpose.msra.mxu0 0.0
    %2005 = vmatprep.subr.mxu0 0.0
    %2006 = vmatpush2.xpose.msra.mxu0 0.0
    %2007 = vmatprep.subr.mxu0 0.0
    %2008 = vmatpush2.xpose.msra.mxu0 0.0
    %2009 = vmatprep.subr.mxu0 0.0
    %2010 = vmatpush2.xpose.msra.mxu0 0.0
    %2011 = vmatprep.subr.mxu0 0.0
    %2012 = vmatpush2.xpose.msra.mxu0 0.0
    %2013 = vmatprep.subr.mxu0 0.0
    %2014 = vmatpush2.xpose.msra.mxu0 0.0
    %2015 = vmatprep.mubr.f32.mxu0 0.0
    %2016 = vmatmul.mubr.f32.gmra.mxu0 %v1943
    %v2017 = vpop.f32.mrf.mxu0
    %v2018 = vadd.f32 0.0, %v2017
    %v2019 = vpop.f32.mrf.mxu0
    %2020 = vmatprep.mubr.f32.mxu0 0.0
    %2021 = vmatmul.mubr.f32.gmra.mxu0 %v1945
    %v2022 = vpop.f32.mrf.mxu0
    %v2023 = vadd.f32 0.0, %v2022
    %v2024 = vpop.f32.mrf.mxu0
    %2025 = vdwg.mxu0
    %v2026 = vmul.f32 %v1745, 0.35355338
    %v2027 = vmul.f32 %v1750, 0.35355338
    %v2028 = vmul.f32 %v1836, 0.35355338
    %v2029 = vmul.f32 %v1841, 0.35355338
    %v2030 = vmul.f32 %v1927, 0.35355338
    %v2031 = vmul.f32 %v1932, 0.35355338
    %v2032 = vmul.f32 %v2018, 0.35355338
    %v2033 = vmul.f32 %v2023, 0.35355338
    %v2034 = vadd.f32 %v2026, %v134
    %v2035 = vadd.f32 %v2027, %v135
    %v2036 = vadd.f32 %v2028, %v134
    %v2037 = vadd.f32 %v2029, %v135
    %v2038 = vadd.f32 %v2030, %v134
    %v2039 = vadd.f32 %v2031, %v135
    %v2040 = vadd.f32 %v2032, %v134
    %v2041 = vadd.f32 %v2033, %v135
    %v2042 = vsel %vm724, %v2034, -inf
    %2043 = vmax.xlane.f32.xlu0 %v2042
    %v2044 = vpop.xlane.xlu0 %2043
    %v2045 = vsel %vm724, %v2035, -inf
    %2046 = vmax.xlane.f32.xlu0 %v2045
    %v2047 = vpop.xlane.xlu0 %2046
    %v2048 = vsel %vm724, %v2036, -inf
    %2049 = vmax.xlane.f32.xlu0 %v2048
    %v2050 = vpop.xlane.xlu0 %2049
    %v2051 = vsel %vm724, %v2037, -inf
    %2052 = vmax.xlane.f32.xlu0 %v2051
    %v2053 = vpop.xlane.xlu0 %2052
    %v2054 = vsel %vm724, %v2038, -inf
    %2055 = vmax.xlane.f32.xlu0 %v2054
    %v2056 = vpop.xlane.xlu0 %2055
    %v2057 = vsel %vm724, %v2039, -inf
    %2058 = vmax.xlane.f32.xlu0 %v2057
    %v2059 = vpop.xlane.xlu0 %2058
    %v2060 = vsel %vm724, %v2040, -inf
    %2061 = vmax.xlane.f32.xlu0 %v2060
    %v2062 = vpop.xlane.xlu0 %2061
    %v2063 = vsel %vm724, %v2041, -inf
    %2064 = vmax.xlane.f32.xlu0 %v2063
    %v2065 = vpop.xlane.xlu0 %2064
    %v2066 = vsub.f32 %v2034, %v2044
    %v2067 = vsub.f32 %v2035, %v2047
    %v2068 = vsub.f32 %v2036, %v2050
    %v2069 = vsub.f32 %v2037, %v2053
    %v2070 = vsub.f32 %v2038, %v2056
    %v2071 = vsub.f32 %v2039, %v2059
    %v2072 = vsub.f32 %v2040, %v2062
    %v2073 = vsub.f32 %v2041, %v2065
    %v2074 = vmul.f32 %v2066, 1.442695
    %v2075 = vpow.pop %v2074
    %v2076 = vmul.f32 %v2067, 1.442695
    %v2077 = vpow.pop %v2076
    %v2078 = vmul.f32 %v2068, 1.442695
    %v2079 = vpow.pop %v2078
    %v2080 = vmul.f32 %v2069, 1.442695
    %v2081 = vpow.pop %v2080
    %v2082 = vmul.f32 %v2070, 1.442695
    %v2083 = vpow.pop %v2082
    %v2084 = vmul.f32 %v2071, 1.442695
    %v2085 = vpow.pop %v2084
    %v2086 = vmul.f32 %v2072, 1.442695
    %v2087 = vpow.pop %v2086
    %v2088 = vmul.f32 %v2073, 1.442695
    %v2089 = vpow.pop %v2088
    %v2090 = vsel %vm724, %v2075, 0.0
    %2091 = vadd.xlane.f32.xlu0 %v2090
    %v2092 = vpop.xlane.xlu0 %2091
    %v2093 = vsel %vm724, %v2077, 0.0
    %2094 = vadd.xlane.f32.xlu0 %v2093
    %v2095 = vpop.xlane.xlu0 %2094
    %v2096 = vsel %vm724, %v2079, 0.0
    %2097 = vadd.xlane.f32.xlu0 %v2096
    %v2098 = vpop.xlane.xlu0 %2097
    %v2099 = vsel %vm724, %v2081, 0.0
    %2100 = vadd.xlane.f32.xlu0 %v2099
    %v2101 = vpop.xlane.xlu0 %2100
    %v2102 = vsel %vm724, %v2083, 0.0
    %2103 = vadd.xlane.f32.xlu0 %v2102
    %v2104 = vpop.xlane.xlu0 %2103
    %v2105 = vsel %vm724, %v2085, 0.0
    %2106 = vadd.xlane.f32.xlu0 %v2105
    %v2107 = vpop.xlane.xlu0 %2106
    %v2108 = vsel %vm724, %v2087, 0.0
    %2109 = vadd.xlane.f32.xlu0 %v2108
    %v2110 = vpop.xlane.xlu0 %2109
    %v2111 = vsel %vm724, %v2089, 0.0
    %2112 = vadd.xlane.f32.xlu0 %v2111
    %v2113 = vpop.xlane.xlu0 %2112
    %v2114 = vrcp.pop %v2092
    %v2115 = vmul.f32 %v2075, %v2114
    %v2116 = vrcp.pop %v2095
    %v2117 = vmul.f32 %v2077, %v2116
    %v2118 = vrcp.pop %v2098
    %v2119 = vmul.f32 %v2079, %v2118
    %v2120 = vrcp.pop %v2101
    %v2121 = vmul.f32 %v2081, %v2120
    %v2122 = vrcp.pop %v2104
    %v2123 = vmul.f32 %v2083, %v2122
    %v2124 = vrcp.pop %v2107
    %v2125 = vmul.f32 %v2085, %v2124
    %v2126 = vrcp.pop %v2110
    %v2127 = vmul.f32 %v2087, %v2126
    %v2128 = vrcp.pop %v2113
    %v2129 = vmul.f32 %v2089, %v2128
    %2130 = vrot.lane.b32.xlu0 %v1656, 64
    %v2131 = vpop.permute.xlu0 %2130
    %2132 = vrot.lane.b32.xlu0 %v1661, 64
    %v2133 = vpop.permute.xlu0 %2132
    %v2137 = vsel %vm724, %v2115, 0
    %v2140 = vsel %vm724, %v2117, 0
    %2142 = vmatprep.subr.mxu0 0.0
    %2143 = vmatpush1.msra.mxu0 0.0
    %2144 = vmatprep.subr.mxu0 0.0
    %2145 = vmatpush1.msra.mxu0 0.0
    %2146 = vmatprep.subr.mxu0 0.0
    %2147 = vmatpush1.msra.mxu0 0.0
    %2148 = vmatprep.subr.mxu0 0.0
    %2149 = vmatpush1.msra.mxu0 0.0
    %2150 = vmatprep.subr.mxu0 0.0
    %2151 = vmatpush1.msra.mxu0 0.0
    %2152 = vmatprep.subr.mxu0 0.0
    %2153 = vmatpush1.msra.mxu0 0.0
    %2154 = vmatprep.subr.mxu0 0.0
    %2155 = vmatpush1.msra.mxu0 0.0
    %2156 = vmatprep.subr.mxu0 0.0
    %2157 = vmatpush1.msra.mxu0 0.0
    %2158 = vmatprep.subr.mxu0 0.0
    %2159 = vmatpush1.msra.mxu0 0.0
    %2160 = vmatprep.subr.mxu0 0.0
    %2161 = vmatpush1.msra.mxu0 0.0
    %2162 = vmatprep.subr.mxu0 0.0
    %2163 = vmatpush1.msra.mxu0 0.0
    %2164 = vmatprep.subr.mxu0 0.0
    %2165 = vmatpush1.msra.mxu0 0.0
    %2166 = vmatprep.subr.mxu0 0.0
    %2167 = vmatpush1.msra.mxu0 0.0
    %2168 = vmatprep.subr.mxu0 0.0
    %2169 = vmatpush1.msra.mxu0 0.0
    %2170 = vmatprep.subr.mxu0 0.0
    %2171 = vmatpush1.msra.mxu0 %v2133
    %2172 = vmatprep.subr.mxu0 0.0
    %2173 = vmatpush1.msra.mxu0 %v2131
    %2174 = vmatprep.subr.mxu0 0.0
    %2175 = vmatpush2.msra.mxu0 0.0
    %2176 = vmatprep.subr.mxu0 0.0
    %2177 = vmatpush2.msra.mxu0 0.0
    %2178 = vmatprep.subr.mxu0 0.0
    %2179 = vmatpush2.msra.mxu0 0.0
    %2180 = vmatprep.subr.mxu0 0.0
    %2181 = vmatpush2.msra.mxu0 0.0
    %2182 = vmatprep.subr.mxu0 0.0
    %2183 = vmatpush2.msra.mxu0 0.0
    %2184 = vmatprep.subr.mxu0 0.0
    %2185 = vmatpush2.msra.mxu0 0.0
    %2186 = vmatprep.subr.mxu0 0.0
    %2187 = vmatpush2.msra.mxu0 0.0
    %2188 = vmatprep.subr.mxu0 0.0
    %2189 = vmatpush2.msra.mxu0 0.0
    %2190 = vmatprep.subr.mxu0 0.0
    %2191 = vmatpush2.msra.mxu0 0.0
    %2192 = vmatprep.subr.mxu0 0.0
    %2193 = vmatpush2.msra.mxu0 0.0
    %2194 = vmatprep.subr.mxu0 0.0
    %2195 = vmatpush2.msra.mxu0 0.0
    %2196 = vmatprep.subr.mxu0 0.0
    %2197 = vmatpush2.msra.mxu0 0.0
    %2198 = vmatprep.subr.mxu0 0.0
    %2199 = vmatpush2.msra.mxu0 0.0
    %2200 = vmatprep.subr.mxu0 0.0
    %2201 = vmatpush2.msra.mxu0 0.0
    %2202 = vmatprep.subr.mxu0 0.0
    %2203 = vmatpush2.msra.mxu0 0.0
    %2204 = vmatprep.subr.mxu0 0.0
    %2205 = vmatpush2.msra.mxu0 0.0
    %2206 = vmatprep.mubr.f32.mxu0 0.0
    %2207 = vmatmul.mubr.f32.gmra.mxu0 %v2137
    %v2208 = vpop.f32.mrf.mxu0
    %v2209 = vadd.f32 0.0, %v2208
    %v2210 = vpop.f32.mrf.mxu0
    %2211 = vmatprep.mubr.f32.mxu0 0.0
    %2212 = vmatmul.mubr.f32.gmra.mxu0 %v2140
    %v2213 = vpop.f32.mrf.mxu0
    %v2214 = vadd.f32 0.0, %v2213
    %v2215 = vpop.f32.mrf.mxu0
    %2216 = vdwg.mxu0
    %2217 = vrot.lane.b32.xlu0 %v1656, 56
    %v2218 = vpop.permute.xlu0 %2217
    %2219 = vrot.lane.b32.xlu0 %v1661, 56
    %v2220 = vpop.permute.xlu0 %2219
    %v2224 = vsel %vm724, %v2119, 0
    %v2227 = vsel %vm724, %v2121, 0
    %2229 = vmatprep.subr.mxu0 0.0
    %2230 = vmatpush1.msra.mxu0 0.0
    %2231 = vmatprep.subr.mxu0 0.0
    %2232 = vmatpush1.msra.mxu0 0.0
    %2233 = vmatprep.subr.mxu0 0.0
    %2234 = vmatpush1.msra.mxu0 0.0
    %2235 = vmatprep.subr.mxu0 0.0
    %2236 = vmatpush1.msra.mxu0 0.0
    %2237 = vmatprep.subr.mxu0 0.0
    %2238 = vmatpush1.msra.mxu0 0.0
    %2239 = vmatprep.subr.mxu0 0.0
    %2240 = vmatpush1.msra.mxu0 0.0
    %2241 = vmatprep.subr.mxu0 0.0
    %2242 = vmatpush1.msra.mxu0 0.0
    %2243 = vmatprep.subr.mxu0 0.0
    %2244 = vmatpush1.msra.mxu0 0.0
    %2245 = vmatprep.subr.mxu0 0.0
    %2246 = vmatpush1.msra.mxu0 0.0
    %2247 = vmatprep.subr.mxu0 0.0
    %2248 = vmatpush1.msra.mxu0 0.0
    %2249 = vmatprep.subr.mxu0 0.0
    %2250 = vmatpush1.msra.mxu0 0.0
    %2251 = vmatprep.subr.mxu0 0.0
    %2252 = vmatpush1.msra.mxu0 0.0
    %2253 = vmatprep.subr.mxu0 0.0
    %2254 = vmatpush1.msra.mxu0 0.0
    %2255 = vmatprep.subr.mxu0 0.0
    %2256 = vmatpush1.msra.mxu0 0.0
    %2257 = vmatprep.subr.mxu0 0.0
    %2258 = vmatpush1.msra.mxu0 %v2220
    %2259 = vmatprep.subr.mxu0 0.0
    %2260 = vmatpush1.msra.mxu0 %v2218
    %2261 = vmatprep.subr.mxu0 0.0
    %2262 = vmatpush2.msra.mxu0 0.0
    %2263 = vmatprep.subr.mxu0 0.0
    %2264 = vmatpush2.msra.mxu0 0.0
    %2265 = vmatprep.subr.mxu0 0.0
    %2266 = vmatpush2.msra.mxu0 0.0
    %2267 = vmatprep.subr.mxu0 0.0
    %2268 = vmatpush2.msra.mxu0 0.0
    %2269 = vmatprep.subr.mxu0 0.0
    %2270 = vmatpush2.msra.mxu0 0.0
    %2271 = vmatprep.subr.mxu0 0.0
    %2272 = vmatpush2.msra.mxu0 0.0
    %2273 = vmatprep.subr.mxu0 0.0
    %2274 = vmatpush2.msra.mxu0 0.0
    %2275 = vmatprep.subr.mxu0 0.0
    %2276 = vmatpush2.msra.mxu0 0.0
    %2277 = vmatprep.subr.mxu0 0.0
    %2278 = vmatpush2.msra.mxu0 0.0
    %2279 = vmatprep.subr.mxu0 0.0
    %2280 = vmatpush2.msra.mxu0 0.0
    %2281 = vmatprep.subr.mxu0 0.0
    %2282 = vmatpush2.msra.mxu0 0.0
    %2283 = vmatprep.subr.mxu0 0.0
    %2284 = vmatpush2.msra.mxu0 0.0
    %2285 = vmatprep.subr.mxu0 0.0
    %2286 = vmatpush2.msra.mxu0 0.0
    %2287 = vmatprep.subr.mxu0 0.0
    %2288 = vmatpush2.msra.mxu0 0.0
    %2289 = vmatprep.subr.mxu0 0.0
    %2290 = vmatpush2.msra.mxu0 0.0
    %2291 = vmatprep.subr.mxu0 0.0
    %2292 = vmatpush2.msra.mxu0 0.0
    %2293 = vmatprep.mubr.f32.mxu0 0.0
    %2294 = vmatmul.mubr.f32.gmra.mxu0 %v2224
    %v2295 = vpop.f32.mrf.mxu0
    %v2296 = vadd.f32 0.0, %v2295
    %v2297 = vpop.f32.mrf.mxu0
    %2298 = vmatprep.mubr.f32.mxu0 0.0
    %2299 = vmatmul.mubr.f32.gmra.mxu0 %v2227
    %v2300 = vpop.f32.mrf.mxu0
    %v2301 = vadd.f32 0.0, %v2300
    %v2302 = vpop.f32.mrf.mxu0
    %2303 = vdwg.mxu0
    %2304 = vrot.lane.b32.xlu0 %v1656, 48
    %v2305 = vpop.permute.xlu0 %2304
    %2306 = vrot.lane.b32.xlu0 %v1661, 48
    %v2307 = vpop.permute.xlu0 %2306
    %v2311 = vsel %vm724, %v2123, 0
    %v2314 = vsel %vm724, %v2125, 0
    %2316 = vmatprep.subr.mxu0 0.0
    %2317 = vmatpush1.msra.mxu0 0.0
    %2318 = vmatprep.subr.mxu0 0.0
    %2319 = vmatpush1.msra.mxu0 0.0
    %2320 = vmatprep.subr.mxu0 0.0
    %2321 = vmatpush1.msra.mxu0 0.0
    %2322 = vmatprep.subr.mxu0 0.0
    %2323 = vmatpush1.msra.mxu0 0.0
    %2324 = vmatprep.subr.mxu0 0.0
    %2325 = vmatpush1.msra.mxu0 0.0
    %2326 = vmatprep.subr.mxu0 0.0
    %2327 = vmatpush1.msra.mxu0 0.0
    %2328 = vmatprep.subr.mxu0 0.0
    %2329 = vmatpush1.msra.mxu0 0.0
    %2330 = vmatprep.subr.mxu0 0.0
    %2331 = vmatpush1.msra.mxu0 0.0
    %2332 = vmatprep.subr.mxu0 0.0
    %2333 = vmatpush1.msra.mxu0 0.0
    %2334 = vmatprep.subr.mxu0 0.0
    %2335 = vmatpush1.msra.mxu0 0.0
    %2336 = vmatprep.subr.mxu0 0.0
    %2337 = vmatpush1.msra.mxu0 0.0
    %2338 = vmatprep.subr.mxu0 0.0
    %2339 = vmatpush1.msra.mxu0 0.0
    %2340 = vmatprep.subr.mxu0 0.0
    %2341 = vmatpush1.msra.mxu0 0.0
    %2342 = vmatprep.subr.mxu0 0.0
    %2343 = vmatpush1.msra.mxu0 0.0
    %2344 = vmatprep.subr.mxu0 0.0
    %2345 = vmatpush1.msra.mxu0 %v2307
    %2346 = vmatprep.subr.mxu0 0.0
    %2347 = vmatpush1.msra.mxu0 %v2305
    %2348 = vmatprep.subr.mxu0 0.0
    %2349 = vmatpush2.msra.mxu0 0.0
    %2350 = vmatprep.subr.mxu0 0.0
    %2351 = vmatpush2.msra.mxu0 0.0
    %2352 = vmatprep.subr.mxu0 0.0
    %2353 = vmatpush2.msra.mxu0 0.0
    %2354 = vmatprep.subr.mxu0 0.0
    %2355 = vmatpush2.msra.mxu0 0.0
    %2356 = vmatprep.subr.mxu0 0.0
    %2357 = vmatpush2.msra.mxu0 0.0
    %2358 = vmatprep.subr.mxu0 0.0
    %2359 = vmatpush2.msra.mxu0 0.0
    %2360 = vmatprep.subr.mxu0 0.0
    %2361 = vmatpush2.msra.mxu0 0.0
    %2362 = vmatprep.subr.mxu0 0.0
    %2363 = vmatpush2.msra.mxu0 0.0
    %2364 = vmatprep.subr.mxu0 0.0
    %2365 = vmatpush2.msra.mxu0 0.0
    %2366 = vmatprep.subr.mxu0 0.0
    %2367 = vmatpush2.msra.mxu0 0.0
    %2368 = vmatprep.subr.mxu0 0.0
    %2369 = vmatpush2.msra.mxu0 0.0
    %2370 = vmatprep.subr.mxu0 0.0
    %2371 = vmatpush2.msra.mxu0 0.0
    %2372 = vmatprep.subr.mxu0 0.0
    %2373 = vmatpush2.msra.mxu0 0.0
    %2374 = vmatprep.subr.mxu0 0.0
    %2375 = vmatpush2.msra.mxu0 0.0
    %2376 = vmatprep.subr.mxu0 0.0
    %2377 = vmatpush2.msra.mxu0 0.0
    %2378 = vmatprep.subr.mxu0 0.0
    %2379 = vmatpush2.msra.mxu0 0.0
    %2380 = vmatprep.mubr.f32.mxu0 0.0
    %2381 = vmatmul.mubr.f32.gmra.mxu0 %v2311
    %v2382 = vpop.f32.mrf.mxu0
    %v2383 = vadd.f32 0.0, %v2382
    %v2384 = vpop.f32.mrf.mxu0
    %2385 = vmatprep.mubr.f32.mxu0 0.0
    %2386 = vmatmul.mubr.f32.gmra.mxu0 %v2314
    %v2387 = vpop.f32.mrf.mxu0
    %v2388 = vadd.f32 0.0, %v2387
    %v2389 = vpop.f32.mrf.mxu0
    %2390 = vdwg.mxu0
    %2391 = vrot.lane.b32.xlu0 %v1656, 40
    %v2392 = vpop.permute.xlu0 %2391
    %2393 = vrot.lane.b32.xlu0 %v1661, 40
    %v2394 = vpop.permute.xlu0 %2393
    %v2398 = vsel %vm724, %v2127, 0
    %v2401 = vsel %vm724, %v2129, 0
    %2403 = vmatprep.subr.mxu0 0.0
    %2404 = vmatpush1.msra.mxu0 0.0
    %2405 = vmatprep.subr.mxu0 0.0
    %2406 = vmatpush1.msra.mxu0 0.0
    %2407 = vmatprep.subr.mxu0 0.0
    %2408 = vmatpush1.msra.mxu0 0.0
    %2409 = vmatprep.subr.mxu0 0.0
    %2410 = vmatpush1.msra.mxu0 0.0
    %2411 = vmatprep.subr.mxu0 0.0
    %2412 = vmatpush1.msra.mxu0 0.0
    %2413 = vmatprep.subr.mxu0 0.0
    %2414 = vmatpush1.msra.mxu0 0.0
    %2415 = vmatprep.subr.mxu0 0.0
    %2416 = vmatpush1.msra.mxu0 0.0
    %2417 = vmatprep.subr.mxu0 0.0
    %2418 = vmatpush1.msra.mxu0 0.0
    %2419 = vmatprep.subr.mxu0 0.0
    %2420 = vmatpush1.msra.mxu0 0.0
    %2421 = vmatprep.subr.mxu0 0.0
    %2422 = vmatpush1.msra.mxu0 0.0
    %2423 = vmatprep.subr.mxu0 0.0
    %2424 = vmatpush1.msra.mxu0 0.0
    %2425 = vmatprep.subr.mxu0 0.0
    %2426 = vmatpush1.msra.mxu0 0.0
    %2427 = vmatprep.subr.mxu0 0.0
    %2428 = vmatpush1.msra.mxu0 0.0
    %2429 = vmatprep.subr.mxu0 0.0
    %2430 = vmatpush1.msra.mxu0 0.0
    %2431 = vmatprep.subr.mxu0 0.0
    %2432 = vmatpush1.msra.mxu0 %v2394
    %2433 = vmatprep.subr.mxu0 0.0
    %2434 = vmatpush1.msra.mxu0 %v2392
    %2435 = vmatprep.subr.mxu0 0.0
    %2436 = vmatpush2.msra.mxu0 0.0
    %2437 = vmatprep.subr.mxu0 0.0
    %2438 = vmatpush2.msra.mxu0 0.0
    %2439 = vmatprep.subr.mxu0 0.0
    %2440 = vmatpush2.msra.mxu0 0.0
    %2441 = vmatprep.subr.mxu0 0.0
    %2442 = vmatpush2.msra.mxu0 0.0
    %2443 = vmatprep.subr.mxu0 0.0
    %2444 = vmatpush2.msra.mxu0 0.0
    %2445 = vmatprep.subr.mxu0 0.0
    %2446 = vmatpush2.msra.mxu0 0.0
    %2447 = vmatprep.subr.mxu0 0.0
    %2448 = vmatpush2.msra.mxu0 0.0
    %2449 = vmatprep.subr.mxu0 0.0
    %2450 = vmatpush2.msra.mxu0 0.0
    %2451 = vmatprep.subr.mxu0 0.0
    %2452 = vmatpush2.msra.mxu0 0.0
    %2453 = vmatprep.subr.mxu0 0.0
    %2454 = vmatpush2.msra.mxu0 0.0
    %2455 = vmatprep.subr.mxu0 0.0
    %2456 = vmatpush2.msra.mxu0 0.0
    %2457 = vmatprep.subr.mxu0 0.0
    %2458 = vmatpush2.msra.mxu0 0.0
    %2459 = vmatprep.subr.mxu0 0.0
    %2460 = vmatpush2.msra.mxu0 0.0
    %2461 = vmatprep.subr.mxu0 0.0
    %2462 = vmatpush2.msra.mxu0 0.0
    %2463 = vmatprep.subr.mxu0 0.0
    %2464 = vmatpush2.msra.mxu0 0.0
    %2465 = vmatprep.subr.mxu0 0.0
    %2466 = vmatpush2.msra.mxu0 0.0
    %2467 = vmatprep.mubr.f32.mxu0 0.0
    %2468 = vmatmul.mubr.f32.gmra.mxu0 %v2398
    %v2469 = vpop.f32.mrf.mxu0
    %v2470 = vadd.f32 0.0, %v2469
    %v2471 = vpop.f32.mrf.mxu0
    %2472 = vmatprep.mubr.f32.mxu0 0.0
    %2473 = vmatmul.mubr.f32.gmra.mxu0 %v2401
    %v2474 = vpop.f32.mrf.mxu0
    %v2475 = vadd.f32 0.0, %v2474
    %v2476 = vpop.f32.mrf.mxu0
    %2477 = vdwg.mxu0
    %2480 = vrot.lane.b32.xlu0 %v2296, 8
    %v2481 = vpop.permute.xlu0 %2480
    %2482 = vrot.lane.b32.xlu0 %v2301, 8
    %v2483 = vpop.permute.xlu0 %2482
    %2488 = vrot.lane.b32.xlu0 %v2383, 16
    %v2489 = vpop.permute.xlu0 %2488
    %2490 = vrot.lane.b32.xlu0 %v2388, 16
    %v2491 = vpop.permute.xlu0 %2490
    %2496 = vrot.lane.b32.xlu0 %v2470, 24
    %v2497 = vpop.permute.xlu0 %2496
    %2498 = vrot.lane.b32.xlu0 %v2475, 24
    %v2499 = vpop.permute.xlu0 %2498
    %v2502 = vsel %vm116, %v2209, %v2481
    %v2503 = vsel %vm116, %v2214, %v2483
    %v2504 = vsel %vm724, %v2502, %v2489
    %v2505 = vsel %vm724, %v2503, %v2491
    %v2506 = vsel %vm1189, %v2504, %v2497
    %v2507 = vsel %vm1189, %v2505, %v2499
    %s2508 = scalar_lea.vmem %s6, 32
    %v2509 = vld [vmem:[%s2508] sm:$0xff]
    %v2510 = vld [vmem:[%s2508 + $0x8] sm:$0xff]
    %v2511 = vld [vmem:[%s2508 + $0x10] sm:$0xff]
    %v2512 = vld [vmem:[%s2508 + $0x18] sm:$0xff]
    %s2513 = scalar_lea.vmem [#allocation5], 1
    %v2514 = vld [vmem:[%s2513] sm:$0x1]
    %v2516 = vlaneseq
    %v2517 = vshrl.u32 %v2516, 7
    %v2518 = vsub.s32 0, %v2517
    %v2519 = vrot.slane %v2514, %v2518
    %v2522 = vsel %vm264, %v2506, 0
    %v2525 = vsel %vm264, %v2507, 0
    %2527 = vmatprep.subr.mxu0 0.0
    %2528 = vmatpush1.msra.mxu0 0.0
    %2529 = vmatprep.subr.mxu0 0.0
    %2530 = vmatpush1.msra.mxu0 0.0
    %2531 = vmatprep.subr.mxu0 0.0
    %2532 = vmatpush1.msra.mxu0 0.0
    %2533 = vmatprep.subr.mxu0 0.0
    %2534 = vmatpush1.msra.mxu0 0.0
    %2535 = vmatprep.subr.mxu0 0.0
    %2536 = vmatpush1.msra.mxu0 0.0
    %2537 = vmatprep.subr.mxu0 0.0
    %2538 = vmatpush1.msra.mxu0 0.0
    %2539 = vmatprep.subr.mxu0 0.0
    %2540 = vmatpush1.msra.mxu0 0.0
    %2541 = vmatprep.subr.mxu0 0.0
    %2542 = vmatpush1.msra.mxu0 0.0
    %2543 = vmatprep.subr.mxu0 0.0
    %2544 = vmatpush1.msra.mxu0 0.0
    %2545 = vmatprep.subr.mxu0 0.0
    %2546 = vmatpush1.msra.mxu0 0.0
    %2547 = vmatprep.subr.mxu0 0.0
    %2548 = vmatpush1.msra.mxu0 0.0
    %2549 = vmatprep.subr.mxu0 0.0
    %2550 = vmatpush1.msra.mxu0 0.0
    %2551 = vmatprep.subr.mxu0 0.0
    %2552 = vmatpush1.msra.mxu0 %v2512
    %2553 = vmatprep.subr.mxu0 0.0
    %2554 = vmatpush1.msra.mxu0 %v2511
    %2555 = vmatprep.subr.mxu0 0.0
    %2556 = vmatpush1.msra.mxu0 %v2510
    %2557 = vmatprep.subr.mxu0 0.0
    %2558 = vmatpush1.msra.mxu0 %v2509
    %2559 = vmatprep.subr.mxu0 0.0
    %2560 = vmatpush2.msra.mxu0 0.0
    %2561 = vmatprep.subr.mxu0 0.0
    %2562 = vmatpush2.msra.mxu0 0.0
    %2563 = vmatprep.subr.mxu0 0.0
    %2564 = vmatpush2.msra.mxu0 0.0
    %2565 = vmatprep.subr.mxu0 0.0
    %2566 = vmatpush2.msra.mxu0 0.0
    %2567 = vmatprep.subr.mxu0 0.0
    %2568 = vmatpush2.msra.mxu0 0.0
    %2569 = vmatprep.subr.mxu0 0.0
    %2570 = vmatpush2.msra.mxu0 0.0
    %2571 = vmatprep.subr.mxu0 0.0
    %2572 = vmatpush2.msra.mxu0 0.0
    %2573 = vmatprep.subr.mxu0 0.0
    %2574 = vmatpush2.msra.mxu0 0.0
    %2575 = vmatprep.subr.mxu0 0.0
    %2576 = vmatpush2.msra.mxu0 0.0
    %2577 = vmatprep.subr.mxu0 0.0
    %2578 = vmatpush2.msra.mxu0 0.0
    %2579 = vmatprep.subr.mxu0 0.0
    %2580 = vmatpush2.msra.mxu0 0.0
    %2581 = vmatprep.subr.mxu0 0.0
    %2582 = vmatpush2.msra.mxu0 0.0
    %2583 = vmatprep.subr.mxu0 0.0
    %2584 = vmatpush2.msra.mxu0 0.0
    %2585 = vmatprep.subr.mxu0 0.0
    %2586 = vmatpush2.msra.mxu0 0.0
    %2587 = vmatprep.subr.mxu0 0.0
    %2588 = vmatpush2.msra.mxu0 0.0
    %2589 = vmatprep.subr.mxu0 0.0
    %2590 = vmatpush2.msra.mxu0 0.0
    %2591 = vmatprep.mubr.f32.mxu0 0.0
    %2592 = vmatmul.mubr.f32.gmra.mxu0 %v2522
    %v2593 = vpop.f32.mrf.mxu0
    %v2594 = vadd.f32 %v2519, %v2593
    %v2595 = vpop.f32.mrf.mxu0
    %2596 = vmatprep.mubr.f32.mxu0 0.0
    %2597 = vmatmul.mubr.f32.gmra.mxu0 %v2525
    %v2598 = vpop.f32.mrf.mxu0
    %v2599 = vadd.f32 %v2519, %v2598
    %v2600 = vpop.f32.mrf.mxu0
    %2601 = vdwg.mxu0
    %v2602 = vadd.f32 %v1568, %v2594
    %v2603 = vadd.f32 %v1569, %v2599
    %v2604 = vsel %vm264, %v2602, 0.0
    %2605 = vadd.xlane.f32.xlu0 %v2604
    %v2606 = vpop.xlane.xlu0 %2605
    %v2607 = vsel %vm264, %v2603, 0.0
    %2608 = vadd.xlane.f32.xlu0 %v2607
    %v2609 = vpop.xlane.xlu0 %2608
    %v2610 = vmul.f32 %v2606, %v1292
    %v2611 = vmul.f32 %v2609, %v1292
    %v2612 = vsub.f32 %v2602, %v2610
    %v2613 = vsub.f32 %v2603, %v2611
    %v2614 = vmul.f32 %v2612, %v2612
    %v2615 = vmul.f32 %v2613, %v2613
    %v2616 = vsel %vm264, %v2614, 0.0
    %2617 = vadd.xlane.f32.xlu0 %v2616
    %v2618 = vpop.xlane.xlu0 %2617
    %v2619 = vsel %vm264, %v2615, 0.0
    %2620 = vadd.xlane.f32.xlu0 %v2619
    %v2621 = vpop.xlane.xlu0 %2620
    %v2622 = vmul.f32 %v2618, %v1292
    %v2623 = vmul.f32 %v2621, %v1292
    %v2624 = vadd.f32 %v2622, 1e-05
    %v2625 = vadd.f32 %v2623, 1e-05
    %v2626 = vrsqrt.pop %v2624
    %v2627 = vrsqrt.pop %v2625
    %v2628 = vmul.f32 %v2612, %v2626
    %v2629 = vmul.f32 %v2613, %v2627
    %s2630 = scalar_lea.vmem %s12, 2
    %v2631 = vld [vmem:[%s2630] sm:$0x1]
    %v2633 = vlaneseq
    %v2634 = vshrl.u32 %v2633, 7
    %v2635 = vsub.s32 0, %v2634
    %v2636 = vrot.slane %v2631, %v2635
    %v2638 = vmul.f32 %v2628, %v2636
    %v2639 = vmul.f32 %v2629, %v2636
    %s2640 = scalar_lea.vmem %s13, 2
    %v2641 = vld [vmem:[%s2640] sm:$0x1]
    %v2643 = vlaneseq
    %v2644 = vshrl.u32 %v2643, 7
    %v2645 = vsub.s32 0, %v2644
    %v2646 = vrot.slane %v2641, %v2645
    %v2648 = vadd.f32 %v2638, %v2646
    %v2649 = vadd.f32 %v2639, %v2646
    %s2650 = scalar_lea.vmem %s8, 32
    %v2651 = vld [vmem:[%s2650] sm:$0xff]
    %v2652 = vld [vmem:[%s2650 + $0x8] sm:$0xff]
    %v2653 = vld [vmem:[%s2650 + $0x10] sm:$0xff]
    %v2654 = vld [vmem:[%s2650 + $0x18] sm:$0xff]
    %s2655 = scalar_lea.vmem [#allocation7], 1
    %v2656 = vld [vmem:[%s2655] sm:$0x1]
    %v2658 = vlaneseq
    %v2659 = vshrl.u32 %v2658, 7
    %v2660 = vsub.s32 0, %v2659
    %v2661 = vrot.slane %v2656, %v2660
    %v2664 = vsel %vm264, %v2648, 0
    %v2667 = vsel %vm264, %v2649, 0
    %2669 = vmatprep.subr.mxu0 0.0
    %2670 = vmatpush1.msra.mxu0 0.0
    %2671 = vmatprep.subr.mxu0 0.0
    %2672 = vmatpush1.msra.mxu0 0.0
    %2673 = vmatprep.subr.mxu0 0.0
    %2674 = vmatpush1.msra.mxu0 0.0
    %2675 = vmatprep.subr.mxu0 0.0
    %2676 = vmatpush1.msra.mxu0 0.0
    %2677 = vmatprep.subr.mxu0 0.0
    %2678 = vmatpush1.msra.mxu0 0.0
    %2679 = vmatprep.subr.mxu0 0.0
    %2680 = vmatpush1.msra.mxu0 0.0
    %2681 = vmatprep.subr.mxu0 0.0
    %2682 = vmatpush1.msra.mxu0 0.0
    %2683 = vmatprep.subr.mxu0 0.0
    %2684 = vmatpush1.msra.mxu0 0.0
    %2685 = vmatprep.subr.mxu0 0.0
    %2686 = vmatpush1.msra.mxu0 0.0
    %2687 = vmatprep.subr.mxu0 0.0
    %2688 = vmatpush1.msra.mxu0 0.0
    %2689 = vmatprep.subr.mxu0 0.0
    %2690 = vmatpush1.msra.mxu0 0.0
    %2691 = vmatprep.subr.mxu0 0.0
    %2692 = vmatpush1.msra.mxu0 0.0
    %2693 = vmatprep.subr.mxu0 0.0
    %2694 = vmatpush1.msra.mxu0 %v2654
    %2695 = vmatprep.subr.mxu0 0.0
    %2696 = vmatpush1.msra.mxu0 %v2653
    %2697 = vmatprep.subr.mxu0 0.0
    %2698 = vmatpush1.msra.mxu0 %v2652
    %2699 = vmatprep.subr.mxu0 0.0
    %2700 = vmatpush1.msra.mxu0 %v2651
    %2701 = vmatprep.subr.mxu0 0.0
    %2702 = vmatpush2.msra.mxu0 0.0
    %2703 = vmatprep.subr.mxu0 0.0
    %2704 = vmatpush2.msra.mxu0 0.0
    %2705 = vmatprep.subr.mxu0 0.0
    %2706 = vmatpush2.msra.mxu0 0.0
    %2707 = vmatprep.subr.mxu0 0.0
    %2708 = vmatpush2.msra.mxu0 0.0
    %2709 = vmatprep.subr.mxu0 0.0
    %2710 = vmatpush2.msra.mxu0 0.0
    %2711 = vmatprep.subr.mxu0 0.0
    %2712 = vmatpush2.msra.mxu0 0.0
    %2713 = vmatprep.subr.mxu0 0.0
    %2714 = vmatpush2.msra.mxu0 0.0
    %2715 = vmatprep.subr.mxu0 0.0
    %2716 = vmatpush2.msra.mxu0 0.0
    %2717 = vmatprep.subr.mxu0 0.0
    %2718 = vmatpush2.msra.mxu0 0.0
    %2719 = vmatprep.subr.mxu0 0.0
    %2720 = vmatpush2.msra.mxu0 0.0
    %2721 = vmatprep.subr.mxu0 0.0
    %2722 = vmatpush2.msra.mxu0 0.0
    %2723 = vmatprep.subr.mxu0 0.0
    %2724 = vmatpush2.msra.mxu0 0.0
    %2725 = vmatprep.subr.mxu0 0.0
    %2726 = vmatpush2.msra.mxu0 0.0
    %2727 = vmatprep.subr.mxu0 0.0
    %2728 = vmatpush2.msra.mxu0 0.0
    %2729 = vmatprep.subr.mxu0 0.0
    %2730 = vmatpush2.msra.mxu0 0.0
    %2731 = vmatprep.subr.mxu0 0.0
    %2732 = vmatpush2.msra.mxu0 0.0
    %2733 = vmatprep.mubr.f32.mxu0 0.0
    %2734 = vmatmul.mubr.f32.gmra.mxu0 %v2664
    %v2735 = vpop.f32.mrf.mxu0
    %v2736 = vadd.f32 %v2661, %v2735
    %v2737 = vpop.f32.mrf.mxu0
    %2738 = vmatprep.mubr.f32.mxu0 0.0
    %2739 = vmatmul.mubr.f32.gmra.mxu0 %v2667
    %v2740 = vpop.f32.mrf.mxu0
    %v2741 = vadd.f32 %v2661, %v2740
    %v2742 = vpop.f32.mrf.mxu0
    %2743 = vdwg.mxu0
    %v2744 = vmax.f32 %v2736, 0.0
    %v2745 = vmax.f32 %v2741, 0.0
    %s2746 = scalar_lea.vmem %s10, 64
    %v2747 = vld [vmem:[%s2746] sm:$0xff]
    %v2748 = vld [vmem:[%s2746 + $0x8] sm:$0xff]
    %v2749 = vld [vmem:[%s2746 + $0x10] sm:$0xff]
    %v2750 = vld [vmem:[%s2746 + $0x18] sm:$0xff]
    %v2751 = vld [vmem:[%s2746 + $0x20] sm:$0xff]
    %v2752 = vld [vmem:[%s2746 + $0x28] sm:$0xff]
    %v2753 = vld [vmem:[%s2746 + $0x30] sm:$0xff]
    %v2754 = vld [vmem:[%s2746 + $0x38] sm:$0xff]
    %s2755 = scalar_lea.vmem [#allocation8], 1
    %v2756 = vld [vmem:[%s2755] sm:$0x1]
    %v2758 = vlaneseq
    %v2759 = vshrl.u32 %v2758, 7
    %v2760 = vsub.s32 0, %v2759
    %v2761 = vrot.slane %v2756, %v2760
    %v2764 = vsel %vm1440, %v2744, 0
    %v2767 = vsel %vm1440, %v2745, 0
    %2769 = vmatprep.subr.mxu0 0.0
    %2770 = vmatpush1.msra.mxu0 0.0
    %2771 = vmatprep.subr.mxu0 0.0
    %2772 = vmatpush1.msra.mxu0 0.0
    %2773 = vmatprep.subr.mxu0 0.0
    %2774 = vmatpush1.msra.mxu0 0.0
    %2775 = vmatprep.subr.mxu0 0.0
    %2776 = vmatpush1.msra.mxu0 0.0
    %2777 = vmatprep.subr.mxu0 0.0
    %2778 = vmatpush1.msra.mxu0 0.0
    %2779 = vmatprep.subr.mxu0 0.0
    %2780 = vmatpush1.msra.mxu0 0.0
    %2781 = vmatprep.subr.mxu0 0.0
    %2782 = vmatpush1.msra.mxu0 0.0
    %2783 = vmatprep.subr.mxu0 0.0
    %2784 = vmatpush1.msra.mxu0 0.0
    %2785 = vmatprep.subr.mxu0 0.0
    %2786 = vmatpush1.msra.mxu0 %v2754
    %2787 = vmatprep.subr.mxu0 0.0
    %2788 = vmatpush1.msra.mxu0 %v2753
    %2789 = vmatprep.subr.mxu0 0.0
    %2790 = vmatpush1.msra.mxu0 %v2752
    %2791 = vmatprep.subr.mxu0 0.0
    %2792 = vmatpush1.msra.mxu0 %v2751
    %2793 = vmatprep.subr.mxu0 0.0
    %2794 = vmatpush1.msra.mxu0 %v2750
    %2795 = vmatprep.subr.mxu0 0.0
    %2796 = vmatpush1.msra.mxu0 %v2749
    %2797 = vmatprep.subr.mxu0 0.0
    %2798 = vmatpush1.msra.mxu0 %v2748
    %2799 = vmatprep.subr.mxu0 0.0
    %2800 = vmatpush1.msra.mxu0 %v2747
    %2801 = vmatprep.subr.mxu0 0.0
    %2802 = vmatpush2.msra.mxu0 0.0
    %2803 = vmatprep.subr.mxu0 0.0
    %2804 = vmatpush2.msra.mxu0 0.0
    %2805 = vmatprep.subr.mxu0 0.0
    %2806 = vmatpush2.msra.mxu0 0.0
    %2807 = vmatprep.subr.mxu0 0.0
    %2808 = vmatpush2.msra.mxu0 0.0
    %2809 = vmatprep.subr.mxu0 0.0
    %2810 = vmatpush2.msra.mxu0 0.0
    %2811 = vmatprep.subr.mxu0 0.0
    %2812 = vmatpush2.msra.mxu0 0.0
    %2813 = vmatprep.subr.mxu0 0.0
    %2814 = vmatpush2.msra.mxu0 0.0
    %2815 = vmatprep.subr.mxu0 0.0
    %2816 = vmatpush2.msra.mxu0 0.0
    %2817 = vmatprep.subr.mxu0 0.0
    %2818 = vmatpush2.msra.mxu0 0.0
    %2819 = vmatprep.subr.mxu0 0.0
    %2820 = vmatpush2.msra.mxu0 0.0
    %2821 = vmatprep.subr.mxu0 0.0
    %2822 = vmatpush2.msra.mxu0 0.0
    %2823 = vmatprep.subr.mxu0 0.0
    %2824 = vmatpush2.msra.mxu0 0.0
    %2825 = vmatprep.subr.mxu0 0.0
    %2826 = vmatpush2.msra.mxu0 0.0
    %2827 = vmatprep.subr.mxu0 0.0
    %2828 = vmatpush2.msra.mxu0 0.0
    %2829 = vmatprep.subr.mxu0 0.0
    %2830 = vmatpush2.msra.mxu0 0.0
    %2831 = vmatprep.subr.mxu0 0.0
    %2832 = vmatpush2.msra.mxu0 0.0
    %2833 = vmatprep.mubr.f32.mxu0 0.0
    %2834 = vmatmul.mubr.f32.gmra.mxu0 %v2764
    %v2835 = vpop.f32.mrf.mxu0
    %v2836 = vadd.f32 %v2761, %v2835
    %v2837 = vpop.f32.mrf.mxu0
    %2838 = vmatprep.mubr.f32.mxu0 0.0
    %2839 = vmatmul.mubr.f32.gmra.mxu0 %v2767
    %v2840 = vpop.f32.mrf.mxu0
    %v2841 = vadd.f32 %v2761, %v2840
    %v2842 = vpop.f32.mrf.mxu0
    %2843 = vdwg.mxu0
    %v2844 = vadd.f32 %v2648, %v2836
    %v2845 = vadd.f32 %v2649, %v2841
    %v2846 = vsel %vm264, %v2844, 0.0
    %2847 = vadd.xlane.f32.xlu0 %v2846
    %v2848 = vpop.xlane.xlu0 %2847
    %v2849 = vsel %vm264, %v2845, 0.0
    %2850 = vadd.xlane.f32.xlu0 %v2849
    %v2851 = vpop.xlane.xlu0 %2850
    %v2852 = vmul.f32 %v2848, %v1292
    %v2853 = vmul.f32 %v2851, %v1292
    %v2854 = vsub.f32 %v2844, %v2852
    %v2855 = vsub.f32 %v2845, %v2853
    %v2856 = vmul.f32 %v2854, %v2854
    %v2857 = vmul.f32 %v2855, %v2855
    %v2858 = vsel %vm264, %v2856, 0.0
    %2859 = vadd.xlane.f32.xlu0 %v2858
    %v2860 = vpop.xlane.xlu0 %2859
    %v2861 = vsel %vm264, %v2857, 0.0
    %2862 = vadd.xlane.f32.xlu0 %v2861
    %v2863 = vpop.xlane.xlu0 %2862
    %v2864 = vmul.f32 %v2860, %v1292
    %v2865 = vmul.f32 %v2863, %v1292
    %v2866 = vadd.f32 %v2864, 1e-05
    %v2867 = vadd.f32 %v2865, 1e-05
    %v2868 = vrsqrt.pop %v2866
    %v2869 = vrsqrt.pop %v2867
    %v2870 = vmul.f32 %v2854, %v2868
    %v2871 = vmul.f32 %v2855, %v2869
    %s2872 = scalar_lea.vmem %s12, 3
    %v2873 = vld [vmem:[%s2872] sm:$0x1]
    %v2875 = vlaneseq
    %v2876 = vshrl.u32 %v2875, 7
    %v2877 = vsub.s32 0, %v2876
    %v2878 = vrot.slane %v2873, %v2877
    %v2880 = vmul.f32 %v2870, %v2878
    %v2881 = vmul.f32 %v2871, %v2878
    %s2882 = scalar_lea.vmem %s13, 3
    %v2883 = vld [vmem:[%s2882] sm:$0x1]
    %v2885 = vlaneseq
    %v2886 = vshrl.u32 %v2885, 7
    %v2887 = vsub.s32 0, %v2886
    %v2888 = vrot.slane %v2883, %v2887
    %v2890 = vadd.f32 %v2880, %v2888
    %v2891 = vadd.f32 %v2881, %v2888
    %v2892 = vsel %vm264, %v2890, 0.0
    %2893 = vadd.xlane.f32.xlu0 %v2892
    %v2894 = vpop.xlane.xlu0 %2893
    %v2895 = vsel %vm264, %v2891, 0.0
    %2896 = vadd.xlane.f32.xlu0 %v2895
    %v2897 = vpop.xlane.xlu0 %2896
    %v2898 = vmul.f32 %v2894, %v1292
    %v2899 = vmul.f32 %v2897, %v1292
    %v2900 = vsub.f32 %v2890, %v2898
    %v2901 = vsub.f32 %v2891, %v2899
    %v2902 = vmul.f32 %v2900, %v2900
    %v2903 = vmul.f32 %v2901, %v2901
    %v2904 = vsel %vm264, %v2902, 0.0
    %2905 = vadd.xlane.f32.xlu0 %v2904
    %v2906 = vpop.xlane.xlu0 %2905
    %v2907 = vsel %vm264, %v2903, 0.0
    %2908 = vadd.xlane.f32.xlu0 %v2907
    %v2909 = vpop.xlane.xlu0 %2908
    %v2910 = vmul.f32 %v2906, %v1292
    %v2911 = vmul.f32 %v2909, %v1292
    %v2912 = vadd.f32 %v2910, 1e-05
    %v2913 = vadd.f32 %v2911, 1e-05
    %v2914 = vrsqrt.pop %v2912
    %v2915 = vrsqrt.pop %v2913
    %v2916 = vmul.f32 %v2900, %v2914
    %v2917 = vmul.f32 %v2901, %v2915
    %s2918 = scalar_lea.vmem %s12, 4
    %v2919 = vld [vmem:[%s2918] sm:$0x1]
    %v2921 = vlaneseq
    %v2922 = vshrl.u32 %v2921, 7
    %v2923 = vsub.s32 0, %v2922
    %v2924 = vrot.slane %v2919, %v2923
    %v2926 = vmul.f32 %v2916, %v2924
    %v2927 = vmul.f32 %v2917, %v2924
    %s2928 = scalar_lea.vmem %s13, 4
    %v2929 = vld [vmem:[%s2928] sm:$0x1]
    %v2931 = vlaneseq
    %v2932 = vshrl.u32 %v2931, 7
    %v2933 = vsub.s32 0, %v2932
    %v2934 = vrot.slane %v2929, %v2933
    %v2936 = vadd.f32 %v2926, %v2934
    %v2937 = vadd.f32 %v2927, %v2934
    %v2938 = vld [vmem:[%s1] sm:$0xff]
    %2939 = vrot.lane.b32.xlu0 %v2938, 127
    %v2940 = vpop.permute.xlu0 %2939
    %2941 = vset.pattern.permute.xlu0 0
    %2942 = vperm.xlu0 %2941, %v2938
    %v2943 = vpop.permute.xlu0 %2942
    %2944 = vset.pattern.permute.xlu0 0
    %2945 = vperm.xlu0 %2944, %v2940
    %v2946 = vpop.permute.xlu0 %2945
    %vm2947 = vcmp.eq.s32.totalorder %v2943, %v140
    %vm2948 = vcmp.eq.s32.totalorder %v2946, %v140
    %v2949 = vsel %vm2947, 1, 0
    %v2950 = vsel %vm2948, 1, 0
    %v2951 = vcvt.s32.f32 %v2949
    %v2952 = vcvt.s32.f32 %v2950
    %v2954 = vsel %vm153, %v2951, 0
    %v2957 = vsel %vm153, %v2952, 0
    %2959 = vmatprep.subr.mxu0 0.0
    %2960 = vmatpush1.msra.mxu0 0.0
    %2961 = vmatprep.subr.mxu0 0.0
    %2962 = vmatpush1.msra.mxu0 0.0
    %2963 = vmatprep.subr.mxu0 0.0
    %2964 = vmatpush1.msra.mxu0 0.0
    %2965 = vmatprep.subr.mxu0 0.0
    %2966 = vmatpush1.msra.mxu0 0.0
    %2967 = vmatprep.subr.mxu0 0.0
    %2968 = vmatpush1.msra.mxu0 0.0
    %2969 = vmatprep.subr.mxu0 0.0
    %2970 = vmatpush1.msra.mxu0 0.0
    %2971 = vmatprep.subr.mxu0 0.0
    %2972 = vmatpush1.msra.mxu0 0.0
    %2973 = vmatprep.subr.mxu0 0.0
    %2974 = vmatpush1.msra.mxu0 0.0
    %2975 = vmatprep.subr.mxu0 0.0
    %2976 = vmatpush1.msra.mxu0 0.0
    %2977 = vmatprep.subr.mxu0 0.0
    %2978 = vmatpush1.msra.mxu0 %v162
    %2979 = vmatprep.subr.mxu0 0.0
    %2980 = vmatpush1.msra.mxu0 %v114
    %2981 = vmatprep.subr.mxu0 0.0
    %2982 = vmatpush1.msra.mxu0 %v113
    %2983 = vmatprep.subr.mxu0 0.0
    %2984 = vmatpush1.msra.mxu0 %v112
    %2985 = vmatprep.subr.mxu0 0.0
    %2986 = vmatpush1.msra.mxu0 %v111
    %2987 = vmatprep.subr.mxu0 0.0
    %2988 = vmatpush1.msra.mxu0 %v110
    %2989 = vmatprep.subr.mxu0 0.0
    %2990 = vmatpush1.msra.mxu0 %v109
    %2991 = vmatprep.subr.mxu0 0.0
    %2992 = vmatpush2.msra.mxu0 0.0
    %2993 = vmatprep.subr.mxu0 0.0
    %2994 = vmatpush2.msra.mxu0 0.0
    %2995 = vmatprep.subr.mxu0 0.0
    %2996 = vmatpush2.msra.mxu0 0.0
    %2997 = vmatprep.subr.mxu0 0.0
    %2998 = vmatpush2.msra.mxu0 0.0
    %2999 = vmatprep.subr.mxu0 0.0
    %3000 = vmatpush2.msra.mxu0 0.0
    %3001 = vmatprep.subr.mxu0 0.0
    %3002 = vmatpush2.msra.mxu0 0.0
    %3003 = vmatprep.subr.mxu0 0.0
    %3004 = vmatpush2.msra.mxu0 0.0
    %3005 = vmatprep.subr.mxu0 0.0
    %3006 = vmatpush2.msra.mxu0 0.0
    %3007 = vmatprep.subr.mxu0 0.0
    %3008 = vmatpush2.msra.mxu0 0.0
    %3009 = vmatprep.subr.mxu0 0.0
    %3010 = vmatpush2.msra.mxu0 0.0
    %3011 = vmatprep.subr.mxu0 0.0
    %3012 = vmatpush2.msra.mxu0 0.0
    %3013 = vmatprep.subr.mxu0 0.0
    %3014 = vmatpush2.msra.mxu0 0.0
    %3015 = vmatprep.subr.mxu0 0.0
    %3016 = vmatpush2.msra.mxu0 0.0
    %3017 = vmatprep.subr.mxu0 0.0
    %3018 = vmatpush2.msra.mxu0 0.0
    %3019 = vmatprep.subr.mxu0 0.0
    %3020 = vmatpush2.msra.mxu0 0.0
    %3021 = vmatprep.subr.mxu0 0.0
    %3022 = vmatpush2.msra.mxu0 0.0
    %3023 = vmatprep.mubr.f32.mxu0 0.0
    %3024 = vmatmul.mubr.f32.gmra.mxu0 %v2954
    %v3025 = vpop.f32.mrf.mxu0
    %v3026 = vadd.f32 0.0, %v3025
    %v3027 = vpop.f32.mrf.mxu0
    %3028 = vmatprep.mubr.f32.mxu0 0.0
    %3029 = vmatmul.mubr.f32.gmra.mxu0 %v2957
    %v3030 = vpop.f32.mrf.mxu0
    %v3031 = vadd.f32 0.0, %v3030
    %v3032 = vpop.f32.mrf.mxu0
    %3033 = vdwg.mxu0
    %v3034 = vmul.f32 %v3026, 5.656854
    %v3035 = vmul.f32 %v3031, 5.656854
    %v3036 = vadd.f32 %v3034, %v245
    %v3037 = vadd.f32 %v3035, %v250
    %s3038 = scalar_lea.vmem %s4, 64
    %v3039 = vld [vmem:[%s3038] sm:$0xff]
    %v3040 = vld [vmem:[%s3038 + $0x8] sm:$0xff]
    %v3041 = vld [vmem:[%s3038 + $0x10] sm:$0xff]
    %v3042 = vld [vmem:[%s3038 + $0x18] sm:$0xff]
    %s3043 = scalar_lea.vmem [#allocation2], 2
    %v3044 = vld [vmem:[%s3043] sm:$0x1]
    %v3046 = vlaneseq
    %v3047 = vshrl.u32 %v3046, 7
    %v3048 = vsub.s32 0, %v3047
    %v3049 = vrot.slane %v3044, %v3048
    %v3052 = vsel %vm264, %v3036, 0
    %v3055 = vsel %vm264, %v3037, 0
    %3057 = vmatprep.subr.mxu0 0.0
    %3058 = vmatpush1.msra.mxu0 0.0
    %3059 = vmatprep.subr.mxu0 0.0
    %3060 = vmatpush1.msra.mxu0 0.0
    %3061 = vmatprep.subr.mxu0 0.0
    %3062 = vmatpush1.msra.mxu0 0.0
    %3063 = vmatprep.subr.mxu0 0.0
    %3064 = vmatpush1.msra.mxu0 0.0
    %3065 = vmatprep.subr.mxu0 0.0
    %3066 = vmatpush1.msra.mxu0 0.0
    %3067 = vmatprep.subr.mxu0 0.0
    %3068 = vmatpush1.msra.mxu0 0.0
    %3069 = vmatprep.subr.mxu0 0.0
    %3070 = vmatpush1.msra.mxu0 0.0
    %3071 = vmatprep.subr.mxu0 0.0
    %3072 = vmatpush1.msra.mxu0 0.0
    %3073 = vmatprep.subr.mxu0 0.0
    %3074 = vmatpush1.msra.mxu0 0.0
    %3075 = vmatprep.subr.mxu0 0.0
    %3076 = vmatpush1.msra.mxu0 0.0
    %3077 = vmatprep.subr.mxu0 0.0
    %3078 = vmatpush1.msra.mxu0 0.0
    %3079 = vmatprep.subr.mxu0 0.0
    %3080 = vmatpush1.msra.mxu0 0.0
    %3081 = vmatprep.subr.mxu0 0.0
    %3082 = vmatpush1.msra.mxu0 %v3042
    %3083 = vmatprep.subr.mxu0 0.0
    %3084 = vmatpush1.msra.mxu0 %v3041
    %3085 = vmatprep.subr.mxu0 0.0
    %3086 = vmatpush1.msra.mxu0 %v3040
    %3087 = vmatprep.subr.mxu0 0.0
    %3088 = vmatpush1.msra.mxu0 %v3039
    %3089 = vmatprep.subr.mxu0 0.0
    %3090 = vmatpush2.msra.mxu0 0.0
    %3091 = vmatprep.subr.mxu0 0.0
    %3092 = vmatpush2.msra.mxu0 0.0
    %3093 = vmatprep.subr.mxu0 0.0
    %3094 = vmatpush2.msra.mxu0 0.0
    %3095 = vmatprep.subr.mxu0 0.0
    %3096 = vmatpush2.msra.mxu0 0.0
    %3097 = vmatprep.subr.mxu0 0.0
    %3098 = vmatpush2.msra.mxu0 0.0
    %3099 = vmatprep.subr.mxu0 0.0
    %3100 = vmatpush2.msra.mxu0 0.0
    %3101 = vmatprep.subr.mxu0 0.0
    %3102 = vmatpush2.msra.mxu0 0.0
    %3103 = vmatprep.subr.mxu0 0.0
    %3104 = vmatpush2.msra.mxu0 0.0
    %3105 = vmatprep.subr.mxu0 0.0
    %3106 = vmatpush2.msra.mxu0 0.0
    %3107 = vmatprep.subr.mxu0 0.0
    %3108 = vmatpush2.msra.mxu0 0.0
    %3109 = vmatprep.subr.mxu0 0.0
    %3110 = vmatpush2.msra.mxu0 0.0
    %3111 = vmatprep.subr.mxu0 0.0
    %3112 = vmatpush2.msra.mxu0 0.0
    %3113 = vmatprep.subr.mxu0 0.0
    %3114 = vmatpush2.msra.mxu0 0.0
    %3115 = vmatprep.subr.mxu0 0.0
    %3116 = vmatpush2.msra.mxu0 0.0
    %3117 = vmatprep.subr.mxu0 0.0
    %3118 = vmatpush2.msra.mxu0 0.0
    %3119 = vmatprep.subr.mxu0 0.0
    %3120 = vmatpush2.msra.mxu0 0.0
    %3121 = vmatprep.mubr.f32.mxu0 0.0
    %3122 = vmatmul.mubr.f32.gmra.mxu0 %v3052
    %v3123 = vpop.f32.mrf.mxu0
    %v3124 = vadd.f32 %v3049, %v3123
    %v3125 = vpop.f32.mrf.mxu0
    %3126 = vmatprep.mubr.f32.mxu0 0.0
    %3127 = vmatmul.mubr.f32.gmra.mxu0 %v3055
    %v3128 = vpop.f32.mrf.mxu0
    %v3129 = vadd.f32 %v3049, %v3128
    %v3130 = vpop.f32.mrf.mxu0
    %3131 = vdwg.mxu0
    %3134 = vrot.lane.b32.xlu0 %v3124, 96
    %v3135 = vpop.permute.xlu0 %3134
    %3136 = vrot.lane.b32.xlu0 %v3129, 96
    %v3137 = vpop.permute.xlu0 %3136
    %v3138 = vsel %vm116, %v3124, 0
    %v3140 = vsel %vm116, %v3129, 0
    %v3142 = vsel %vm116, %v3135, 0
    %v3144 = vsel %vm116, %v3137, 0
    %3146 = vmatprep.subr.mxu0 0.0
    %3147 = vmatpush1.xpose.msra.mxu0 0.0
    %3148 = vmatprep.subr.mxu0 0.0
    %3149 = vmatpush1.xpose.msra.mxu0 0.0
    %3150 = vmatprep.subr.mxu0 0.0
    %3151 = vmatpush1.xpose.msra.mxu0 0.0
    %3152 = vmatprep.subr.mxu0 0.0
    %3153 = vmatpush1.xpose.msra.mxu0 0.0
    %3154 = vmatprep.subr.mxu0 0.0
    %3155 = vmatpush1.xpose.msra.mxu0 0.0
    %3156 = vmatprep.subr.mxu0 0.0
    %3157 = vmatpush1.xpose.msra.mxu0 0.0
    %3158 = vmatprep.subr.mxu0 0.0
    %3159 = vmatpush1.xpose.msra.mxu0 0.0
    %3160 = vmatprep.subr.mxu0 0.0
    %3161 = vmatpush1.xpose.msra.mxu0 0.0
    %3162 = vmatprep.subr.mxu0 0.0
    %3163 = vmatpush1.xpose.msra.mxu0 0.0
    %3164 = vmatprep.subr.mxu0 0.0
    %3165 = vmatpush1.xpose.msra.mxu0 0.0
    %3166 = vmatprep.subr.mxu0 0.0
    %3167 = vmatpush1.xpose.msra.mxu0 0.0
    %3168 = vmatprep.subr.mxu0 0.0
    %3169 = vmatpush1.xpose.msra.mxu0 0.0
    %3170 = vmatprep.subr.mxu0 0.0
    %3171 = vmatpush1.xpose.msra.mxu0 0.0
    %3172 = vmatprep.subr.mxu0 0.0
    %3173 = vmatpush1.xpose.msra.mxu0 0.0
    %3174 = vmatprep.subr.mxu0 0.0
    %3175 = vmatpush1.xpose.msra.mxu0 %v3144
    %3176 = vmatprep.subr.mxu0 0.0
    %3177 = vmatpush1.xpose.msra.mxu0 %v3142
    %3178 = vmatprep.subr.mxu0 0.0
    %3179 = vmatpush2.xpose.msra.mxu0 0.0
    %3180 = vmatprep.subr.mxu0 0.0
    %3181 = vmatpush2.xpose.msra.mxu0 0.0
    %3182 = vmatprep.subr.mxu0 0.0
    %3183 = vmatpush2.xpose.msra.mxu0 0.0
    %3184 = vmatprep.subr.mxu0 0.0
    %3185 = vmatpush2.xpose.msra.mxu0 0.0
    %3186 = vmatprep.subr.mxu0 0.0
    %3187 = vmatpush2.xpose.msra.mxu0 0.0
    %3188 = vmatprep.subr.mxu0 0.0
    %3189 = vmatpush2.xpose.msra.mxu0 0.0
    %3190 = vmatprep.subr.mxu0 0.0
    %3191 = vmatpush2.xpose.msra.mxu0 0.0
    %3192 = vmatprep.subr.mxu0 0.0
    %3193 = vmatpush2.xpose.msra.mxu0 0.0
    %3194 = vmatprep.subr.mxu0 0.0
    %3195 = vmatpush2.xpose.msra.mxu0 0.0
    %3196 = vmatprep.subr.mxu0 0.0
    %3197 = vmatpush2.xpose.msra.mxu0 0.0
    %3198 = vmatprep.subr.mxu0 0.0
    %3199 = vmatpush2.xpose.msra.mxu0 0.0
    %3200 = vmatprep.subr.mxu0 0.0
    %3201 = vmatpush2.xpose.msra.mxu0 0.0
    %3202 = vmatprep.subr.mxu0 0.0
    %3203 = vmatpush2.xpose.msra.mxu0 0.0
    %3204 = vmatprep.subr.mxu0 0.0
    %3205 = vmatpush2.xpose.msra.mxu0 0.0
    %3206 = vmatprep.subr.mxu0 0.0
    %3207 = vmatpush2.xpose.msra.mxu0 0.0
    %3208 = vmatprep.subr.mxu0 0.0
    %3209 = vmatpush2.xpose.msra.mxu0 0.0
    %3210 = vmatprep.mubr.f32.mxu0 0.0
    %3211 = vmatmul.mubr.f32.gmra.mxu0 %v3138
    %v3212 = vpop.f32.mrf.mxu0
    %v3213 = vadd.f32 0.0, %v3212
    %v3214 = vpop.f32.mrf.mxu0
    %3215 = vmatprep.mubr.f32.mxu0 0.0
    %3216 = vmatmul.mubr.f32.gmra.mxu0 %v3140
    %v3217 = vpop.f32.mrf.mxu0
    %v3218 = vadd.f32 0.0, %v3217
    %v3219 = vpop.f32.mrf.mxu0
    %3220 = vdwg.mxu0
    %3221 = vrot.lane.b32.xlu0 %v3124, 120
    %v3222 = vpop.permute.xlu0 %3221
    %3223 = vrot.lane.b32.xlu0 %v3129, 120
    %v3224 = vpop.permute.xlu0 %3223
    %3225 = vrot.lane.b32.xlu0 %v3124, 88
    %v3226 = vpop.permute.xlu0 %3225
    %3227 = vrot.lane.b32.xlu0 %v3129, 88
    %v3228 = vpop.permute.xlu0 %3227
    %v3229 = vsel %vm116, %v3222, 0
    %v3231 = vsel %vm116, %v3224, 0
    %v3233 = vsel %vm116, %v3226, 0
    %v3235 = vsel %vm116, %v3228, 0
    %3237 = vmatprep.subr.mxu0 0.0
    %3238 = vmatpush1.xpose.msra.mxu0 0.0
    %3239 = vmatprep.subr.mxu0 0.0
    %3240 = vmatpush1.xpose.msra.mxu0 0.0
    %3241 = vmatprep.subr.mxu0 0.0
    %3242 = vmatpush1.xpose.msra.mxu0 0.0
    %3243 = vmatprep.subr.mxu0 0.0
    %3244 = vmatpush1.xpose.msra.mxu0 0.0
    %3245 = vmatprep.subr.mxu0 0.0
    %3246 = vmatpush1.xpose.msra.mxu0 0.0
    %3247 = vmatprep.subr.mxu0 0.0
    %3248 = vmatpush1.xpose.msra.mxu0 0.0
    %3249 = vmatprep.subr.mxu0 0.0
    %3250 = vmatpush1.xpose.msra.mxu0 0.0
    %3251 = vmatprep.subr.mxu0 0.0
    %3252 = vmatpush1.xpose.msra.mxu0 0.0
    %3253 = vmatprep.subr.mxu0 0.0
    %3254 = vmatpush1.xpose.msra.mxu0 0.0
    %3255 = vmatprep.subr.mxu0 0.0
    %3256 = vmatpush1.xpose.msra.mxu0 0.0
    %3257 = vmatprep.subr.mxu0 0.0
    %3258 = vmatpush1.xpose.msra.mxu0 0.0
    %3259 = vmatprep.subr.mxu0 0.0
    %3260 = vmatpush1.xpose.msra.mxu0 0.0
    %3261 = vmatprep.subr.mxu0 0.0
    %3262 = vmatpush1.xpose.msra.mxu0 0.0
    %3263 = vmatprep.subr.mxu0 0.0
    %3264 = vmatpush1.xpose.msra.mxu0 0.0
    %3265 = vmatprep.subr.mxu0 0.0
    %3266 = vmatpush1.xpose.msra.mxu0 %v3235
    %3267 = vmatprep.subr.mxu0 0.0
    %3268 = vmatpush1.xpose.msra.mxu0 %v3233
    %3269 = vmatprep.subr.mxu0 0.0
    %3270 = vmatpush2.xpose.msra.mxu0 0.0
    %3271 = vmatprep.subr.mxu0 0.0
    %3272 = vmatpush2.xpose.msra.mxu0 0.0
    %3273 = vmatprep.subr.mxu0 0.0
    %3274 = vmatpush2.xpose.msra.mxu0 0.0
    %3275 = vmatprep.subr.mxu0 0.0
    %3276 = vmatpush2.xpose.msra.mxu0 0.0
    %3277 = vmatprep.subr.mxu0 0.0
    %3278 = vmatpush2.xpose.msra.mxu0 0.0
    %3279 = vmatprep.subr.mxu0 0.0
    %3280 = vmatpush2.xpose.msra.mxu0 0.0
    %3281 = vmatprep.subr.mxu0 0.0
    %3282 = vmatpush2.xpose.msra.mxu0 0.0
    %3283 = vmatprep.subr.mxu0 0.0
    %3284 = vmatpush2.xpose.msra.mxu0 0.0
    %3285 = vmatprep.subr.mxu0 0.0
    %3286 = vmatpush2.xpose.msra.mxu0 0.0
    %3287 = vmatprep.subr.mxu0 0.0
    %3288 = vmatpush2.xpose.msra.mxu0 0.0
    %3289 = vmatprep.subr.mxu0 0.0
    %3290 = vmatpush2.xpose.msra.mxu0 0.0
    %3291 = vmatprep.subr.mxu0 0.0
    %3292 = vmatpush2.xpose.msra.mxu0 0.0
    %3293 = vmatprep.subr.mxu0 0.0
    %3294 = vmatpush2.xpose.msra.mxu0 0.0
    %3295 = vmatprep.subr.mxu0 0.0
    %3296 = vmatpush2.xpose.msra.mxu0 0.0
    %3297 = vmatprep.subr.mxu0 0.0
    %3298 = vmatpush2.xpose.msra.mxu0 0.0
    %3299 = vmatprep.subr.mxu0 0.0
    %3300 = vmatpush2.xpose.msra.mxu0 0.0
    %3301 = vmatprep.mubr.f32.mxu0 0.0
    %3302 = vmatmul.mubr.f32.gmra.mxu0 %v3229
    %v3303 = vpop.f32.mrf.mxu0
    %v3304 = vadd.f32 0.0, %v3303
    %v3305 = vpop.f32.mrf.mxu0
    %3306 = vmatprep.mubr.f32.mxu0 0.0
    %3307 = vmatmul.mubr.f32.gmra.mxu0 %v3231
    %v3308 = vpop.f32.mrf.mxu0
    %v3309 = vadd.f32 0.0, %v3308
    %v3310 = vpop.f32.mrf.mxu0
    %3311 = vdwg.mxu0
    %3312 = vrot.lane.b32.xlu0 %v3124, 112
    %v3313 = vpop.permute.xlu0 %3312
    %3314 = vrot.lane.b32.xlu0 %v3129, 112
    %v3315 = vpop.permute.xlu0 %3314
    %3316 = vrot.lane.b32.xlu0 %v3124, 80
    %v3317 = vpop.permute.xlu0 %3316
    %3318 = vrot.lane.b32.xlu0 %v3129, 80
    %v3319 = vpop.permute.xlu0 %3318
    %v3320 = vsel %vm116, %v3313, 0
    %v3322 = vsel %vm116, %v3315, 0
    %v3324 = vsel %vm116, %v3317, 0
    %v3326 = vsel %vm116, %v3319, 0
    %3328 = vmatprep.subr.mxu0 0.0
    %3329 = vmatpush1.xpose.msra.mxu0 0.0
    %3330 = vmatprep.subr.mxu0 0.0
    %3331 = vmatpush1.xpose.msra.mxu0 0.0
    %3332 = vmatprep.subr.mxu0 0.0
    %3333 = vmatpush1.xpose.msra.mxu0 0.0
    %3334 = vmatprep.subr.mxu0 0.0
    %3335 = vmatpush1.xpose.msra.mxu0 0.0
    %3336 = vmatprep.subr.mxu0 0.0
    %3337 = vmatpush1.xpose.msra.mxu0 0.0
    %3338 = vmatprep.subr.mxu0 0.0
    %3339 = vmatpush1.xpose.msra.mxu0 0.0
    %3340 = vmatprep.subr.mxu0 0.0
    %3341 = vmatpush1.xpose.msra.mxu0 0.0
    %3342 = vmatprep.subr.mxu0 0.0
    %3343 = vmatpush1.xpose.msra.mxu0 0.0
    %3344 = vmatprep.subr.mxu0 0.0
    %3345 = vmatpush1.xpose.msra.mxu0 0.0
    %3346 = vmatprep.subr.mxu0 0.0
    %3347 = vmatpush1.xpose.msra.mxu0 0.0
    %3348 = vmatprep.subr.mxu0 0.0
    %3349 = vmatpush1.xpose.msra.mxu0 0.0
    %3350 = vmatprep.subr.mxu0 0.0
    %3351 = vmatpush1.xpose.msra.mxu0 0.0
    %3352 = vmatprep.subr.mxu0 0.0
    %3353 = vmatpush1.xpose.msra.mxu0 0.0
    %3354 = vmatprep.subr.mxu0 0.0
    %3355 = vmatpush1.xpose.msra.mxu0 0.0
    %3356 = vmatprep.subr.mxu0 0.0
    %3357 = vmatpush1.xpose.msra.mxu0 %v3326
    %3358 = vmatprep.subr.mxu0 0.0
    %3359 = vmatpush1.xpose.msra.mxu0 %v3324
    %3360 = vmatprep.subr.mxu0 0.0
    %3361 = vmatpush2.xpose.msra.mxu0 0.0
    %3362 = vmatprep.subr.mxu0 0.0
    %3363 = vmatpush2.xpose.msra.mxu0 0.0
    %3364 = vmatprep.subr.mxu0 0.0
    %3365 = vmatpush2.xpose.msra.mxu0 0.0
    %3366 = vmatprep.subr.mxu0 0.0
    %3367 = vmatpush2.xpose.msra.mxu0 0.0
    %3368 = vmatprep.subr.mxu0 0.0
    %3369 = vmatpush2.xpose.msra.mxu0 0.0
    %3370 = vmatprep.subr.mxu0 0.0
    %3371 = vmatpush2.xpose.msra.mxu0 0.0
    %3372 = vmatprep.subr.mxu0 0.0
    %3373 = vmatpush2.xpose.msra.mxu0 0.0
    %3374 = vmatprep.subr.mxu0 0.0
    %3375 = vmatpush2.xpose.msra.mxu0 0.0
    %3376 = vmatprep.subr.mxu0 0.0
    %3377 = vmatpush2.xpose.msra.mxu0 0.0
    %3378 = vmatprep.subr.mxu0 0.0
    %3379 = vmatpush2.xpose.msra.mxu0 0.0
    %3380 = vmatprep.subr.mxu0 0.0
    %3381 = vmatpush2.xpose.msra.mxu0 0.0
    %3382 = vmatprep.subr.mxu0 0.0
    %3383 = vmatpush2.xpose.msra.mxu0 0.0
    %3384 = vmatprep.subr.mxu0 0.0
    %3385 = vmatpush2.xpose.msra.mxu0 0.0
    %3386 = vmatprep.subr.mxu0 0.0
    %3387 = vmatpush2.xpose.msra.mxu0 0.0
    %3388 = vmatprep.subr.mxu0 0.0
    %3389 = vmatpush2.xpose.msra.mxu0 0.0
    %3390 = vmatprep.subr.mxu0 0.0
    %3391 = vmatpush2.xpose.msra.mxu0 0.0
    %3392 = vmatprep.mubr.f32.mxu0 0.0
    %3393 = vmatmul.mubr.f32.gmra.mxu0 %v3320
    %v3394 = vpop.f32.mrf.mxu0
    %v3395 = vadd.f32 0.0, %v3394
    %v3396 = vpop.f32.mrf.mxu0
    %3397 = vmatprep.mubr.f32.mxu0 0.0
    %3398 = vmatmul.mubr.f32.gmra.mxu0 %v3322
    %v3399 = vpop.f32.mrf.mxu0
    %v3400 = vadd.f32 0.0, %v3399
    %v3401 = vpop.f32.mrf.mxu0
    %3402 = vdwg.mxu0
    %3403 = vrot.lane.b32.xlu0 %v3124, 104
    %v3404 = vpop.permute.xlu0 %3403
    %3405 = vrot.lane.b32.xlu0 %v3129, 104
    %v3406 = vpop.permute.xlu0 %3405
    %3407 = vrot.lane.b32.xlu0 %v3124, 72
    %v3408 = vpop.permute.xlu0 %3407
    %3409 = vrot.lane.b32.xlu0 %v3129, 72
    %v3410 = vpop.permute.xlu0 %3409
    %v3411 = vsel %vm116, %v3404, 0
    %v3413 = vsel %vm116, %v3406, 0
    %v3415 = vsel %vm116, %v3408, 0
    %v3417 = vsel %vm116, %v3410, 0
    %3419 = vmatprep.subr.mxu0 0.0
    %3420 = vmatpush1.xpose.msra.mxu0 0.0
    %3421 = vmatprep.subr.mxu0 0.0
    %3422 = vmatpush1.xpose.msra.mxu0 0.0
    %3423 = vmatprep.subr.mxu0 0.0
    %3424 = vmatpush1.xpose.msra.mxu0 0.0
    %3425 = vmatprep.subr.mxu0 0.0
    %3426 = vmatpush1.xpose.msra.mxu0 0.0
    %3427 = vmatprep.subr.mxu0 0.0
    %3428 = vmatpush1.xpose.msra.mxu0 0.0
    %3429 = vmatprep.subr.mxu0 0.0
    %3430 = vmatpush1.xpose.msra.mxu0 0.0
    %3431 = vmatprep.subr.mxu0 0.0
    %3432 = vmatpush1.xpose.msra.mxu0 0.0
    %3433 = vmatprep.subr.mxu0 0.0
    %3434 = vmatpush1.xpose.msra.mxu0 0.0
    %3435 = vmatprep.subr.mxu0 0.0
    %3436 = vmatpush1.xpose.msra.mxu0 0.0
    %3437 = vmatprep.subr.mxu0 0.0
    %3438 = vmatpush1.xpose.msra.mxu0 0.0
    %3439 = vmatprep.subr.mxu0 0.0
    %3440 = vmatpush1.xpose.msra.mxu0 0.0
    %3441 = vmatprep.subr.mxu0 0.0
    %3442 = vmatpush1.xpose.msra.mxu0 0.0
    %3443 = vmatprep.subr.mxu0 0.0
    %3444 = vmatpush1.xpose.msra.mxu0 0.0
    %3445 = vmatprep.subr.mxu0 0.0
    %3446 = vmatpush1.xpose.msra.mxu0 0.0
    %3447 = vmatprep.subr.mxu0 0.0
    %3448 = vmatpush1.xpose.msra.mxu0 %v3417
    %3449 = vmatprep.subr.mxu0 0.0
    %3450 = vmatpush1.xpose.msra.mxu0 %v3415
    %3451 = vmatprep.subr.mxu0 0.0
    %3452 = vmatpush2.xpose.msra.mxu0 0.0
    %3453 = vmatprep.subr.mxu0 0.0
    %3454 = vmatpush2.xpose.msra.mxu0 0.0
    %3455 = vmatprep.subr.mxu0 0.0
    %3456 = vmatpush2.xpose.msra.mxu0 0.0
    %3457 = vmatprep.subr.mxu0 0.0
    %3458 = vmatpush2.xpose.msra.mxu0 0.0
    %3459 = vmatprep.subr.mxu0 0.0
    %3460 = vmatpush2.xpose.msra.mxu0 0.0
    %3461 = vmatprep.subr.mxu0 0.0
    %3462 = vmatpush2.xpose.msra.mxu0 0.0
    %3463 = vmatprep.subr.mxu0 0.0
    %3464 = vmatpush2.xpose.msra.mxu0 0.0
    %3465 = vmatprep.subr.mxu0 0.0
    %3466 = vmatpush2.xpose.msra.mxu0 0.0
    %3467 = vmatprep.subr.mxu0 0.0
    %3468 = vmatpush2.xpose.msra.mxu0 0.0
    %3469 = vmatprep.subr.mxu0 0.0
    %3470 = vmatpush2.xpose.msra.mxu0 0.0
    %3471 = vmatprep.subr.mxu0 0.0
    %3472 = vmatpush2.xpose.msra.mxu0 0.0
    %3473 = vmatprep.subr.mxu0 0.0
    %3474 = vmatpush2.xpose.msra.mxu0 0.0
    %3475 = vmatprep.subr.mxu0 0.0
    %3476 = vmatpush2.xpose.msra.mxu0 0.0
    %3477 = vmatprep.subr.mxu0 0.0
    %3478 = vmatpush2.xpose.msra.mxu0 0.0
    %3479 = vmatprep.subr.mxu0 0.0
    %3480 = vmatpush2.xpose.msra.mxu0 0.0
    %3481 = vmatprep.subr.mxu0 0.0
    %3482 = vmatpush2.xpose.msra.mxu0 0.0
    %3483 = vmatprep.mubr.f32.mxu0 0.0
    %3484 = vmatmul.mubr.f32.gmra.mxu0 %v3411
    %v3485 = vpop.f32.mrf.mxu0
    %v3486 = vadd.f32 0.0, %v3485
    %v3487 = vpop.f32.mrf.mxu0
    %3488 = vmatprep.mubr.f32.mxu0 0.0
    %3489 = vmatmul.mubr.f32.gmra.mxu0 %v3413
    %v3490 = vpop.f32.mrf.mxu0
    %v3491 = vadd.f32 0.0, %v3490
    %v3492 = vpop.f32.mrf.mxu0
    %3493 = vdwg.mxu0
    %v3494 = vmul.f32 %v3213, 0.35355338
    %v3495 = vmul.f32 %v3218, 0.35355338
    %v3496 = vmul.f32 %v3304, 0.35355338
    %v3497 = vmul.f32 %v3309, 0.35355338
    %v3498 = vmul.f32 %v3395, 0.35355338
    %v3499 = vmul.f32 %v3400, 0.35355338
    %v3500 = vmul.f32 %v3486, 0.35355338
    %v3501 = vmul.f32 %v3491, 0.35355338
    %v3502 = vadd.f32 %v3494, %v134
    %v3503 = vadd.f32 %v3495, %v135
    %v3504 = vadd.f32 %v3496, %v134
    %v3505 = vadd.f32 %v3497, %v135
    %v3506 = vadd.f32 %v3498, %v134
    %v3507 = vadd.f32 %v3499, %v135
    %v3508 = vadd.f32 %v3500, %v134
    %v3509 = vadd.f32 %v3501, %v135
    %v3510 = vsel %vm724, %v3502, -inf
    %3511 = vmax.xlane.f32.xlu0 %v3510
    %v3512 = vpop.xlane.xlu0 %3511
    %v3513 = vsel %vm724, %v3503, -inf
    %3514 = vmax.xlane.f32.xlu0 %v3513
    %v3515 = vpop.xlane.xlu0 %3514
    %v3516 = vsel %vm724, %v3504, -inf
    %3517 = vmax.xlane.f32.xlu0 %v3516
    %v3518 = vpop.xlane.xlu0 %3517
    %v3519 = vsel %vm724, %v3505, -inf
    %3520 = vmax.xlane.f32.xlu0 %v3519
    %v3521 = vpop.xlane.xlu0 %3520
    %v3522 = vsel %vm724, %v3506, -inf
    %3523 = vmax.xlane.f32.xlu0 %v3522
    %v3524 = vpop.xlane.xlu0 %3523
    %v3525 = vsel %vm724, %v3507, -inf
    %3526 = vmax.xlane.f32.xlu0 %v3525
    %v3527 = vpop.xlane.xlu0 %3526
    %v3528 = vsel %vm724, %v3508, -inf
    %3529 = vmax.xlane.f32.xlu0 %v3528
    %v3530 = vpop.xlane.xlu0 %3529
    %v3531 = vsel %vm724, %v3509, -inf
    %3532 = vmax.xlane.f32.xlu0 %v3531
    %v3533 = vpop.xlane.xlu0 %3532
    %v3534 = vsub.f32 %v3502, %v3512
    %v3535 = vsub.f32 %v3503, %v3515
    %v3536 = vsub.f32 %v3504, %v3518
    %v3537 = vsub.f32 %v3505, %v3521
    %v3538 = vsub.f32 %v3506, %v3524
    %v3539 = vsub.f32 %v3507, %v3527
    %v3540 = vsub.f32 %v3508, %v3530
    %v3541 = vsub.f32 %v3509, %v3533
    %v3542 = vmul.f32 %v3534, 1.442695
    %v3543 = vpow.pop %v3542
    %v3544 = vmul.f32 %v3535, 1.442695
    %v3545 = vpow.pop %v3544
    %v3546 = vmul.f32 %v3536, 1.442695
    %v3547 = vpow.pop %v3546
    %v3548 = vmul.f32 %v3537, 1.442695
    %v3549 = vpow.pop %v3548
    %v3550 = vmul.f32 %v3538, 1.442695
    %v3551 = vpow.pop %v3550
    %v3552 = vmul.f32 %v3539, 1.442695
    %v3553 = vpow.pop %v3552
    %v3554 = vmul.f32 %v3540, 1.442695
    %v3555 = vpow.pop %v3554
    %v3556 = vmul.f32 %v3541, 1.442695
    %v3557 = vpow.pop %v3556
    %v3558 = vsel %vm724, %v3543, 0.0
    %3559 = vadd.xlane.f32.xlu0 %v3558
    %v3560 = vpop.xlane.xlu0 %3559
    %v3561 = vsel %vm724, %v3545, 0.0
    %3562 = vadd.xlane.f32.xlu0 %v3561
    %v3563 = vpop.xlane.xlu0 %3562
    %v3564 = vsel %vm724, %v3547, 0.0
    %3565 = vadd.xlane.f32.xlu0 %v3564
    %v3566 = vpop.xlane.xlu0 %3565
    %v3567 = vsel %vm724, %v3549, 0.0
    %3568 = vadd.xlane.f32.xlu0 %v3567
    %v3569 = vpop.xlane.xlu0 %3568
    %v3570 = vsel %vm724, %v3551, 0.0
    %3571 = vadd.xlane.f32.xlu0 %v3570
    %v3572 = vpop.xlane.xlu0 %3571
    %v3573 = vsel %vm724, %v3553, 0.0
    %3574 = vadd.xlane.f32.xlu0 %v3573
    %v3575 = vpop.xlane.xlu0 %3574
    %v3576 = vsel %vm724, %v3555, 0.0
    %3577 = vadd.xlane.f32.xlu0 %v3576
    %v3578 = vpop.xlane.xlu0 %3577
    %v3579 = vsel %vm724, %v3557, 0.0
    %3580 = vadd.xlane.f32.xlu0 %v3579
    %v3581 = vpop.xlane.xlu0 %3580
    %v3582 = vrcp.pop %v3560
    %v3583 = vmul.f32 %v3543, %v3582
    %v3584 = vrcp.pop %v3563
    %v3585 = vmul.f32 %v3545, %v3584
    %v3586 = vrcp.pop %v3566
    %v3587 = vmul.f32 %v3547, %v3586
    %v3588 = vrcp.pop %v3569
    %v3589 = vmul.f32 %v3549, %v3588
    %v3590 = vrcp.pop %v3572
    %v3591 = vmul.f32 %v3551, %v3590
    %v3592 = vrcp.pop %v3575
    %v3593 = vmul.f32 %v3553, %v3592
    %v3594 = vrcp.pop %v3578
    %v3595 = vmul.f32 %v3555, %v3594
    %v3596 = vrcp.pop %v3581
    %v3597 = vmul.f32 %v3557, %v3596
    %3598 = vrot.lane.b32.xlu0 %v3124, 64
    %v3599 = vpop.permute.xlu0 %3598
    %3600 = vrot.lane.b32.xlu0 %v3129, 64
    %v3601 = vpop.permute.xlu0 %3600
    %v3605 = vsel %vm724, %v3583, 0
    %v3608 = vsel %vm724, %v3585, 0
    %3610 = vmatprep.subr.mxu0 0.0
    %3611 = vmatpush1.msra.mxu0 0.0
    %3612 = vmatprep.subr.mxu0 0.0
    %3613 = vmatpush1.msra.mxu0 0.0
    %3614 = vmatprep.subr.mxu0 0.0
    %3615 = vmatpush1.msra.mxu0 0.0
    %3616 = vmatprep.subr.mxu0 0.0
    %3617 = vmatpush1.msra.mxu0 0.0
    %3618 = vmatprep.subr.mxu0 0.0
    %3619 = vmatpush1.msra.mxu0 0.0
    %3620 = vmatprep.subr.mxu0 0.0
    %3621 = vmatpush1.msra.mxu0 0.0
    %3622 = vmatprep.subr.mxu0 0.0
    %3623 = vmatpush1.msra.mxu0 0.0
    %3624 = vmatprep.subr.mxu0 0.0
    %3625 = vmatpush1.msra.mxu0 0.0
    %3626 = vmatprep.subr.mxu0 0.0
    %3627 = vmatpush1.msra.mxu0 0.0
    %3628 = vmatprep.subr.mxu0 0.0
    %3629 = vmatpush1.msra.mxu0 0.0
    %3630 = vmatprep.subr.mxu0 0.0
    %3631 = vmatpush1.msra.mxu0 0.0
    %3632 = vmatprep.subr.mxu0 0.0
    %3633 = vmatpush1.msra.mxu0 0.0
    %3634 = vmatprep.subr.mxu0 0.0
    %3635 = vmatpush1.msra.mxu0 0.0
    %3636 = vmatprep.subr.mxu0 0.0
    %3637 = vmatpush1.msra.mxu0 0.0
    %3638 = vmatprep.subr.mxu0 0.0
    %3639 = vmatpush1.msra.mxu0 %v3601
    %3640 = vmatprep.subr.mxu0 0.0
    %3641 = vmatpush1.msra.mxu0 %v3599
    %3642 = vmatprep.subr.mxu0 0.0
    %3643 = vmatpush2.msra.mxu0 0.0
    %3644 = vmatprep.subr.mxu0 0.0
    %3645 = vmatpush2.msra.mxu0 0.0
    %3646 = vmatprep.subr.mxu0 0.0
    %3647 = vmatpush2.msra.mxu0 0.0
    %3648 = vmatprep.subr.mxu0 0.0
    %3649 = vmatpush2.msra.mxu0 0.0
    %3650 = vmatprep.subr.mxu0 0.0
    %3651 = vmatpush2.msra.mxu0 0.0
    %3652 = vmatprep.subr.mxu0 0.0
    %3653 = vmatpush2.msra.mxu0 0.0
    %3654 = vmatprep.subr.mxu0 0.0
    %3655 = vmatpush2.msra.mxu0 0.0
    %3656 = vmatprep.subr.mxu0 0.0
    %3657 = vmatpush2.msra.mxu0 0.0
    %3658 = vmatprep.subr.mxu0 0.0
    %3659 = vmatpush2.msra.mxu0 0.0
    %3660 = vmatprep.subr.mxu0 0.0
    %3661 = vmatpush2.msra.mxu0 0.0
    %3662 = vmatprep.subr.mxu0 0.0
    %3663 = vmatpush2.msra.mxu0 0.0
    %3664 = vmatprep.subr.mxu0 0.0
    %3665 = vmatpush2.msra.mxu0 0.0
    %3666 = vmatprep.subr.mxu0 0.0
    %3667 = vmatpush2.msra.mxu0 0.0
    %3668 = vmatprep.subr.mxu0 0.0
    %3669 = vmatpush2.msra.mxu0 0.0
    %3670 = vmatprep.subr.mxu0 0.0
    %3671 = vmatpush2.msra.mxu0 0.0
    %3672 = vmatprep.subr.mxu0 0.0
    %3673 = vmatpush2.msra.mxu0 0.0
    %3674 = vmatprep.mubr.f32.mxu0 0.0
    %3675 = vmatmul.mubr.f32.gmra.mxu0 %v3605
    %v3676 = vpop.f32.mrf.mxu0
    %v3677 = vadd.f32 0.0, %v3676
    %v3678 = vpop.f32.mrf.mxu0
    %3679 = vmatprep.mubr.f32.mxu0 0.0
    %3680 = vmatmul.mubr.f32.gmra.mxu0 %v3608
    %v3681 = vpop.f32.mrf.mxu0
    %v3682 = vadd.f32 0.0, %v3681
    %v3683 = vpop.f32.mrf.mxu0
    %3684 = vdwg.mxu0
    %3685 = vrot.lane.b32.xlu0 %v3124, 56
    %v3686 = vpop.permute.xlu0 %3685
    %3687 = vrot.lane.b32.xlu0 %v3129, 56
    %v3688 = vpop.permute.xlu0 %3687
    %v3692 = vsel %vm724, %v3587, 0
    %v3695 = vsel %vm724, %v3589, 0
    %3697 = vmatprep.subr.mxu0 0.0
    %3698 = vmatpush1.msra.mxu0 0.0
    %3699 = vmatprep.subr.mxu0 0.0
    %3700 = vmatpush1.msra.mxu0 0.0
    %3701 = vmatprep.subr.mxu0 0.0
    %3702 = vmatpush1.msra.mxu0 0.0
    %3703 = vmatprep.subr.mxu0 0.0
    %3704 = vmatpush1.msra.mxu0 0.0
    %3705 = vmatprep.subr.mxu0 0.0
    %3706 = vmatpush1.msra.mxu0 0.0
    %3707 = vmatprep.subr.mxu0 0.0
    %3708 = vmatpush1.msra.mxu0 0.0
    %3709 = vmatprep.subr.mxu0 0.0
    %3710 = vmatpush1.msra.mxu0 0.0
    %3711 = vmatprep.subr.mxu0 0.0
    %3712 = vmatpush1.msra.mxu0 0.0
    %3713 = vmatprep.subr.mxu0 0.0
    %3714 = vmatpush1.msra.mxu0 0.0
    %3715 = vmatprep.subr.mxu0 0.0
    %3716 = vmatpush1.msra.mxu0 0.0
    %3717 = vmatprep.subr.mxu0 0.0
    %3718 = vmatpush1.msra.mxu0 0.0
    %3719 = vmatprep.subr.mxu0 0.0
    %3720 = vmatpush1.msra.mxu0 0.0
    %3721 = vmatprep.subr.mxu0 0.0
    %3722 = vmatpush1.msra.mxu0 0.0
    %3723 = vmatprep.subr.mxu0 0.0
    %3724 = vmatpush1.msra.mxu0 0.0
    %3725 = vmatprep.subr.mxu0 0.0
    %3726 = vmatpush1.msra.mxu0 %v3688
    %3727 = vmatprep.subr.mxu0 0.0
    %3728 = vmatpush1.msra.mxu0 %v3686
    %3729 = vmatprep.subr.mxu0 0.0
    %3730 = vmatpush2.msra.mxu0 0.0
    %3731 = vmatprep.subr.mxu0 0.0
    %3732 = vmatpush2.msra.mxu0 0.0
    %3733 = vmatprep.subr.mxu0 0.0
    %3734 = vmatpush2.msra.mxu0 0.0
    %3735 = vmatprep.subr.mxu0 0.0
    %3736 = vmatpush2.msra.mxu0 0.0
    %3737 = vmatprep.subr.mxu0 0.0
    %3738 = vmatpush2.msra.mxu0 0.0
    %3739 = vmatprep.subr.mxu0 0.0
    %3740 = vmatpush2.msra.mxu0 0.0
    %3741 = vmatprep.subr.mxu0 0.0
    %3742 = vmatpush2.msra.mxu0 0.0
    %3743 = vmatprep.subr.mxu0 0.0
    %3744 = vmatpush2.msra.mxu0 0.0
    %3745 = vmatprep.subr.mxu0 0.0
    %3746 = vmatpush2.msra.mxu0 0.0
    %3747 = vmatprep.subr.mxu0 0.0
    %3748 = vmatpush2.msra.mxu0 0.0
    %3749 = vmatprep.subr.mxu0 0.0
    %3750 = vmatpush2.msra.mxu0 0.0
    %3751 = vmatprep.subr.mxu0 0.0
    %3752 = vmatpush2.msra.mxu0 0.0
    %3753 = vmatprep.subr.mxu0 0.0
    %3754 = vmatpush2.msra.mxu0 0.0
    %3755 = vmatprep.subr.mxu0 0.0
    %3756 = vmatpush2.msra.mxu0 0.0
    %3757 = vmatprep.subr.mxu0 0.0
    %3758 = vmatpush2.msra.mxu0 0.0
    %3759 = vmatprep.subr.mxu0 0.0
    %3760 = vmatpush2.msra.mxu0 0.0
    %3761 = vmatprep.mubr.f32.mxu0 0.0
    %3762 = vmatmul.mubr.f32.gmra.mxu0 %v3692
    %v3763 = vpop.f32.mrf.mxu0
    %v3764 = vadd.f32 0.0, %v3763
    %v3765 = vpop.f32.mrf.mxu0
    %3766 = vmatprep.mubr.f32.mxu0 0.0
    %3767 = vmatmul.mubr.f32.gmra.mxu0 %v3695
    %v3768 = vpop.f32.mrf.mxu0
    %v3769 = vadd.f32 0.0, %v3768
    %v3770 = vpop.f32.mrf.mxu0
    %3771 = vdwg.mxu0
    %3772 = vrot.lane.b32.xlu0 %v3124, 48
    %v3773 = vpop.permute.xlu0 %3772
    %3774 = vrot.lane.b32.xlu0 %v3129, 48
    %v3775 = vpop.permute.xlu0 %3774
    %v3779 = vsel %vm724, %v3591, 0
    %v3782 = vsel %vm724, %v3593, 0
    %3784 = vmatprep.subr.mxu0 0.0
    %3785 = vmatpush1.msra.mxu0 0.0
    %3786 = vmatprep.subr.mxu0 0.0
    %3787 = vmatpush1.msra.mxu0 0.0
    %3788 = vmatprep.subr.mxu0 0.0
    %3789 = vmatpush1.msra.mxu0 0.0
    %3790 = vmatprep.subr.mxu0 0.0
    %3791 = vmatpush1.msra.mxu0 0.0
    %3792 = vmatprep.subr.mxu0 0.0
    %3793 = vmatpush1.msra.mxu0 0.0
    %3794 = vmatprep.subr.mxu0 0.0
    %3795 = vmatpush1.msra.mxu0 0.0
    %3796 = vmatprep.subr.mxu0 0.0
    %3797 = vmatpush1.msra.mxu0 0.0
    %3798 = vmatprep.subr.mxu0 0.0
    %3799 = vmatpush1.msra.mxu0 0.0
    %3800 = vmatprep.subr.mxu0 0.0
    %3801 = vmatpush1.msra.mxu0 0.0
    %3802 = vmatprep.subr.mxu0 0.0
    %3803 = vmatpush1.msra.mxu0 0.0
    %3804 = vmatprep.subr.mxu0 0.0
    %3805 = vmatpush1.msra.mxu0 0.0
    %3806 = vmatprep.subr.mxu0 0.0
    %3807 = vmatpush1.msra.mxu0 0.0
    %3808 = vmatprep.subr.mxu0 0.0
    %3809 = vmatpush1.msra.mxu0 0.0
    %3810 = vmatprep.subr.mxu0 0.0
    %3811 = vmatpush1.msra.mxu0 0.0
    %3812 = vmatprep.subr.mxu0 0.0
    %3813 = vmatpush1.msra.mxu0 %v3775
    %3814 = vmatprep.subr.mxu0 0.0
    %3815 = vmatpush1.msra.mxu0 %v3773
    %3816 = vmatprep.subr.mxu0 0.0
    %3817 = vmatpush2.msra.mxu0 0.0
    %3818 = vmatprep.subr.mxu0 0.0
    %3819 = vmatpush2.msra.mxu0 0.0
    %3820 = vmatprep.subr.mxu0 0.0
    %3821 = vmatpush2.msra.mxu0 0.0
    %3822 = vmatprep.subr.mxu0 0.0
    %3823 = vmatpush2.msra.mxu0 0.0
    %3824 = vmatprep.subr.mxu0 0.0
    %3825 = vmatpush2.msra.mxu0 0.0
    %3826 = vmatprep.subr.mxu0 0.0
    %3827 = vmatpush2.msra.mxu0 0.0
    %3828 = vmatprep.subr.mxu0 0.0
    %3829 = vmatpush2.msra.mxu0 0.0
    %3830 = vmatprep.subr.mxu0 0.0
    %3831 = vmatpush2.msra.mxu0 0.0
    %3832 = vmatprep.subr.mxu0 0.0
    %3833 = vmatpush2.msra.mxu0 0.0
    %3834 = vmatprep.subr.mxu0 0.0
    %3835 = vmatpush2.msra.mxu0 0.0
    %3836 = vmatprep.subr.mxu0 0.0
    %3837 = vmatpush2.msra.mxu0 0.0
    %3838 = vmatprep.subr.mxu0 0.0
    %3839 = vmatpush2.msra.mxu0 0.0
    %3840 = vmatprep.subr.mxu0 0.0
    %3841 = vmatpush2.msra.mxu0 0.0
    %3842 = vmatprep.subr.mxu0 0.0
    %3843 = vmatpush2.msra.mxu0 0.0
    %3844 = vmatprep.subr.mxu0 0.0
    %3845 = vmatpush2.msra.mxu0 0.0
    %3846 = vmatprep.subr.mxu0 0.0
    %3847 = vmatpush2.msra.mxu0 0.0
    %3848 = vmatprep.mubr.f32.mxu0 0.0
    %3849 = vmatmul.mubr.f32.gmra.mxu0 %v3779
    %v3850 = vpop.f32.mrf.mxu0
    %v3851 = vadd.f32 0.0, %v3850
    %v3852 = vpop.f32.mrf.mxu0
    %3853 = vmatprep.mubr.f32.mxu0 0.0
    %3854 = vmatmul.mubr.f32.gmra.mxu0 %v3782
    %v3855 = vpop.f32.mrf.mxu0
    %v3856 = vadd.f32 0.0, %v3855
    %v3857 = vpop.f32.mrf.mxu0
    %3858 = vdwg.mxu0
    %3859 = vrot.lane.b32.xlu0 %v3124, 40
    %v3860 = vpop.permute.xlu0 %3859
    %3861 = vrot.lane.b32.xlu0 %v3129, 40
    %v3862 = vpop.permute.xlu0 %3861
    %v3866 = vsel %vm724, %v3595, 0
    %v3869 = vsel %vm724, %v3597, 0
    %3871 = vmatprep.subr.mxu0 0.0
    %3872 = vmatpush1.msra.mxu0 0.0
    %3873 = vmatprep.subr.mxu0 0.0
    %3874 = vmatpush1.msra.mxu0 0.0
    %3875 = vmatprep.subr.mxu0 0.0
    %3876 = vmatpush1.msra.mxu0 0.0
    %3877 = vmatprep.subr.mxu0 0.0
    %3878 = vmatpush1.msra.mxu0 0.0
    %3879 = vmatprep.subr.mxu0 0.0
    %3880 = vmatpush1.msra.mxu0 0.0
    %3881 = vmatprep.subr.mxu0 0.0
    %3882 = vmatpush1.msra.mxu0 0.0
    %3883 = vmatprep.subr.mxu0 0.0
    %3884 = vmatpush1.msra.mxu0 0.0
    %3885 = vmatprep.subr.mxu0 0.0
    %3886 = vmatpush1.msra.mxu0 0.0
    %3887 = vmatprep.subr.mxu0 0.0
    %3888 = vmatpush1.msra.mxu0 0.0
    %3889 = vmatprep.subr.mxu0 0.0
    %3890 = vmatpush1.msra.mxu0 0.0
    %3891 = vmatprep.subr.mxu0 0.0
    %3892 = vmatpush1.msra.mxu0 0.0
    %3893 = vmatprep.subr.mxu0 0.0
    %3894 = vmatpush1.msra.mxu0 0.0
    %3895 = vmatprep.subr.mxu0 0.0
    %3896 = vmatpush1.msra.mxu0 0.0
    %3897 = vmatprep.subr.mxu0 0.0
    %3898 = vmatpush1.msra.mxu0 0.0
    %3899 = vmatprep.subr.mxu0 0.0
    %3900 = vmatpush1.msra.mxu0 %v3862
    %3901 = vmatprep.subr.mxu0 0.0
    %3902 = vmatpush1.msra.mxu0 %v3860
    %3903 = vmatprep.subr.mxu0 0.0
    %3904 = vmatpush2.msra.mxu0 0.0
    %3905 = vmatprep.subr.mxu0 0.0
    %3906 = vmatpush2.msra.mxu0 0.0
    %3907 = vmatprep.subr.mxu0 0.0
    %3908 = vmatpush2.msra.mxu0 0.0
    %3909 = vmatprep.subr.mxu0 0.0
    %3910 = vmatpush2.msra.mxu0 0.0
    %3911 = vmatprep.subr.mxu0 0.0
    %3912 = vmatpush2.msra.mxu0 0.0
    %3913 = vmatprep.subr.mxu0 0.0
    %3914 = vmatpush2.msra.mxu0 0.0
    %3915 = vmatprep.subr.mxu0 0.0
    %3916 = vmatpush2.msra.mxu0 0.0
    %3917 = vmatprep.subr.mxu0 0.0
    %3918 = vmatpush2.msra.mxu0 0.0
    %3919 = vmatprep.subr.mxu0 0.0
    %3920 = vmatpush2.msra.mxu0 0.0
    %3921 = vmatprep.subr.mxu0 0.0
    %3922 = vmatpush2.msra.mxu0 0.0
    %3923 = vmatprep.subr.mxu0 0.0
    %3924 = vmatpush2.msra.mxu0 0.0
    %3925 = vmatprep.subr.mxu0 0.0
    %3926 = vmatpush2.msra.mxu0 0.0
    %3927 = vmatprep.subr.mxu0 0.0
    %3928 = vmatpush2.msra.mxu0 0.0
    %3929 = vmatprep.subr.mxu0 0.0
    %3930 = vmatpush2.msra.mxu0 0.0
    %3931 = vmatprep.subr.mxu0 0.0
    %3932 = vmatpush2.msra.mxu0 0.0
    %3933 = vmatprep.subr.mxu0 0.0
    %3934 = vmatpush2.msra.mxu0 0.0
    %3935 = vmatprep.mubr.f32.mxu0 0.0
    %3936 = vmatmul.mubr.f32.gmra.mxu0 %v3866
    %v3937 = vpop.f32.mrf.mxu0
    %v3938 = vadd.f32 0.0, %v3937
    %v3939 = vpop.f32.mrf.mxu0
    %3940 = vmatprep.mubr.f32.mxu0 0.0
    %3941 = vmatmul.mubr.f32.gmra.mxu0 %v3869
    %v3942 = vpop.f32.mrf.mxu0
    %v3943 = vadd.f32 0.0, %v3942
    %v3944 = vpop.f32.mrf.mxu0
    %3945 = vdwg.mxu0
    %3948 = vrot.lane.b32.xlu0 %v3764, 8
    %v3949 = vpop.permute.xlu0 %3948
    %3950 = vrot.lane.b32.xlu0 %v3769, 8
    %v3951 = vpop.permute.xlu0 %3950
    %3956 = vrot.lane.b32.xlu0 %v3851, 16
    %v3957 = vpop.permute.xlu0 %3956
    %3958 = vrot.lane.b32.xlu0 %v3856, 16
    %v3959 = vpop.permute.xlu0 %3958
    %3964 = vrot.lane.b32.xlu0 %v3938, 24
    %v3965 = vpop.permute.xlu0 %3964
    %3966 = vrot.lane.b32.xlu0 %v3943, 24
    %v3967 = vpop.permute.xlu0 %3966
    %v3970 = vsel %vm116, %v3677, %v3949
    %v3971 = vsel %vm116, %v3682, %v3951
    %v3972 = vsel %vm724, %v3970, %v3957
    %v3973 = vsel %vm724, %v3971, %v3959
    %v3974 = vsel %vm1189, %v3972, %v3965
    %v3975 = vsel %vm1189, %v3973, %v3967
    %s3976 = scalar_lea.vmem %s6, 64
    %v3977 = vld [vmem:[%s3976] sm:$0xff]
    %v3978 = vld [vmem:[%s3976 + $0x8] sm:$0xff]
    %v3979 = vld [vmem:[%s3976 + $0x10] sm:$0xff]
    %v3980 = vld [vmem:[%s3976 + $0x18] sm:$0xff]
    %s3981 = scalar_lea.vmem [#allocation5], 2
    %v3982 = vld [vmem:[%s3981] sm:$0x1]
    %v3984 = vlaneseq
    %v3985 = vshrl.u32 %v3984, 7
    %v3986 = vsub.s32 0, %v3985
    %v3987 = vrot.slane %v3982, %v3986
    %v3990 = vsel %vm264, %v3974, 0
    %v3993 = vsel %vm264, %v3975, 0
    %3995 = vmatprep.subr.mxu0 0.0
    %3996 = vmatpush1.msra.mxu0 0.0
    %3997 = vmatprep.subr.mxu0 0.0
    %3998 = vmatpush1.msra.mxu0 0.0
    %3999 = vmatprep.subr.mxu0 0.0
    %4000 = vmatpush1.msra.mxu0 0.0
    %4001 = vmatprep.subr.mxu0 0.0
    %4002 = vmatpush1.msra.mxu0 0.0
    %4003 = vmatprep.subr.mxu0 0.0
    %4004 = vmatpush1.msra.mxu0 0.0
    %4005 = vmatprep.subr.mxu0 0.0
    %4006 = vmatpush1.msra.mxu0 0.0
    %4007 = vmatprep.subr.mxu0 0.0
    %4008 = vmatpush1.msra.mxu0 0.0
    %4009 = vmatprep.subr.mxu0 0.0
    %4010 = vmatpush1.msra.mxu0 0.0
    %4011 = vmatprep.subr.mxu0 0.0
    %4012 = vmatpush1.msra.mxu0 0.0
    %4013 = vmatprep.subr.mxu0 0.0
    %4014 = vmatpush1.msra.mxu0 0.0
    %4015 = vmatprep.subr.mxu0 0.0
    %4016 = vmatpush1.msra.mxu0 0.0
    %4017 = vmatprep.subr.mxu0 0.0
    %4018 = vmatpush1.msra.mxu0 0.0
    %4019 = vmatprep.subr.mxu0 0.0
    %4020 = vmatpush1.msra.mxu0 %v3980
    %4021 = vmatprep.subr.mxu0 0.0
    %4022 = vmatpush1.msra.mxu0 %v3979
    %4023 = vmatprep.subr.mxu0 0.0
    %4024 = vmatpush1.msra.mxu0 %v3978
    %4025 = vmatprep.subr.mxu0 0.0
    %4026 = vmatpush1.msra.mxu0 %v3977
    %4027 = vmatprep.subr.mxu0 0.0
    %4028 = vmatpush2.msra.mxu0 0.0
    %4029 = vmatprep.subr.mxu0 0.0
    %4030 = vmatpush2.msra.mxu0 0.0
    %4031 = vmatprep.subr.mxu0 0.0
    %4032 = vmatpush2.msra.mxu0 0.0
    %4033 = vmatprep.subr.mxu0 0.0
    %4034 = vmatpush2.msra.mxu0 0.0
    %4035 = vmatprep.subr.mxu0 0.0
    %4036 = vmatpush2.msra.mxu0 0.0
    %4037 = vmatprep.subr.mxu0 0.0
    %4038 = vmatpush2.msra.mxu0 0.0
    %4039 = vmatprep.subr.mxu0 0.0
    %4040 = vmatpush2.msra.mxu0 0.0
    %4041 = vmatprep.subr.mxu0 0.0
    %4042 = vmatpush2.msra.mxu0 0.0
    %4043 = vmatprep.subr.mxu0 0.0
    %4044 = vmatpush2.msra.mxu0 0.0
    %4045 = vmatprep.subr.mxu0 0.0
    %4046 = vmatpush2.msra.mxu0 0.0
    %4047 = vmatprep.subr.mxu0 0.0
    %4048 = vmatpush2.msra.mxu0 0.0
    %4049 = vmatprep.subr.mxu0 0.0
    %4050 = vmatpush2.msra.mxu0 0.0
    %4051 = vmatprep.subr.mxu0 0.0
    %4052 = vmatpush2.msra.mxu0 0.0
    %4053 = vmatprep.subr.mxu0 0.0
    %4054 = vmatpush2.msra.mxu0 0.0
    %4055 = vmatprep.subr.mxu0 0.0
    %4056 = vmatpush2.msra.mxu0 0.0
    %4057 = vmatprep.subr.mxu0 0.0
    %4058 = vmatpush2.msra.mxu0 0.0
    %4059 = vmatprep.mubr.f32.mxu0 0.0
    %4060 = vmatmul.mubr.f32.gmra.mxu0 %v3990
    %v4061 = vpop.f32.mrf.mxu0
    %v4062 = vadd.f32 %v3987, %v4061
    %v4063 = vpop.f32.mrf.mxu0
    %4064 = vmatprep.mubr.f32.mxu0 0.0
    %4065 = vmatmul.mubr.f32.gmra.mxu0 %v3993
    %v4066 = vpop.f32.mrf.mxu0
    %v4067 = vadd.f32 %v3987, %v4066
    %v4068 = vpop.f32.mrf.mxu0
    %4069 = vdwg.mxu0
    %v4070 = vadd.f32 %v3036, %v4062
    %v4071 = vadd.f32 %v3037, %v4067
    %v4072 = vsel %vm264, %v4070, 0.0
    %4073 = vadd.xlane.f32.xlu0 %v4072
    %v4074 = vpop.xlane.xlu0 %4073
    %v4075 = vsel %vm264, %v4071, 0.0
    %4076 = vadd.xlane.f32.xlu0 %v4075
    %v4077 = vpop.xlane.xlu0 %4076
    %v4078 = vmul.f32 %v4074, %v1292
    %v4079 = vmul.f32 %v4077, %v1292
    %v4080 = vsub.f32 %v4070, %v4078
    %v4081 = vsub.f32 %v4071, %v4079
    %v4082 = vmul.f32 %v4080, %v4080
    %v4083 = vmul.f32 %v4081, %v4081
    %v4084 = vsel %vm264, %v4082, 0.0
    %4085 = vadd.xlane.f32.xlu0 %v4084
    %v4086 = vpop.xlane.xlu0 %4085
    %v4087 = vsel %vm264, %v4083, 0.0
    %4088 = vadd.xlane.f32.xlu0 %v4087
    %v4089 = vpop.xlane.xlu0 %4088
    %v4090 = vmul.f32 %v4086, %v1292
    %v4091 = vmul.f32 %v4089, %v1292
    %v4092 = vadd.f32 %v4090, 1e-05
    %v4093 = vadd.f32 %v4091, 1e-05
    %v4094 = vrsqrt.pop %v4092
    %v4095 = vrsqrt.pop %v4093
    %v4096 = vmul.f32 %v4080, %v4094
    %v4097 = vmul.f32 %v4081, %v4095
    %s4098 = scalar_lea.vmem %s12, 5
    %v4099 = vld [vmem:[%s4098] sm:$0x1]
    %v4101 = vlaneseq
    %v4102 = vshrl.u32 %v4101, 7
    %v4103 = vsub.s32 0, %v4102
    %v4104 = vrot.slane %v4099, %v4103
    %v4106 = vmul.f32 %v4096, %v4104
    %v4107 = vmul.f32 %v4097, %v4104
    %s4108 = scalar_lea.vmem %s13, 5
    %v4109 = vld [vmem:[%s4108] sm:$0x1]
    %v4111 = vlaneseq
    %v4112 = vshrl.u32 %v4111, 7
    %v4113 = vsub.s32 0, %v4112
    %v4114 = vrot.slane %v4109, %v4113
    %v4116 = vadd.f32 %v4106, %v4114
    %v4117 = vadd.f32 %v4107, %v4114
    %s4118 = scalar_lea.vmem %s4, 96
    %v4119 = vld [vmem:[%s4118] sm:$0xff]
    %v4120 = vld [vmem:[%s4118 + $0x8] sm:$0xff]
    %v4121 = vld [vmem:[%s4118 + $0x10] sm:$0xff]
    %v4122 = vld [vmem:[%s4118 + $0x18] sm:$0xff]
    %s4123 = scalar_lea.vmem [#allocation2], 3
    %v4124 = vld [vmem:[%s4123] sm:$0x1]
    %v4126 = vlaneseq
    %v4127 = vshrl.u32 %v4126, 7
    %v4128 = vsub.s32 0, %v4127
    %v4129 = vrot.slane %v4124, %v4128
    %v4132 = vsel %vm264, %v4116, 0
    %v4135 = vsel %vm264, %v4117, 0
    %4137 = vmatprep.subr.mxu0 0.0
    %4138 = vmatpush1.msra.mxu0 0.0
    %4139 = vmatprep.subr.mxu0 0.0
    %4140 = vmatpush1.msra.mxu0 0.0
    %4141 = vmatprep.subr.mxu0 0.0
    %4142 = vmatpush1.msra.mxu0 0.0
    %4143 = vmatprep.subr.mxu0 0.0
    %4144 = vmatpush1.msra.mxu0 0.0
    %4145 = vmatprep.subr.mxu0 0.0
    %4146 = vmatpush1.msra.mxu0 0.0
    %4147 = vmatprep.subr.mxu0 0.0
    %4148 = vmatpush1.msra.mxu0 0.0
    %4149 = vmatprep.subr.mxu0 0.0
    %4150 = vmatpush1.msra.mxu0 0.0
    %4151 = vmatprep.subr.mxu0 0.0
    %4152 = vmatpush1.msra.mxu0 0.0
    %4153 = vmatprep.subr.mxu0 0.0
    %4154 = vmatpush1.msra.mxu0 0.0
    %4155 = vmatprep.subr.mxu0 0.0
    %4156 = vmatpush1.msra.mxu0 0.0
    %4157 = vmatprep.subr.mxu0 0.0
    %4158 = vmatpush1.msra.mxu0 0.0
    %4159 = vmatprep.subr.mxu0 0.0
    %4160 = vmatpush1.msra.mxu0 0.0
    %4161 = vmatprep.subr.mxu0 0.0
    %4162 = vmatpush1.msra.mxu0 %v4122
    %4163 = vmatprep.subr.mxu0 0.0
    %4164 = vmatpush1.msra.mxu0 %v4121
    %4165 = vmatprep.subr.mxu0 0.0
    %4166 = vmatpush1.msra.mxu0 %v4120
    %4167 = vmatprep.subr.mxu0 0.0
    %4168 = vmatpush1.msra.mxu0 %v4119
    %4169 = vmatprep.subr.mxu0 0.0
    %4170 = vmatpush2.msra.mxu0 0.0
    %4171 = vmatprep.subr.mxu0 0.0
    %4172 = vmatpush2.msra.mxu0 0.0
    %4173 = vmatprep.subr.mxu0 0.0
    %4174 = vmatpush2.msra.mxu0 0.0
    %4175 = vmatprep.subr.mxu0 0.0
    %4176 = vmatpush2.msra.mxu0 0.0
    %4177 = vmatprep.subr.mxu0 0.0
    %4178 = vmatpush2.msra.mxu0 0.0
    %4179 = vmatprep.subr.mxu0 0.0
    %4180 = vmatpush2.msra.mxu0 0.0
    %4181 = vmatprep.subr.mxu0 0.0
    %4182 = vmatpush2.msra.mxu0 0.0
    %4183 = vmatprep.subr.mxu0 0.0
    %4184 = vmatpush2.msra.mxu0 0.0
    %4185 = vmatprep.subr.mxu0 0.0
    %4186 = vmatpush2.msra.mxu0 0.0
    %4187 = vmatprep.subr.mxu0 0.0
    %4188 = vmatpush2.msra.mxu0 0.0
    %4189 = vmatprep.subr.mxu0 0.0
    %4190 = vmatpush2.msra.mxu0 0.0
    %4191 = vmatprep.subr.mxu0 0.0
    %4192 = vmatpush2.msra.mxu0 0.0
    %4193 = vmatprep.subr.mxu0 0.0
    %4194 = vmatpush2.msra.mxu0 0.0
    %4195 = vmatprep.subr.mxu0 0.0
    %4196 = vmatpush2.msra.mxu0 0.0
    %4197 = vmatprep.subr.mxu0 0.0
    %4198 = vmatpush2.msra.mxu0 0.0
    %4199 = vmatprep.subr.mxu0 0.0
    %4200 = vmatpush2.msra.mxu0 0.0
    %4201 = vmatprep.mubr.f32.mxu0 0.0
    %4202 = vmatmul.mubr.f32.gmra.mxu0 %v4132
    %v4203 = vpop.f32.mrf.mxu0
    %v4204 = vadd.f32 %v4129, %v4203
    %v4205 = vpop.f32.mrf.mxu0
    %4206 = vmatprep.mubr.f32.mxu0 0.0
    %4207 = vmatmul.mubr.f32.gmra.mxu0 %v4135
    %v4208 = vpop.f32.mrf.mxu0
    %v4209 = vadd.f32 %v4129, %v4208
    %v4210 = vpop.f32.mrf.mxu0
    %4211 = vdwg.mxu0
    %4216 = vrot.lane.b32.xlu0 %v4119, 96
    %v4217 = vpop.permute.xlu0 %4216
    %4218 = vrot.lane.b32.xlu0 %v4120, 96
    %v4219 = vpop.permute.xlu0 %4218
    %4220 = vrot.lane.b32.xlu0 %v4121, 96
    %v4221 = vpop.permute.xlu0 %4220
    %4222 = vrot.lane.b32.xlu0 %v4122, 96
    %v4223 = vpop.permute.xlu0 %4222
    %4228 = vrot.lane.b32.xlu0 %v4129, 96
    %v4229 = vpop.permute.xlu0 %4228
    %v4232 = vsel %vm264, %v2936, 0
    %v4235 = vsel %vm264, %v2937, 0
    %4237 = vmatprep.subr.mxu0 0.0
    %4238 = vmatpush1.msra.mxu0 0.0
    %4239 = vmatprep.subr.mxu0 0.0
    %4240 = vmatpush1.msra.mxu0 0.0
    %4241 = vmatprep.subr.mxu0 0.0
    %4242 = vmatpush1.msra.mxu0 0.0
    %4243 = vmatprep.subr.mxu0 0.0
    %4244 = vmatpush1.msra.mxu0 0.0
    %4245 = vmatprep.subr.mxu0 0.0
    %4246 = vmatpush1.msra.mxu0 0.0
    %4247 = vmatprep.subr.mxu0 0.0
    %4248 = vmatpush1.msra.mxu0 0.0
    %4249 = vmatprep.subr.mxu0 0.0
    %4250 = vmatpush1.msra.mxu0 0.0
    %4251 = vmatprep.subr.mxu0 0.0
    %4252 = vmatpush1.msra.mxu0 0.0
    %4253 = vmatprep.subr.mxu0 0.0
    %4254 = vmatpush1.msra.mxu0 0.0
    %4255 = vmatprep.subr.mxu0 0.0
    %4256 = vmatpush1.msra.mxu0 0.0
    %4257 = vmatprep.subr.mxu0 0.0
    %4258 = vmatpush1.msra.mxu0 0.0
    %4259 = vmatprep.subr.mxu0 0.0
    %4260 = vmatpush1.msra.mxu0 0.0
    %4261 = vmatprep.subr.mxu0 0.0
    %4262 = vmatpush1.msra.mxu0 %v4223
    %4263 = vmatprep.subr.mxu0 0.0
    %4264 = vmatpush1.msra.mxu0 %v4221
    %4265 = vmatprep.subr.mxu0 0.0
    %4266 = vmatpush1.msra.mxu0 %v4219
    %4267 = vmatprep.subr.mxu0 0.0
    %4268 = vmatpush1.msra.mxu0 %v4217
    %4269 = vmatprep.subr.mxu0 0.0
    %4270 = vmatpush2.msra.mxu0 0.0
    %4271 = vmatprep.subr.mxu0 0.0
    %4272 = vmatpush2.msra.mxu0 0.0
    %4273 = vmatprep.subr.mxu0 0.0
    %4274 = vmatpush2.msra.mxu0 0.0
    %4275 = vmatprep.subr.mxu0 0.0
    %4276 = vmatpush2.msra.mxu0 0.0
    %4277 = vmatprep.subr.mxu0 0.0
    %4278 = vmatpush2.msra.mxu0 0.0
    %4279 = vmatprep.subr.mxu0 0.0
    %4280 = vmatpush2.msra.mxu0 0.0
    %4281 = vmatprep.subr.mxu0 0.0
    %4282 = vmatpush2.msra.mxu0 0.0
    %4283 = vmatprep.subr.mxu0 0.0
    %4284 = vmatpush2.msra.mxu0 0.0
    %4285 = vmatprep.subr.mxu0 0.0
    %4286 = vmatpush2.msra.mxu0 0.0
    %4287 = vmatprep.subr.mxu0 0.0
    %4288 = vmatpush2.msra.mxu0 0.0
    %4289 = vmatprep.subr.mxu0 0.0
    %4290 = vmatpush2.msra.mxu0 0.0
    %4291 = vmatprep.subr.mxu0 0.0
    %4292 = vmatpush2.msra.mxu0 0.0
    %4293 = vmatprep.subr.mxu0 0.0
    %4294 = vmatpush2.msra.mxu0 0.0
    %4295 = vmatprep.subr.mxu0 0.0
    %4296 = vmatpush2.msra.mxu0 0.0
    %4297 = vmatprep.subr.mxu0 0.0
    %4298 = vmatpush2.msra.mxu0 0.0
    %4299 = vmatprep.subr.mxu0 0.0
    %4300 = vmatpush2.msra.mxu0 0.0
    %4301 = vmatprep.mubr.f32.mxu0 0.0
    %4302 = vmatmul.mubr.f32.gmra.mxu0 %v4232
    %v4303 = vpop.f32.mrf.mxu0
    %v4304 = vadd.f32 %v4229, %v4303
    %v4305 = vpop.f32.mrf.mxu0
    %4306 = vmatprep.mubr.f32.mxu0 0.0
    %4307 = vmatmul.mubr.f32.gmra.mxu0 %v4235
    %v4308 = vpop.f32.mrf.mxu0
    %v4309 = vadd.f32 %v4229, %v4308
    %v4310 = vpop.f32.mrf.mxu0
    %4311 = vdwg.mxu0
    %v4313 = vsel %vm116, %v4204, 0
    %v4316 = vsel %vm116, %v4209, 0
    %v4319 = vsel %vm116, %v4304, 0
    %v4322 = vsel %vm116, %v4309, 0
    %4324 = vmatprep.subr.mxu0 0.0
    %4325 = vmatpush1.xpose.msra.mxu0 0.0
    %4326 = vmatprep.subr.mxu0 0.0
    %4327 = vmatpush1.xpose.msra.mxu0 0.0
    %4328 = vmatprep.subr.mxu0 0.0
    %4329 = vmatpush1.xpose.msra.mxu0 0.0
    %4330 = vmatprep.subr.mxu0 0.0
    %4331 = vmatpush1.xpose.msra.mxu0 0.0
    %4332 = vmatprep.subr.mxu0 0.0
    %4333 = vmatpush1.xpose.msra.mxu0 0.0
    %4334 = vmatprep.subr.mxu0 0.0
    %4335 = vmatpush1.xpose.msra.mxu0 0.0
    %4336 = vmatprep.subr.mxu0 0.0
    %4337 = vmatpush1.xpose.msra.mxu0 0.0
    %4338 = vmatprep.subr.mxu0 0.0
    %4339 = vmatpush1.xpose.msra.mxu0 0.0
    %4340 = vmatprep.subr.mxu0 0.0
    %4341 = vmatpush1.xpose.msra.mxu0 0.0
    %4342 = vmatprep.subr.mxu0 0.0
    %4343 = vmatpush1.xpose.msra.mxu0 0.0
    %4344 = vmatprep.subr.mxu0 0.0
    %4345 = vmatpush1.xpose.msra.mxu0 0.0
    %4346 = vmatprep.subr.mxu0 0.0
    %4347 = vmatpush1.xpose.msra.mxu0 0.0
    %4348 = vmatprep.subr.mxu0 0.0
    %4349 = vmatpush1.xpose.msra.mxu0 0.0
    %4350 = vmatprep.subr.mxu0 0.0
    %4351 = vmatpush1.xpose.msra.mxu0 0.0
    %4352 = vmatprep.subr.mxu0 0.0
    %4353 = vmatpush1.xpose.msra.mxu0 %v4322
    %4354 = vmatprep.subr.mxu0 0.0
    %4355 = vmatpush1.xpose.msra.mxu0 %v4319
    %4356 = vmatprep.subr.mxu0 0.0
    %4357 = vmatpush2.xpose.msra.mxu0 0.0
    %4358 = vmatprep.subr.mxu0 0.0
    %4359 = vmatpush2.xpose.msra.mxu0 0.0
    %4360 = vmatprep.subr.mxu0 0.0
    %4361 = vmatpush2.xpose.msra.mxu0 0.0
    %4362 = vmatprep.subr.mxu0 0.0
    %4363 = vmatpush2.xpose.msra.mxu0 0.0
    %4364 = vmatprep.subr.mxu0 0.0
    %4365 = vmatpush2.xpose.msra.mxu0 0.0
    %4366 = vmatprep.subr.mxu0 0.0
    %4367 = vmatpush2.xpose.msra.mxu0 0.0
    %4368 = vmatprep.subr.mxu0 0.0
    %4369 = vmatpush2.xpose.msra.mxu0 0.0
    %4370 = vmatprep.subr.mxu0 0.0
    %4371 = vmatpush2.xpose.msra.mxu0 0.0
    %4372 = vmatprep.subr.mxu0 0.0
    %4373 = vmatpush2.xpose.msra.mxu0 0.0
    %4374 = vmatprep.subr.mxu0 0.0
    %4375 = vmatpush2.xpose.msra.mxu0 0.0
    %4376 = vmatprep.subr.mxu0 0.0
    %4377 = vmatpush2.xpose.msra.mxu0 0.0
    %4378 = vmatprep.subr.mxu0 0.0
    %4379 = vmatpush2.xpose.msra.mxu0 0.0
    %4380 = vmatprep.subr.mxu0 0.0
    %4381 = vmatpush2.xpose.msra.mxu0 0.0
    %4382 = vmatprep.subr.mxu0 0.0
    %4383 = vmatpush2.xpose.msra.mxu0 0.0
    %4384 = vmatprep.subr.mxu0 0.0
    %4385 = vmatpush2.xpose.msra.mxu0 0.0
    %4386 = vmatprep.subr.mxu0 0.0
    %4387 = vmatpush2.xpose.msra.mxu0 0.0
    %4388 = vmatprep.mubr.f32.mxu0 0.0
    %4389 = vmatmul.mubr.f32.gmra.mxu0 %v4313
    %v4390 = vpop.f32.mrf.mxu0
    %v4391 = vadd.f32 0.0, %v4390
    %v4392 = vpop.f32.mrf.mxu0
    %4393 = vmatprep.mubr.f32.mxu0 0.0
    %4394 = vmatmul.mubr.f32.gmra.mxu0 %v4316
    %v4395 = vpop.f32.mrf.mxu0
    %v4396 = vadd.f32 0.0, %v4395
    %v4397 = vpop.f32.mrf.mxu0
    %4398 = vdwg.mxu0
    %4399 = vrot.lane.b32.xlu0 %v4204, 120
    %v4400 = vpop.permute.xlu0 %4399
    %4401 = vrot.lane.b32.xlu0 %v4209, 120
    %v4402 = vpop.permute.xlu0 %4401
    %4403 = vrot.lane.b32.xlu0 %v4304, 120
    %v4404 = vpop.permute.xlu0 %4403
    %4405 = vrot.lane.b32.xlu0 %v4309, 120
    %v4406 = vpop.permute.xlu0 %4405
    %v4407 = vsel %vm116, %v4400, 0
    %v4409 = vsel %vm116, %v4402, 0
    %v4411 = vsel %vm116, %v4404, 0
    %v4413 = vsel %vm116, %v4406, 0
    %4415 = vmatprep.subr.mxu0 0.0
    %4416 = vmatpush1.xpose.msra.mxu0 0.0
    %4417 = vmatprep.subr.mxu0 0.0
    %4418 = vmatpush1.xpose.msra.mxu0 0.0
    %4419 = vmatprep.subr.mxu0 0.0
    %4420 = vmatpush1.xpose.msra.mxu0 0.0
    %4421 = vmatprep.subr.mxu0 0.0
    %4422 = vmatpush1.xpose.msra.mxu0 0.0
    %4423 = vmatprep.subr.mxu0 0.0
    %4424 = vmatpush1.xpose.msra.mxu0 0.0
    %4425 = vmatprep.subr.mxu0 0.0
    %4426 = vmatpush1.xpose.msra.mxu0 0.0
    %4427 = vmatprep.subr.mxu0 0.0
    %4428 = vmatpush1.xpose.msra.mxu0 0.0
    %4429 = vmatprep.subr.mxu0 0.0
    %4430 = vmatpush1.xpose.msra.mxu0 0.0
    %4431 = vmatprep.subr.mxu0 0.0
    %4432 = vmatpush1.xpose.msra.mxu0 0.0
    %4433 = vmatprep.subr.mxu0 0.0
    %4434 = vmatpush1.xpose.msra.mxu0 0.0
    %4435 = vmatprep.subr.mxu0 0.0
    %4436 = vmatpush1.xpose.msra.mxu0 0.0
    %4437 = vmatprep.subr.mxu0 0.0
    %4438 = vmatpush1.xpose.msra.mxu0 0.0
    %4439 = vmatprep.subr.mxu0 0.0
    %4440 = vmatpush1.xpose.msra.mxu0 0.0
    %4441 = vmatprep.subr.mxu0 0.0
    %4442 = vmatpush1.xpose.msra.mxu0 0.0
    %4443 = vmatprep.subr.mxu0 0.0
    %4444 = vmatpush1.xpose.msra.mxu0 %v4413
    %4445 = vmatprep.subr.mxu0 0.0
    %4446 = vmatpush1.xpose.msra.mxu0 %v4411
    %4447 = vmatprep.subr.mxu0 0.0
    %4448 = vmatpush2.xpose.msra.mxu0 0.0
    %4449 = vmatprep.subr.mxu0 0.0
    %4450 = vmatpush2.xpose.msra.mxu0 0.0
    %4451 = vmatprep.subr.mxu0 0.0
    %4452 = vmatpush2.xpose.msra.mxu0 0.0
    %4453 = vmatprep.subr.mxu0 0.0
    %4454 = vmatpush2.xpose.msra.mxu0 0.0
    %4455 = vmatprep.subr.mxu0 0.0
    %4456 = vmatpush2.xpose.msra.mxu0 0.0
    %4457 = vmatprep.subr.mxu0 0.0
    %4458 = vmatpush2.xpose.msra.mxu0 0.0
    %4459 = vmatprep.subr.mxu0 0.0
    %4460 = vmatpush2.xpose.msra.mxu0 0.0
    %4461 = vmatprep.subr.mxu0 0.0
    %4462 = vmatpush2.xpose.msra.mxu0 0.0
    %4463 = vmatprep.subr.mxu0 0.0
    %4464 = vmatpush2.xpose.msra.mxu0 0.0
    %4465 = vmatprep.subr.mxu0 0.0
    %4466 = vmatpush2.xpose.msra.mxu0 0.0
    %4467 = vmatprep.subr.mxu0 0.0
    %4468 = vmatpush2.xpose.msra.mxu0 0.0
    %4469 = vmatprep.subr.mxu0 0.0
    %4470 = vmatpush2.xpose.msra.mxu0 0.0
    %4471 = vmatprep.subr.mxu0 0.0
    %4472 = vmatpush2.xpose.msra.mxu0 0.0
    %4473 = vmatprep.subr.mxu0 0.0
    %4474 = vmatpush2.xpose.msra.mxu0 0.0
    %4475 = vmatprep.subr.mxu0 0.0
    %4476 = vmatpush2.xpose.msra.mxu0 0.0
    %4477 = vmatprep.subr.mxu0 0.0
    %4478 = vmatpush2.xpose.msra.mxu0 0.0
    %4479 = vmatprep.mubr.f32.mxu0 0.0
    %4480 = vmatmul.mubr.f32.gmra.mxu0 %v4407
    %v4481 = vpop.f32.mrf.mxu0
    %v4482 = vadd.f32 0.0, %v4481
    %v4483 = vpop.f32.mrf.mxu0
    %4484 = vmatprep.mubr.f32.mxu0 0.0
    %4485 = vmatmul.mubr.f32.gmra.mxu0 %v4409
    %v4486 = vpop.f32.mrf.mxu0
    %v4487 = vadd.f32 0.0, %v4486
    %v4488 = vpop.f32.mrf.mxu0
    %4489 = vdwg.mxu0
    %4490 = vrot.lane.b32.xlu0 %v4204, 112
    %v4491 = vpop.permute.xlu0 %4490
    %4492 = vrot.lane.b32.xlu0 %v4209, 112
    %v4493 = vpop.permute.xlu0 %4492
    %4494 = vrot.lane.b32.xlu0 %v4304, 112
    %v4495 = vpop.permute.xlu0 %4494
    %4496 = vrot.lane.b32.xlu0 %v4309, 112
    %v4497 = vpop.permute.xlu0 %4496
    %v4498 = vsel %vm116, %v4491, 0
    %v4500 = vsel %vm116, %v4493, 0
    %v4502 = vsel %vm116, %v4495, 0
    %v4504 = vsel %vm116, %v4497, 0
    %4506 = vmatprep.subr.mxu0 0.0
    %4507 = vmatpush1.xpose.msra.mxu0 0.0
    %4508 = vmatprep.subr.mxu0 0.0
    %4509 = vmatpush1.xpose.msra.mxu0 0.0
    %4510 = vmatprep.subr.mxu0 0.0
    %4511 = vmatpush1.xpose.msra.mxu0 0.0
    %4512 = vmatprep.subr.mxu0 0.0
    %4513 = vmatpush1.xpose.msra.mxu0 0.0
    %4514 = vmatprep.subr.mxu0 0.0
    %4515 = vmatpush1.xpose.msra.mxu0 0.0
    %4516 = vmatprep.subr.mxu0 0.0
    %4517 = vmatpush1.xpose.msra.mxu0 0.0
    %4518 = vmatprep.subr.mxu0 0.0
    %4519 = vmatpush1.xpose.msra.mxu0 0.0
    %4520 = vmatprep.subr.mxu0 0.0
    %4521 = vmatpush1.xpose.msra.mxu0 0.0
    %4522 = vmatprep.subr.mxu0 0.0
    %4523 = vmatpush1.xpose.msra.mxu0 0.0
    %4524 = vmatprep.subr.mxu0 0.0
    %4525 = vmatpush1.xpose.msra.mxu0 0.0
    %4526 = vmatprep.subr.mxu0 0.0
    %4527 = vmatpush1.xpose.msra.mxu0 0.0
    %4528 = vmatprep.subr.mxu0 0.0
    %4529 = vmatpush1.xpose.msra.mxu0 0.0
    %4530 = vmatprep.subr.mxu0 0.0
    %4531 = vmatpush1.xpose.msra.mxu0 0.0
    %4532 = vmatprep.subr.mxu0 0.0
    %4533 = vmatpush1.xpose.msra.mxu0 0.0
    %4534 = vmatprep.subr.mxu0 0.0
    %4535 = vmatpush1.xpose.msra.mxu0 %v4504
    %4536 = vmatprep.subr.mxu0 0.0
    %4537 = vmatpush1.xpose.msra.mxu0 %v4502
    %4538 = vmatprep.subr.mxu0 0.0
    %4539 = vmatpush2.xpose.msra.mxu0 0.0
    %4540 = vmatprep.subr.mxu0 0.0
    %4541 = vmatpush2.xpose.msra.mxu0 0.0
    %4542 = vmatprep.subr.mxu0 0.0
    %4543 = vmatpush2.xpose.msra.mxu0 0.0
    %4544 = vmatprep.subr.mxu0 0.0
    %4545 = vmatpush2.xpose.msra.mxu0 0.0
    %4546 = vmatprep.subr.mxu0 0.0
    %4547 = vmatpush2.xpose.msra.mxu0 0.0
    %4548 = vmatprep.subr.mxu0 0.0
    %4549 = vmatpush2.xpose.msra.mxu0 0.0
    %4550 = vmatprep.subr.mxu0 0.0
    %4551 = vmatpush2.xpose.msra.mxu0 0.0
    %4552 = vmatprep.subr.mxu0 0.0
    %4553 = vmatpush2.xpose.msra.mxu0 0.0
    %4554 = vmatprep.subr.mxu0 0.0
    %4555 = vmatpush2.xpose.msra.mxu0 0.0
    %4556 = vmatprep.subr.mxu0 0.0
    %4557 = vmatpush2.xpose.msra.mxu0 0.0
    %4558 = vmatprep.subr.mxu0 0.0
    %4559 = vmatpush2.xpose.msra.mxu0 0.0
    %4560 = vmatprep.subr.mxu0 0.0
    %4561 = vmatpush2.xpose.msra.mxu0 0.0
    %4562 = vmatprep.subr.mxu0 0.0
    %4563 = vmatpush2.xpose.msra.mxu0 0.0
    %4564 = vmatprep.subr.mxu0 0.0
    %4565 = vmatpush2.xpose.msra.mxu0 0.0
    %4566 = vmatprep.subr.mxu0 0.0
    %4567 = vmatpush2.xpose.msra.mxu0 0.0
    %4568 = vmatprep.subr.mxu0 0.0
    %4569 = vmatpush2.xpose.msra.mxu0 0.0
    %4570 = vmatprep.mubr.f32.mxu0 0.0
    %4571 = vmatmul.mubr.f32.gmra.mxu0 %v4498
    %v4572 = vpop.f32.mrf.mxu0
    %v4573 = vadd.f32 0.0, %v4572
    %v4574 = vpop.f32.mrf.mxu0
    %4575 = vmatprep.mubr.f32.mxu0 0.0
    %4576 = vmatmul.mubr.f32.gmra.mxu0 %v4500
    %v4577 = vpop.f32.mrf.mxu0
    %v4578 = vadd.f32 0.0, %v4577
    %v4579 = vpop.f32.mrf.mxu0
    %4580 = vdwg.mxu0
    %4581 = vrot.lane.b32.xlu0 %v4204, 104
    %v4582 = vpop.permute.xlu0 %4581
    %4583 = vrot.lane.b32.xlu0 %v4209, 104
    %v4584 = vpop.permute.xlu0 %4583
    %4585 = vrot.lane.b32.xlu0 %v4304, 104
    %v4586 = vpop.permute.xlu0 %4585
    %4587 = vrot.lane.b32.xlu0 %v4309, 104
    %v4588 = vpop.permute.xlu0 %4587
    %v4589 = vsel %vm116, %v4582, 0
    %v4591 = vsel %vm116, %v4584, 0
    %v4593 = vsel %vm116, %v4586, 0
    %v4595 = vsel %vm116, %v4588, 0
    %4597 = vmatprep.subr.mxu0 0.0
    %4598 = vmatpush1.xpose.msra.mxu0 0.0
    %4599 = vmatprep.subr.mxu0 0.0
    %4600 = vmatpush1.xpose.msra.mxu0 0.0
    %4601 = vmatprep.subr.mxu0 0.0
    %4602 = vmatpush1.xpose.msra.mxu0 0.0
    %4603 = vmatprep.subr.mxu0 0.0
    %4604 = vmatpush1.xpose.msra.mxu0 0.0
    %4605 = vmatprep.subr.mxu0 0.0
    %4606 = vmatpush1.xpose.msra.mxu0 0.0
    %4607 = vmatprep.subr.mxu0 0.0
    %4608 = vmatpush1.xpose.msra.mxu0 0.0
    %4609 = vmatprep.subr.mxu0 0.0
    %4610 = vmatpush1.xpose.msra.mxu0 0.0
    %4611 = vmatprep.subr.mxu0 0.0
    %4612 = vmatpush1.xpose.msra.mxu0 0.0
    %4613 = vmatprep.subr.mxu0 0.0
    %4614 = vmatpush1.xpose.msra.mxu0 0.0
    %4615 = vmatprep.subr.mxu0 0.0
    %4616 = vmatpush1.xpose.msra.mxu0 0.0
    %4617 = vmatprep.subr.mxu0 0.0
    %4618 = vmatpush1.xpose.msra.mxu0 0.0
    %4619 = vmatprep.subr.mxu0 0.0
    %4620 = vmatpush1.xpose.msra.mxu0 0.0
    %4621 = vmatprep.subr.mxu0 0.0
    %4622 = vmatpush1.xpose.msra.mxu0 0.0
    %4623 = vmatprep.subr.mxu0 0.0
    %4624 = vmatpush1.xpose.msra.mxu0 0.0
    %4625 = vmatprep.subr.mxu0 0.0
    %4626 = vmatpush1.xpose.msra.mxu0 %v4595
    %4627 = vmatprep.subr.mxu0 0.0
    %4628 = vmatpush1.xpose.msra.mxu0 %v4593
    %4629 = vmatprep.subr.mxu0 0.0
    %4630 = vmatpush2.xpose.msra.mxu0 0.0
    %4631 = vmatprep.subr.mxu0 0.0
    %4632 = vmatpush2.xpose.msra.mxu0 0.0
    %4633 = vmatprep.subr.mxu0 0.0
    %4634 = vmatpush2.xpose.msra.mxu0 0.0
    %4635 = vmatprep.subr.mxu0 0.0
    %4636 = vmatpush2.xpose.msra.mxu0 0.0
    %4637 = vmatprep.subr.mxu0 0.0
    %4638 = vmatpush2.xpose.msra.mxu0 0.0
    %4639 = vmatprep.subr.mxu0 0.0
    %4640 = vmatpush2.xpose.msra.mxu0 0.0
    %4641 = vmatprep.subr.mxu0 0.0
    %4642 = vmatpush2.xpose.msra.mxu0 0.0
    %4643 = vmatprep.subr.mxu0 0.0
    %4644 = vmatpush2.xpose.msra.mxu0 0.0
    %4645 = vmatprep.subr.mxu0 0.0
    %4646 = vmatpush2.xpose.msra.mxu0 0.0
    %4647 = vmatprep.subr.mxu0 0.0
    %4648 = vmatpush2.xpose.msra.mxu0 0.0
    %4649 = vmatprep.subr.mxu0 0.0
    %4650 = vmatpush2.xpose.msra.mxu0 0.0
    %4651 = vmatprep.subr.mxu0 0.0
    %4652 = vmatpush2.xpose.msra.mxu0 0.0
    %4653 = vmatprep.subr.mxu0 0.0
    %4654 = vmatpush2.xpose.msra.mxu0 0.0
    %4655 = vmatprep.subr.mxu0 0.0
    %4656 = vmatpush2.xpose.msra.mxu0 0.0
    %4657 = vmatprep.subr.mxu0 0.0
    %4658 = vmatpush2.xpose.msra.mxu0 0.0
    %4659 = vmatprep.subr.mxu0 0.0
    %4660 = vmatpush2.xpose.msra.mxu0 0.0
    %4661 = vmatprep.mubr.f32.mxu0 0.0
    %4662 = vmatmul.mubr.f32.gmra.mxu0 %v4589
    %v4663 = vpop.f32.mrf.mxu0
    %v4664 = vadd.f32 0.0, %v4663
    %v4665 = vpop.f32.mrf.mxu0
    %4666 = vmatprep.mubr.f32.mxu0 0.0
    %4667 = vmatmul.mubr.f32.gmra.mxu0 %v4591
    %v4668 = vpop.f32.mrf.mxu0
    %v4669 = vadd.f32 0.0, %v4668
    %v4670 = vpop.f32.mrf.mxu0
    %4671 = vdwg.mxu0
    %v4672 = vmul.f32 %v4391, 0.35355338
    %v4673 = vmul.f32 %v4396, 0.35355338
    %v4674 = vmul.f32 %v4482, 0.35355338
    %v4675 = vmul.f32 %v4487, 0.35355338
    %v4676 = vmul.f32 %v4573, 0.35355338
    %v4677 = vmul.f32 %v4578, 0.35355338
    %v4678 = vmul.f32 %v4664, 0.35355338
    %v4679 = vmul.f32 %v4669, 0.35355338
    %v4680 = vadd.f32 %v4672, %v134
    %v4681 = vadd.f32 %v4673, %v135
    %v4682 = vadd.f32 %v4674, %v134
    %v4683 = vadd.f32 %v4675, %v135
    %v4684 = vadd.f32 %v4676, %v134
    %v4685 = vadd.f32 %v4677, %v135
    %v4686 = vadd.f32 %v4678, %v134
    %v4687 = vadd.f32 %v4679, %v135
    %v4688 = vsel %vm724, %v4680, -inf
    %4689 = vmax.xlane.f32.xlu0 %v4688
    %v4690 = vpop.xlane.xlu0 %4689
    %v4691 = vsel %vm724, %v4681, -inf
    %4692 = vmax.xlane.f32.xlu0 %v4691
    %v4693 = vpop.xlane.xlu0 %4692
    %v4694 = vsel %vm724, %v4682, -inf
    %4695 = vmax.xlane.f32.xlu0 %v4694
    %v4696 = vpop.xlane.xlu0 %4695
    %v4697 = vsel %vm724, %v4683, -inf
    %4698 = vmax.xlane.f32.xlu0 %v4697
    %v4699 = vpop.xlane.xlu0 %4698
    %v4700 = vsel %vm724, %v4684, -inf
    %4701 = vmax.xlane.f32.xlu0 %v4700
    %v4702 = vpop.xlane.xlu0 %4701
    %v4703 = vsel %vm724, %v4685, -inf
    %4704 = vmax.xlane.f32.xlu0 %v4703
    %v4705 = vpop.xlane.xlu0 %4704
    %v4706 = vsel %vm724, %v4686, -inf
    %4707 = vmax.xlane.f32.xlu0 %v4706
    %v4708 = vpop.xlane.xlu0 %4707
    %v4709 = vsel %vm724, %v4687, -inf
    %4710 = vmax.xlane.f32.xlu0 %v4709
    %v4711 = vpop.xlane.xlu0 %4710
    %v4712 = vsub.f32 %v4680, %v4690
    %v4713 = vsub.f32 %v4681, %v4693
    %v4714 = vsub.f32 %v4682, %v4696
    %v4715 = vsub.f32 %v4683, %v4699
    %v4716 = vsub.f32 %v4684, %v4702
    %v4717 = vsub.f32 %v4685, %v4705
    %v4718 = vsub.f32 %v4686, %v4708
    %v4719 = vsub.f32 %v4687, %v4711
    %v4720 = vmul.f32 %v4712, 1.442695
    %v4721 = vpow.pop %v4720
    %v4722 = vmul.f32 %v4713, 1.442695
    %v4723 = vpow.pop %v4722
    %v4724 = vmul.f32 %v4714, 1.442695
    %v4725 = vpow.pop %v4724
    %v4726 = vmul.f32 %v4715, 1.442695
    %v4727 = vpow.pop %v4726
    %v4728 = vmul.f32 %v4716, 1.442695
    %v4729 = vpow.pop %v4728
    %v4730 = vmul.f32 %v4717, 1.442695
    %v4731 = vpow.pop %v4730
    %v4732 = vmul.f32 %v4718, 1.442695
    %v4733 = vpow.pop %v4732
    %v4734 = vmul.f32 %v4719, 1.442695
    %v4735 = vpow.pop %v4734
    %v4736 = vsel %vm724, %v4721, 0.0
    %4737 = vadd.xlane.f32.xlu0 %v4736
    %v4738 = vpop.xlane.xlu0 %4737
    %v4739 = vsel %vm724, %v4723, 0.0
    %4740 = vadd.xlane.f32.xlu0 %v4739
    %v4741 = vpop.xlane.xlu0 %4740
    %v4742 = vsel %vm724, %v4725, 0.0
    %4743 = vadd.xlane.f32.xlu0 %v4742
    %v4744 = vpop.xlane.xlu0 %4743
    %v4745 = vsel %vm724, %v4727, 0.0
    %4746 = vadd.xlane.f32.xlu0 %v4745
    %v4747 = vpop.xlane.xlu0 %4746
    %v4748 = vsel %vm724, %v4729, 0.0
    %4749 = vadd.xlane.f32.xlu0 %v4748
    %v4750 = vpop.xlane.xlu0 %4749
    %v4751 = vsel %vm724, %v4731, 0.0
    %4752 = vadd.xlane.f32.xlu0 %v4751
    %v4753 = vpop.xlane.xlu0 %4752
    %v4754 = vsel %vm724, %v4733, 0.0
    %4755 = vadd.xlane.f32.xlu0 %v4754
    %v4756 = vpop.xlane.xlu0 %4755
    %v4757 = vsel %vm724, %v4735, 0.0
    %4758 = vadd.xlane.f32.xlu0 %v4757
    %v4759 = vpop.xlane.xlu0 %4758
    %v4760 = vrcp.pop %v4738
    %v4761 = vmul.f32 %v4721, %v4760
    %v4762 = vrcp.pop %v4741
    %v4763 = vmul.f32 %v4723, %v4762
    %v4764 = vrcp.pop %v4744
    %v4765 = vmul.f32 %v4725, %v4764
    %v4766 = vrcp.pop %v4747
    %v4767 = vmul.f32 %v4727, %v4766
    %v4768 = vrcp.pop %v4750
    %v4769 = vmul.f32 %v4729, %v4768
    %v4770 = vrcp.pop %v4753
    %v4771 = vmul.f32 %v4731, %v4770
    %v4772 = vrcp.pop %v4756
    %v4773 = vmul.f32 %v4733, %v4772
    %v4774 = vrcp.pop %v4759
    %v4775 = vmul.f32 %v4735, %v4774
    %4776 = vrot.lane.b32.xlu0 %v4304, 96
    %v4777 = vpop.permute.xlu0 %4776
    %4778 = vrot.lane.b32.xlu0 %v4309, 96
    %v4779 = vpop.permute.xlu0 %4778
    %v4783 = vsel %vm724, %v4761, 0
    %v4786 = vsel %vm724, %v4763, 0
    %4788 = vmatprep.subr.mxu0 0.0
    %4789 = vmatpush1.msra.mxu0 0.0
    %4790 = vmatprep.subr.mxu0 0.0
    %4791 = vmatpush1.msra.mxu0 0.0
    %4792 = vmatprep.subr.mxu0 0.0
    %4793 = vmatpush1.msra.mxu0 0.0
    %4794 = vmatprep.subr.mxu0 0.0
    %4795 = vmatpush1.msra.mxu0 0.0
    %4796 = vmatprep.subr.mxu0 0.0
    %4797 = vmatpush1.msra.mxu0 0.0
    %4798 = vmatprep.subr.mxu0 0.0
    %4799 = vmatpush1.msra.mxu0 0.0
    %4800 = vmatprep.subr.mxu0 0.0
    %4801 = vmatpush1.msra.mxu0 0.0
    %4802 = vmatprep.subr.mxu0 0.0
    %4803 = vmatpush1.msra.mxu0 0.0
    %4804 = vmatprep.subr.mxu0 0.0
    %4805 = vmatpush1.msra.mxu0 0.0
    %4806 = vmatprep.subr.mxu0 0.0
    %4807 = vmatpush1.msra.mxu0 0.0
    %4808 = vmatprep.subr.mxu0 0.0
    %4809 = vmatpush1.msra.mxu0 0.0
    %4810 = vmatprep.subr.mxu0 0.0
    %4811 = vmatpush1.msra.mxu0 0.0
    %4812 = vmatprep.subr.mxu0 0.0
    %4813 = vmatpush1.msra.mxu0 0.0
    %4814 = vmatprep.subr.mxu0 0.0
    %4815 = vmatpush1.msra.mxu0 0.0
    %4816 = vmatprep.subr.mxu0 0.0
    %4817 = vmatpush1.msra.mxu0 %v4779
    %4818 = vmatprep.subr.mxu0 0.0
    %4819 = vmatpush1.msra.mxu0 %v4777
    %4820 = vmatprep.subr.mxu0 0.0
    %4821 = vmatpush2.msra.mxu0 0.0
    %4822 = vmatprep.subr.mxu0 0.0
    %4823 = vmatpush2.msra.mxu0 0.0
    %4824 = vmatprep.subr.mxu0 0.0
    %4825 = vmatpush2.msra.mxu0 0.0
    %4826 = vmatprep.subr.mxu0 0.0
    %4827 = vmatpush2.msra.mxu0 0.0
    %4828 = vmatprep.subr.mxu0 0.0
    %4829 = vmatpush2.msra.mxu0 0.0
    %4830 = vmatprep.subr.mxu0 0.0
    %4831 = vmatpush2.msra.mxu0 0.0
    %4832 = vmatprep.subr.mxu0 0.0
    %4833 = vmatpush2.msra.mxu0 0.0
    %4834 = vmatprep.subr.mxu0 0.0
    %4835 = vmatpush2.msra.mxu0 0.0
    %4836 = vmatprep.subr.mxu0 0.0
    %4837 = vmatpush2.msra.mxu0 0.0
    %4838 = vmatprep.subr.mxu0 0.0
    %4839 = vmatpush2.msra.mxu0 0.0
    %4840 = vmatprep.subr.mxu0 0.0
    %4841 = vmatpush2.msra.mxu0 0.0
    %4842 = vmatprep.subr.mxu0 0.0
    %4843 = vmatpush2.msra.mxu0 0.0
    %4844 = vmatprep.subr.mxu0 0.0
    %4845 = vmatpush2.msra.mxu0 0.0
    %4846 = vmatprep.subr.mxu0 0.0
    %4847 = vmatpush2.msra.mxu0 0.0
    %4848 = vmatprep.subr.mxu0 0.0
    %4849 = vmatpush2.msra.mxu0 0.0
    %4850 = vmatprep.subr.mxu0 0.0
    %4851 = vmatpush2.msra.mxu0 0.0
    %4852 = vmatprep.mubr.f32.mxu0 0.0
    %4853 = vmatmul.mubr.f32.gmra.mxu0 %v4783
    %v4854 = vpop.f32.mrf.mxu0
    %v4855 = vadd.f32 0.0, %v4854
    %v4856 = vpop.f32.mrf.mxu0
    %4857 = vmatprep.mubr.f32.mxu0 0.0
    %4858 = vmatmul.mubr.f32.gmra.mxu0 %v4786
    %v4859 = vpop.f32.mrf.mxu0
    %v4860 = vadd.f32 0.0, %v4859
    %v4861 = vpop.f32.mrf.mxu0
    %4862 = vdwg.mxu0
    %4863 = vrot.lane.b32.xlu0 %v4304, 88
    %v4864 = vpop.permute.xlu0 %4863
    %4865 = vrot.lane.b32.xlu0 %v4309, 88
    %v4866 = vpop.permute.xlu0 %4865
    %v4870 = vsel %vm724, %v4765, 0
    %v4873 = vsel %vm724, %v4767, 0
    %4875 = vmatprep.subr.mxu0 0.0
    %4876 = vmatpush1.msra.mxu0 0.0
    %4877 = vmatprep.subr.mxu0 0.0
    %4878 = vmatpush1.msra.mxu0 0.0
    %4879 = vmatprep.subr.mxu0 0.0
    %4880 = vmatpush1.msra.mxu0 0.0
    %4881 = vmatprep.subr.mxu0 0.0
    %4882 = vmatpush1.msra.mxu0 0.0
    %4883 = vmatprep.subr.mxu0 0.0
    %4884 = vmatpush1.msra.mxu0 0.0
    %4885 = vmatprep.subr.mxu0 0.0
    %4886 = vmatpush1.msra.mxu0 0.0
    %4887 = vmatprep.subr.mxu0 0.0
    %4888 = vmatpush1.msra.mxu0 0.0
    %4889 = vmatprep.subr.mxu0 0.0
    %4890 = vmatpush1.msra.mxu0 0.0
    %4891 = vmatprep.subr.mxu0 0.0
    %4892 = vmatpush1.msra.mxu0 0.0
    %4893 = vmatprep.subr.mxu0 0.0
    %4894 = vmatpush1.msra.mxu0 0.0
    %4895 = vmatprep.subr.mxu0 0.0
    %4896 = vmatpush1.msra.mxu0 0.0
    %4897 = vmatprep.subr.mxu0 0.0
    %4898 = vmatpush1.msra.mxu0 0.0
    %4899 = vmatprep.subr.mxu0 0.0
    %4900 = vmatpush1.msra.mxu0 0.0
    %4901 = vmatprep.subr.mxu0 0.0
    %4902 = vmatpush1.msra.mxu0 0.0
    %4903 = vmatprep.subr.mxu0 0.0
    %4904 = vmatpush1.msra.mxu0 %v4866
    %4905 = vmatprep.subr.mxu0 0.0
    %4906 = vmatpush1.msra.mxu0 %v4864
    %4907 = vmatprep.subr.mxu0 0.0
    %4908 = vmatpush2.msra.mxu0 0.0
    %4909 = vmatprep.subr.mxu0 0.0
    %4910 = vmatpush2.msra.mxu0 0.0
    %4911 = vmatprep.subr.mxu0 0.0
    %4912 = vmatpush2.msra.mxu0 0.0
    %4913 = vmatprep.subr.mxu0 0.0
    %4914 = vmatpush2.msra.mxu0 0.0
    %4915 = vmatprep.subr.mxu0 0.0
    %4916 = vmatpush2.msra.mxu0 0.0
    %4917 = vmatprep.subr.mxu0 0.0
    %4918 = vmatpush2.msra.mxu0 0.0
    %4919 = vmatprep.subr.mxu0 0.0
    %4920 = vmatpush2.msra.mxu0 0.0
    %4921 = vmatprep.subr.mxu0 0.0
    %4922 = vmatpush2.msra.mxu0 0.0
    %4923 = vmatprep.subr.mxu0 0.0
    %4924 = vmatpush2.msra.mxu0 0.0
    %4925 = vmatprep.subr.mxu0 0.0
    %4926 = vmatpush2.msra.mxu0 0.0
    %4927 = vmatprep.subr.mxu0 0.0
    %4928 = vmatpush2.msra.mxu0 0.0
    %4929 = vmatprep.subr.mxu0 0.0
    %4930 = vmatpush2.msra.mxu0 0.0
    %4931 = vmatprep.subr.mxu0 0.0
    %4932 = vmatpush2.msra.mxu0 0.0
    %4933 = vmatprep.subr.mxu0 0.0
    %4934 = vmatpush2.msra.mxu0 0.0
    %4935 = vmatprep.subr.mxu0 0.0
    %4936 = vmatpush2.msra.mxu0 0.0
    %4937 = vmatprep.subr.mxu0 0.0
    %4938 = vmatpush2.msra.mxu0 0.0
    %4939 = vmatprep.mubr.f32.mxu0 0.0
    %4940 = vmatmul.mubr.f32.gmra.mxu0 %v4870
    %v4941 = vpop.f32.mrf.mxu0
    %v4942 = vadd.f32 0.0, %v4941
    %v4943 = vpop.f32.mrf.mxu0
    %4944 = vmatprep.mubr.f32.mxu0 0.0
    %4945 = vmatmul.mubr.f32.gmra.mxu0 %v4873
    %v4946 = vpop.f32.mrf.mxu0
    %v4947 = vadd.f32 0.0, %v4946
    %v4948 = vpop.f32.mrf.mxu0
    %4949 = vdwg.mxu0
    %4950 = vrot.lane.b32.xlu0 %v4304, 80
    %v4951 = vpop.permute.xlu0 %4950
    %4952 = vrot.lane.b32.xlu0 %v4309, 80
    %v4953 = vpop.permute.xlu0 %4952
    %v4957 = vsel %vm724, %v4769, 0
    %v4960 = vsel %vm724, %v4771, 0
    %4962 = vmatprep.subr.mxu0 0.0
    %4963 = vmatpush1.msra.mxu0 0.0
    %4964 = vmatprep.subr.mxu0 0.0
    %4965 = vmatpush1.msra.mxu0 0.0
    %4966 = vmatprep.subr.mxu0 0.0
    %4967 = vmatpush1.msra.mxu0 0.0
    %4968 = vmatprep.subr.mxu0 0.0
    %4969 = vmatpush1.msra.mxu0 0.0
    %4970 = vmatprep.subr.mxu0 0.0
    %4971 = vmatpush1.msra.mxu0 0.0
    %4972 = vmatprep.subr.mxu0 0.0
    %4973 = vmatpush1.msra.mxu0 0.0
    %4974 = vmatprep.subr.mxu0 0.0
    %4975 = vmatpush1.msra.mxu0 0.0
    %4976 = vmatprep.subr.mxu0 0.0
    %4977 = vmatpush1.msra.mxu0 0.0
    %4978 = vmatprep.subr.mxu0 0.0
    %4979 = vmatpush1.msra.mxu0 0.0
    %4980 = vmatprep.subr.mxu0 0.0
    %4981 = vmatpush1.msra.mxu0 0.0
    %4982 = vmatprep.subr.mxu0 0.0
    %4983 = vmatpush1.msra.mxu0 0.0
    %4984 = vmatprep.subr.mxu0 0.0
    %4985 = vmatpush1.msra.mxu0 0.0
    %4986 = vmatprep.subr.mxu0 0.0
    %4987 = vmatpush1.msra.mxu0 0.0
    %4988 = vmatprep.subr.mxu0 0.0
    %4989 = vmatpush1.msra.mxu0 0.0
    %4990 = vmatprep.subr.mxu0 0.0
    %4991 = vmatpush1.msra.mxu0 %v4953
    %4992 = vmatprep.subr.mxu0 0.0
    %4993 = vmatpush1.msra.mxu0 %v4951
    %4994 = vmatprep.subr.mxu0 0.0
    %4995 = vmatpush2.msra.mxu0 0.0
    %4996 = vmatprep.subr.mxu0 0.0
    %4997 = vmatpush2.msra.mxu0 0.0
    %4998 = vmatprep.subr.mxu0 0.0
    %4999 = vmatpush2.msra.mxu0 0.0
    %5000 = vmatprep.subr.mxu0 0.0
    %5001 = vmatpush2.msra.mxu0 0.0
    %5002 = vmatprep.subr.mxu0 0.0
    %5003 = vmatpush2.msra.mxu0 0.0
    %5004 = vmatprep.subr.mxu0 0.0
    %5005 = vmatpush2.msra.mxu0 0.0
    %5006 = vmatprep.subr.mxu0 0.0
    %5007 = vmatpush2.msra.mxu0 0.0
    %5008 = vmatprep.subr.mxu0 0.0
    %5009 = vmatpush2.msra.mxu0 0.0
    %5010 = vmatprep.subr.mxu0 0.0
    %5011 = vmatpush2.msra.mxu0 0.0
    %5012 = vmatprep.subr.mxu0 0.0
    %5013 = vmatpush2.msra.mxu0 0.0
    %5014 = vmatprep.subr.mxu0 0.0
    %5015 = vmatpush2.msra.mxu0 0.0
    %5016 = vmatprep.subr.mxu0 0.0
    %5017 = vmatpush2.msra.mxu0 0.0
    %5018 = vmatprep.subr.mxu0 0.0
    %5019 = vmatpush2.msra.mxu0 0.0
    %5020 = vmatprep.subr.mxu0 0.0
    %5021 = vmatpush2.msra.mxu0 0.0
    %5022 = vmatprep.subr.mxu0 0.0
    %5023 = vmatpush2.msra.mxu0 0.0
    %5024 = vmatprep.subr.mxu0 0.0
    %5025 = vmatpush2.msra.mxu0 0.0
    %5026 = vmatprep.mubr.f32.mxu0 0.0
    %5027 = vmatmul.mubr.f32.gmra.mxu0 %v4957
    %v5028 = vpop.f32.mrf.mxu0
    %v5029 = vadd.f32 0.0, %v5028
    %v5030 = vpop.f32.mrf.mxu0
    %5031 = vmatprep.mubr.f32.mxu0 0.0
    %5032 = vmatmul.mubr.f32.gmra.mxu0 %v4960
    %v5033 = vpop.f32.mrf.mxu0
    %v5034 = vadd.f32 0.0, %v5033
    %v5035 = vpop.f32.mrf.mxu0
    %5036 = vdwg.mxu0
    %5037 = vrot.lane.b32.xlu0 %v4304, 72
    %v5038 = vpop.permute.xlu0 %5037
    %5039 = vrot.lane.b32.xlu0 %v4309, 72
    %v5040 = vpop.permute.xlu0 %5039
    %v5044 = vsel %vm724, %v4773, 0
    %v5047 = vsel %vm724, %v4775, 0
    %5049 = vmatprep.subr.mxu0 0.0
    %5050 = vmatpush1.msra.mxu0 0.0
    %5051 = vmatprep.subr.mxu0 0.0
    %5052 = vmatpush1.msra.mxu0 0.0
    %5053 = vmatprep.subr.mxu0 0.0
    %5054 = vmatpush1.msra.mxu0 0.0
    %5055 = vmatprep.subr.mxu0 0.0
    %5056 = vmatpush1.msra.mxu0 0.0
    %5057 = vmatprep.subr.mxu0 0.0
    %5058 = vmatpush1.msra.mxu0 0.0
    %5059 = vmatprep.subr.mxu0 0.0
    %5060 = vmatpush1.msra.mxu0 0.0
    %5061 = vmatprep.subr.mxu0 0.0
    %5062 = vmatpush1.msra.mxu0 0.0
    %5063 = vmatprep.subr.mxu0 0.0
    %5064 = vmatpush1.msra.mxu0 0.0
    %5065 = vmatprep.subr.mxu0 0.0
    %5066 = vmatpush1.msra.mxu0 0.0
    %5067 = vmatprep.subr.mxu0 0.0
    %5068 = vmatpush1.msra.mxu0 0.0
    %5069 = vmatprep.subr.mxu0 0.0
    %5070 = vmatpush1.msra.mxu0 0.0
    %5071 = vmatprep.subr.mxu0 0.0
    %5072 = vmatpush1.msra.mxu0 0.0
    %5073 = vmatprep.subr.mxu0 0.0
    %5074 = vmatpush1.msra.mxu0 0.0
    %5075 = vmatprep.subr.mxu0 0.0
    %5076 = vmatpush1.msra.mxu0 0.0
    %5077 = vmatprep.subr.mxu0 0.0
    %5078 = vmatpush1.msra.mxu0 %v5040
    %5079 = vmatprep.subr.mxu0 0.0
    %5080 = vmatpush1.msra.mxu0 %v5038
    %5081 = vmatprep.subr.mxu0 0.0
    %5082 = vmatpush2.msra.mxu0 0.0
    %5083 = vmatprep.subr.mxu0 0.0
    %5084 = vmatpush2.msra.mxu0 0.0
    %5085 = vmatprep.subr.mxu0 0.0
    %5086 = vmatpush2.msra.mxu0 0.0
    %5087 = vmatprep.subr.mxu0 0.0
    %5088 = vmatpush2.msra.mxu0 0.0
    %5089 = vmatprep.subr.mxu0 0.0
    %5090 = vmatpush2.msra.mxu0 0.0
    %5091 = vmatprep.subr.mxu0 0.0
    %5092 = vmatpush2.msra.mxu0 0.0
    %5093 = vmatprep.subr.mxu0 0.0
    %5094 = vmatpush2.msra.mxu0 0.0
    %5095 = vmatprep.subr.mxu0 0.0
    %5096 = vmatpush2.msra.mxu0 0.0
    %5097 = vmatprep.subr.mxu0 0.0
    %5098 = vmatpush2.msra.mxu0 0.0
    %5099 = vmatprep.subr.mxu0 0.0
    %5100 = vmatpush2.msra.mxu0 0.0
    %5101 = vmatprep.subr.mxu0 0.0
    %5102 = vmatpush2.msra.mxu0 0.0
    %5103 = vmatprep.subr.mxu0 0.0
    %5104 = vmatpush2.msra.mxu0 0.0
    %5105 = vmatprep.subr.mxu0 0.0
    %5106 = vmatpush2.msra.mxu0 0.0
    %5107 = vmatprep.subr.mxu0 0.0
    %5108 = vmatpush2.msra.mxu0 0.0
    %5109 = vmatprep.subr.mxu0 0.0
    %5110 = vmatpush2.msra.mxu0 0.0
    %5111 = vmatprep.subr.mxu0 0.0
    %5112 = vmatpush2.msra.mxu0 0.0
    %5113 = vmatprep.mubr.f32.mxu0 0.0
    %5114 = vmatmul.mubr.f32.gmra.mxu0 %v5044
    %v5115 = vpop.f32.mrf.mxu0
    %v5116 = vadd.f32 0.0, %v5115
    %v5117 = vpop.f32.mrf.mxu0
    %5118 = vmatprep.mubr.f32.mxu0 0.0
    %5119 = vmatmul.mubr.f32.gmra.mxu0 %v5047
    %v5120 = vpop.f32.mrf.mxu0
    %v5121 = vadd.f32 0.0, %v5120
    %v5122 = vpop.f32.mrf.mxu0
    %5123 = vdwg.mxu0
    %5126 = vrot.lane.b32.xlu0 %v4942, 8
    %v5127 = vpop.permute.xlu0 %5126
    %5128 = vrot.lane.b32.xlu0 %v4947, 8
    %v5129 = vpop.permute.xlu0 %5128
    %5134 = vrot.lane.b32.xlu0 %v5029, 16
    %v5135 = vpop.permute.xlu0 %5134
    %5136 = vrot.lane.b32.xlu0 %v5034, 16
    %v5137 = vpop.permute.xlu0 %5136
    %5142 = vrot.lane.b32.xlu0 %v5116, 24
    %v5143 = vpop.permute.xlu0 %5142
    %5144 = vrot.lane.b32.xlu0 %v5121, 24
    %v5145 = vpop.permute.xlu0 %5144
    %v5148 = vsel %vm116, %v4855, %v5127
    %v5149 = vsel %vm116, %v4860, %v5129
    %v5150 = vsel %vm724, %v5148, %v5135
    %v5151 = vsel %vm724, %v5149, %v5137
    %v5152 = vsel %vm1189, %v5150, %v5143
    %v5153 = vsel %vm1189, %v5151, %v5145
    %s5154 = scalar_lea.vmem %s6, 96
    %v5155 = vld [vmem:[%s5154] sm:$0xff]
    %v5156 = vld [vmem:[%s5154 + $0x8] sm:$0xff]
    %v5157 = vld [vmem:[%s5154 + $0x10] sm:$0xff]
    %v5158 = vld [vmem:[%s5154 + $0x18] sm:$0xff]
    %s5159 = scalar_lea.vmem [#allocation5], 3
    %v5160 = vld [vmem:[%s5159] sm:$0x1]
    %v5162 = vlaneseq
    %v5163 = vshrl.u32 %v5162, 7
    %v5164 = vsub.s32 0, %v5163
    %v5165 = vrot.slane %v5160, %v5164
    %v5168 = vsel %vm264, %v5152, 0
    %v5171 = vsel %vm264, %v5153, 0
    %5173 = vmatprep.subr.mxu0 0.0
    %5174 = vmatpush1.msra.mxu0 0.0
    %5175 = vmatprep.subr.mxu0 0.0
    %5176 = vmatpush1.msra.mxu0 0.0
    %5177 = vmatprep.subr.mxu0 0.0
    %5178 = vmatpush1.msra.mxu0 0.0
    %5179 = vmatprep.subr.mxu0 0.0
    %5180 = vmatpush1.msra.mxu0 0.0
    %5181 = vmatprep.subr.mxu0 0.0
    %5182 = vmatpush1.msra.mxu0 0.0
    %5183 = vmatprep.subr.mxu0 0.0
    %5184 = vmatpush1.msra.mxu0 0.0
    %5185 = vmatprep.subr.mxu0 0.0
    %5186 = vmatpush1.msra.mxu0 0.0
    %5187 = vmatprep.subr.mxu0 0.0
    %5188 = vmatpush1.msra.mxu0 0.0
    %5189 = vmatprep.subr.mxu0 0.0
    %5190 = vmatpush1.msra.mxu0 0.0
    %5191 = vmatprep.subr.mxu0 0.0
    %5192 = vmatpush1.msra.mxu0 0.0
    %5193 = vmatprep.subr.mxu0 0.0
    %5194 = vmatpush1.msra.mxu0 0.0
    %5195 = vmatprep.subr.mxu0 0.0
    %5196 = vmatpush1.msra.mxu0 0.0
    %5197 = vmatprep.subr.mxu0 0.0
    %5198 = vmatpush1.msra.mxu0 %v5158
    %5199 = vmatprep.subr.mxu0 0.0
    %5200 = vmatpush1.msra.mxu0 %v5157
    %5201 = vmatprep.subr.mxu0 0.0
    %5202 = vmatpush1.msra.mxu0 %v5156
    %5203 = vmatprep.subr.mxu0 0.0
    %5204 = vmatpush1.msra.mxu0 %v5155
    %5205 = vmatprep.subr.mxu0 0.0
    %5206 = vmatpush2.msra.mxu0 0.0
    %5207 = vmatprep.subr.mxu0 0.0
    %5208 = vmatpush2.msra.mxu0 0.0
    %5209 = vmatprep.subr.mxu0 0.0
    %5210 = vmatpush2.msra.mxu0 0.0
    %5211 = vmatprep.subr.mxu0 0.0
    %5212 = vmatpush2.msra.mxu0 0.0
    %5213 = vmatprep.subr.mxu0 0.0
    %5214 = vmatpush2.msra.mxu0 0.0
    %5215 = vmatprep.subr.mxu0 0.0
    %5216 = vmatpush2.msra.mxu0 0.0
    %5217 = vmatprep.subr.mxu0 0.0
    %5218 = vmatpush2.msra.mxu0 0.0
    %5219 = vmatprep.subr.mxu0 0.0
    %5220 = vmatpush2.msra.mxu0 0.0
    %5221 = vmatprep.subr.mxu0 0.0
    %5222 = vmatpush2.msra.mxu0 0.0
    %5223 = vmatprep.subr.mxu0 0.0
    %5224 = vmatpush2.msra.mxu0 0.0
    %5225 = vmatprep.subr.mxu0 0.0
    %5226 = vmatpush2.msra.mxu0 0.0
    %5227 = vmatprep.subr.mxu0 0.0
    %5228 = vmatpush2.msra.mxu0 0.0
    %5229 = vmatprep.subr.mxu0 0.0
    %5230 = vmatpush2.msra.mxu0 0.0
    %5231 = vmatprep.subr.mxu0 0.0
    %5232 = vmatpush2.msra.mxu0 0.0
    %5233 = vmatprep.subr.mxu0 0.0
    %5234 = vmatpush2.msra.mxu0 0.0
    %5235 = vmatprep.subr.mxu0 0.0
    %5236 = vmatpush2.msra.mxu0 0.0
    %5237 = vmatprep.mubr.f32.mxu0 0.0
    %5238 = vmatmul.mubr.f32.gmra.mxu0 %v5168
    %v5239 = vpop.f32.mrf.mxu0
    %v5240 = vadd.f32 %v5165, %v5239
    %v5241 = vpop.f32.mrf.mxu0
    %5242 = vmatprep.mubr.f32.mxu0 0.0
    %5243 = vmatmul.mubr.f32.gmra.mxu0 %v5171
    %v5244 = vpop.f32.mrf.mxu0
    %v5245 = vadd.f32 %v5165, %v5244
    %v5246 = vpop.f32.mrf.mxu0
    %5247 = vdwg.mxu0
    %v5248 = vadd.f32 %v4116, %v5240
    %v5249 = vadd.f32 %v4117, %v5245
    %v5250 = vsel %vm264, %v5248, 0.0
    %5251 = vadd.xlane.f32.xlu0 %v5250
    %v5252 = vpop.xlane.xlu0 %5251
    %v5253 = vsel %vm264, %v5249, 0.0
    %5254 = vadd.xlane.f32.xlu0 %v5253
    %v5255 = vpop.xlane.xlu0 %5254
    %v5256 = vmul.f32 %v5252, %v1292
    %v5257 = vmul.f32 %v5255, %v1292
    %v5258 = vsub.f32 %v5248, %v5256
    %v5259 = vsub.f32 %v5249, %v5257
    %v5260 = vmul.f32 %v5258, %v5258
    %v5261 = vmul.f32 %v5259, %v5259
    %v5262 = vsel %vm264, %v5260, 0.0
    %5263 = vadd.xlane.f32.xlu0 %v5262
    %v5264 = vpop.xlane.xlu0 %5263
    %v5265 = vsel %vm264, %v5261, 0.0
    %5266 = vadd.xlane.f32.xlu0 %v5265
    %v5267 = vpop.xlane.xlu0 %5266
    %v5268 = vmul.f32 %v5264, %v1292
    %v5269 = vmul.f32 %v5267, %v1292
    %v5270 = vadd.f32 %v5268, 1e-05
    %v5271 = vadd.f32 %v5269, 1e-05
    %v5272 = vrsqrt.pop %v5270
    %v5273 = vrsqrt.pop %v5271
    %v5274 = vmul.f32 %v5258, %v5272
    %v5275 = vmul.f32 %v5259, %v5273
    %s5276 = scalar_lea.vmem %s12, 6
    %v5277 = vld [vmem:[%s5276] sm:$0x1]
    %v5279 = vlaneseq
    %v5280 = vshrl.u32 %v5279, 7
    %v5281 = vsub.s32 0, %v5280
    %v5282 = vrot.slane %v5277, %v5281
    %v5284 = vmul.f32 %v5274, %v5282
    %v5285 = vmul.f32 %v5275, %v5282
    %s5286 = scalar_lea.vmem %s13, 6
    %v5287 = vld [vmem:[%s5286] sm:$0x1]
    %v5289 = vlaneseq
    %v5290 = vshrl.u32 %v5289, 7
    %v5291 = vsub.s32 0, %v5290
    %v5292 = vrot.slane %v5287, %v5291
    %v5294 = vadd.f32 %v5284, %v5292
    %v5295 = vadd.f32 %v5285, %v5292
    %s5296 = scalar_lea.vmem %s8, 64
    %v5297 = vld [vmem:[%s5296] sm:$0xff]
    %v5298 = vld [vmem:[%s5296 + $0x8] sm:$0xff]
    %v5299 = vld [vmem:[%s5296 + $0x10] sm:$0xff]
    %v5300 = vld [vmem:[%s5296 + $0x18] sm:$0xff]
    %s5301 = scalar_lea.vmem [#allocation7], 2
    %v5302 = vld [vmem:[%s5301] sm:$0x1]
    %v5304 = vlaneseq
    %v5305 = vshrl.u32 %v5304, 7
    %v5306 = vsub.s32 0, %v5305
    %v5307 = vrot.slane %v5302, %v5306
    %v5310 = vsel %vm264, %v5294, 0
    %v5313 = vsel %vm264, %v5295, 0
    %5315 = vmatprep.subr.mxu0 0.0
    %5316 = vmatpush1.msra.mxu0 0.0
    %5317 = vmatprep.subr.mxu0 0.0
    %5318 = vmatpush1.msra.mxu0 0.0
    %5319 = vmatprep.subr.mxu0 0.0
    %5320 = vmatpush1.msra.mxu0 0.0
    %5321 = vmatprep.subr.mxu0 0.0
    %5322 = vmatpush1.msra.mxu0 0.0
    %5323 = vmatprep.subr.mxu0 0.0
    %5324 = vmatpush1.msra.mxu0 0.0
    %5325 = vmatprep.subr.mxu0 0.0
    %5326 = vmatpush1.msra.mxu0 0.0
    %5327 = vmatprep.subr.mxu0 0.0
    %5328 = vmatpush1.msra.mxu0 0.0
    %5329 = vmatprep.subr.mxu0 0.0
    %5330 = vmatpush1.msra.mxu0 0.0
    %5331 = vmatprep.subr.mxu0 0.0
    %5332 = vmatpush1.msra.mxu0 0.0
    %5333 = vmatprep.subr.mxu0 0.0
    %5334 = vmatpush1.msra.mxu0 0.0
    %5335 = vmatprep.subr.mxu0 0.0
    %5336 = vmatpush1.msra.mxu0 0.0
    %5337 = vmatprep.subr.mxu0 0.0
    %5338 = vmatpush1.msra.mxu0 0.0
    %5339 = vmatprep.subr.mxu0 0.0
    %5340 = vmatpush1.msra.mxu0 %v5300
    %5341 = vmatprep.subr.mxu0 0.0
    %5342 = vmatpush1.msra.mxu0 %v5299
    %5343 = vmatprep.subr.mxu0 0.0
    %5344 = vmatpush1.msra.mxu0 %v5298
    %5345 = vmatprep.subr.mxu0 0.0
    %5346 = vmatpush1.msra.mxu0 %v5297
    %5347 = vmatprep.subr.mxu0 0.0
    %5348 = vmatpush2.msra.mxu0 0.0
    %5349 = vmatprep.subr.mxu0 0.0
    %5350 = vmatpush2.msra.mxu0 0.0
    %5351 = vmatprep.subr.mxu0 0.0
    %5352 = vmatpush2.msra.mxu0 0.0
    %5353 = vmatprep.subr.mxu0 0.0
    %5354 = vmatpush2.msra.mxu0 0.0
    %5355 = vmatprep.subr.mxu0 0.0
    %5356 = vmatpush2.msra.mxu0 0.0
    %5357 = vmatprep.subr.mxu0 0.0
    %5358 = vmatpush2.msra.mxu0 0.0
    %5359 = vmatprep.subr.mxu0 0.0
    %5360 = vmatpush2.msra.mxu0 0.0
    %5361 = vmatprep.subr.mxu0 0.0
    %5362 = vmatpush2.msra.mxu0 0.0
    %5363 = vmatprep.subr.mxu0 0.0
    %5364 = vmatpush2.msra.mxu0 0.0
    %5365 = vmatprep.subr.mxu0 0.0
    %5366 = vmatpush2.msra.mxu0 0.0
    %5367 = vmatprep.subr.mxu0 0.0
    %5368 = vmatpush2.msra.mxu0 0.0
    %5369 = vmatprep.subr.mxu0 0.0
    %5370 = vmatpush2.msra.mxu0 0.0
    %5371 = vmatprep.subr.mxu0 0.0
    %5372 = vmatpush2.msra.mxu0 0.0
    %5373 = vmatprep.subr.mxu0 0.0
    %5374 = vmatpush2.msra.mxu0 0.0
    %5375 = vmatprep.subr.mxu0 0.0
    %5376 = vmatpush2.msra.mxu0 0.0
    %5377 = vmatprep.subr.mxu0 0.0
    %5378 = vmatpush2.msra.mxu0 0.0
    %5379 = vmatprep.mubr.f32.mxu0 0.0
    %5380 = vmatmul.mubr.f32.gmra.mxu0 %v5310
    %v5381 = vpop.f32.mrf.mxu0
    %v5382 = vadd.f32 %v5307, %v5381
    %v5383 = vpop.f32.mrf.mxu0
    %5384 = vmatprep.mubr.f32.mxu0 0.0
    %5385 = vmatmul.mubr.f32.gmra.mxu0 %v5313
    %v5386 = vpop.f32.mrf.mxu0
    %v5387 = vadd.f32 %v5307, %v5386
    %v5388 = vpop.f32.mrf.mxu0
    %5389 = vdwg.mxu0
    %v5390 = vmax.f32 %v5382, 0.0
    %v5391 = vmax.f32 %v5387, 0.0
    %s5392 = scalar_lea.vmem %s10, 128
    %v5393 = vld [vmem:[%s5392] sm:$0xff]
    %v5394 = vld [vmem:[%s5392 + $0x8] sm:$0xff]
    %v5395 = vld [vmem:[%s5392 + $0x10] sm:$0xff]
    %v5396 = vld [vmem:[%s5392 + $0x18] sm:$0xff]
    %v5397 = vld [vmem:[%s5392 + $0x20] sm:$0xff]
    %v5398 = vld [vmem:[%s5392 + $0x28] sm:$0xff]
    %v5399 = vld [vmem:[%s5392 + $0x30] sm:$0xff]
    %v5400 = vld [vmem:[%s5392 + $0x38] sm:$0xff]
    %s5401 = scalar_lea.vmem [#allocation8], 2
    %v5402 = vld [vmem:[%s5401] sm:$0x1]
    %v5404 = vlaneseq
    %v5405 = vshrl.u32 %v5404, 7
    %v5406 = vsub.s32 0, %v5405
    %v5407 = vrot.slane %v5402, %v5406
    %v5410 = vsel %vm1440, %v5390, 0
    %v5413 = vsel %vm1440, %v5391, 0
    %5415 = vmatprep.subr.mxu0 0.0
    %5416 = vmatpush1.msra.mxu0 0.0
    %5417 = vmatprep.subr.mxu0 0.0
    %5418 = vmatpush1.msra.mxu0 0.0
    %5419 = vmatprep.subr.mxu0 0.0
    %5420 = vmatpush1.msra.mxu0 0.0
    %5421 = vmatprep.subr.mxu0 0.0
    %5422 = vmatpush1.msra.mxu0 0.0
    %5423 = vmatprep.subr.mxu0 0.0
    %5424 = vmatpush1.msra.mxu0 0.0
    %5425 = vmatprep.subr.mxu0 0.0
    %5426 = vmatpush1.msra.mxu0 0.0
    %5427 = vmatprep.subr.mxu0 0.0
    %5428 = vmatpush1.msra.mxu0 0.0
    %5429 = vmatprep.subr.mxu0 0.0
    %5430 = vmatpush1.msra.mxu0 0.0
    %5431 = vmatprep.subr.mxu0 0.0
    %5432 = vmatpush1.msra.mxu0 %v5400
    %5433 = vmatprep.subr.mxu0 0.0
    %5434 = vmatpush1.msra.mxu0 %v5399
    %5435 = vmatprep.subr.mxu0 0.0
    %5436 = vmatpush1.msra.mxu0 %v5398
    %5437 = vmatprep.subr.mxu0 0.0
    %5438 = vmatpush1.msra.mxu0 %v5397
    %5439 = vmatprep.subr.mxu0 0.0
    %5440 = vmatpush1.msra.mxu0 %v5396
    %5441 = vmatprep.subr.mxu0 0.0
    %5442 = vmatpush1.msra.mxu0 %v5395
    %5443 = vmatprep.subr.mxu0 0.0
    %5444 = vmatpush1.msra.mxu0 %v5394
    %5445 = vmatprep.subr.mxu0 0.0
    %5446 = vmatpush1.msra.mxu0 %v5393
    %5447 = vmatprep.subr.mxu0 0.0
    %5448 = vmatpush2.msra.mxu0 0.0
    %5449 = vmatprep.subr.mxu0 0.0
    %5450 = vmatpush2.msra.mxu0 0.0
    %5451 = vmatprep.subr.mxu0 0.0
    %5452 = vmatpush2.msra.mxu0 0.0
    %5453 = vmatprep.subr.mxu0 0.0
    %5454 = vmatpush2.msra.mxu0 0.0
    %5455 = vmatprep.subr.mxu0 0.0
    %5456 = vmatpush2.msra.mxu0 0.0
    %5457 = vmatprep.subr.mxu0 0.0
    %5458 = vmatpush2.msra.mxu0 0.0
    %5459 = vmatprep.subr.mxu0 0.0
    %5460 = vmatpush2.msra.mxu0 0.0
    %5461 = vmatprep.subr.mxu0 0.0
    %5462 = vmatpush2.msra.mxu0 0.0
    %5463 = vmatprep.subr.mxu0 0.0
    %5464 = vmatpush2.msra.mxu0 0.0
    %5465 = vmatprep.subr.mxu0 0.0
    %5466 = vmatpush2.msra.mxu0 0.0
    %5467 = vmatprep.subr.mxu0 0.0
    %5468 = vmatpush2.msra.mxu0 0.0
    %5469 = vmatprep.subr.mxu0 0.0
    %5470 = vmatpush2.msra.mxu0 0.0
    %5471 = vmatprep.subr.mxu0 0.0
    %5472 = vmatpush2.msra.mxu0 0.0
    %5473 = vmatprep.subr.mxu0 0.0
    %5474 = vmatpush2.msra.mxu0 0.0
    %5475 = vmatprep.subr.mxu0 0.0
    %5476 = vmatpush2.msra.mxu0 0.0
    %5477 = vmatprep.subr.mxu0 0.0
    %5478 = vmatpush2.msra.mxu0 0.0
    %5479 = vmatprep.mubr.f32.mxu0 0.0
    %5480 = vmatmul.mubr.f32.gmra.mxu0 %v5410
    %v5481 = vpop.f32.mrf.mxu0
    %v5482 = vadd.f32 %v5407, %v5481
    %v5483 = vpop.f32.mrf.mxu0
    %5484 = vmatprep.mubr.f32.mxu0 0.0
    %5485 = vmatmul.mubr.f32.gmra.mxu0 %v5413
    %v5486 = vpop.f32.mrf.mxu0
    %v5487 = vadd.f32 %v5407, %v5486
    %v5488 = vpop.f32.mrf.mxu0
    %5489 = vdwg.mxu0
    %v5490 = vadd.f32 %v5294, %v5482
    %v5491 = vadd.f32 %v5295, %v5487
    %v5492 = vsel %vm264, %v5490, 0.0
    %5493 = vadd.xlane.f32.xlu0 %v5492
    %v5494 = vpop.xlane.xlu0 %5493
    %v5495 = vsel %vm264, %v5491, 0.0
    %5496 = vadd.xlane.f32.xlu0 %v5495
    %v5497 = vpop.xlane.xlu0 %5496
    %v5498 = vmul.f32 %v5494, %v1292
    %v5499 = vmul.f32 %v5497, %v1292
    %v5500 = vsub.f32 %v5490, %v5498
    %v5501 = vsub.f32 %v5491, %v5499
    %v5502 = vmul.f32 %v5500, %v5500
    %v5503 = vmul.f32 %v5501, %v5501
    %v5504 = vsel %vm264, %v5502, 0.0
    %5505 = vadd.xlane.f32.xlu0 %v5504
    %v5506 = vpop.xlane.xlu0 %5505
    %v5507 = vsel %vm264, %v5503, 0.0
    %5508 = vadd.xlane.f32.xlu0 %v5507
    %v5509 = vpop.xlane.xlu0 %5508
    %v5510 = vmul.f32 %v5506, %v1292
    %v5511 = vmul.f32 %v5509, %v1292
    %v5512 = vadd.f32 %v5510, 1e-05
    %v5513 = vadd.f32 %v5511, 1e-05
    %v5514 = vrsqrt.pop %v5512
    %v5515 = vrsqrt.pop %v5513
    %v5516 = vmul.f32 %v5500, %v5514
    %v5517 = vmul.f32 %v5501, %v5515
    %s5518 = scalar_lea.vmem %s12, 7
    %v5519 = vld [vmem:[%s5518] sm:$0x1]
    %v5521 = vlaneseq
    %v5522 = vshrl.u32 %v5521, 7
    %v5523 = vsub.s32 0, %v5522
    %v5524 = vrot.slane %v5519, %v5523
    %v5526 = vmul.f32 %v5516, %v5524
    %v5527 = vmul.f32 %v5517, %v5524
    %s5528 = scalar_lea.vmem %s13, 7
    %v5529 = vld [vmem:[%s5528] sm:$0x1]
    %v5531 = vlaneseq
    %v5532 = vshrl.u32 %v5531, 7
    %v5533 = vsub.s32 0, %v5532
    %v5534 = vrot.slane %v5529, %v5533
    %v5536 = vadd.f32 %v5526, %v5534
    %v5537 = vadd.f32 %v5527, %v5534
    %s5538 = scalar_lea.vmem %s4, 128
    %v5539 = vld [vmem:[%s5538] sm:$0xff]
    %v5540 = vld [vmem:[%s5538 + $0x8] sm:$0xff]
    %v5541 = vld [vmem:[%s5538 + $0x10] sm:$0xff]
    %v5542 = vld [vmem:[%s5538 + $0x18] sm:$0xff]
    %s5543 = scalar_lea.vmem [#allocation2], 4
    %v5544 = vld [vmem:[%s5543] sm:$0x1]
    %v5546 = vlaneseq
    %v5547 = vshrl.u32 %v5546, 7
    %v5548 = vsub.s32 0, %v5547
    %v5549 = vrot.slane %v5544, %v5548
    %v5552 = vsel %vm264, %v5536, 0
    %v5555 = vsel %vm264, %v5537, 0
    %5557 = vmatprep.subr.mxu0 0.0
    %5558 = vmatpush1.msra.mxu0 0.0
    %5559 = vmatprep.subr.mxu0 0.0
    %5560 = vmatpush1.msra.mxu0 0.0
    %5561 = vmatprep.subr.mxu0 0.0
    %5562 = vmatpush1.msra.mxu0 0.0
    %5563 = vmatprep.subr.mxu0 0.0
    %5564 = vmatpush1.msra.mxu0 0.0
    %5565 = vmatprep.subr.mxu0 0.0
    %5566 = vmatpush1.msra.mxu0 0.0
    %5567 = vmatprep.subr.mxu0 0.0
    %5568 = vmatpush1.msra.mxu0 0.0
    %5569 = vmatprep.subr.mxu0 0.0
    %5570 = vmatpush1.msra.mxu0 0.0
    %5571 = vmatprep.subr.mxu0 0.0
    %5572 = vmatpush1.msra.mxu0 0.0
    %5573 = vmatprep.subr.mxu0 0.0
    %5574 = vmatpush1.msra.mxu0 0.0
    %5575 = vmatprep.subr.mxu0 0.0
    %5576 = vmatpush1.msra.mxu0 0.0
    %5577 = vmatprep.subr.mxu0 0.0
    %5578 = vmatpush1.msra.mxu0 0.0
    %5579 = vmatprep.subr.mxu0 0.0
    %5580 = vmatpush1.msra.mxu0 0.0
    %5581 = vmatprep.subr.mxu0 0.0
    %5582 = vmatpush1.msra.mxu0 %v5542
    %5583 = vmatprep.subr.mxu0 0.0
    %5584 = vmatpush1.msra.mxu0 %v5541
    %5585 = vmatprep.subr.mxu0 0.0
    %5586 = vmatpush1.msra.mxu0 %v5540
    %5587 = vmatprep.subr.mxu0 0.0
    %5588 = vmatpush1.msra.mxu0 %v5539
    %5589 = vmatprep.subr.mxu0 0.0
    %5590 = vmatpush2.msra.mxu0 0.0
    %5591 = vmatprep.subr.mxu0 0.0
    %5592 = vmatpush2.msra.mxu0 0.0
    %5593 = vmatprep.subr.mxu0 0.0
    %5594 = vmatpush2.msra.mxu0 0.0
    %5595 = vmatprep.subr.mxu0 0.0
    %5596 = vmatpush2.msra.mxu0 0.0
    %5597 = vmatprep.subr.mxu0 0.0
    %5598 = vmatpush2.msra.mxu0 0.0
    %5599 = vmatprep.subr.mxu0 0.0
    %5600 = vmatpush2.msra.mxu0 0.0
    %5601 = vmatprep.subr.mxu0 0.0
    %5602 = vmatpush2.msra.mxu0 0.0
    %5603 = vmatprep.subr.mxu0 0.0
    %5604 = vmatpush2.msra.mxu0 0.0
    %5605 = vmatprep.subr.mxu0 0.0
    %5606 = vmatpush2.msra.mxu0 0.0
    %5607 = vmatprep.subr.mxu0 0.0
    %5608 = vmatpush2.msra.mxu0 0.0
    %5609 = vmatprep.subr.mxu0 0.0
    %5610 = vmatpush2.msra.mxu0 0.0
    %5611 = vmatprep.subr.mxu0 0.0
    %5612 = vmatpush2.msra.mxu0 0.0
    %5613 = vmatprep.subr.mxu0 0.0
    %5614 = vmatpush2.msra.mxu0 0.0
    %5615 = vmatprep.subr.mxu0 0.0
    %5616 = vmatpush2.msra.mxu0 0.0
    %5617 = vmatprep.subr.mxu0 0.0
    %5618 = vmatpush2.msra.mxu0 0.0
    %5619 = vmatprep.subr.mxu0 0.0
    %5620 = vmatpush2.msra.mxu0 0.0
    %5621 = vmatprep.mubr.f32.mxu0 0.0
    %5622 = vmatmul.mubr.f32.gmra.mxu0 %v5552
    %v5623 = vpop.f32.mrf.mxu0
    %v5624 = vadd.f32 %v5549, %v5623
    %v5625 = vpop.f32.mrf.mxu0
    %5626 = vmatprep.mubr.f32.mxu0 0.0
    %5627 = vmatmul.mubr.f32.gmra.mxu0 %v5555
    %v5628 = vpop.f32.mrf.mxu0
    %v5629 = vadd.f32 %v5549, %v5628
    %v5630 = vpop.f32.mrf.mxu0
    %5631 = vdwg.mxu0
    %5634 = vrot.lane.b32.xlu0 %v5624, 96
    %v5635 = vpop.permute.xlu0 %5634
    %5636 = vrot.lane.b32.xlu0 %v5629, 96
    %v5637 = vpop.permute.xlu0 %5636
    %v5638 = vsel %vm116, %v5624, 0
    %v5640 = vsel %vm116, %v5629, 0
    %v5642 = vsel %vm116, %v5635, 0
    %v5644 = vsel %vm116, %v5637, 0
    %5646 = vmatprep.subr.mxu0 0.0
    %5647 = vmatpush1.xpose.msra.mxu0 0.0
    %5648 = vmatprep.subr.mxu0 0.0
    %5649 = vmatpush1.xpose.msra.mxu0 0.0
    %5650 = vmatprep.subr.mxu0 0.0
    %5651 = vmatpush1.xpose.msra.mxu0 0.0
    %5652 = vmatprep.subr.mxu0 0.0
    %5653 = vmatpush1.xpose.msra.mxu0 0.0
    %5654 = vmatprep.subr.mxu0 0.0
    %5655 = vmatpush1.xpose.msra.mxu0 0.0
    %5656 = vmatprep.subr.mxu0 0.0
    %5657 = vmatpush1.xpose.msra.mxu0 0.0
    %5658 = vmatprep.subr.mxu0 0.0
    %5659 = vmatpush1.xpose.msra.mxu0 0.0
    %5660 = vmatprep.subr.mxu0 0.0
    %5661 = vmatpush1.xpose.msra.mxu0 0.0
    %5662 = vmatprep.subr.mxu0 0.0
    %5663 = vmatpush1.xpose.msra.mxu0 0.0
    %5664 = vmatprep.subr.mxu0 0.0
    %5665 = vmatpush1.xpose.msra.mxu0 0.0
    %5666 = vmatprep.subr.mxu0 0.0
    %5667 = vmatpush1.xpose.msra.mxu0 0.0
    %5668 = vmatprep.subr.mxu0 0.0
    %5669 = vmatpush1.xpose.msra.mxu0 0.0
    %5670 = vmatprep.subr.mxu0 0.0
    %5671 = vmatpush1.xpose.msra.mxu0 0.0
    %5672 = vmatprep.subr.mxu0 0.0
    %5673 = vmatpush1.xpose.msra.mxu0 0.0
    %5674 = vmatprep.subr.mxu0 0.0
    %5675 = vmatpush1.xpose.msra.mxu0 %v5644
    %5676 = vmatprep.subr.mxu0 0.0
    %5677 = vmatpush1.xpose.msra.mxu0 %v5642
    %5678 = vmatprep.subr.mxu0 0.0
    %5679 = vmatpush2.xpose.msra.mxu0 0.0
    %5680 = vmatprep.subr.mxu0 0.0
    %5681 = vmatpush2.xpose.msra.mxu0 0.0
    %5682 = vmatprep.subr.mxu0 0.0
    %5683 = vmatpush2.xpose.msra.mxu0 0.0
    %5684 = vmatprep.subr.mxu0 0.0
    %5685 = vmatpush2.xpose.msra.mxu0 0.0
    %5686 = vmatprep.subr.mxu0 0.0
    %5687 = vmatpush2.xpose.msra.mxu0 0.0
    %5688 = vmatprep.subr.mxu0 0.0
    %5689 = vmatpush2.xpose.msra.mxu0 0.0
    %5690 = vmatprep.subr.mxu0 0.0
    %5691 = vmatpush2.xpose.msra.mxu0 0.0
    %5692 = vmatprep.subr.mxu0 0.0
    %5693 = vmatpush2.xpose.msra.mxu0 0.0
    %5694 = vmatprep.subr.mxu0 0.0
    %5695 = vmatpush2.xpose.msra.mxu0 0.0
    %5696 = vmatprep.subr.mxu0 0.0
    %5697 = vmatpush2.xpose.msra.mxu0 0.0
    %5698 = vmatprep.subr.mxu0 0.0
    %5699 = vmatpush2.xpose.msra.mxu0 0.0
    %5700 = vmatprep.subr.mxu0 0.0
    %5701 = vmatpush2.xpose.msra.mxu0 0.0
    %5702 = vmatprep.subr.mxu0 0.0
    %5703 = vmatpush2.xpose.msra.mxu0 0.0
    %5704 = vmatprep.subr.mxu0 0.0
    %5705 = vmatpush2.xpose.msra.mxu0 0.0
    %5706 = vmatprep.subr.mxu0 0.0
    %5707 = vmatpush2.xpose.msra.mxu0 0.0
    %5708 = vmatprep.subr.mxu0 0.0
    %5709 = vmatpush2.xpose.msra.mxu0 0.0
    %5710 = vmatprep.mubr.f32.mxu0 0.0
    %5711 = vmatmul.mubr.f32.gmra.mxu0 %v5638
    %v5712 = vpop.f32.mrf.mxu0
    %v5713 = vadd.f32 0.0, %v5712
    %v5714 = vpop.f32.mrf.mxu0
    %5715 = vmatprep.mubr.f32.mxu0 0.0
    %5716 = vmatmul.mubr.f32.gmra.mxu0 %v5640
    %v5717 = vpop.f32.mrf.mxu0
    %v5718 = vadd.f32 0.0, %v5717
    %v5719 = vpop.f32.mrf.mxu0
    %5720 = vdwg.mxu0
    %5721 = vrot.lane.b32.xlu0 %v5624, 120
    %v5722 = vpop.permute.xlu0 %5721
    %5723 = vrot.lane.b32.xlu0 %v5629, 120
    %v5724 = vpop.permute.xlu0 %5723
    %5725 = vrot.lane.b32.xlu0 %v5624, 88
    %v5726 = vpop.permute.xlu0 %5725
    %5727 = vrot.lane.b32.xlu0 %v5629, 88
    %v5728 = vpop.permute.xlu0 %5727
    %v5729 = vsel %vm116, %v5722, 0
    %v5731 = vsel %vm116, %v5724, 0
    %v5733 = vsel %vm116, %v5726, 0
    %v5735 = vsel %vm116, %v5728, 0
    %5737 = vmatprep.subr.mxu0 0.0
    %5738 = vmatpush1.xpose.msra.mxu0 0.0
    %5739 = vmatprep.subr.mxu0 0.0
    %5740 = vmatpush1.xpose.msra.mxu0 0.0
    %5741 = vmatprep.subr.mxu0 0.0
    %5742 = vmatpush1.xpose.msra.mxu0 0.0
    %5743 = vmatprep.subr.mxu0 0.0
    %5744 = vmatpush1.xpose.msra.mxu0 0.0
    %5745 = vmatprep.subr.mxu0 0.0
    %5746 = vmatpush1.xpose.msra.mxu0 0.0
    %5747 = vmatprep.subr.mxu0 0.0
    %5748 = vmatpush1.xpose.msra.mxu0 0.0
    %5749 = vmatprep.subr.mxu0 0.0
    %5750 = vmatpush1.xpose.msra.mxu0 0.0
    %5751 = vmatprep.subr.mxu0 0.0
    %5752 = vmatpush1.xpose.msra.mxu0 0.0
    %5753 = vmatprep.subr.mxu0 0.0
    %5754 = vmatpush1.xpose.msra.mxu0 0.0
    %5755 = vmatprep.subr.mxu0 0.0
    %5756 = vmatpush1.xpose.msra.mxu0 0.0
    %5757 = vmatprep.subr.mxu0 0.0
    %5758 = vmatpush1.xpose.msra.mxu0 0.0
    %5759 = vmatprep.subr.mxu0 0.0
    %5760 = vmatpush1.xpose.msra.mxu0 0.0
    %5761 = vmatprep.subr.mxu0 0.0
    %5762 = vmatpush1.xpose.msra.mxu0 0.0
    %5763 = vmatprep.subr.mxu0 0.0
    %5764 = vmatpush1.xpose.msra.mxu0 0.0
    %5765 = vmatprep.subr.mxu0 0.0
    %5766 = vmatpush1.xpose.msra.mxu0 %v5735
    %5767 = vmatprep.subr.mxu0 0.0
    %5768 = vmatpush1.xpose.msra.mxu0 %v5733
    %5769 = vmatprep.subr.mxu0 0.0
    %5770 = vmatpush2.xpose.msra.mxu0 0.0
    %5771 = vmatprep.subr.mxu0 0.0
    %5772 = vmatpush2.xpose.msra.mxu0 0.0
    %5773 = vmatprep.subr.mxu0 0.0
    %5774 = vmatpush2.xpose.msra.mxu0 0.0
    %5775 = vmatprep.subr.mxu0 0.0
    %5776 = vmatpush2.xpose.msra.mxu0 0.0
    %5777 = vmatprep.subr.mxu0 0.0
    %5778 = vmatpush2.xpose.msra.mxu0 0.0
    %5779 = vmatprep.subr.mxu0 0.0
    %5780 = vmatpush2.xpose.msra.mxu0 0.0
    %5781 = vmatprep.subr.mxu0 0.0
    %5782 = vmatpush2.xpose.msra.mxu0 0.0
    %5783 = vmatprep.subr.mxu0 0.0
    %5784 = vmatpush2.xpose.msra.mxu0 0.0
    %5785 = vmatprep.subr.mxu0 0.0
    %5786 = vmatpush2.xpose.msra.mxu0 0.0
    %5787 = vmatprep.subr.mxu0 0.0
    %5788 = vmatpush2.xpose.msra.mxu0 0.0
    %5789 = vmatprep.subr.mxu0 0.0
    %5790 = vmatpush2.xpose.msra.mxu0 0.0
    %5791 = vmatprep.subr.mxu0 0.0
    %5792 = vmatpush2.xpose.msra.mxu0 0.0
    %5793 = vmatprep.subr.mxu0 0.0
    %5794 = vmatpush2.xpose.msra.mxu0 0.0
    %5795 = vmatprep.subr.mxu0 0.0
    %5796 = vmatpush2.xpose.msra.mxu0 0.0
    %5797 = vmatprep.subr.mxu0 0.0
    %5798 = vmatpush2.xpose.msra.mxu0 0.0
    %5799 = vmatprep.subr.mxu0 0.0
    %5800 = vmatpush2.xpose.msra.mxu0 0.0
    %5801 = vmatprep.mubr.f32.mxu0 0.0
    %5802 = vmatmul.mubr.f32.gmra.mxu0 %v5729
    %v5803 = vpop.f32.mrf.mxu0
    %v5804 = vadd.f32 0.0, %v5803
    %v5805 = vpop.f32.mrf.mxu0
    %5806 = vmatprep.mubr.f32.mxu0 0.0
    %5807 = vmatmul.mubr.f32.gmra.mxu0 %v5731
    %v5808 = vpop.f32.mrf.mxu0
    %v5809 = vadd.f32 0.0, %v5808
    %v5810 = vpop.f32.mrf.mxu0
    %5811 = vdwg.mxu0
    %5812 = vrot.lane.b32.xlu0 %v5624, 112
    %v5813 = vpop.permute.xlu0 %5812
    %5814 = vrot.lane.b32.xlu0 %v5629, 112
    %v5815 = vpop.permute.xlu0 %5814
    %5816 = vrot.lane.b32.xlu0 %v5624, 80
    %v5817 = vpop.permute.xlu0 %5816
    %5818 = vrot.lane.b32.xlu0 %v5629, 80
    %v5819 = vpop.permute.xlu0 %5818
    %v5820 = vsel %vm116, %v5813, 0
    %v5822 = vsel %vm116, %v5815, 0
    %v5824 = vsel %vm116, %v5817, 0
    %v5826 = vsel %vm116, %v5819, 0
    %5828 = vmatprep.subr.mxu0 0.0
    %5829 = vmatpush1.xpose.msra.mxu0 0.0
    %5830 = vmatprep.subr.mxu0 0.0
    %5831 = vmatpush1.xpose.msra.mxu0 0.0
    %5832 = vmatprep.subr.mxu0 0.0
    %5833 = vmatpush1.xpose.msra.mxu0 0.0
    %5834 = vmatprep.subr.mxu0 0.0
    %5835 = vmatpush1.xpose.msra.mxu0 0.0
    %5836 = vmatprep.subr.mxu0 0.0
    %5837 = vmatpush1.xpose.msra.mxu0 0.0
    %5838 = vmatprep.subr.mxu0 0.0
    %5839 = vmatpush1.xpose.msra.mxu0 0.0
    %5840 = vmatprep.subr.mxu0 0.0
    %5841 = vmatpush1.xpose.msra.mxu0 0.0
    %5842 = vmatprep.subr.mxu0 0.0
    %5843 = vmatpush1.xpose.msra.mxu0 0.0
    %5844 = vmatprep.subr.mxu0 0.0
    %5845 = vmatpush1.xpose.msra.mxu0 0.0
    %5846 = vmatprep.subr.mxu0 0.0
    %5847 = vmatpush1.xpose.msra.mxu0 0.0
    %5848 = vmatprep.subr.mxu0 0.0
    %5849 = vmatpush1.xpose.msra.mxu0 0.0
    %5850 = vmatprep.subr.mxu0 0.0
    %5851 = vmatpush1.xpose.msra.mxu0 0.0
    %5852 = vmatprep.subr.mxu0 0.0
    %5853 = vmatpush1.xpose.msra.mxu0 0.0
    %5854 = vmatprep.subr.mxu0 0.0
    %5855 = vmatpush1.xpose.msra.mxu0 0.0
    %5856 = vmatprep.subr.mxu0 0.0
    %5857 = vmatpush1.xpose.msra.mxu0 %v5826
    %5858 = vmatprep.subr.mxu0 0.0
    %5859 = vmatpush1.xpose.msra.mxu0 %v5824
    %5860 = vmatprep.subr.mxu0 0.0
    %5861 = vmatpush2.xpose.msra.mxu0 0.0
    %5862 = vmatprep.subr.mxu0 0.0
    %5863 = vmatpush2.xpose.msra.mxu0 0.0
    %5864 = vmatprep.subr.mxu0 0.0
    %5865 = vmatpush2.xpose.msra.mxu0 0.0
    %5866 = vmatprep.subr.mxu0 0.0
    %5867 = vmatpush2.xpose.msra.mxu0 0.0
    %5868 = vmatprep.subr.mxu0 0.0
    %5869 = vmatpush2.xpose.msra.mxu0 0.0
    %5870 = vmatprep.subr.mxu0 0.0
    %5871 = vmatpush2.xpose.msra.mxu0 0.0
    %5872 = vmatprep.subr.mxu0 0.0
    %5873 = vmatpush2.xpose.msra.mxu0 0.0
    %5874 = vmatprep.subr.mxu0 0.0
    %5875 = vmatpush2.xpose.msra.mxu0 0.0
    %5876 = vmatprep.subr.mxu0 0.0
    %5877 = vmatpush2.xpose.msra.mxu0 0.0
    %5878 = vmatprep.subr.mxu0 0.0
    %5879 = vmatpush2.xpose.msra.mxu0 0.0
    %5880 = vmatprep.subr.mxu0 0.0
    %5881 = vmatpush2.xpose.msra.mxu0 0.0
    %5882 = vmatprep.subr.mxu0 0.0
    %5883 = vmatpush2.xpose.msra.mxu0 0.0
    %5884 = vmatprep.subr.mxu0 0.0
    %5885 = vmatpush2.xpose.msra.mxu0 0.0
    %5886 = vmatprep.subr.mxu0 0.0
    %5887 = vmatpush2.xpose.msra.mxu0 0.0
    %5888 = vmatprep.subr.mxu0 0.0
    %5889 = vmatpush2.xpose.msra.mxu0 0.0
    %5890 = vmatprep.subr.mxu0 0.0
    %5891 = vmatpush2.xpose.msra.mxu0 0.0
    %5892 = vmatprep.mubr.f32.mxu0 0.0
    %5893 = vmatmul.mubr.f32.gmra.mxu0 %v5820
    %v5894 = vpop.f32.mrf.mxu0
    %v5895 = vadd.f32 0.0, %v5894
    %v5896 = vpop.f32.mrf.mxu0
    %5897 = vmatprep.mubr.f32.mxu0 0.0
    %5898 = vmatmul.mubr.f32.gmra.mxu0 %v5822
    %v5899 = vpop.f32.mrf.mxu0
    %v5900 = vadd.f32 0.0, %v5899
    %v5901 = vpop.f32.mrf.mxu0
    %5902 = vdwg.mxu0
    %5903 = vrot.lane.b32.xlu0 %v5624, 104
    %v5904 = vpop.permute.xlu0 %5903
    %5905 = vrot.lane.b32.xlu0 %v5629, 104
    %v5906 = vpop.permute.xlu0 %5905
    %5907 = vrot.lane.b32.xlu0 %v5624, 72
    %v5908 = vpop.permute.xlu0 %5907
    %5909 = vrot.lane.b32.xlu0 %v5629, 72
    %v5910 = vpop.permute.xlu0 %5909
    %v5911 = vsel %vm116, %v5904, 0
    %v5913 = vsel %vm116, %v5906, 0
    %v5915 = vsel %vm116, %v5908, 0
    %v5917 = vsel %vm116, %v5910, 0
    %5919 = vmatprep.subr.mxu0 0.0
    %5920 = vmatpush1.xpose.msra.mxu0 0.0
    %5921 = vmatprep.subr.mxu0 0.0
    %5922 = vmatpush1.xpose.msra.mxu0 0.0
    %5923 = vmatprep.subr.mxu0 0.0
    %5924 = vmatpush1.xpose.msra.mxu0 0.0
    %5925 = vmatprep.subr.mxu0 0.0
    %5926 = vmatpush1.xpose.msra.mxu0 0.0
    %5927 = vmatprep.subr.mxu0 0.0
    %5928 = vmatpush1.xpose.msra.mxu0 0.0
    %5929 = vmatprep.subr.mxu0 0.0
    %5930 = vmatpush1.xpose.msra.mxu0 0.0
    %5931 = vmatprep.subr.mxu0 0.0
    %5932 = vmatpush1.xpose.msra.mxu0 0.0
    %5933 = vmatprep.subr.mxu0 0.0
    %5934 = vmatpush1.xpose.msra.mxu0 0.0
    %5935 = vmatprep.subr.mxu0 0.0
    %5936 = vmatpush1.xpose.msra.mxu0 0.0
    %5937 = vmatprep.subr.mxu0 0.0
    %5938 = vmatpush1.xpose.msra.mxu0 0.0
    %5939 = vmatprep.subr.mxu0 0.0
    %5940 = vmatpush1.xpose.msra.mxu0 0.0
    %5941 = vmatprep.subr.mxu0 0.0
    %5942 = vmatpush1.xpose.msra.mxu0 0.0
    %5943 = vmatprep.subr.mxu0 0.0
    %5944 = vmatpush1.xpose.msra.mxu0 0.0
    %5945 = vmatprep.subr.mxu0 0.0
    %5946 = vmatpush1.xpose.msra.mxu0 0.0
    %5947 = vmatprep.subr.mxu0 0.0
    %5948 = vmatpush1.xpose.msra.mxu0 %v5917
    %5949 = vmatprep.subr.mxu0 0.0
    %5950 = vmatpush1.xpose.msra.mxu0 %v5915
    %5951 = vmatprep.subr.mxu0 0.0
    %5952 = vmatpush2.xpose.msra.mxu0 0.0
    %5953 = vmatprep.subr.mxu0 0.0
    %5954 = vmatpush2.xpose.msra.mxu0 0.0
    %5955 = vmatprep.subr.mxu0 0.0
    %5956 = vmatpush2.xpose.msra.mxu0 0.0
    %5957 = vmatprep.subr.mxu0 0.0
    %5958 = vmatpush2.xpose.msra.mxu0 0.0
    %5959 = vmatprep.subr.mxu0 0.0
    %5960 = vmatpush2.xpose.msra.mxu0 0.0
    %5961 = vmatprep.subr.mxu0 0.0
    %5962 = vmatpush2.xpose.msra.mxu0 0.0
    %5963 = vmatprep.subr.mxu0 0.0
    %5964 = vmatpush2.xpose.msra.mxu0 0.0
    %5965 = vmatprep.subr.mxu0 0.0
    %5966 = vmatpush2.xpose.msra.mxu0 0.0
    %5967 = vmatprep.subr.mxu0 0.0
    %5968 = vmatpush2.xpose.msra.mxu0 0.0
    %5969 = vmatprep.subr.mxu0 0.0
    %5970 = vmatpush2.xpose.msra.mxu0 0.0
    %5971 = vmatprep.subr.mxu0 0.0
    %5972 = vmatpush2.xpose.msra.mxu0 0.0
    %5973 = vmatprep.subr.mxu0 0.0
    %5974 = vmatpush2.xpose.msra.mxu0 0.0
    %5975 = vmatprep.subr.mxu0 0.0
    %5976 = vmatpush2.xpose.msra.mxu0 0.0
    %5977 = vmatprep.subr.mxu0 0.0
    %5978 = vmatpush2.xpose.msra.mxu0 0.0
    %5979 = vmatprep.subr.mxu0 0.0
    %5980 = vmatpush2.xpose.msra.mxu0 0.0
    %5981 = vmatprep.subr.mxu0 0.0
    %5982 = vmatpush2.xpose.msra.mxu0 0.0
    %5983 = vmatprep.mubr.f32.mxu0 0.0
    %5984 = vmatmul.mubr.f32.gmra.mxu0 %v5911
    %v5985 = vpop.f32.mrf.mxu0
    %v5986 = vadd.f32 0.0, %v5985
    %v5987 = vpop.f32.mrf.mxu0
    %5988 = vmatprep.mubr.f32.mxu0 0.0
    %5989 = vmatmul.mubr.f32.gmra.mxu0 %v5913
    %v5990 = vpop.f32.mrf.mxu0
    %v5991 = vadd.f32 0.0, %v5990
    %v5992 = vpop.f32.mrf.mxu0
    %5993 = vdwg.mxu0
    %v5994 = vmul.f32 %v5713, 0.35355338
    %v5995 = vmul.f32 %v5718, 0.35355338
    %v5996 = vmul.f32 %v5804, 0.35355338
    %v5997 = vmul.f32 %v5809, 0.35355338
    %v5998 = vmul.f32 %v5895, 0.35355338
    %v5999 = vmul.f32 %v5900, 0.35355338
    %v6000 = vmul.f32 %v5986, 0.35355338
    %v6001 = vmul.f32 %v5991, 0.35355338
    %v6002 = vadd.f32 %v5994, %v134
    %v6003 = vadd.f32 %v5995, %v135
    %v6004 = vadd.f32 %v5996, %v134
    %v6005 = vadd.f32 %v5997, %v135
    %v6006 = vadd.f32 %v5998, %v134
    %v6007 = vadd.f32 %v5999, %v135
    %v6008 = vadd.f32 %v6000, %v134
    %v6009 = vadd.f32 %v6001, %v135
    %v6010 = vsel %vm724, %v6002, -inf
    %6011 = vmax.xlane.f32.xlu0 %v6010
    %v6012 = vpop.xlane.xlu0 %6011
    %v6013 = vsel %vm724, %v6003, -inf
    %6014 = vmax.xlane.f32.xlu0 %v6013
    %v6015 = vpop.xlane.xlu0 %6014
    %v6016 = vsel %vm724, %v6004, -inf
    %6017 = vmax.xlane.f32.xlu0 %v6016
    %v6018 = vpop.xlane.xlu0 %6017
    %v6019 = vsel %vm724, %v6005, -inf
    %6020 = vmax.xlane.f32.xlu0 %v6019
    %v6021 = vpop.xlane.xlu0 %6020
    %v6022 = vsel %vm724, %v6006, -inf
    %6023 = vmax.xlane.f32.xlu0 %v6022
    %v6024 = vpop.xlane.xlu0 %6023
    %v6025 = vsel %vm724, %v6007, -inf
    %6026 = vmax.xlane.f32.xlu0 %v6025
    %v6027 = vpop.xlane.xlu0 %6026
    %v6028 = vsel %vm724, %v6008, -inf
    %6029 = vmax.xlane.f32.xlu0 %v6028
    %v6030 = vpop.xlane.xlu0 %6029
    %v6031 = vsel %vm724, %v6009, -inf
    %6032 = vmax.xlane.f32.xlu0 %v6031
    %v6033 = vpop.xlane.xlu0 %6032
    %v6034 = vsub.f32 %v6002, %v6012
    %v6035 = vsub.f32 %v6003, %v6015
    %v6036 = vsub.f32 %v6004, %v6018
    %v6037 = vsub.f32 %v6005, %v6021
    %v6038 = vsub.f32 %v6006, %v6024
    %v6039 = vsub.f32 %v6007, %v6027
    %v6040 = vsub.f32 %v6008, %v6030
    %v6041 = vsub.f32 %v6009, %v6033
    %v6042 = vmul.f32 %v6034, 1.442695
    %v6043 = vpow.pop %v6042
    %v6044 = vmul.f32 %v6035, 1.442695
    %v6045 = vpow.pop %v6044
    %v6046 = vmul.f32 %v6036, 1.442695
    %v6047 = vpow.pop %v6046
    %v6048 = vmul.f32 %v6037, 1.442695
    %v6049 = vpow.pop %v6048
    %v6050 = vmul.f32 %v6038, 1.442695
    %v6051 = vpow.pop %v6050
    %v6052 = vmul.f32 %v6039, 1.442695
    %v6053 = vpow.pop %v6052
    %v6054 = vmul.f32 %v6040, 1.442695
    %v6055 = vpow.pop %v6054
    %v6056 = vmul.f32 %v6041, 1.442695
    %v6057 = vpow.pop %v6056
    %v6058 = vsel %vm724, %v6043, 0.0
    %6059 = vadd.xlane.f32.xlu0 %v6058
    %v6060 = vpop.xlane.xlu0 %6059
    %v6061 = vsel %vm724, %v6045, 0.0
    %6062 = vadd.xlane.f32.xlu0 %v6061
    %v6063 = vpop.xlane.xlu0 %6062
    %v6064 = vsel %vm724, %v6047, 0.0
    %6065 = vadd.xlane.f32.xlu0 %v6064
    %v6066 = vpop.xlane.xlu0 %6065
    %v6067 = vsel %vm724, %v6049, 0.0
    %6068 = vadd.xlane.f32.xlu0 %v6067
    %v6069 = vpop.xlane.xlu0 %6068
    %v6070 = vsel %vm724, %v6051, 0.0
    %6071 = vadd.xlane.f32.xlu0 %v6070
    %v6072 = vpop.xlane.xlu0 %6071
    %v6073 = vsel %vm724, %v6053, 0.0
    %6074 = vadd.xlane.f32.xlu0 %v6073
    %v6075 = vpop.xlane.xlu0 %6074
    %v6076 = vsel %vm724, %v6055, 0.0
    %6077 = vadd.xlane.f32.xlu0 %v6076
    %v6078 = vpop.xlane.xlu0 %6077
    %v6079 = vsel %vm724, %v6057, 0.0
    %6080 = vadd.xlane.f32.xlu0 %v6079
    %v6081 = vpop.xlane.xlu0 %6080
    %v6082 = vrcp.pop %v6060
    %v6083 = vmul.f32 %v6043, %v6082
    %v6084 = vrcp.pop %v6063
    %v6085 = vmul.f32 %v6045, %v6084
    %v6086 = vrcp.pop %v6066
    %v6087 = vmul.f32 %v6047, %v6086
    %v6088 = vrcp.pop %v6069
    %v6089 = vmul.f32 %v6049, %v6088
    %v6090 = vrcp.pop %v6072
    %v6091 = vmul.f32 %v6051, %v6090
    %v6092 = vrcp.pop %v6075
    %v6093 = vmul.f32 %v6053, %v6092
    %v6094 = vrcp.pop %v6078
    %v6095 = vmul.f32 %v6055, %v6094
    %v6096 = vrcp.pop %v6081
    %v6097 = vmul.f32 %v6057, %v6096
    %6098 = vrot.lane.b32.xlu0 %v5624, 64
    %v6099 = vpop.permute.xlu0 %6098
    %6100 = vrot.lane.b32.xlu0 %v5629, 64
    %v6101 = vpop.permute.xlu0 %6100
    %v6105 = vsel %vm724, %v6083, 0
    %v6108 = vsel %vm724, %v6085, 0
    %6110 = vmatprep.subr.mxu0 0.0
    %6111 = vmatpush1.msra.mxu0 0.0
    %6112 = vmatprep.subr.mxu0 0.0
    %6113 = vmatpush1.msra.mxu0 0.0
    %6114 = vmatprep.subr.mxu0 0.0
    %6115 = vmatpush1.msra.mxu0 0.0
    %6116 = vmatprep.subr.mxu0 0.0
    %6117 = vmatpush1.msra.mxu0 0.0
    %6118 = vmatprep.subr.mxu0 0.0
    %6119 = vmatpush1.msra.mxu0 0.0
    %6120 = vmatprep.subr.mxu0 0.0
    %6121 = vmatpush1.msra.mxu0 0.0
    %6122 = vmatprep.subr.mxu0 0.0
    %6123 = vmatpush1.msra.mxu0 0.0
    %6124 = vmatprep.subr.mxu0 0.0
    %6125 = vmatpush1.msra.mxu0 0.0
    %6126 = vmatprep.subr.mxu0 0.0
    %6127 = vmatpush1.msra.mxu0 0.0
    %6128 = vmatprep.subr.mxu0 0.0
    %6129 = vmatpush1.msra.mxu0 0.0
    %6130 = vmatprep.subr.mxu0 0.0
    %6131 = vmatpush1.msra.mxu0 0.0
    %6132 = vmatprep.subr.mxu0 0.0
    %6133 = vmatpush1.msra.mxu0 0.0
    %6134 = vmatprep.subr.mxu0 0.0
    %6135 = vmatpush1.msra.mxu0 0.0
    %6136 = vmatprep.subr.mxu0 0.0
    %6137 = vmatpush1.msra.mxu0 0.0
    %6138 = vmatprep.subr.mxu0 0.0
    %6139 = vmatpush1.msra.mxu0 %v6101
    %6140 = vmatprep.subr.mxu0 0.0
    %6141 = vmatpush1.msra.mxu0 %v6099
    %6142 = vmatprep.subr.mxu0 0.0
    %6143 = vmatpush2.msra.mxu0 0.0
    %6144 = vmatprep.subr.mxu0 0.0
    %6145 = vmatpush2.msra.mxu0 0.0
    %6146 = vmatprep.subr.mxu0 0.0
    %6147 = vmatpush2.msra.mxu0 0.0
    %6148 = vmatprep.subr.mxu0 0.0
    %6149 = vmatpush2.msra.mxu0 0.0
    %6150 = vmatprep.subr.mxu0 0.0
    %6151 = vmatpush2.msra.mxu0 0.0
    %6152 = vmatprep.subr.mxu0 0.0
    %6153 = vmatpush2.msra.mxu0 0.0
    %6154 = vmatprep.subr.mxu0 0.0
    %6155 = vmatpush2.msra.mxu0 0.0
    %6156 = vmatprep.subr.mxu0 0.0
    %6157 = vmatpush2.msra.mxu0 0.0
    %6158 = vmatprep.subr.mxu0 0.0
    %6159 = vmatpush2.msra.mxu0 0.0
    %6160 = vmatprep.subr.mxu0 0.0
    %6161 = vmatpush2.msra.mxu0 0.0
    %6162 = vmatprep.subr.mxu0 0.0
    %6163 = vmatpush2.msra.mxu0 0.0
    %6164 = vmatprep.subr.mxu0 0.0
    %6165 = vmatpush2.msra.mxu0 0.0
    %6166 = vmatprep.subr.mxu0 0.0
    %6167 = vmatpush2.msra.mxu0 0.0
    %6168 = vmatprep.subr.mxu0 0.0
    %6169 = vmatpush2.msra.mxu0 0.0
    %6170 = vmatprep.subr.mxu0 0.0
    %6171 = vmatpush2.msra.mxu0 0.0
    %6172 = vmatprep.subr.mxu0 0.0
    %6173 = vmatpush2.msra.mxu0 0.0
    %6174 = vmatprep.mubr.f32.mxu0 0.0
    %6175 = vmatmul.mubr.f32.gmra.mxu0 %v6105
    %v6176 = vpop.f32.mrf.mxu0
    %v6177 = vadd.f32 0.0, %v6176
    %v6178 = vpop.f32.mrf.mxu0
    %6179 = vmatprep.mubr.f32.mxu0 0.0
    %6180 = vmatmul.mubr.f32.gmra.mxu0 %v6108
    %v6181 = vpop.f32.mrf.mxu0
    %v6182 = vadd.f32 0.0, %v6181
    %v6183 = vpop.f32.mrf.mxu0
    %6184 = vdwg.mxu0
    %6185 = vrot.lane.b32.xlu0 %v5624, 56
    %v6186 = vpop.permute.xlu0 %6185
    %6187 = vrot.lane.b32.xlu0 %v5629, 56
    %v6188 = vpop.permute.xlu0 %6187
    %v6192 = vsel %vm724, %v6087, 0
    %v6195 = vsel %vm724, %v6089, 0
    %6197 = vmatprep.subr.mxu0 0.0
    %6198 = vmatpush1.msra.mxu0 0.0
    %6199 = vmatprep.subr.mxu0 0.0
    %6200 = vmatpush1.msra.mxu0 0.0
    %6201 = vmatprep.subr.mxu0 0.0
    %6202 = vmatpush1.msra.mxu0 0.0
    %6203 = vmatprep.subr.mxu0 0.0
    %6204 = vmatpush1.msra.mxu0 0.0
    %6205 = vmatprep.subr.mxu0 0.0
    %6206 = vmatpush1.msra.mxu0 0.0
    %6207 = vmatprep.subr.mxu0 0.0
    %6208 = vmatpush1.msra.mxu0 0.0
    %6209 = vmatprep.subr.mxu0 0.0
    %6210 = vmatpush1.msra.mxu0 0.0
    %6211 = vmatprep.subr.mxu0 0.0
    %6212 = vmatpush1.msra.mxu0 0.0
    %6213 = vmatprep.subr.mxu0 0.0
    %6214 = vmatpush1.msra.mxu0 0.0
    %6215 = vmatprep.subr.mxu0 0.0
    %6216 = vmatpush1.msra.mxu0 0.0
    %6217 = vmatprep.subr.mxu0 0.0
    %6218 = vmatpush1.msra.mxu0 0.0
    %6219 = vmatprep.subr.mxu0 0.0
    %6220 = vmatpush1.msra.mxu0 0.0
    %6221 = vmatprep.subr.mxu0 0.0
    %6222 = vmatpush1.msra.mxu0 0.0
    %6223 = vmatprep.subr.mxu0 0.0
    %6224 = vmatpush1.msra.mxu0 0.0
    %6225 = vmatprep.subr.mxu0 0.0
    %6226 = vmatpush1.msra.mxu0 %v6188
    %6227 = vmatprep.subr.mxu0 0.0
    %6228 = vmatpush1.msra.mxu0 %v6186
    %6229 = vmatprep.subr.mxu0 0.0
    %6230 = vmatpush2.msra.mxu0 0.0
    %6231 = vmatprep.subr.mxu0 0.0
    %6232 = vmatpush2.msra.mxu0 0.0
    %6233 = vmatprep.subr.mxu0 0.0
    %6234 = vmatpush2.msra.mxu0 0.0
    %6235 = vmatprep.subr.mxu0 0.0
    %6236 = vmatpush2.msra.mxu0 0.0
    %6237 = vmatprep.subr.mxu0 0.0
    %6238 = vmatpush2.msra.mxu0 0.0
    %6239 = vmatprep.subr.mxu0 0.0
    %6240 = vmatpush2.msra.mxu0 0.0
    %6241 = vmatprep.subr.mxu0 0.0
    %6242 = vmatpush2.msra.mxu0 0.0
    %6243 = vmatprep.subr.mxu0 0.0
    %6244 = vmatpush2.msra.mxu0 0.0
    %6245 = vmatprep.subr.mxu0 0.0
    %6246 = vmatpush2.msra.mxu0 0.0
    %6247 = vmatprep.subr.mxu0 0.0
    %6248 = vmatpush2.msra.mxu0 0.0
    %6249 = vmatprep.subr.mxu0 0.0
    %6250 = vmatpush2.msra.mxu0 0.0
    %6251 = vmatprep.subr.mxu0 0.0
    %6252 = vmatpush2.msra.mxu0 0.0
    %6253 = vmatprep.subr.mxu0 0.0
    %6254 = vmatpush2.msra.mxu0 0.0
    %6255 = vmatprep.subr.mxu0 0.0
    %6256 = vmatpush2.msra.mxu0 0.0
    %6257 = vmatprep.subr.mxu0 0.0
    %6258 = vmatpush2.msra.mxu0 0.0
    %6259 = vmatprep.subr.mxu0 0.0
    %6260 = vmatpush2.msra.mxu0 0.0
    %6261 = vmatprep.mubr.f32.mxu0 0.0
    %6262 = vmatmul.mubr.f32.gmra.mxu0 %v6192
    %v6263 = vpop.f32.mrf.mxu0
    %v6264 = vadd.f32 0.0, %v6263
    %v6265 = vpop.f32.mrf.mxu0
    %6266 = vmatprep.mubr.f32.mxu0 0.0
    %6267 = vmatmul.mubr.f32.gmra.mxu0 %v6195
    %v6268 = vpop.f32.mrf.mxu0
    %v6269 = vadd.f32 0.0, %v6268
    %v6270 = vpop.f32.mrf.mxu0
    %6271 = vdwg.mxu0
    %6272 = vrot.lane.b32.xlu0 %v5624, 48
    %v6273 = vpop.permute.xlu0 %6272
    %6274 = vrot.lane.b32.xlu0 %v5629, 48
    %v6275 = vpop.permute.xlu0 %6274
    %v6279 = vsel %vm724, %v6091, 0
    %v6282 = vsel %vm724, %v6093, 0
    %6284 = vmatprep.subr.mxu0 0.0
    %6285 = vmatpush1.msra.mxu0 0.0
    %6286 = vmatprep.subr.mxu0 0.0
    %6287 = vmatpush1.msra.mxu0 0.0
    %6288 = vmatprep.subr.mxu0 0.0
    %6289 = vmatpush1.msra.mxu0 0.0
    %6290 = vmatprep.subr.mxu0 0.0
    %6291 = vmatpush1.msra.mxu0 0.0
    %6292 = vmatprep.subr.mxu0 0.0
    %6293 = vmatpush1.msra.mxu0 0.0
    %6294 = vmatprep.subr.mxu0 0.0
    %6295 = vmatpush1.msra.mxu0 0.0
    %6296 = vmatprep.subr.mxu0 0.0
    %6297 = vmatpush1.msra.mxu0 0.0
    %6298 = vmatprep.subr.mxu0 0.0
    %6299 = vmatpush1.msra.mxu0 0.0
    %6300 = vmatprep.subr.mxu0 0.0
    %6301 = vmatpush1.msra.mxu0 0.0
    %6302 = vmatprep.subr.mxu0 0.0
    %6303 = vmatpush1.msra.mxu0 0.0
    %6304 = vmatprep.subr.mxu0 0.0
    %6305 = vmatpush1.msra.mxu0 0.0
    %6306 = vmatprep.subr.mxu0 0.0
    %6307 = vmatpush1.msra.mxu0 0.0
    %6308 = vmatprep.subr.mxu0 0.0
    %6309 = vmatpush1.msra.mxu0 0.0
    %6310 = vmatprep.subr.mxu0 0.0
    %6311 = vmatpush1.msra.mxu0 0.0
    %6312 = vmatprep.subr.mxu0 0.0
    %6313 = vmatpush1.msra.mxu0 %v6275
    %6314 = vmatprep.subr.mxu0 0.0
    %6315 = vmatpush1.msra.mxu0 %v6273
    %6316 = vmatprep.subr.mxu0 0.0
    %6317 = vmatpush2.msra.mxu0 0.0
    %6318 = vmatprep.subr.mxu0 0.0
    %6319 = vmatpush2.msra.mxu0 0.0
    %6320 = vmatprep.subr.mxu0 0.0
    %6321 = vmatpush2.msra.mxu0 0.0
    %6322 = vmatprep.subr.mxu0 0.0
    %6323 = vmatpush2.msra.mxu0 0.0
    %6324 = vmatprep.subr.mxu0 0.0
    %6325 = vmatpush2.msra.mxu0 0.0
    %6326 = vmatprep.subr.mxu0 0.0
    %6327 = vmatpush2.msra.mxu0 0.0
    %6328 = vmatprep.subr.mxu0 0.0
    %6329 = vmatpush2.msra.mxu0 0.0
    %6330 = vmatprep.subr.mxu0 0.0
    %6331 = vmatpush2.msra.mxu0 0.0
    %6332 = vmatprep.subr.mxu0 0.0
    %6333 = vmatpush2.msra.mxu0 0.0
    %6334 = vmatprep.subr.mxu0 0.0
    %6335 = vmatpush2.msra.mxu0 0.0
    %6336 = vmatprep.subr.mxu0 0.0
    %6337 = vmatpush2.msra.mxu0 0.0
    %6338 = vmatprep.subr.mxu0 0.0
    %6339 = vmatpush2.msra.mxu0 0.0
    %6340 = vmatprep.subr.mxu0 0.0
    %6341 = vmatpush2.msra.mxu0 0.0
    %6342 = vmatprep.subr.mxu0 0.0
    %6343 = vmatpush2.msra.mxu0 0.0
    %6344 = vmatprep.subr.mxu0 0.0
    %6345 = vmatpush2.msra.mxu0 0.0
    %6346 = vmatprep.subr.mxu0 0.0
    %6347 = vmatpush2.msra.mxu0 0.0
    %6348 = vmatprep.mubr.f32.mxu0 0.0
    %6349 = vmatmul.mubr.f32.gmra.mxu0 %v6279
    %v6350 = vpop.f32.mrf.mxu0
    %v6351 = vadd.f32 0.0, %v6350
    %v6352 = vpop.f32.mrf.mxu0
    %6353 = vmatprep.mubr.f32.mxu0 0.0
    %6354 = vmatmul.mubr.f32.gmra.mxu0 %v6282
    %v6355 = vpop.f32.mrf.mxu0
    %v6356 = vadd.f32 0.0, %v6355
    %v6357 = vpop.f32.mrf.mxu0
    %6358 = vdwg.mxu0
    %6359 = vrot.lane.b32.xlu0 %v5624, 40
    %v6360 = vpop.permute.xlu0 %6359
    %6361 = vrot.lane.b32.xlu0 %v5629, 40
    %v6362 = vpop.permute.xlu0 %6361
    %v6366 = vsel %vm724, %v6095, 0
    %v6369 = vsel %vm724, %v6097, 0
    %6371 = vmatprep.subr.mxu0 0.0
    %6372 = vmatpush1.msra.mxu0 0.0
    %6373 = vmatprep.subr.mxu0 0.0
    %6374 = vmatpush1.msra.mxu0 0.0
    %6375 = vmatprep.subr.mxu0 0.0
    %6376 = vmatpush1.msra.mxu0 0.0
    %6377 = vmatprep.subr.mxu0 0.0
    %6378 = vmatpush1.msra.mxu0 0.0
    %6379 = vmatprep.subr.mxu0 0.0
    %6380 = vmatpush1.msra.mxu0 0.0
    %6381 = vmatprep.subr.mxu0 0.0
    %6382 = vmatpush1.msra.mxu0 0.0
    %6383 = vmatprep.subr.mxu0 0.0
    %6384 = vmatpush1.msra.mxu0 0.0
    %6385 = vmatprep.subr.mxu0 0.0
    %6386 = vmatpush1.msra.mxu0 0.0
    %6387 = vmatprep.subr.mxu0 0.0
    %6388 = vmatpush1.msra.mxu0 0.0
    %6389 = vmatprep.subr.mxu0 0.0
    %6390 = vmatpush1.msra.mxu0 0.0
    %6391 = vmatprep.subr.mxu0 0.0
    %6392 = vmatpush1.msra.mxu0 0.0
    %6393 = vmatprep.subr.mxu0 0.0
    %6394 = vmatpush1.msra.mxu0 0.0
    %6395 = vmatprep.subr.mxu0 0.0
    %6396 = vmatpush1.msra.mxu0 0.0
    %6397 = vmatprep.subr.mxu0 0.0
    %6398 = vmatpush1.msra.mxu0 0.0
    %6399 = vmatprep.subr.mxu0 0.0
    %6400 = vmatpush1.msra.mxu0 %v6362
    %6401 = vmatprep.subr.mxu0 0.0
    %6402 = vmatpush1.msra.mxu0 %v6360
    %6403 = vmatprep.subr.mxu0 0.0
    %6404 = vmatpush2.msra.mxu0 0.0
    %6405 = vmatprep.subr.mxu0 0.0
    %6406 = vmatpush2.msra.mxu0 0.0
    %6407 = vmatprep.subr.mxu0 0.0
    %6408 = vmatpush2.msra.mxu0 0.0
    %6409 = vmatprep.subr.mxu0 0.0
    %6410 = vmatpush2.msra.mxu0 0.0
    %6411 = vmatprep.subr.mxu0 0.0
    %6412 = vmatpush2.msra.mxu0 0.0
    %6413 = vmatprep.subr.mxu0 0.0
    %6414 = vmatpush2.msra.mxu0 0.0
    %6415 = vmatprep.subr.mxu0 0.0
    %6416 = vmatpush2.msra.mxu0 0.0
    %6417 = vmatprep.subr.mxu0 0.0
    %6418 = vmatpush2.msra.mxu0 0.0
    %6419 = vmatprep.subr.mxu0 0.0
    %6420 = vmatpush2.msra.mxu0 0.0
    %6421 = vmatprep.subr.mxu0 0.0
    %6422 = vmatpush2.msra.mxu0 0.0
    %6423 = vmatprep.subr.mxu0 0.0
    %6424 = vmatpush2.msra.mxu0 0.0
    %6425 = vmatprep.subr.mxu0 0.0
    %6426 = vmatpush2.msra.mxu0 0.0
    %6427 = vmatprep.subr.mxu0 0.0
    %6428 = vmatpush2.msra.mxu0 0.0
    %6429 = vmatprep.subr.mxu0 0.0
    %6430 = vmatpush2.msra.mxu0 0.0
    %6431 = vmatprep.subr.mxu0 0.0
    %6432 = vmatpush2.msra.mxu0 0.0
    %6433 = vmatprep.subr.mxu0 0.0
    %6434 = vmatpush2.msra.mxu0 0.0
    %6435 = vmatprep.mubr.f32.mxu0 0.0
    %6436 = vmatmul.mubr.f32.gmra.mxu0 %v6366
    %v6437 = vpop.f32.mrf.mxu0
    %v6438 = vadd.f32 0.0, %v6437
    %v6439 = vpop.f32.mrf.mxu0
    %6440 = vmatprep.mubr.f32.mxu0 0.0
    %6441 = vmatmul.mubr.f32.gmra.mxu0 %v6369
    %v6442 = vpop.f32.mrf.mxu0
    %v6443 = vadd.f32 0.0, %v6442
    %v6444 = vpop.f32.mrf.mxu0
    %6445 = vdwg.mxu0
    %6448 = vrot.lane.b32.xlu0 %v6264, 8
    %v6449 = vpop.permute.xlu0 %6448
    %6450 = vrot.lane.b32.xlu0 %v6269, 8
    %v6451 = vpop.permute.xlu0 %6450
    %6456 = vrot.lane.b32.xlu0 %v6351, 16
    %v6457 = vpop.permute.xlu0 %6456
    %6458 = vrot.lane.b32.xlu0 %v6356, 16
    %v6459 = vpop.permute.xlu0 %6458
    %6464 = vrot.lane.b32.xlu0 %v6438, 24
    %v6465 = vpop.permute.xlu0 %6464
    %6466 = vrot.lane.b32.xlu0 %v6443, 24
    %v6467 = vpop.permute.xlu0 %6466
    %v6470 = vsel %vm116, %v6177, %v6449
    %v6471 = vsel %vm116, %v6182, %v6451
    %v6472 = vsel %vm724, %v6470, %v6457
    %v6473 = vsel %vm724, %v6471, %v6459
    %v6474 = vsel %vm1189, %v6472, %v6465
    %v6475 = vsel %vm1189, %v6473, %v6467
    %s6476 = scalar_lea.vmem %s6, 128
    %v6477 = vld [vmem:[%s6476] sm:$0xff]
    %v6478 = vld [vmem:[%s6476 + $0x8] sm:$0xff]
    %v6479 = vld [vmem:[%s6476 + $0x10] sm:$0xff]
    %v6480 = vld [vmem:[%s6476 + $0x18] sm:$0xff]
    %s6481 = scalar_lea.vmem [#allocation5], 4
    %v6482 = vld [vmem:[%s6481] sm:$0x1]
    %v6484 = vlaneseq
    %v6485 = vshrl.u32 %v6484, 7
    %v6486 = vsub.s32 0, %v6485
    %v6487 = vrot.slane %v6482, %v6486
    %v6490 = vsel %vm264, %v6474, 0
    %v6493 = vsel %vm264, %v6475, 0
    %6495 = vmatprep.subr.mxu0 0.0
    %6496 = vmatpush1.msra.mxu0 0.0
    %6497 = vmatprep.subr.mxu0 0.0
    %6498 = vmatpush1.msra.mxu0 0.0
    %6499 = vmatprep.subr.mxu0 0.0
    %6500 = vmatpush1.msra.mxu0 0.0
    %6501 = vmatprep.subr.mxu0 0.0
    %6502 = vmatpush1.msra.mxu0 0.0
    %6503 = vmatprep.subr.mxu0 0.0
    %6504 = vmatpush1.msra.mxu0 0.0
    %6505 = vmatprep.subr.mxu0 0.0
    %6506 = vmatpush1.msra.mxu0 0.0
    %6507 = vmatprep.subr.mxu0 0.0
    %6508 = vmatpush1.msra.mxu0 0.0
    %6509 = vmatprep.subr.mxu0 0.0
    %6510 = vmatpush1.msra.mxu0 0.0
    %6511 = vmatprep.subr.mxu0 0.0
    %6512 = vmatpush1.msra.mxu0 0.0
    %6513 = vmatprep.subr.mxu0 0.0
    %6514 = vmatpush1.msra.mxu0 0.0
    %6515 = vmatprep.subr.mxu0 0.0
    %6516 = vmatpush1.msra.mxu0 0.0
    %6517 = vmatprep.subr.mxu0 0.0
    %6518 = vmatpush1.msra.mxu0 0.0
    %6519 = vmatprep.subr.mxu0 0.0
    %6520 = vmatpush1.msra.mxu0 %v6480
    %6521 = vmatprep.subr.mxu0 0.0
    %6522 = vmatpush1.msra.mxu0 %v6479
    %6523 = vmatprep.subr.mxu0 0.0
    %6524 = vmatpush1.msra.mxu0 %v6478
    %6525 = vmatprep.subr.mxu0 0.0
    %6526 = vmatpush1.msra.mxu0 %v6477
    %6527 = vmatprep.subr.mxu0 0.0
    %6528 = vmatpush2.msra.mxu0 0.0
    %6529 = vmatprep.subr.mxu0 0.0
    %6530 = vmatpush2.msra.mxu0 0.0
    %6531 = vmatprep.subr.mxu0 0.0
    %6532 = vmatpush2.msra.mxu0 0.0
    %6533 = vmatprep.subr.mxu0 0.0
    %6534 = vmatpush2.msra.mxu0 0.0
    %6535 = vmatprep.subr.mxu0 0.0
    %6536 = vmatpush2.msra.mxu0 0.0
    %6537 = vmatprep.subr.mxu0 0.0
    %6538 = vmatpush2.msra.mxu0 0.0
    %6539 = vmatprep.subr.mxu0 0.0
    %6540 = vmatpush2.msra.mxu0 0.0
    %6541 = vmatprep.subr.mxu0 0.0
    %6542 = vmatpush2.msra.mxu0 0.0
    %6543 = vmatprep.subr.mxu0 0.0
    %6544 = vmatpush2.msra.mxu0 0.0
    %6545 = vmatprep.subr.mxu0 0.0
    %6546 = vmatpush2.msra.mxu0 0.0
    %6547 = vmatprep.subr.mxu0 0.0
    %6548 = vmatpush2.msra.mxu0 0.0
    %6549 = vmatprep.subr.mxu0 0.0
    %6550 = vmatpush2.msra.mxu0 0.0
    %6551 = vmatprep.subr.mxu0 0.0
    %6552 = vmatpush2.msra.mxu0 0.0
    %6553 = vmatprep.subr.mxu0 0.0
    %6554 = vmatpush2.msra.mxu0 0.0
    %6555 = vmatprep.subr.mxu0 0.0
    %6556 = vmatpush2.msra.mxu0 0.0
    %6557 = vmatprep.subr.mxu0 0.0
    %6558 = vmatpush2.msra.mxu0 0.0
    %6559 = vmatprep.mubr.f32.mxu0 0.0
    %6560 = vmatmul.mubr.f32.gmra.mxu0 %v6490
    %v6561 = vpop.f32.mrf.mxu0
    %v6562 = vadd.f32 %v6487, %v6561
    %v6563 = vpop.f32.mrf.mxu0
    %6564 = vmatprep.mubr.f32.mxu0 0.0
    %6565 = vmatmul.mubr.f32.gmra.mxu0 %v6493
    %v6566 = vpop.f32.mrf.mxu0
    %v6567 = vadd.f32 %v6487, %v6566
    %v6568 = vpop.f32.mrf.mxu0
    %6569 = vdwg.mxu0
    %v6570 = vadd.f32 %v5536, %v6562
    %v6571 = vadd.f32 %v5537, %v6567
    %v6572 = vsel %vm264, %v6570, 0.0
    %6573 = vadd.xlane.f32.xlu0 %v6572
    %v6574 = vpop.xlane.xlu0 %6573
    %v6575 = vsel %vm264, %v6571, 0.0
    %6576 = vadd.xlane.f32.xlu0 %v6575
    %v6577 = vpop.xlane.xlu0 %6576
    %v6578 = vmul.f32 %v6574, %v1292
    %v6579 = vmul.f32 %v6577, %v1292
    %v6580 = vsub.f32 %v6570, %v6578
    %v6581 = vsub.f32 %v6571, %v6579
    %v6582 = vmul.f32 %v6580, %v6580
    %v6583 = vmul.f32 %v6581, %v6581
    %v6584 = vsel %vm264, %v6582, 0.0
    %6585 = vadd.xlane.f32.xlu0 %v6584
    %v6586 = vpop.xlane.xlu0 %6585
    %v6587 = vsel %vm264, %v6583, 0.0
    %6588 = vadd.xlane.f32.xlu0 %v6587
    %v6589 = vpop.xlane.xlu0 %6588
    %v6590 = vmul.f32 %v6586, %v1292
    %v6591 = vmul.f32 %v6589, %v1292
    %v6592 = vadd.f32 %v6590, 1e-05
    %v6593 = vadd.f32 %v6591, 1e-05
    %v6594 = vrsqrt.pop %v6592
    %v6595 = vrsqrt.pop %v6593
    %v6596 = vmul.f32 %v6580, %v6594
    %v6597 = vmul.f32 %v6581, %v6595
    %s6598 = scalar_lea.vmem %s12, 8
    %v6599 = vld [vmem:[%s6598] sm:$0x1]
    %v6601 = vlaneseq
    %v6602 = vshrl.u32 %v6601, 7
    %v6603 = vsub.s32 0, %v6602
    %v6604 = vrot.slane %v6599, %v6603
    %v6606 = vmul.f32 %v6596, %v6604
    %v6607 = vmul.f32 %v6597, %v6604
    %s6608 = scalar_lea.vmem %s13, 8
    %v6609 = vld [vmem:[%s6608] sm:$0x1]
    %v6611 = vlaneseq
    %v6612 = vshrl.u32 %v6611, 7
    %v6613 = vsub.s32 0, %v6612
    %v6614 = vrot.slane %v6609, %v6613
    %v6616 = vadd.f32 %v6606, %v6614
    %v6617 = vadd.f32 %v6607, %v6614
    %s6618 = scalar_lea.vmem %s4, 160
    %v6619 = vld [vmem:[%s6618] sm:$0xff]
    %v6620 = vld [vmem:[%s6618 + $0x8] sm:$0xff]
    %v6621 = vld [vmem:[%s6618 + $0x10] sm:$0xff]
    %v6622 = vld [vmem:[%s6618 + $0x18] sm:$0xff]
    %s6623 = scalar_lea.vmem [#allocation2], 5
    %v6624 = vld [vmem:[%s6623] sm:$0x1]
    %v6626 = vlaneseq
    %v6627 = vshrl.u32 %v6626, 7
    %v6628 = vsub.s32 0, %v6627
    %v6629 = vrot.slane %v6624, %v6628
    %v6632 = vsel %vm264, %v6616, 0
    %v6635 = vsel %vm264, %v6617, 0
    %6637 = vmatprep.subr.mxu0 0.0
    %6638 = vmatpush1.msra.mxu0 0.0
    %6639 = vmatprep.subr.mxu0 0.0
    %6640 = vmatpush1.msra.mxu0 0.0
    %6641 = vmatprep.subr.mxu0 0.0
    %6642 = vmatpush1.msra.mxu0 0.0
    %6643 = vmatprep.subr.mxu0 0.0
    %6644 = vmatpush1.msra.mxu0 0.0
    %6645 = vmatprep.subr.mxu0 0.0
    %6646 = vmatpush1.msra.mxu0 0.0
    %6647 = vmatprep.subr.mxu0 0.0
    %6648 = vmatpush1.msra.mxu0 0.0
    %6649 = vmatprep.subr.mxu0 0.0
    %6650 = vmatpush1.msra.mxu0 0.0
    %6651 = vmatprep.subr.mxu0 0.0
    %6652 = vmatpush1.msra.mxu0 0.0
    %6653 = vmatprep.subr.mxu0 0.0
    %6654 = vmatpush1.msra.mxu0 0.0
    %6655 = vmatprep.subr.mxu0 0.0
    %6656 = vmatpush1.msra.mxu0 0.0
    %6657 = vmatprep.subr.mxu0 0.0
    %6658 = vmatpush1.msra.mxu0 0.0
    %6659 = vmatprep.subr.mxu0 0.0
    %6660 = vmatpush1.msra.mxu0 0.0
    %6661 = vmatprep.subr.mxu0 0.0
    %6662 = vmatpush1.msra.mxu0 %v6622
    %6663 = vmatprep.subr.mxu0 0.0
    %6664 = vmatpush1.msra.mxu0 %v6621
    %6665 = vmatprep.subr.mxu0 0.0
    %6666 = vmatpush1.msra.mxu0 %v6620
    %6667 = vmatprep.subr.mxu0 0.0
    %6668 = vmatpush1.msra.mxu0 %v6619
    %6669 = vmatprep.subr.mxu0 0.0
    %6670 = vmatpush2.msra.mxu0 0.0
    %6671 = vmatprep.subr.mxu0 0.0
    %6672 = vmatpush2.msra.mxu0 0.0
    %6673 = vmatprep.subr.mxu0 0.0
    %6674 = vmatpush2.msra.mxu0 0.0
    %6675 = vmatprep.subr.mxu0 0.0
    %6676 = vmatpush2.msra.mxu0 0.0
    %6677 = vmatprep.subr.mxu0 0.0
    %6678 = vmatpush2.msra.mxu0 0.0
    %6679 = vmatprep.subr.mxu0 0.0
    %6680 = vmatpush2.msra.mxu0 0.0
    %6681 = vmatprep.subr.mxu0 0.0
    %6682 = vmatpush2.msra.mxu0 0.0
    %6683 = vmatprep.subr.mxu0 0.0
    %6684 = vmatpush2.msra.mxu0 0.0
    %6685 = vmatprep.subr.mxu0 0.0
    %6686 = vmatpush2.msra.mxu0 0.0
    %6687 = vmatprep.subr.mxu0 0.0
    %6688 = vmatpush2.msra.mxu0 0.0
    %6689 = vmatprep.subr.mxu0 0.0
    %6690 = vmatpush2.msra.mxu0 0.0
    %6691 = vmatprep.subr.mxu0 0.0
    %6692 = vmatpush2.msra.mxu0 0.0
    %6693 = vmatprep.subr.mxu0 0.0
    %6694 = vmatpush2.msra.mxu0 0.0
    %6695 = vmatprep.subr.mxu0 0.0
    %6696 = vmatpush2.msra.mxu0 0.0
    %6697 = vmatprep.subr.mxu0 0.0
    %6698 = vmatpush2.msra.mxu0 0.0
    %6699 = vmatprep.subr.mxu0 0.0
    %6700 = vmatpush2.msra.mxu0 0.0
    %6701 = vmatprep.mubr.f32.mxu0 0.0
    %6702 = vmatmul.mubr.f32.gmra.mxu0 %v6632
    %v6703 = vpop.f32.mrf.mxu0
    %v6704 = vadd.f32 %v6629, %v6703
    %v6705 = vpop.f32.mrf.mxu0
    %6706 = vmatprep.mubr.f32.mxu0 0.0
    %6707 = vmatmul.mubr.f32.gmra.mxu0 %v6635
    %v6708 = vpop.f32.mrf.mxu0
    %v6709 = vadd.f32 %v6629, %v6708
    %v6710 = vpop.f32.mrf.mxu0
    %6711 = vdwg.mxu0
    %6716 = vrot.lane.b32.xlu0 %v6619, 96
    %v6717 = vpop.permute.xlu0 %6716
    %6718 = vrot.lane.b32.xlu0 %v6620, 96
    %v6719 = vpop.permute.xlu0 %6718
    %6720 = vrot.lane.b32.xlu0 %v6621, 96
    %v6721 = vpop.permute.xlu0 %6720
    %6722 = vrot.lane.b32.xlu0 %v6622, 96
    %v6723 = vpop.permute.xlu0 %6722
    %6728 = vrot.lane.b32.xlu0 %v6629, 96
    %v6729 = vpop.permute.xlu0 %6728
    %6731 = vmatprep.subr.mxu0 0.0
    %6732 = vmatpush1.msra.mxu0 0.0
    %6733 = vmatprep.subr.mxu0 0.0
    %6734 = vmatpush1.msra.mxu0 0.0
    %6735 = vmatprep.subr.mxu0 0.0
    %6736 = vmatpush1.msra.mxu0 0.0
    %6737 = vmatprep.subr.mxu0 0.0
    %6738 = vmatpush1.msra.mxu0 0.0
    %6739 = vmatprep.subr.mxu0 0.0
    %6740 = vmatpush1.msra.mxu0 0.0
    %6741 = vmatprep.subr.mxu0 0.0
    %6742 = vmatpush1.msra.mxu0 0.0
    %6743 = vmatprep.subr.mxu0 0.0
    %6744 = vmatpush1.msra.mxu0 0.0
    %6745 = vmatprep.subr.mxu0 0.0
    %6746 = vmatpush1.msra.mxu0 0.0
    %6747 = vmatprep.subr.mxu0 0.0
    %6748 = vmatpush1.msra.mxu0 0.0
    %6749 = vmatprep.subr.mxu0 0.0
    %6750 = vmatpush1.msra.mxu0 0.0
    %6751 = vmatprep.subr.mxu0 0.0
    %6752 = vmatpush1.msra.mxu0 0.0
    %6753 = vmatprep.subr.mxu0 0.0
    %6754 = vmatpush1.msra.mxu0 0.0
    %6755 = vmatprep.subr.mxu0 0.0
    %6756 = vmatpush1.msra.mxu0 %v6723
    %6757 = vmatprep.subr.mxu0 0.0
    %6758 = vmatpush1.msra.mxu0 %v6721
    %6759 = vmatprep.subr.mxu0 0.0
    %6760 = vmatpush1.msra.mxu0 %v6719
    %6761 = vmatprep.subr.mxu0 0.0
    %6762 = vmatpush1.msra.mxu0 %v6717
    %6763 = vmatprep.subr.mxu0 0.0
    %6764 = vmatpush2.msra.mxu0 0.0
    %6765 = vmatprep.subr.mxu0 0.0
    %6766 = vmatpush2.msra.mxu0 0.0
    %6767 = vmatprep.subr.mxu0 0.0
    %6768 = vmatpush2.msra.mxu0 0.0
    %6769 = vmatprep.subr.mxu0 0.0
    %6770 = vmatpush2.msra.mxu0 0.0
    %6771 = vmatprep.subr.mxu0 0.0
    %6772 = vmatpush2.msra.mxu0 0.0
    %6773 = vmatprep.subr.mxu0 0.0
    %6774 = vmatpush2.msra.mxu0 0.0
    %6775 = vmatprep.subr.mxu0 0.0
    %6776 = vmatpush2.msra.mxu0 0.0
    %6777 = vmatprep.subr.mxu0 0.0
    %6778 = vmatpush2.msra.mxu0 0.0
    %6779 = vmatprep.subr.mxu0 0.0
    %6780 = vmatpush2.msra.mxu0 0.0
    %6781 = vmatprep.subr.mxu0 0.0
    %6782 = vmatpush2.msra.mxu0 0.0
    %6783 = vmatprep.subr.mxu0 0.0
    %6784 = vmatpush2.msra.mxu0 0.0
    %6785 = vmatprep.subr.mxu0 0.0
    %6786 = vmatpush2.msra.mxu0 0.0
    %6787 = vmatprep.subr.mxu0 0.0
    %6788 = vmatpush2.msra.mxu0 0.0
    %6789 = vmatprep.subr.mxu0 0.0
    %6790 = vmatpush2.msra.mxu0 0.0
    %6791 = vmatprep.subr.mxu0 0.0
    %6792 = vmatpush2.msra.mxu0 0.0
    %6793 = vmatprep.subr.mxu0 0.0
    %6794 = vmatpush2.msra.mxu0 0.0
    %6795 = vmatprep.mubr.f32.mxu0 0.0
    %6796 = vmatmul.mubr.f32.gmra.mxu0 %v4232
    %v6797 = vpop.f32.mrf.mxu0
    %v6798 = vadd.f32 %v6729, %v6797
    %v6799 = vpop.f32.mrf.mxu0
    %6800 = vmatprep.mubr.f32.mxu0 0.0
    %6801 = vmatmul.mubr.f32.gmra.mxu0 %v4235
    %v6802 = vpop.f32.mrf.mxu0
    %v6803 = vadd.f32 %v6729, %v6802
    %v6804 = vpop.f32.mrf.mxu0
    %6805 = vdwg.mxu0
    %v6807 = vsel %vm116, %v6704, 0
    %v6810 = vsel %vm116, %v6709, 0
    %v6813 = vsel %vm116, %v6798, 0
    %v6816 = vsel %vm116, %v6803, 0
    %6818 = vmatprep.subr.mxu0 0.0
    %6819 = vmatpush1.xpose.msra.mxu0 0.0
    %6820 = vmatprep.subr.mxu0 0.0
    %6821 = vmatpush1.xpose.msra.mxu0 0.0
    %6822 = vmatprep.subr.mxu0 0.0
    %6823 = vmatpush1.xpose.msra.mxu0 0.0
    %6824 = vmatprep.subr.mxu0 0.0
    %6825 = vmatpush1.xpose.msra.mxu0 0.0
    %6826 = vmatprep.subr.mxu0 0.0
    %6827 = vmatpush1.xpose.msra.mxu0 0.0
    %6828 = vmatprep.subr.mxu0 0.0
    %6829 = vmatpush1.xpose.msra.mxu0 0.0
    %6830 = vmatprep.subr.mxu0 0.0
    %6831 = vmatpush1.xpose.msra.mxu0 0.0
    %6832 = vmatprep.subr.mxu0 0.0
    %6833 = vmatpush1.xpose.msra.mxu0 0.0
    %6834 = vmatprep.subr.mxu0 0.0
    %6835 = vmatpush1.xpose.msra.mxu0 0.0
    %6836 = vmatprep.subr.mxu0 0.0
    %6837 = vmatpush1.xpose.msra.mxu0 0.0
    %6838 = vmatprep.subr.mxu0 0.0
    %6839 = vmatpush1.xpose.msra.mxu0 0.0
    %6840 = vmatprep.subr.mxu0 0.0
    %6841 = vmatpush1.xpose.msra.mxu0 0.0
    %6842 = vmatprep.subr.mxu0 0.0
    %6843 = vmatpush1.xpose.msra.mxu0 0.0
    %6844 = vmatprep.subr.mxu0 0.0
    %6845 = vmatpush1.xpose.msra.mxu0 0.0
    %6846 = vmatprep.subr.mxu0 0.0
    %6847 = vmatpush1.xpose.msra.mxu0 %v6816
    %6848 = vmatprep.subr.mxu0 0.0
    %6849 = vmatpush1.xpose.msra.mxu0 %v6813
    %6850 = vmatprep.subr.mxu0 0.0
    %6851 = vmatpush2.xpose.msra.mxu0 0.0
    %6852 = vmatprep.subr.mxu0 0.0
    %6853 = vmatpush2.xpose.msra.mxu0 0.0
    %6854 = vmatprep.subr.mxu0 0.0
    %6855 = vmatpush2.xpose.msra.mxu0 0.0
    %6856 = vmatprep.subr.mxu0 0.0
    %6857 = vmatpush2.xpose.msra.mxu0 0.0
    %6858 = vmatprep.subr.mxu0 0.0
    %6859 = vmatpush2.xpose.msra.mxu0 0.0
    %6860 = vmatprep.subr.mxu0 0.0
    %6861 = vmatpush2.xpose.msra.mxu0 0.0
    %6862 = vmatprep.subr.mxu0 0.0
    %6863 = vmatpush2.xpose.msra.mxu0 0.0
    %6864 = vmatprep.subr.mxu0 0.0
    %6865 = vmatpush2.xpose.msra.mxu0 0.0
    %6866 = vmatprep.subr.mxu0 0.0
    %6867 = vmatpush2.xpose.msra.mxu0 0.0
    %6868 = vmatprep.subr.mxu0 0.0
    %6869 = vmatpush2.xpose.msra.mxu0 0.0
    %6870 = vmatprep.subr.mxu0 0.0
    %6871 = vmatpush2.xpose.msra.mxu0 0.0
    %6872 = vmatprep.subr.mxu0 0.0
    %6873 = vmatpush2.xpose.msra.mxu0 0.0
    %6874 = vmatprep.subr.mxu0 0.0
    %6875 = vmatpush2.xpose.msra.mxu0 0.0
    %6876 = vmatprep.subr.mxu0 0.0
    %6877 = vmatpush2.xpose.msra.mxu0 0.0
    %6878 = vmatprep.subr.mxu0 0.0
    %6879 = vmatpush2.xpose.msra.mxu0 0.0
    %6880 = vmatprep.subr.mxu0 0.0
    %6881 = vmatpush2.xpose.msra.mxu0 0.0
    %6882 = vmatprep.mubr.f32.mxu0 0.0
    %6883 = vmatmul.mubr.f32.gmra.mxu0 %v6807
    %v6884 = vpop.f32.mrf.mxu0
    %v6885 = vadd.f32 0.0, %v6884
    %v6886 = vpop.f32.mrf.mxu0
    %6887 = vmatprep.mubr.f32.mxu0 0.0
    %6888 = vmatmul.mubr.f32.gmra.mxu0 %v6810
    %v6889 = vpop.f32.mrf.mxu0
    %v6890 = vadd.f32 0.0, %v6889
    %v6891 = vpop.f32.mrf.mxu0
    %6892 = vdwg.mxu0
    %6893 = vrot.lane.b32.xlu0 %v6704, 120
    %v6894 = vpop.permute.xlu0 %6893
    %6895 = vrot.lane.b32.xlu0 %v6709, 120
    %v6896 = vpop.permute.xlu0 %6895
    %6897 = vrot.lane.b32.xlu0 %v6798, 120
    %v6898 = vpop.permute.xlu0 %6897
    %6899 = vrot.lane.b32.xlu0 %v6803, 120
    %v6900 = vpop.permute.xlu0 %6899
    %v6901 = vsel %vm116, %v6894, 0
    %v6903 = vsel %vm116, %v6896, 0
    %v6905 = vsel %vm116, %v6898, 0
    %v6907 = vsel %vm116, %v6900, 0
    %6909 = vmatprep.subr.mxu0 0.0
    %6910 = vmatpush1.xpose.msra.mxu0 0.0
    %6911 = vmatprep.subr.mxu0 0.0
    %6912 = vmatpush1.xpose.msra.mxu0 0.0
    %6913 = vmatprep.subr.mxu0 0.0
    %6914 = vmatpush1.xpose.msra.mxu0 0.0
    %6915 = vmatprep.subr.mxu0 0.0
    %6916 = vmatpush1.xpose.msra.mxu0 0.0
    %6917 = vmatprep.subr.mxu0 0.0
    %6918 = vmatpush1.xpose.msra.mxu0 0.0
    %6919 = vmatprep.subr.mxu0 0.0
    %6920 = vmatpush1.xpose.msra.mxu0 0.0
    %6921 = vmatprep.subr.mxu0 0.0
    %6922 = vmatpush1.xpose.msra.mxu0 0.0
    %6923 = vmatprep.subr.mxu0 0.0
    %6924 = vmatpush1.xpose.msra.mxu0 0.0
    %6925 = vmatprep.subr.mxu0 0.0
    %6926 = vmatpush1.xpose.msra.mxu0 0.0
    %6927 = vmatprep.subr.mxu0 0.0
    %6928 = vmatpush1.xpose.msra.mxu0 0.0
    %6929 = vmatprep.subr.mxu0 0.0
    %6930 = vmatpush1.xpose.msra.mxu0 0.0
    %6931 = vmatprep.subr.mxu0 0.0
    %6932 = vmatpush1.xpose.msra.mxu0 0.0
    %6933 = vmatprep.subr.mxu0 0.0
    %6934 = vmatpush1.xpose.msra.mxu0 0.0
    %6935 = vmatprep.subr.mxu0 0.0
    %6936 = vmatpush1.xpose.msra.mxu0 0.0
    %6937 = vmatprep.subr.mxu0 0.0
    %6938 = vmatpush1.xpose.msra.mxu0 %v6907
    %6939 = vmatprep.subr.mxu0 0.0
    %6940 = vmatpush1.xpose.msra.mxu0 %v6905
    %6941 = vmatprep.subr.mxu0 0.0
    %6942 = vmatpush2.xpose.msra.mxu0 0.0
    %6943 = vmatprep.subr.mxu0 0.0
    %6944 = vmatpush2.xpose.msra.mxu0 0.0
    %6945 = vmatprep.subr.mxu0 0.0
    %6946 = vmatpush2.xpose.msra.mxu0 0.0
    %6947 = vmatprep.subr.mxu0 0.0
    %6948 = vmatpush2.xpose.msra.mxu0 0.0
    %6949 = vmatprep.subr.mxu0 0.0
    %6950 = vmatpush2.xpose.msra.mxu0 0.0
    %6951 = vmatprep.subr.mxu0 0.0
    %6952 = vmatpush2.xpose.msra.mxu0 0.0
    %6953 = vmatprep.subr.mxu0 0.0
    %6954 = vmatpush2.xpose.msra.mxu0 0.0
    %6955 = vmatprep.subr.mxu0 0.0
    %6956 = vmatpush2.xpose.msra.mxu0 0.0
    %6957 = vmatprep.subr.mxu0 0.0
    %6958 = vmatpush2.xpose.msra.mxu0 0.0
    %6959 = vmatprep.subr.mxu0 0.0
    %6960 = vmatpush2.xpose.msra.mxu0 0.0
    %6961 = vmatprep.subr.mxu0 0.0
    %6962 = vmatpush2.xpose.msra.mxu0 0.0
    %6963 = vmatprep.subr.mxu0 0.0
    %6964 = vmatpush2.xpose.msra.mxu0 0.0
    %6965 = vmatprep.subr.mxu0 0.0
    %6966 = vmatpush2.xpose.msra.mxu0 0.0
    %6967 = vmatprep.subr.mxu0 0.0
    %6968 = vmatpush2.xpose.msra.mxu0 0.0
    %6969 = vmatprep.subr.mxu0 0.0
    %6970 = vmatpush2.xpose.msra.mxu0 0.0
    %6971 = vmatprep.subr.mxu0 0.0
    %6972 = vmatpush2.xpose.msra.mxu0 0.0
    %6973 = vmatprep.mubr.f32.mxu0 0.0
    %6974 = vmatmul.mubr.f32.gmra.mxu0 %v6901
    %v6975 = vpop.f32.mrf.mxu0
    %v6976 = vadd.f32 0.0, %v6975
    %v6977 = vpop.f32.mrf.mxu0
    %6978 = vmatprep.mubr.f32.mxu0 0.0
    %6979 = vmatmul.mubr.f32.gmra.mxu0 %v6903
    %v6980 = vpop.f32.mrf.mxu0
    %v6981 = vadd.f32 0.0, %v6980
    %v6982 = vpop.f32.mrf.mxu0
    %6983 = vdwg.mxu0
    %6984 = vrot.lane.b32.xlu0 %v6704, 112
    %v6985 = vpop.permute.xlu0 %6984
    %6986 = vrot.lane.b32.xlu0 %v6709, 112
    %v6987 = vpop.permute.xlu0 %6986
    %6988 = vrot.lane.b32.xlu0 %v6798, 112
    %v6989 = vpop.permute.xlu0 %6988
    %6990 = vrot.lane.b32.xlu0 %v6803, 112
    %v6991 = vpop.permute.xlu0 %6990
    %v6992 = vsel %vm116, %v6985, 0
    %v6994 = vsel %vm116, %v6987, 0
    %v6996 = vsel %vm116, %v6989, 0
    %v6998 = vsel %vm116, %v6991, 0
    %7000 = vmatprep.subr.mxu0 0.0
    %7001 = vmatpush1.xpose.msra.mxu0 0.0
    %7002 = vmatprep.subr.mxu0 0.0
    %7003 = vmatpush1.xpose.msra.mxu0 0.0
    %7004 = vmatprep.subr.mxu0 0.0
    %7005 = vmatpush1.xpose.msra.mxu0 0.0
    %7006 = vmatprep.subr.mxu0 0.0
    %7007 = vmatpush1.xpose.msra.mxu0 0.0
    %7008 = vmatprep.subr.mxu0 0.0
    %7009 = vmatpush1.xpose.msra.mxu0 0.0
    %7010 = vmatprep.subr.mxu0 0.0
    %7011 = vmatpush1.xpose.msra.mxu0 0.0
    %7012 = vmatprep.subr.mxu0 0.0
    %7013 = vmatpush1.xpose.msra.mxu0 0.0
    %7014 = vmatprep.subr.mxu0 0.0
    %7015 = vmatpush1.xpose.msra.mxu0 0.0
    %7016 = vmatprep.subr.mxu0 0.0
    %7017 = vmatpush1.xpose.msra.mxu0 0.0
    %7018 = vmatprep.subr.mxu0 0.0
    %7019 = vmatpush1.xpose.msra.mxu0 0.0
    %7020 = vmatprep.subr.mxu0 0.0
    %7021 = vmatpush1.xpose.msra.mxu0 0.0
    %7022 = vmatprep.subr.mxu0 0.0
    %7023 = vmatpush1.xpose.msra.mxu0 0.0
    %7024 = vmatprep.subr.mxu0 0.0
    %7025 = vmatpush1.xpose.msra.mxu0 0.0
    %7026 = vmatprep.subr.mxu0 0.0
    %7027 = vmatpush1.xpose.msra.mxu0 0.0
    %7028 = vmatprep.subr.mxu0 0.0
    %7029 = vmatpush1.xpose.msra.mxu0 %v6998
    %7030 = vmatprep.subr.mxu0 0.0
    %7031 = vmatpush1.xpose.msra.mxu0 %v6996
    %7032 = vmatprep.subr.mxu0 0.0
    %7033 = vmatpush2.xpose.msra.mxu0 0.0
    %7034 = vmatprep.subr.mxu0 0.0
    %7035 = vmatpush2.xpose.msra.mxu0 0.0
    %7036 = vmatprep.subr.mxu0 0.0
    %7037 = vmatpush2.xpose.msra.mxu0 0.0
    %7038 = vmatprep.subr.mxu0 0.0
    %7039 = vmatpush2.xpose.msra.mxu0 0.0
    %7040 = vmatprep.subr.mxu0 0.0
    %7041 = vmatpush2.xpose.msra.mxu0 0.0
    %7042 = vmatprep.subr.mxu0 0.0
    %7043 = vmatpush2.xpose.msra.mxu0 0.0
    %7044 = vmatprep.subr.mxu0 0.0
    %7045 = vmatpush2.xpose.msra.mxu0 0.0
    %7046 = vmatprep.subr.mxu0 0.0
    %7047 = vmatpush2.xpose.msra.mxu0 0.0
    %7048 = vmatprep.subr.mxu0 0.0
    %7049 = vmatpush2.xpose.msra.mxu0 0.0
    %7050 = vmatprep.subr.mxu0 0.0
    %7051 = vmatpush2.xpose.msra.mxu0 0.0
    %7052 = vmatprep.subr.mxu0 0.0
    %7053 = vmatpush2.xpose.msra.mxu0 0.0
    %7054 = vmatprep.subr.mxu0 0.0
    %7055 = vmatpush2.xpose.msra.mxu0 0.0
    %7056 = vmatprep.subr.mxu0 0.0
    %7057 = vmatpush2.xpose.msra.mxu0 0.0
    %7058 = vmatprep.subr.mxu0 0.0
    %7059 = vmatpush2.xpose.msra.mxu0 0.0
    %7060 = vmatprep.subr.mxu0 0.0
    %7061 = vmatpush2.xpose.msra.mxu0 0.0
    %7062 = vmatprep.subr.mxu0 0.0
    %7063 = vmatpush2.xpose.msra.mxu0 0.0
    %7064 = vmatprep.mubr.f32.mxu0 0.0
    %7065 = vmatmul.mubr.f32.gmra.mxu0 %v6992
    %v7066 = vpop.f32.mrf.mxu0
    %v7067 = vadd.f32 0.0, %v7066
    %v7068 = vpop.f32.mrf.mxu0
    %7069 = vmatprep.mubr.f32.mxu0 0.0
    %7070 = vmatmul.mubr.f32.gmra.mxu0 %v6994
    %v7071 = vpop.f32.mrf.mxu0
    %v7072 = vadd.f32 0.0, %v7071
    %v7073 = vpop.f32.mrf.mxu0
    %7074 = vdwg.mxu0
    %7075 = vrot.lane.b32.xlu0 %v6704, 104
    %v7076 = vpop.permute.xlu0 %7075
    %7077 = vrot.lane.b32.xlu0 %v6709, 104
    %v7078 = vpop.permute.xlu0 %7077
    %7079 = vrot.lane.b32.xlu0 %v6798, 104
    %v7080 = vpop.permute.xlu0 %7079
    %7081 = vrot.lane.b32.xlu0 %v6803, 104
    %v7082 = vpop.permute.xlu0 %7081
    %v7083 = vsel %vm116, %v7076, 0
    %v7085 = vsel %vm116, %v7078, 0
    %v7087 = vsel %vm116, %v7080, 0
    %v7089 = vsel %vm116, %v7082, 0
    %7091 = vmatprep.subr.mxu0 0.0
    %7092 = vmatpush1.xpose.msra.mxu0 0.0
    %7093 = vmatprep.subr.mxu0 0.0
    %7094 = vmatpush1.xpose.msra.mxu0 0.0
    %7095 = vmatprep.subr.mxu0 0.0
    %7096 = vmatpush1.xpose.msra.mxu0 0.0
    %7097 = vmatprep.subr.mxu0 0.0
    %7098 = vmatpush1.xpose.msra.mxu0 0.0
    %7099 = vmatprep.subr.mxu0 0.0
    %7100 = vmatpush1.xpose.msra.mxu0 0.0
    %7101 = vmatprep.subr.mxu0 0.0
    %7102 = vmatpush1.xpose.msra.mxu0 0.0
    %7103 = vmatprep.subr.mxu0 0.0
    %7104 = vmatpush1.xpose.msra.mxu0 0.0
    %7105 = vmatprep.subr.mxu0 0.0
    %7106 = vmatpush1.xpose.msra.mxu0 0.0
    %7107 = vmatprep.subr.mxu0 0.0
    %7108 = vmatpush1.xpose.msra.mxu0 0.0
    %7109 = vmatprep.subr.mxu0 0.0
    %7110 = vmatpush1.xpose.msra.mxu0 0.0
    %7111 = vmatprep.subr.mxu0 0.0
    %7112 = vmatpush1.xpose.msra.mxu0 0.0
    %7113 = vmatprep.subr.mxu0 0.0
    %7114 = vmatpush1.xpose.msra.mxu0 0.0
    %7115 = vmatprep.subr.mxu0 0.0
    %7116 = vmatpush1.xpose.msra.mxu0 0.0
    %7117 = vmatprep.subr.mxu0 0.0
    %7118 = vmatpush1.xpose.msra.mxu0 0.0
    %7119 = vmatprep.subr.mxu0 0.0
    %7120 = vmatpush1.xpose.msra.mxu0 %v7089
    %7121 = vmatprep.subr.mxu0 0.0
    %7122 = vmatpush1.xpose.msra.mxu0 %v7087
    %7123 = vmatprep.subr.mxu0 0.0
    %7124 = vmatpush2.xpose.msra.mxu0 0.0
    %7125 = vmatprep.subr.mxu0 0.0
    %7126 = vmatpush2.xpose.msra.mxu0 0.0
    %7127 = vmatprep.subr.mxu0 0.0
    %7128 = vmatpush2.xpose.msra.mxu0 0.0
    %7129 = vmatprep.subr.mxu0 0.0
    %7130 = vmatpush2.xpose.msra.mxu0 0.0
    %7131 = vmatprep.subr.mxu0 0.0
    %7132 = vmatpush2.xpose.msra.mxu0 0.0
    %7133 = vmatprep.subr.mxu0 0.0
    %7134 = vmatpush2.xpose.msra.mxu0 0.0
    %7135 = vmatprep.subr.mxu0 0.0
    %7136 = vmatpush2.xpose.msra.mxu0 0.0
    %7137 = vmatprep.subr.mxu0 0.0
    %7138 = vmatpush2.xpose.msra.mxu0 0.0
    %7139 = vmatprep.subr.mxu0 0.0
    %7140 = vmatpush2.xpose.msra.mxu0 0.0
    %7141 = vmatprep.subr.mxu0 0.0
    %7142 = vmatpush2.xpose.msra.mxu0 0.0
    %7143 = vmatprep.subr.mxu0 0.0
    %7144 = vmatpush2.xpose.msra.mxu0 0.0
    %7145 = vmatprep.subr.mxu0 0.0
    %7146 = vmatpush2.xpose.msra.mxu0 0.0
    %7147 = vmatprep.subr.mxu0 0.0
    %7148 = vmatpush2.xpose.msra.mxu0 0.0
    %7149 = vmatprep.subr.mxu0 0.0
    %7150 = vmatpush2.xpose.msra.mxu0 0.0
    %7151 = vmatprep.subr.mxu0 0.0
    %7152 = vmatpush2.xpose.msra.mxu0 0.0
    %7153 = vmatprep.subr.mxu0 0.0
    %7154 = vmatpush2.xpose.msra.mxu0 0.0
    %7155 = vmatprep.mubr.f32.mxu0 0.0
    %7156 = vmatmul.mubr.f32.gmra.mxu0 %v7083
    %v7157 = vpop.f32.mrf.mxu0
    %v7158 = vadd.f32 0.0, %v7157
    %v7159 = vpop.f32.mrf.mxu0
    %7160 = vmatprep.mubr.f32.mxu0 0.0
    %7161 = vmatmul.mubr.f32.gmra.mxu0 %v7085
    %v7162 = vpop.f32.mrf.mxu0
    %v7163 = vadd.f32 0.0, %v7162
    %v7164 = vpop.f32.mrf.mxu0
    %7165 = vdwg.mxu0
    %v7166 = vmul.f32 %v6885, 0.35355338
    %v7167 = vmul.f32 %v6890, 0.35355338
    %v7168 = vmul.f32 %v6976, 0.35355338
    %v7169 = vmul.f32 %v6981, 0.35355338
    %v7170 = vmul.f32 %v7067, 0.35355338
    %v7171 = vmul.f32 %v7072, 0.35355338
    %v7172 = vmul.f32 %v7158, 0.35355338
    %v7173 = vmul.f32 %v7163, 0.35355338
    %v7174 = vadd.f32 %v7166, %v134
    %v7175 = vadd.f32 %v7167, %v135
    %v7176 = vadd.f32 %v7168, %v134
    %v7177 = vadd.f32 %v7169, %v135
    %v7178 = vadd.f32 %v7170, %v134
    %v7179 = vadd.f32 %v7171, %v135
    %v7180 = vadd.f32 %v7172, %v134
    %v7181 = vadd.f32 %v7173, %v135
    %v7182 = vsel %vm724, %v7174, -inf
    %7183 = vmax.xlane.f32.xlu0 %v7182
    %v7184 = vpop.xlane.xlu0 %7183
    %v7185 = vsel %vm724, %v7175, -inf
    %7186 = vmax.xlane.f32.xlu0 %v7185
    %v7187 = vpop.xlane.xlu0 %7186
    %v7188 = vsel %vm724, %v7176, -inf
    %7189 = vmax.xlane.f32.xlu0 %v7188
    %v7190 = vpop.xlane.xlu0 %7189
    %v7191 = vsel %vm724, %v7177, -inf
    %7192 = vmax.xlane.f32.xlu0 %v7191
    %v7193 = vpop.xlane.xlu0 %7192
    %v7194 = vsel %vm724, %v7178, -inf
    %7195 = vmax.xlane.f32.xlu0 %v7194
    %v7196 = vpop.xlane.xlu0 %7195
    %v7197 = vsel %vm724, %v7179, -inf
    %7198 = vmax.xlane.f32.xlu0 %v7197
    %v7199 = vpop.xlane.xlu0 %7198
    %v7200 = vsel %vm724, %v7180, -inf
    %7201 = vmax.xlane.f32.xlu0 %v7200
    %v7202 = vpop.xlane.xlu0 %7201
    %v7203 = vsel %vm724, %v7181, -inf
    %7204 = vmax.xlane.f32.xlu0 %v7203
    %v7205 = vpop.xlane.xlu0 %7204
    %v7206 = vsub.f32 %v7174, %v7184
    %v7207 = vsub.f32 %v7175, %v7187
    %v7208 = vsub.f32 %v7176, %v7190
    %v7209 = vsub.f32 %v7177, %v7193
    %v7210 = vsub.f32 %v7178, %v7196
    %v7211 = vsub.f32 %v7179, %v7199
    %v7212 = vsub.f32 %v7180, %v7202
    %v7213 = vsub.f32 %v7181, %v7205
    %v7214 = vmul.f32 %v7206, 1.442695
    %v7215 = vpow.pop %v7214
    %v7216 = vmul.f32 %v7207, 1.442695
    %v7217 = vpow.pop %v7216
    %v7218 = vmul.f32 %v7208, 1.442695
    %v7219 = vpow.pop %v7218
    %v7220 = vmul.f32 %v7209, 1.442695
    %v7221 = vpow.pop %v7220
    %v7222 = vmul.f32 %v7210, 1.442695
    %v7223 = vpow.pop %v7222
    %v7224 = vmul.f32 %v7211, 1.442695
    %v7225 = vpow.pop %v7224
    %v7226 = vmul.f32 %v7212, 1.442695
    %v7227 = vpow.pop %v7226
    %v7228 = vmul.f32 %v7213, 1.442695
    %v7229 = vpow.pop %v7228
    %v7230 = vsel %vm724, %v7215, 0.0
    %7231 = vadd.xlane.f32.xlu0 %v7230
    %v7232 = vpop.xlane.xlu0 %7231
    %v7233 = vsel %vm724, %v7217, 0.0
    %7234 = vadd.xlane.f32.xlu0 %v7233
    %v7235 = vpop.xlane.xlu0 %7234
    %v7236 = vsel %vm724, %v7219, 0.0
    %7237 = vadd.xlane.f32.xlu0 %v7236
    %v7238 = vpop.xlane.xlu0 %7237
    %v7239 = vsel %vm724, %v7221, 0.0
    %7240 = vadd.xlane.f32.xlu0 %v7239
    %v7241 = vpop.xlane.xlu0 %7240
    %v7242 = vsel %vm724, %v7223, 0.0
    %7243 = vadd.xlane.f32.xlu0 %v7242
    %v7244 = vpop.xlane.xlu0 %7243
    %v7245 = vsel %vm724, %v7225, 0.0
    %7246 = vadd.xlane.f32.xlu0 %v7245
    %v7247 = vpop.xlane.xlu0 %7246
    %v7248 = vsel %vm724, %v7227, 0.0
    %7249 = vadd.xlane.f32.xlu0 %v7248
    %v7250 = vpop.xlane.xlu0 %7249
    %v7251 = vsel %vm724, %v7229, 0.0
    %7252 = vadd.xlane.f32.xlu0 %v7251
    %v7253 = vpop.xlane.xlu0 %7252
    %v7254 = vrcp.pop %v7232
    %v7255 = vmul.f32 %v7215, %v7254
    %v7256 = vrcp.pop %v7235
    %v7257 = vmul.f32 %v7217, %v7256
    %v7258 = vrcp.pop %v7238
    %v7259 = vmul.f32 %v7219, %v7258
    %v7260 = vrcp.pop %v7241
    %v7261 = vmul.f32 %v7221, %v7260
    %v7262 = vrcp.pop %v7244
    %v7263 = vmul.f32 %v7223, %v7262
    %v7264 = vrcp.pop %v7247
    %v7265 = vmul.f32 %v7225, %v7264
    %v7266 = vrcp.pop %v7250
    %v7267 = vmul.f32 %v7227, %v7266
    %v7268 = vrcp.pop %v7253
    %v7269 = vmul.f32 %v7229, %v7268
    %7270 = vrot.lane.b32.xlu0 %v6798, 96
    %v7271 = vpop.permute.xlu0 %7270
    %7272 = vrot.lane.b32.xlu0 %v6803, 96
    %v7273 = vpop.permute.xlu0 %7272
    %v7277 = vsel %vm724, %v7255, 0
    %v7280 = vsel %vm724, %v7257, 0
    %7282 = vmatprep.subr.mxu0 0.0
    %7283 = vmatpush1.msra.mxu0 0.0
    %7284 = vmatprep.subr.mxu0 0.0
    %7285 = vmatpush1.msra.mxu0 0.0
    %7286 = vmatprep.subr.mxu0 0.0
    %7287 = vmatpush1.msra.mxu0 0.0
    %7288 = vmatprep.subr.mxu0 0.0
    %7289 = vmatpush1.msra.mxu0 0.0
    %7290 = vmatprep.subr.mxu0 0.0
    %7291 = vmatpush1.msra.mxu0 0.0
    %7292 = vmatprep.subr.mxu0 0.0
    %7293 = vmatpush1.msra.mxu0 0.0
    %7294 = vmatprep.subr.mxu0 0.0
    %7295 = vmatpush1.msra.mxu0 0.0
    %7296 = vmatprep.subr.mxu0 0.0
    %7297 = vmatpush1.msra.mxu0 0.0
    %7298 = vmatprep.subr.mxu0 0.0
    %7299 = vmatpush1.msra.mxu0 0.0
    %7300 = vmatprep.subr.mxu0 0.0
    %7301 = vmatpush1.msra.mxu0 0.0
    %7302 = vmatprep.subr.mxu0 0.0
    %7303 = vmatpush1.msra.mxu0 0.0
    %7304 = vmatprep.subr.mxu0 0.0
    %7305 = vmatpush1.msra.mxu0 0.0
    %7306 = vmatprep.subr.mxu0 0.0
    %7307 = vmatpush1.msra.mxu0 0.0
    %7308 = vmatprep.subr.mxu0 0.0
    %7309 = vmatpush1.msra.mxu0 0.0
    %7310 = vmatprep.subr.mxu0 0.0
    %7311 = vmatpush1.msra.mxu0 %v7273
    %7312 = vmatprep.subr.mxu0 0.0
    %7313 = vmatpush1.msra.mxu0 %v7271
    %7314 = vmatprep.subr.mxu0 0.0
    %7315 = vmatpush2.msra.mxu0 0.0
    %7316 = vmatprep.subr.mxu0 0.0
    %7317 = vmatpush2.msra.mxu0 0.0
    %7318 = vmatprep.subr.mxu0 0.0
    %7319 = vmatpush2.msra.mxu0 0.0
    %7320 = vmatprep.subr.mxu0 0.0
    %7321 = vmatpush2.msra.mxu0 0.0
    %7322 = vmatprep.subr.mxu0 0.0
    %7323 = vmatpush2.msra.mxu0 0.0
    %7324 = vmatprep.subr.mxu0 0.0
    %7325 = vmatpush2.msra.mxu0 0.0
    %7326 = vmatprep.subr.mxu0 0.0
    %7327 = vmatpush2.msra.mxu0 0.0
    %7328 = vmatprep.subr.mxu0 0.0
    %7329 = vmatpush2.msra.mxu0 0.0
    %7330 = vmatprep.subr.mxu0 0.0
    %7331 = vmatpush2.msra.mxu0 0.0
    %7332 = vmatprep.subr.mxu0 0.0
    %7333 = vmatpush2.msra.mxu0 0.0
    %7334 = vmatprep.subr.mxu0 0.0
    %7335 = vmatpush2.msra.mxu0 0.0
    %7336 = vmatprep.subr.mxu0 0.0
    %7337 = vmatpush2.msra.mxu0 0.0
    %7338 = vmatprep.subr.mxu0 0.0
    %7339 = vmatpush2.msra.mxu0 0.0
    %7340 = vmatprep.subr.mxu0 0.0
    %7341 = vmatpush2.msra.mxu0 0.0
    %7342 = vmatprep.subr.mxu0 0.0
    %7343 = vmatpush2.msra.mxu0 0.0
    %7344 = vmatprep.subr.mxu0 0.0
    %7345 = vmatpush2.msra.mxu0 0.0
    %7346 = vmatprep.mubr.f32.mxu0 0.0
    %7347 = vmatmul.mubr.f32.gmra.mxu0 %v7277
    %v7348 = vpop.f32.mrf.mxu0
    %v7349 = vadd.f32 0.0, %v7348
    %v7350 = vpop.f32.mrf.mxu0
    %7351 = vmatprep.mubr.f32.mxu0 0.0
    %7352 = vmatmul.mubr.f32.gmra.mxu0 %v7280
    %v7353 = vpop.f32.mrf.mxu0
    %v7354 = vadd.f32 0.0, %v7353
    %v7355 = vpop.f32.mrf.mxu0
    %7356 = vdwg.mxu0
    %7357 = vrot.lane.b32.xlu0 %v6798, 88
    %v7358 = vpop.permute.xlu0 %7357
    %7359 = vrot.lane.b32.xlu0 %v6803, 88
    %v7360 = vpop.permute.xlu0 %7359
    %v7364 = vsel %vm724, %v7259, 0
    %v7367 = vsel %vm724, %v7261, 0
    %7369 = vmatprep.subr.mxu0 0.0
    %7370 = vmatpush1.msra.mxu0 0.0
    %7371 = vmatprep.subr.mxu0 0.0
    %7372 = vmatpush1.msra.mxu0 0.0
    %7373 = vmatprep.subr.mxu0 0.0
    %7374 = vmatpush1.msra.mxu0 0.0
    %7375 = vmatprep.subr.mxu0 0.0
    %7376 = vmatpush1.msra.mxu0 0.0
    %7377 = vmatprep.subr.mxu0 0.0
    %7378 = vmatpush1.msra.mxu0 0.0
    %7379 = vmatprep.subr.mxu0 0.0
    %7380 = vmatpush1.msra.mxu0 0.0
    %7381 = vmatprep.subr.mxu0 0.0
    %7382 = vmatpush1.msra.mxu0 0.0
    %7383 = vmatprep.subr.mxu0 0.0
    %7384 = vmatpush1.msra.mxu0 0.0
    %7385 = vmatprep.subr.mxu0 0.0
    %7386 = vmatpush1.msra.mxu0 0.0
    %7387 = vmatprep.subr.mxu0 0.0
    %7388 = vmatpush1.msra.mxu0 0.0
    %7389 = vmatprep.subr.mxu0 0.0
    %7390 = vmatpush1.msra.mxu0 0.0
    %7391 = vmatprep.subr.mxu0 0.0
    %7392 = vmatpush1.msra.mxu0 0.0
    %7393 = vmatprep.subr.mxu0 0.0
    %7394 = vmatpush1.msra.mxu0 0.0
    %7395 = vmatprep.subr.mxu0 0.0
    %7396 = vmatpush1.msra.mxu0 0.0
    %7397 = vmatprep.subr.mxu0 0.0
    %7398 = vmatpush1.msra.mxu0 %v7360
    %7399 = vmatprep.subr.mxu0 0.0
    %7400 = vmatpush1.msra.mxu0 %v7358
    %7401 = vmatprep.subr.mxu0 0.0
    %7402 = vmatpush2.msra.mxu0 0.0
    %7403 = vmatprep.subr.mxu0 0.0
    %7404 = vmatpush2.msra.mxu0 0.0
    %7405 = vmatprep.subr.mxu0 0.0
    %7406 = vmatpush2.msra.mxu0 0.0
    %7407 = vmatprep.subr.mxu0 0.0
    %7408 = vmatpush2.msra.mxu0 0.0
    %7409 = vmatprep.subr.mxu0 0.0
    %7410 = vmatpush2.msra.mxu0 0.0
    %7411 = vmatprep.subr.mxu0 0.0
    %7412 = vmatpush2.msra.mxu0 0.0
    %7413 = vmatprep.subr.mxu0 0.0
    %7414 = vmatpush2.msra.mxu0 0.0
    %7415 = vmatprep.subr.mxu0 0.0
    %7416 = vmatpush2.msra.mxu0 0.0
    %7417 = vmatprep.subr.mxu0 0.0
    %7418 = vmatpush2.msra.mxu0 0.0
    %7419 = vmatprep.subr.mxu0 0.0
    %7420 = vmatpush2.msra.mxu0 0.0
    %7421 = vmatprep.subr.mxu0 0.0
    %7422 = vmatpush2.msra.mxu0 0.0
    %7423 = vmatprep.subr.mxu0 0.0
    %7424 = vmatpush2.msra.mxu0 0.0
    %7425 = vmatprep.subr.mxu0 0.0
    %7426 = vmatpush2.msra.mxu0 0.0
    %7427 = vmatprep.subr.mxu0 0.0
    %7428 = vmatpush2.msra.mxu0 0.0
    %7429 = vmatprep.subr.mxu0 0.0
    %7430 = vmatpush2.msra.mxu0 0.0
    %7431 = vmatprep.subr.mxu0 0.0
    %7432 = vmatpush2.msra.mxu0 0.0
    %7433 = vmatprep.mubr.f32.mxu0 0.0
    %7434 = vmatmul.mubr.f32.gmra.mxu0 %v7364
    %v7435 = vpop.f32.mrf.mxu0
    %v7436 = vadd.f32 0.0, %v7435
    %v7437 = vpop.f32.mrf.mxu0
    %7438 = vmatprep.mubr.f32.mxu0 0.0
    %7439 = vmatmul.mubr.f32.gmra.mxu0 %v7367
    %v7440 = vpop.f32.mrf.mxu0
    %v7441 = vadd.f32 0.0, %v7440
    %v7442 = vpop.f32.mrf.mxu0
    %7443 = vdwg.mxu0
    %7444 = vrot.lane.b32.xlu0 %v6798, 80
    %v7445 = vpop.permute.xlu0 %7444
    %7446 = vrot.lane.b32.xlu0 %v6803, 80
    %v7447 = vpop.permute.xlu0 %7446
    %v7451 = vsel %vm724, %v7263, 0
    %v7454 = vsel %vm724, %v7265, 0
    %7456 = vmatprep.subr.mxu0 0.0
    %7457 = vmatpush1.msra.mxu0 0.0
    %7458 = vmatprep.subr.mxu0 0.0
    %7459 = vmatpush1.msra.mxu0 0.0
    %7460 = vmatprep.subr.mxu0 0.0
    %7461 = vmatpush1.msra.mxu0 0.0
    %7462 = vmatprep.subr.mxu0 0.0
    %7463 = vmatpush1.msra.mxu0 0.0
    %7464 = vmatprep.subr.mxu0 0.0
    %7465 = vmatpush1.msra.mxu0 0.0
    %7466 = vmatprep.subr.mxu0 0.0
    %7467 = vmatpush1.msra.mxu0 0.0
    %7468 = vmatprep.subr.mxu0 0.0
    %7469 = vmatpush1.msra.mxu0 0.0
    %7470 = vmatprep.subr.mxu0 0.0
    %7471 = vmatpush1.msra.mxu0 0.0
    %7472 = vmatprep.subr.mxu0 0.0
    %7473 = vmatpush1.msra.mxu0 0.0
    %7474 = vmatprep.subr.mxu0 0.0
    %7475 = vmatpush1.msra.mxu0 0.0
    %7476 = vmatprep.subr.mxu0 0.0
    %7477 = vmatpush1.msra.mxu0 0.0
    %7478 = vmatprep.subr.mxu0 0.0
    %7479 = vmatpush1.msra.mxu0 0.0
    %7480 = vmatprep.subr.mxu0 0.0
    %7481 = vmatpush1.msra.mxu0 0.0
    %7482 = vmatprep.subr.mxu0 0.0
    %7483 = vmatpush1.msra.mxu0 0.0
    %7484 = vmatprep.subr.mxu0 0.0
    %7485 = vmatpush1.msra.mxu0 %v7447
    %7486 = vmatprep.subr.mxu0 0.0
    %7487 = vmatpush1.msra.mxu0 %v7445
    %7488 = vmatprep.subr.mxu0 0.0
    %7489 = vmatpush2.msra.mxu0 0.0
    %7490 = vmatprep.subr.mxu0 0.0
    %7491 = vmatpush2.msra.mxu0 0.0
    %7492 = vmatprep.subr.mxu0 0.0
    %7493 = vmatpush2.msra.mxu0 0.0
    %7494 = vmatprep.subr.mxu0 0.0
    %7495 = vmatpush2.msra.mxu0 0.0
    %7496 = vmatprep.subr.mxu0 0.0
    %7497 = vmatpush2.msra.mxu0 0.0
    %7498 = vmatprep.subr.mxu0 0.0
    %7499 = vmatpush2.msra.mxu0 0.0
    %7500 = vmatprep.subr.mxu0 0.0
    %7501 = vmatpush2.msra.mxu0 0.0
    %7502 = vmatprep.subr.mxu0 0.0
    %7503 = vmatpush2.msra.mxu0 0.0
    %7504 = vmatprep.subr.mxu0 0.0
    %7505 = vmatpush2.msra.mxu0 0.0
    %7506 = vmatprep.subr.mxu0 0.0
    %7507 = vmatpush2.msra.mxu0 0.0
    %7508 = vmatprep.subr.mxu0 0.0
    %7509 = vmatpush2.msra.mxu0 0.0
    %7510 = vmatprep.subr.mxu0 0.0
    %7511 = vmatpush2.msra.mxu0 0.0
    %7512 = vmatprep.subr.mxu0 0.0
    %7513 = vmatpush2.msra.mxu0 0.0
    %7514 = vmatprep.subr.mxu0 0.0
    %7515 = vmatpush2.msra.mxu0 0.0
    %7516 = vmatprep.subr.mxu0 0.0
    %7517 = vmatpush2.msra.mxu0 0.0
    %7518 = vmatprep.subr.mxu0 0.0
    %7519 = vmatpush2.msra.mxu0 0.0
    %7520 = vmatprep.mubr.f32.mxu0 0.0
    %7521 = vmatmul.mubr.f32.gmra.mxu0 %v7451
    %v7522 = vpop.f32.mrf.mxu0
    %v7523 = vadd.f32 0.0, %v7522
    %v7524 = vpop.f32.mrf.mxu0
    %7525 = vmatprep.mubr.f32.mxu0 0.0
    %7526 = vmatmul.mubr.f32.gmra.mxu0 %v7454
    %v7527 = vpop.f32.mrf.mxu0
    %v7528 = vadd.f32 0.0, %v7527
    %v7529 = vpop.f32.mrf.mxu0
    %7530 = vdwg.mxu0
    %7531 = vrot.lane.b32.xlu0 %v6798, 72
    %v7532 = vpop.permute.xlu0 %7531
    %7533 = vrot.lane.b32.xlu0 %v6803, 72
    %v7534 = vpop.permute.xlu0 %7533
    %v7538 = vsel %vm724, %v7267, 0
    %v7541 = vsel %vm724, %v7269, 0
    %7543 = vmatprep.subr.mxu0 0.0
    %7544 = vmatpush1.msra.mxu0 0.0
    %7545 = vmatprep.subr.mxu0 0.0
    %7546 = vmatpush1.msra.mxu0 0.0
    %7547 = vmatprep.subr.mxu0 0.0
    %7548 = vmatpush1.msra.mxu0 0.0
    %7549 = vmatprep.subr.mxu0 0.0
    %7550 = vmatpush1.msra.mxu0 0.0
    %7551 = vmatprep.subr.mxu0 0.0
    %7552 = vmatpush1.msra.mxu0 0.0
    %7553 = vmatprep.subr.mxu0 0.0
    %7554 = vmatpush1.msra.mxu0 0.0
    %7555 = vmatprep.subr.mxu0 0.0
    %7556 = vmatpush1.msra.mxu0 0.0
    %7557 = vmatprep.subr.mxu0 0.0
    %7558 = vmatpush1.msra.mxu0 0.0
    %7559 = vmatprep.subr.mxu0 0.0
    %7560 = vmatpush1.msra.mxu0 0.0
    %7561 = vmatprep.subr.mxu0 0.0
    %7562 = vmatpush1.msra.mxu0 0.0
    %7563 = vmatprep.subr.mxu0 0.0
    %7564 = vmatpush1.msra.mxu0 0.0
    %7565 = vmatprep.subr.mxu0 0.0
    %7566 = vmatpush1.msra.mxu0 0.0
    %7567 = vmatprep.subr.mxu0 0.0
    %7568 = vmatpush1.msra.mxu0 0.0
    %7569 = vmatprep.subr.mxu0 0.0
    %7570 = vmatpush1.msra.mxu0 0.0
    %7571 = vmatprep.subr.mxu0 0.0
    %7572 = vmatpush1.msra.mxu0 %v7534
    %7573 = vmatprep.subr.mxu0 0.0
    %7574 = vmatpush1.msra.mxu0 %v7532
    %7575 = vmatprep.subr.mxu0 0.0
    %7576 = vmatpush2.msra.mxu0 0.0
    %7577 = vmatprep.subr.mxu0 0.0
    %7578 = vmatpush2.msra.mxu0 0.0
    %7579 = vmatprep.subr.mxu0 0.0
    %7580 = vmatpush2.msra.mxu0 0.0
    %7581 = vmatprep.subr.mxu0 0.0
    %7582 = vmatpush2.msra.mxu0 0.0
    %7583 = vmatprep.subr.mxu0 0.0
    %7584 = vmatpush2.msra.mxu0 0.0
    %7585 = vmatprep.subr.mxu0 0.0
    %7586 = vmatpush2.msra.mxu0 0.0
    %7587 = vmatprep.subr.mxu0 0.0
    %7588 = vmatpush2.msra.mxu0 0.0
    %7589 = vmatprep.subr.mxu0 0.0
    %7590 = vmatpush2.msra.mxu0 0.0
    %7591 = vmatprep.subr.mxu0 0.0
    %7592 = vmatpush2.msra.mxu0 0.0
    %7593 = vmatprep.subr.mxu0 0.0
    %7594 = vmatpush2.msra.mxu0 0.0
    %7595 = vmatprep.subr.mxu0 0.0
    %7596 = vmatpush2.msra.mxu0 0.0
    %7597 = vmatprep.subr.mxu0 0.0
    %7598 = vmatpush2.msra.mxu0 0.0
    %7599 = vmatprep.subr.mxu0 0.0
    %7600 = vmatpush2.msra.mxu0 0.0
    %7601 = vmatprep.subr.mxu0 0.0
    %7602 = vmatpush2.msra.mxu0 0.0
    %7603 = vmatprep.subr.mxu0 0.0
    %7604 = vmatpush2.msra.mxu0 0.0
    %7605 = vmatprep.subr.mxu0 0.0
    %7606 = vmatpush2.msra.mxu0 0.0
    %7607 = vmatprep.mubr.f32.mxu0 0.0
    %7608 = vmatmul.mubr.f32.gmra.mxu0 %v7538
    %v7609 = vpop.f32.mrf.mxu0
    %v7610 = vadd.f32 0.0, %v7609
    %v7611 = vpop.f32.mrf.mxu0
    %7612 = vmatprep.mubr.f32.mxu0 0.0
    %7613 = vmatmul.mubr.f32.gmra.mxu0 %v7541
    %v7614 = vpop.f32.mrf.mxu0
    %v7615 = vadd.f32 0.0, %v7614
    %v7616 = vpop.f32.mrf.mxu0
    %7617 = vdwg.mxu0
    %7620 = vrot.lane.b32.xlu0 %v7436, 8
    %v7621 = vpop.permute.xlu0 %7620
    %7622 = vrot.lane.b32.xlu0 %v7441, 8
    %v7623 = vpop.permute.xlu0 %7622
    %7628 = vrot.lane.b32.xlu0 %v7523, 16
    %v7629 = vpop.permute.xlu0 %7628
    %7630 = vrot.lane.b32.xlu0 %v7528, 16
    %v7631 = vpop.permute.xlu0 %7630
    %7636 = vrot.lane.b32.xlu0 %v7610, 24
    %v7637 = vpop.permute.xlu0 %7636
    %7638 = vrot.lane.b32.xlu0 %v7615, 24
    %v7639 = vpop.permute.xlu0 %7638
    %v7642 = vsel %vm116, %v7349, %v7621
    %v7643 = vsel %vm116, %v7354, %v7623
    %v7644 = vsel %vm724, %v7642, %v7629
    %v7645 = vsel %vm724, %v7643, %v7631
    %v7646 = vsel %vm1189, %v7644, %v7637
    %v7647 = vsel %vm1189, %v7645, %v7639
    %s7648 = scalar_lea.vmem %s6, 160
    %v7649 = vld [vmem:[%s7648] sm:$0xff]
    %v7650 = vld [vmem:[%s7648 + $0x8] sm:$0xff]
    %v7651 = vld [vmem:[%s7648 + $0x10] sm:$0xff]
    %v7652 = vld [vmem:[%s7648 + $0x18] sm:$0xff]
    %s7653 = scalar_lea.vmem [#allocation5], 5
    %v7654 = vld [vmem:[%s7653] sm:$0x1]
    %v7656 = vlaneseq
    %v7657 = vshrl.u32 %v7656, 7
    %v7658 = vsub.s32 0, %v7657
    %v7659 = vrot.slane %v7654, %v7658
    %v7662 = vsel %vm264, %v7646, 0
    %v7665 = vsel %vm264, %v7647, 0
    %7667 = vmatprep.subr.mxu0 0.0
    %7668 = vmatpush1.msra.mxu0 0.0
    %7669 = vmatprep.subr.mxu0 0.0
    %7670 = vmatpush1.msra.mxu0 0.0
    %7671 = vmatprep.subr.mxu0 0.0
    %7672 = vmatpush1.msra.mxu0 0.0
    %7673 = vmatprep.subr.mxu0 0.0
    %7674 = vmatpush1.msra.mxu0 0.0
    %7675 = vmatprep.subr.mxu0 0.0
    %7676 = vmatpush1.msra.mxu0 0.0
    %7677 = vmatprep.subr.mxu0 0.0
    %7678 = vmatpush1.msra.mxu0 0.0
    %7679 = vmatprep.subr.mxu0 0.0
    %7680 = vmatpush1.msra.mxu0 0.0
    %7681 = vmatprep.subr.mxu0 0.0
    %7682 = vmatpush1.msra.mxu0 0.0
    %7683 = vmatprep.subr.mxu0 0.0
    %7684 = vmatpush1.msra.mxu0 0.0
    %7685 = vmatprep.subr.mxu0 0.0
    %7686 = vmatpush1.msra.mxu0 0.0
    %7687 = vmatprep.subr.mxu0 0.0
    %7688 = vmatpush1.msra.mxu0 0.0
    %7689 = vmatprep.subr.mxu0 0.0
    %7690 = vmatpush1.msra.mxu0 0.0
    %7691 = vmatprep.subr.mxu0 0.0
    %7692 = vmatpush1.msra.mxu0 %v7652
    %7693 = vmatprep.subr.mxu0 0.0
    %7694 = vmatpush1.msra.mxu0 %v7651
    %7695 = vmatprep.subr.mxu0 0.0
    %7696 = vmatpush1.msra.mxu0 %v7650
    %7697 = vmatprep.subr.mxu0 0.0
    %7698 = vmatpush1.msra.mxu0 %v7649
    %7699 = vmatprep.subr.mxu0 0.0
    %7700 = vmatpush2.msra.mxu0 0.0
    %7701 = vmatprep.subr.mxu0 0.0
    %7702 = vmatpush2.msra.mxu0 0.0
    %7703 = vmatprep.subr.mxu0 0.0
    %7704 = vmatpush2.msra.mxu0 0.0
    %7705 = vmatprep.subr.mxu0 0.0
    %7706 = vmatpush2.msra.mxu0 0.0
    %7707 = vmatprep.subr.mxu0 0.0
    %7708 = vmatpush2.msra.mxu0 0.0
    %7709 = vmatprep.subr.mxu0 0.0
    %7710 = vmatpush2.msra.mxu0 0.0
    %7711 = vmatprep.subr.mxu0 0.0
    %7712 = vmatpush2.msra.mxu0 0.0
    %7713 = vmatprep.subr.mxu0 0.0
    %7714 = vmatpush2.msra.mxu0 0.0
    %7715 = vmatprep.subr.mxu0 0.0
    %7716 = vmatpush2.msra.mxu0 0.0
    %7717 = vmatprep.subr.mxu0 0.0
    %7718 = vmatpush2.msra.mxu0 0.0
    %7719 = vmatprep.subr.mxu0 0.0
    %7720 = vmatpush2.msra.mxu0 0.0
    %7721 = vmatprep.subr.mxu0 0.0
    %7722 = vmatpush2.msra.mxu0 0.0
    %7723 = vmatprep.subr.mxu0 0.0
    %7724 = vmatpush2.msra.mxu0 0.0
    %7725 = vmatprep.subr.mxu0 0.0
    %7726 = vmatpush2.msra.mxu0 0.0
    %7727 = vmatprep.subr.mxu0 0.0
    %7728 = vmatpush2.msra.mxu0 0.0
    %7729 = vmatprep.subr.mxu0 0.0
    %7730 = vmatpush2.msra.mxu0 0.0
    %7731 = vmatprep.mubr.f32.mxu0 0.0
    %7732 = vmatmul.mubr.f32.gmra.mxu0 %v7662
    %v7733 = vpop.f32.mrf.mxu0
    %v7734 = vadd.f32 %v7659, %v7733
    %v7735 = vpop.f32.mrf.mxu0
    %7736 = vmatprep.mubr.f32.mxu0 0.0
    %7737 = vmatmul.mubr.f32.gmra.mxu0 %v7665
    %v7738 = vpop.f32.mrf.mxu0
    %v7739 = vadd.f32 %v7659, %v7738
    %v7740 = vpop.f32.mrf.mxu0
    %7741 = vdwg.mxu0
    %v7742 = vadd.f32 %v6616, %v7734
    %v7743 = vadd.f32 %v6617, %v7739
    %v7744 = vsel %vm264, %v7742, 0.0
    %7745 = vadd.xlane.f32.xlu0 %v7744
    %v7746 = vpop.xlane.xlu0 %7745
    %v7747 = vsel %vm264, %v7743, 0.0
    %7748 = vadd.xlane.f32.xlu0 %v7747
    %v7749 = vpop.xlane.xlu0 %7748
    %v7750 = vmul.f32 %v7746, %v1292
    %v7751 = vmul.f32 %v7749, %v1292
    %v7752 = vsub.f32 %v7742, %v7750
    %v7753 = vsub.f32 %v7743, %v7751
    %v7754 = vmul.f32 %v7752, %v7752
    %v7755 = vmul.f32 %v7753, %v7753
    %v7756 = vsel %vm264, %v7754, 0.0
    %7757 = vadd.xlane.f32.xlu0 %v7756
    %v7758 = vpop.xlane.xlu0 %7757
    %v7759 = vsel %vm264, %v7755, 0.0
    %7760 = vadd.xlane.f32.xlu0 %v7759
    %v7761 = vpop.xlane.xlu0 %7760
    %v7762 = vmul.f32 %v7758, %v1292
    %v7763 = vmul.f32 %v7761, %v1292
    %v7764 = vadd.f32 %v7762, 1e-05
    %v7765 = vadd.f32 %v7763, 1e-05
    %v7766 = vrsqrt.pop %v7764
    %v7767 = vrsqrt.pop %v7765
    %v7768 = vmul.f32 %v7752, %v7766
    %v7769 = vmul.f32 %v7753, %v7767
    %s7770 = scalar_lea.vmem %s12, 9
    %v7771 = vld [vmem:[%s7770] sm:$0x1]
    %v7773 = vlaneseq
    %v7774 = vshrl.u32 %v7773, 7
    %v7775 = vsub.s32 0, %v7774
    %v7776 = vrot.slane %v7771, %v7775
    %v7778 = vmul.f32 %v7768, %v7776
    %v7779 = vmul.f32 %v7769, %v7776
    %s7780 = scalar_lea.vmem %s13, 9
    %v7781 = vld [vmem:[%s7780] sm:$0x1]
    %v7783 = vlaneseq
    %v7784 = vshrl.u32 %v7783, 7
    %v7785 = vsub.s32 0, %v7784
    %v7786 = vrot.slane %v7781, %v7785
    %v7788 = vadd.f32 %v7778, %v7786
    %v7789 = vadd.f32 %v7779, %v7786
    %s7790 = scalar_lea.vmem %s8, 96
    %v7791 = vld [vmem:[%s7790] sm:$0xff]
    %v7792 = vld [vmem:[%s7790 + $0x8] sm:$0xff]
    %v7793 = vld [vmem:[%s7790 + $0x10] sm:$0xff]
    %v7794 = vld [vmem:[%s7790 + $0x18] sm:$0xff]
    %s7795 = scalar_lea.vmem [#allocation7], 3
    %v7796 = vld [vmem:[%s7795] sm:$0x1]
    %v7798 = vlaneseq
    %v7799 = vshrl.u32 %v7798, 7
    %v7800 = vsub.s32 0, %v7799
    %v7801 = vrot.slane %v7796, %v7800
    %v7804 = vsel %vm264, %v7788, 0
    %v7807 = vsel %vm264, %v7789, 0
    %7809 = vmatprep.subr.mxu0 0.0
    %7810 = vmatpush1.msra.mxu0 0.0
    %7811 = vmatprep.subr.mxu0 0.0
    %7812 = vmatpush1.msra.mxu0 0.0
    %7813 = vmatprep.subr.mxu0 0.0
    %7814 = vmatpush1.msra.mxu0 0.0
    %7815 = vmatprep.subr.mxu0 0.0
    %7816 = vmatpush1.msra.mxu0 0.0
    %7817 = vmatprep.subr.mxu0 0.0
    %7818 = vmatpush1.msra.mxu0 0.0
    %7819 = vmatprep.subr.mxu0 0.0
    %7820 = vmatpush1.msra.mxu0 0.0
    %7821 = vmatprep.subr.mxu0 0.0
    %7822 = vmatpush1.msra.mxu0 0.0
    %7823 = vmatprep.subr.mxu0 0.0
    %7824 = vmatpush1.msra.mxu0 0.0
    %7825 = vmatprep.subr.mxu0 0.0
    %7826 = vmatpush1.msra.mxu0 0.0
    %7827 = vmatprep.subr.mxu0 0.0
    %7828 = vmatpush1.msra.mxu0 0.0
    %7829 = vmatprep.subr.mxu0 0.0
    %7830 = vmatpush1.msra.mxu0 0.0
    %7831 = vmatprep.subr.mxu0 0.0
    %7832 = vmatpush1.msra.mxu0 0.0
    %7833 = vmatprep.subr.mxu0 0.0
    %7834 = vmatpush1.msra.mxu0 %v7794
    %7835 = vmatprep.subr.mxu0 0.0
    %7836 = vmatpush1.msra.mxu0 %v7793
    %7837 = vmatprep.subr.mxu0 0.0
    %7838 = vmatpush1.msra.mxu0 %v7792
    %7839 = vmatprep.subr.mxu0 0.0
    %7840 = vmatpush1.msra.mxu0 %v7791
    %7841 = vmatprep.subr.mxu0 0.0
    %7842 = vmatpush2.msra.mxu0 0.0
    %7843 = vmatprep.subr.mxu0 0.0
    %7844 = vmatpush2.msra.mxu0 0.0
    %7845 = vmatprep.subr.mxu0 0.0
    %7846 = vmatpush2.msra.mxu0 0.0
    %7847 = vmatprep.subr.mxu0 0.0
    %7848 = vmatpush2.msra.mxu0 0.0
    %7849 = vmatprep.subr.mxu0 0.0
    %7850 = vmatpush2.msra.mxu0 0.0
    %7851 = vmatprep.subr.mxu0 0.0
    %7852 = vmatpush2.msra.mxu0 0.0
    %7853 = vmatprep.subr.mxu0 0.0
    %7854 = vmatpush2.msra.mxu0 0.0
    %7855 = vmatprep.subr.mxu0 0.0
    %7856 = vmatpush2.msra.mxu0 0.0
    %7857 = vmatprep.subr.mxu0 0.0
    %7858 = vmatpush2.msra.mxu0 0.0
    %7859 = vmatprep.subr.mxu0 0.0
    %7860 = vmatpush2.msra.mxu0 0.0
    %7861 = vmatprep.subr.mxu0 0.0
    %7862 = vmatpush2.msra.mxu0 0.0
    %7863 = vmatprep.subr.mxu0 0.0
    %7864 = vmatpush2.msra.mxu0 0.0
    %7865 = vmatprep.subr.mxu0 0.0
    %7866 = vmatpush2.msra.mxu0 0.0
    %7867 = vmatprep.subr.mxu0 0.0
    %7868 = vmatpush2.msra.mxu0 0.0
    %7869 = vmatprep.subr.mxu0 0.0
    %7870 = vmatpush2.msra.mxu0 0.0
    %7871 = vmatprep.subr.mxu0 0.0
    %7872 = vmatpush2.msra.mxu0 0.0
    %7873 = vmatprep.mubr.f32.mxu0 0.0
    %7874 = vmatmul.mubr.f32.gmra.mxu0 %v7804
    %v7875 = vpop.f32.mrf.mxu0
    %v7876 = vadd.f32 %v7801, %v7875
    %v7877 = vpop.f32.mrf.mxu0
    %7878 = vmatprep.mubr.f32.mxu0 0.0
    %7879 = vmatmul.mubr.f32.gmra.mxu0 %v7807
    %v7880 = vpop.f32.mrf.mxu0
    %v7881 = vadd.f32 %v7801, %v7880
    %v7882 = vpop.f32.mrf.mxu0
    %7883 = vdwg.mxu0
    %v7884 = vmax.f32 %v7876, 0.0
    %v7885 = vmax.f32 %v7881, 0.0
    %s7886 = scalar_lea.vmem %s10, 192
    %v7887 = vld [vmem:[%s7886] sm:$0xff]
    %v7888 = vld [vmem:[%s7886 + $0x8] sm:$0xff]
    %v7889 = vld [vmem:[%s7886 + $0x10] sm:$0xff]
    %v7890 = vld [vmem:[%s7886 + $0x18] sm:$0xff]
    %v7891 = vld [vmem:[%s7886 + $0x20] sm:$0xff]
    %v7892 = vld [vmem:[%s7886 + $0x28] sm:$0xff]
    %v7893 = vld [vmem:[%s7886 + $0x30] sm:$0xff]
    %v7894 = vld [vmem:[%s7886 + $0x38] sm:$0xff]
    %s7895 = scalar_lea.vmem [#allocation8], 3
    %v7896 = vld [vmem:[%s7895] sm:$0x1]
    %v7898 = vlaneseq
    %v7899 = vshrl.u32 %v7898, 7
    %v7900 = vsub.s32 0, %v7899
    %v7901 = vrot.slane %v7896, %v7900
    %v7904 = vsel %vm1440, %v7884, 0
    %v7907 = vsel %vm1440, %v7885, 0
    %7909 = vmatprep.subr.mxu0 0.0
    %7910 = vmatpush1.msra.mxu0 0.0
    %7911 = vmatprep.subr.mxu0 0.0
    %7912 = vmatpush1.msra.mxu0 0.0
    %7913 = vmatprep.subr.mxu0 0.0
    %7914 = vmatpush1.msra.mxu0 0.0
    %7915 = vmatprep.subr.mxu0 0.0
    %7916 = vmatpush1.msra.mxu0 0.0
    %7917 = vmatprep.subr.mxu0 0.0
    %7918 = vmatpush1.msra.mxu0 0.0
    %7919 = vmatprep.subr.mxu0 0.0
    %7920 = vmatpush1.msra.mxu0 0.0
    %7921 = vmatprep.subr.mxu0 0.0
    %7922 = vmatpush1.msra.mxu0 0.0
    %7923 = vmatprep.subr.mxu0 0.0
    %7924 = vmatpush1.msra.mxu0 0.0
    %7925 = vmatprep.subr.mxu0 0.0
    %7926 = vmatpush1.msra.mxu0 %v7894
    %7927 = vmatprep.subr.mxu0 0.0
    %7928 = vmatpush1.msra.mxu0 %v7893
    %7929 = vmatprep.subr.mxu0 0.0
    %7930 = vmatpush1.msra.mxu0 %v7892
    %7931 = vmatprep.subr.mxu0 0.0
    %7932 = vmatpush1.msra.mxu0 %v7891
    %7933 = vmatprep.subr.mxu0 0.0
    %7934 = vmatpush1.msra.mxu0 %v7890
    %7935 = vmatprep.subr.mxu0 0.0
    %7936 = vmatpush1.msra.mxu0 %v7889
    %7937 = vmatprep.subr.mxu0 0.0
    %7938 = vmatpush1.msra.mxu0 %v7888
    %7939 = vmatprep.subr.mxu0 0.0
    %7940 = vmatpush1.msra.mxu0 %v7887
    %7941 = vmatprep.subr.mxu0 0.0
    %7942 = vmatpush2.msra.mxu0 0.0
    %7943 = vmatprep.subr.mxu0 0.0
    %7944 = vmatpush2.msra.mxu0 0.0
    %7945 = vmatprep.subr.mxu0 0.0
    %7946 = vmatpush2.msra.mxu0 0.0
    %7947 = vmatprep.subr.mxu0 0.0
    %7948 = vmatpush2.msra.mxu0 0.0
    %7949 = vmatprep.subr.mxu0 0.0
    %7950 = vmatpush2.msra.mxu0 0.0
    %7951 = vmatprep.subr.mxu0 0.0
    %7952 = vmatpush2.msra.mxu0 0.0
    %7953 = vmatprep.subr.mxu0 0.0
    %7954 = vmatpush2.msra.mxu0 0.0
    %7955 = vmatprep.subr.mxu0 0.0
    %7956 = vmatpush2.msra.mxu0 0.0
    %7957 = vmatprep.subr.mxu0 0.0
    %7958 = vmatpush2.msra.mxu0 0.0
    %7959 = vmatprep.subr.mxu0 0.0
    %7960 = vmatpush2.msra.mxu0 0.0
    %7961 = vmatprep.subr.mxu0 0.0
    %7962 = vmatpush2.msra.mxu0 0.0
    %7963 = vmatprep.subr.mxu0 0.0
    %7964 = vmatpush2.msra.mxu0 0.0
    %7965 = vmatprep.subr.mxu0 0.0
    %7966 = vmatpush2.msra.mxu0 0.0
    %7967 = vmatprep.subr.mxu0 0.0
    %7968 = vmatpush2.msra.mxu0 0.0
    %7969 = vmatprep.subr.mxu0 0.0
    %7970 = vmatpush2.msra.mxu0 0.0
    %7971 = vmatprep.subr.mxu0 0.0
    %7972 = vmatpush2.msra.mxu0 0.0
    %7973 = vmatprep.mubr.f32.mxu0 0.0
    %7974 = vmatmul.mubr.f32.gmra.mxu0 %v7904
    %v7975 = vpop.f32.mrf.mxu0
    %v7976 = vadd.f32 %v7901, %v7975
    %v7977 = vpop.f32.mrf.mxu0
    %7978 = vmatprep.mubr.f32.mxu0 0.0
    %7979 = vmatmul.mubr.f32.gmra.mxu0 %v7907
    %v7980 = vpop.f32.mrf.mxu0
    %v7981 = vadd.f32 %v7901, %v7980
    %v7982 = vpop.f32.mrf.mxu0
    %7983 = vdwg.mxu0
    %v7984 = vadd.f32 %v7788, %v7976
    %v7985 = vadd.f32 %v7789, %v7981
    %v7986 = vsel %vm264, %v7984, 0.0
    %7987 = vadd.xlane.f32.xlu0 %v7986
    %v7988 = vpop.xlane.xlu0 %7987
    %v7989 = vsel %vm264, %v7985, 0.0
    %7990 = vadd.xlane.f32.xlu0 %v7989
    %v7991 = vpop.xlane.xlu0 %7990
    %v7992 = vmul.f32 %v7988, %v1292
    %v7993 = vmul.f32 %v7991, %v1292
    %v7994 = vsub.f32 %v7984, %v7992
    %v7995 = vsub.f32 %v7985, %v7993
    %v7996 = vmul.f32 %v7994, %v7994
    %v7997 = vmul.f32 %v7995, %v7995
    %v7998 = vsel %vm264, %v7996, 0.0
    %7999 = vadd.xlane.f32.xlu0 %v7998
    %v8000 = vpop.xlane.xlu0 %7999
    %v8001 = vsel %vm264, %v7997, 0.0
    %8002 = vadd.xlane.f32.xlu0 %v8001
    %v8003 = vpop.xlane.xlu0 %8002
    %v8004 = vmul.f32 %v8000, %v1292
    %v8005 = vmul.f32 %v8003, %v1292
    %v8006 = vadd.f32 %v8004, 1e-05
    %v8007 = vadd.f32 %v8005, 1e-05
    %v8008 = vrsqrt.pop %v8006
    %v8009 = vrsqrt.pop %v8007
    %v8010 = vmul.f32 %v7994, %v8008
    %v8011 = vmul.f32 %v7995, %v8009
    %s8012 = scalar_lea.vmem %s12, 10
    %v8013 = vld [vmem:[%s8012] sm:$0x1]
    %v8015 = vlaneseq
    %v8016 = vshrl.u32 %v8015, 7
    %v8017 = vsub.s32 0, %v8016
    %v8018 = vrot.slane %v8013, %v8017
    %v8020 = vmul.f32 %v8010, %v8018
    %v8021 = vmul.f32 %v8011, %v8018
    %s8022 = scalar_lea.vmem %s13, 10
    %v8023 = vld [vmem:[%s8022] sm:$0x1]
    %v8025 = vlaneseq
    %v8026 = vshrl.u32 %v8025, 7
    %v8027 = vsub.s32 0, %v8026
    %v8028 = vrot.slane %v8023, %v8027
    %v8030 = vadd.f32 %v8020, %v8028
    %v8031 = vadd.f32 %v8021, %v8028
    %v8032 = vsel %vm264, %v8030, 0.0
    %8033 = vadd.xlane.f32.xlu0 %v8032
    %v8034 = vpop.xlane.xlu0 %8033
    %v8035 = vsel %vm264, %v8031, 0.0
    %8036 = vadd.xlane.f32.xlu0 %v8035
    %v8037 = vpop.xlane.xlu0 %8036
    %v8038 = vmul.f32 %v8034, %v1292
    %v8039 = vmul.f32 %v8037, %v1292
    %v8040 = vsub.f32 %v8030, %v8038
    %v8041 = vsub.f32 %v8031, %v8039
    %v8042 = vmul.f32 %v8040, %v8040
    %v8043 = vmul.f32 %v8041, %v8041
    %v8044 = vsel %vm264, %v8042, 0.0
    %8045 = vadd.xlane.f32.xlu0 %v8044
    %v8046 = vpop.xlane.xlu0 %8045
    %v8047 = vsel %vm264, %v8043, 0.0
    %8048 = vadd.xlane.f32.xlu0 %v8047
    %v8049 = vpop.xlane.xlu0 %8048
    %v8050 = vmul.f32 %v8046, %v1292
    %v8051 = vmul.f32 %v8049, %v1292
    %v8052 = vadd.f32 %v8050, 1e-05
    %v8053 = vadd.f32 %v8051, 1e-05
    %v8054 = vrsqrt.pop %v8052
    %v8055 = vrsqrt.pop %v8053
    %v8056 = vmul.f32 %v8040, %v8054
    %v8057 = vmul.f32 %v8041, %v8055
    %s8058 = scalar_lea.vmem %s12, 11
    %v8059 = vld [vmem:[%s8058] sm:$0x1]
    %v8061 = vlaneseq
    %v8062 = vshrl.u32 %v8061, 7
    %v8063 = vsub.s32 0, %v8062
    %v8064 = vrot.slane %v8059, %v8063
    %v8066 = vmul.f32 %v8056, %v8064
    %v8067 = vmul.f32 %v8057, %v8064
    %s8068 = scalar_lea.vmem %s13, 11
    %v8069 = vld [vmem:[%s8068] sm:$0x1]
    %v8071 = vlaneseq
    %v8072 = vshrl.u32 %v8071, 7
    %v8073 = vsub.s32 0, %v8072
    %v8074 = vrot.slane %v8069, %v8073
    %v8076 = vadd.f32 %v8066, %v8074
    %v8077 = vadd.f32 %v8067, %v8074
    %v8078 = vld [vmem:[%s14] sm:$0xff]
    %v8079 = vld [vmem:[%s14 + $0x8] sm:$0xff]
    %v8080 = vld [vmem:[%s14 + $0x10] sm:$0xff]
    %v8081 = vld [vmem:[%s14 + $0x18] sm:$0xff]
    %v8082 = vld [vmem:[%s15] sm:$0x1]
    %v8084 = vlaneseq
    %v8085 = vshrl.u32 %v8084, 7
    %v8086 = vsub.s32 0, %v8085
    %v8087 = vrot.slane %v8082, %v8086
    %v8090 = vsel %vm264, %v8076, 0
    %v8093 = vsel %vm264, %v8077, 0
    %8095 = vmatprep.subr.mxu0 0.0
    %8096 = vmatpush1.msra.mxu0 0.0
    %8097 = vmatprep.subr.mxu0 0.0
    %8098 = vmatpush1.msra.mxu0 0.0
    %8099 = vmatprep.subr.mxu0 0.0
    %8100 = vmatpush1.msra.mxu0 0.0
    %8101 = vmatprep.subr.mxu0 0.0
    %8102 = vmatpush1.msra.mxu0 0.0
    %8103 = vmatprep.subr.mxu0 0.0
    %8104 = vmatpush1.msra.mxu0 0.0
    %8105 = vmatprep.subr.mxu0 0.0
    %8106 = vmatpush1.msra.mxu0 0.0
    %8107 = vmatprep.subr.mxu0 0.0
    %8108 = vmatpush1.msra.mxu0 0.0
    %8109 = vmatprep.subr.mxu0 0.0
    %8110 = vmatpush1.msra.mxu0 0.0
    %8111 = vmatprep.subr.mxu0 0.0
    %8112 = vmatpush1.msra.mxu0 0.0
    %8113 = vmatprep.subr.mxu0 0.0
    %8114 = vmatpush1.msra.mxu0 0.0
    %8115 = vmatprep.subr.mxu0 0.0
    %8116 = vmatpush1.msra.mxu0 0.0
    %8117 = vmatprep.subr.mxu0 0.0
    %8118 = vmatpush1.msra.mxu0 0.0
    %8119 = vmatprep.subr.mxu0 0.0
    %8120 = vmatpush1.msra.mxu0 %v8081
    %8121 = vmatprep.subr.mxu0 0.0
    %8122 = vmatpush1.msra.mxu0 %v8080
    %8123 = vmatprep.subr.mxu0 0.0
    %8124 = vmatpush1.msra.mxu0 %v8079
    %8125 = vmatprep.subr.mxu0 0.0
    %8126 = vmatpush1.msra.mxu0 %v8078
    %8127 = vmatprep.subr.mxu0 0.0
    %8128 = vmatpush2.msra.mxu0 0.0
    %8129 = vmatprep.subr.mxu0 0.0
    %8130 = vmatpush2.msra.mxu0 0.0
    %8131 = vmatprep.subr.mxu0 0.0
    %8132 = vmatpush2.msra.mxu0 0.0
    %8133 = vmatprep.subr.mxu0 0.0
    %8134 = vmatpush2.msra.mxu0 0.0
    %8135 = vmatprep.subr.mxu0 0.0
    %8136 = vmatpush2.msra.mxu0 0.0
    %8137 = vmatprep.subr.mxu0 0.0
    %8138 = vmatpush2.msra.mxu0 0.0
    %8139 = vmatprep.subr.mxu0 0.0
    %8140 = vmatpush2.msra.mxu0 0.0
    %8141 = vmatprep.subr.mxu0 0.0
    %8142 = vmatpush2.msra.mxu0 0.0
    %8143 = vmatprep.subr.mxu0 0.0
    %8144 = vmatpush2.msra.mxu0 0.0
    %8145 = vmatprep.subr.mxu0 0.0
    %8146 = vmatpush2.msra.mxu0 0.0
    %8147 = vmatprep.subr.mxu0 0.0
    %8148 = vmatpush2.msra.mxu0 0.0
    %8149 = vmatprep.subr.mxu0 0.0
    %8150 = vmatpush2.msra.mxu0 0.0
    %8151 = vmatprep.subr.mxu0 0.0
    %8152 = vmatpush2.msra.mxu0 0.0
    %8153 = vmatprep.subr.mxu0 0.0
    %8154 = vmatpush2.msra.mxu0 0.0
    %8155 = vmatprep.subr.mxu0 0.0
    %8156 = vmatpush2.msra.mxu0 0.0
    %8157 = vmatprep.subr.mxu0 0.0
    %8158 = vmatpush2.msra.mxu0 0.0
    %8159 = vmatprep.mubr.f32.mxu0 0.0
    %8160 = vmatmul.mubr.f32.gmra.mxu0 %v8090
    %v8161 = vpop.f32.mrf.mxu0
    %v8162 = vadd.f32 %v8087, %v8161
    %v8163 = vpop.f32.mrf.mxu0
    %8164 = vmatprep.mubr.f32.mxu0 0.0
    %8165 = vmatmul.mubr.f32.gmra.mxu0 %v8093
    %v8166 = vpop.f32.mrf.mxu0
    %v8167 = vadd.f32 %v8087, %v8166
    %v8168 = vpop.f32.mrf.mxu0
    %8169 = vdwg.mxu0
    %8170 = vst [vmem:[#allocation10] sm:$0xff] %v8162
    %8171 = vst [vmem:[#allocation10 + $0x8] sm:$0xff] %v8167
    // Predicated region
    $region82: #{tpu_custom_call.1} parent=1 // pred_check
      _
    $region83: #{tpu_custom_call.1} parent=1 // pred_check_branch
      %8173 = sbr.rel (0) target = $region85
    $region84: #{tpu_custom_call.1} parent=1 // pred_region
      %s8175 = ssub.s32 256, 256
      %8176 = vsyncadd [#allocation4], %s8175
      %s8177 = sshll.u32 [#allocation10], 4
      %s8178 = int_to_ptr.vmem [resolvable:$true] %s8177
      %8183 = dma.vmem_to_hbm [thread:$0]  %s8178, 256, %s16, [#allocation4], 128, 128, 8
    $region85: #{tpu_custom_call.1} parent=1 // pred_fallthru
      _
    // Predicated region
    $region86: #{tpu_custom_call.1} parent=1 // pred_check
      _
    $region87: #{tpu_custom_call.1} parent=1 // pred_check_branch
      %8185 = sbr.rel (0) target = $region89
    $region88: #{tpu_custom_call.1} parent=1 // pred_region
      %8186 = dma.done [#allocation4], 256
    $region89: #{tpu_custom_call.1} parent=1 // pred_fallthru
      _
    %8187 = vsyncpa [#allocation3], 1
    %8188 = vsyncpa [#allocation6], 1
    %8189 = vsyncpa [#allocation9], 1
    %8190 = vsyncpa [#allocation4], 1

</llo_original>
